<compile_context>
chip_gen: v7x
topology: tpu7x:2x2x1
jax: 0.10.0
libtpu: 0.0.40
codegen_flags: <defaults>
</compile_context>

<pallas_src>
import functools

import jax
import jax.numpy as jnp
from jax.experimental import pallas as pl
from jax.experimental.pallas import tpu as pltpu


_VMEM_LIMIT = 32 * 1024 * 1024  # safe on v5e/v6e (128 MiB) and v7x (64 MiB physical)


# ---------------------------------------------------------------------------
# Kernels
# ---------------------------------------------------------------------------
def _upconv_rows_kernel(x_ref, w_ref, b_ref, o_ref):
    """ConvTranspose2d(k=2, s=2) for a tile of low-res rows, stored pre-interleaved.

    x_ref: (1, TH, W, Cin)        low-res activation rows
    w_ref: (Cin, 4*Cout)          columns ordered (di, dj, o)
    b_ref: (1, 4*Cout)
    o_ref: (1, 2*TH, W, 2*Cout)   row 2t+di holds phase di; lane index dj*Cout+o,
                                  i.e. exactly the (2*TH, 2*W, Cout) interleaved
                                  rows after a free reshape in the wrapper.
    """
    _, th, w, cin = x_ref.shape
    two_cout = o_ref.shape[-1]
    x = x_ref[...].reshape(th * w, cin)
    y = jnp.dot(x, w_ref[...], preferred_element_type=jnp.float32) + b_ref[...]
    for t in range(th):  # static unroll: two row-phase stores per low-res row
        row = y[t * w:(t + 1) * w, :]            # (W, 4*Cout)
        o_ref[0, 2 * t] = row[:, :two_cout]      # high-res row 2t   (di = 0)
        o_ref[0, 2 * t + 1] = row[:, two_cout:]  # high-res row 2t+1 (di = 1)


def _im2col(pad_ref, h, w, c):
    """Gather the 9 shifted taps from a zero-padded VMEM scratch into an
    (h*w, 9*c) im2col matrix; tap order (ky, kx) matches w.reshape(9*c, Cout)."""
    pieces = [pad_ref[pl.ds(ky, h), pl.ds(kx, w), :]
              for ky in range(3) for kx in range(3)]
    return jnp.concatenate(pieces, axis=-1).reshape(h * w, 9 * c)


def _conv3x3_relu_kernel(x_ref, w_ref, b_ref, o_ref, pad_ref):
    """3x3 / stride 1 / pad 1 conv + ReLU for one image; single K=9*Cin matmul.

    x_ref: (1, H, W, Cin); w_ref: (9*Cin, Cout); b_ref: (1, Cout)
    o_ref: (1, H*W, Cout); pad_ref (scratch): (H+2, W+2, Cin)
    """
    _, h, w, cin = x_ref.shape
    # in-kernel zero padding (no jnp.pad HBM round trip)
    pad_ref[...] = jnp.zeros_like(pad_ref)
    pad_ref[pl.ds(1, h), pl.ds(1, w), :] = x_ref[0]
    acc = jnp.dot(_im2col(pad_ref, h, w, cin), w_ref[...],
                  preferred_element_type=jnp.float32)
    acc = acc + b_ref[...]
    o_ref[0] = jnp.maximum(acc, 0.0)


def _conv3x3_relu_dual_kernel(up_ref, dn_ref, wu_ref, wd_ref, b_ref, o_ref,
                              up_pad, dn_pad):
    """conv1 with the channel concat fused away: two inputs, two weight slices,
    one f32 accumulator.  The concatenated tensor never touches HBM."""
    _, h, w, cu = up_ref.shape
    cd = dn_ref.shape[-1]
    up_pad[...] = jnp.zeros_like(up_pad)
    dn_pad[...] = jnp.zeros_like(dn_pad)
    up_pad[pl.ds(1, h), pl.ds(1, w), :] = up_ref[0]
    dn_pad[pl.ds(1, h), pl.ds(1, w), :] = dn_ref[0]
    acc = jnp.dot(_im2col(up_pad, h, w, cu), wu_ref[...],
                  preferred_element_type=jnp.float32)
    acc = acc + jnp.dot(_im2col(dn_pad, h, w, cd), wd_ref[...],
                        preferred_element_type=jnp.float32)
    acc = acc + b_ref[...]
    o_ref[0] = jnp.maximum(acc, 0.0)


# ---------------------------------------------------------------------------
# Pallas-backed ops
# ---------------------------------------------------------------------------
def _row_tile(h, w, max_elems=1024):
    """Largest divisor of h such that th*w <= max_elems (>=1)."""
    th = max(1, min(h, max_elems // max(w, 1)))
    while h % th:
        th -= 1
    return max(th, 1)


def upconv2x2_transpose(x_nhwc, w, b):
    """ConvTranspose2d(Cin, Cout, kernel_size=2, stride=2).

    w: (Cin, Cout, 2, 2) (PyTorch layout), b: (Cout,)
    y[n, 2i+di, 2j+dj, o] = sum_c x[n,i,j,c] * w[c,o,di,dj] + b[o]
    """
    n, h, wd, cin = x_nhwc.shape
    cout = w.shape[1]
    # (Cin, Cout, 2, 2) -> (Cin, di, dj, o) -> (Cin, 4*Cout); col = di*2*Cout + dj*Cout + o
    w_flat = jnp.transpose(w, (0, 2, 3, 1)).reshape(cin, 4 * cout)
    b_flat = jnp.tile(b, 4)[None, :]
    th = _row_tile(h, wd)

    flops = 2 * n * h * wd * cin * 4 * cout
    bytes_accessed = 4 * (n * h * wd * cin + cin * 4 * cout + 4 * cout
                          + n * 2 * h * 2 * wd * cout)

    y = pl.pallas_call(
        _upconv_rows_kernel,
        out_shape=jax.ShapeDtypeStruct((n, 2 * h, wd, 2 * cout), jnp.float32),
        grid=(n, h // th),
        in_specs=[
            pl.BlockSpec((1, th, wd, cin), lambda i, t: (i, t, 0, 0)),
            pl.BlockSpec((cin, 4 * cout), lambda i, t: (0, 0)),
            pl.BlockSpec((1, 4 * cout), lambda i, t: (0, 0)),
        ],
        out_specs=pl.BlockSpec((1, 2 * th, wd, 2 * cout), lambda i, t: (i, t, 0, 0)),
        compiler_params=pltpu.CompilerParams(
            dimension_semantics=("parallel", "parallel"),
            vmem_limit_bytes=_VMEM_LIMIT),
        cost_estimate=pl.CostEstimate(flops=flops, transcendentals=0,
                                      bytes_accessed=bytes_accessed),
    )(x_nhwc, w_flat, b_flat)
    # (N, 2H, W, 2*Cout) -> (N, 2H, 2W, Cout): contiguous (free) reshape, no transpose.
    return y.reshape(n, 2 * h, 2 * wd, cout)


def conv3x3_relu(x_nhwc, w_hwio, b):
    """3x3 conv, stride 1, padding 1, followed by ReLU.  w: (3,3,Cin,Cout)."""
    n, h, wd, cin = x_nhwc.shape
    cout = w_hwio.shape[-1]
    w_flat = w_hwio.reshape(9 * cin, cout)  # rows ordered (ky, kx, c)

    flops = 2 * n * h * wd * 9 * cin * cout
    bytes_accessed = 4 * (n * h * wd * (cin + cout) + 9 * cin * cout + cout)

    y = pl.pallas_call(
        _conv3x3_relu_kernel,
        out_shape=jax.ShapeDtypeStruct((n, h * wd, cout), jnp.float32),
        grid=(n,),
        in_specs=[
            pl.BlockSpec((1, h, wd, cin), lambda i: (i, 0, 0, 0)),
            pl.BlockSpec((9 * cin, cout), lambda i: (0, 0)),
            pl.BlockSpec((1, cout), lambda i: (0, 0)),
        ],
        out_specs=pl.BlockSpec((1, h * wd, cout), lambda i: (i, 0, 0)),
        scratch_shapes=[pltpu.VMEM((h + 2, wd + 2, cin), jnp.float32)],
        compiler_params=pltpu.CompilerParams(
            dimension_semantics=("parallel",), vmem_limit_bytes=_VMEM_LIMIT),
        cost_estimate=pl.CostEstimate(flops=flops, transcendentals=0,
                                      bytes_accessed=bytes_accessed),
    )(x_nhwc, w_flat, b[None, :])
    return y.reshape(n, h, wd, cout)


def conv3x3_relu_concat(up_nhwc, down_nhwc, w_hwio, b):
    """ReLU(conv3x3(concat([up, down], channels))) with the concat fused away.
    w_hwio: (3, 3, Cu + Cd, Cout) with up channels first (torch.cat order)."""
    n, h, wd, cu = up_nhwc.shape
    cd = down_nhwc.shape[-1]
    cout = w_hwio.shape[-1]
    wu = w_hwio[:, :, :cu, :].reshape(9 * cu, cout)
    wdn = w_hwio[:, :, cu:, :].reshape(9 * cd, cout)

    flops = 2 * n * h * wd * 9 * (cu + cd) * cout
    bytes_accessed = 4 * (n * h * wd * (cu + cd + cout) + 9 * (cu + cd) * cout + cout)

    y = pl.pallas_call(
        _conv3x3_relu_dual_kernel,
        out_shape=jax.ShapeDtypeStruct((n, h * wd, cout), jnp.float32),
        grid=(n,),
        in_specs=[
            pl.BlockSpec((1, h, wd, cu), lambda i: (i, 0, 0, 0)),
            pl.BlockSpec((1, h, wd, cd), lambda i: (i, 0, 0, 0)),
            pl.BlockSpec((9 * cu, cout), lambda i: (0, 0)),
            pl.BlockSpec((9 * cd, cout), lambda i: (0, 0)),
            pl.BlockSpec((1, cout), lambda i: (0, 0)),
        ],
        out_specs=pl.BlockSpec((1, h * wd, cout), lambda i: (i, 0, 0)),
        scratch_shapes=[pltpu.VMEM((h + 2, wd + 2, cu), jnp.float32),
                        pltpu.VMEM((h + 2, wd + 2, cd), jnp.float32)],
        compiler_params=pltpu.CompilerParams(
            dimension_semantics=("parallel",), vmem_limit_bytes=_VMEM_LIMIT),
        cost_estimate=pl.CostEstimate(flops=flops, transcendentals=0,
                                      bytes_accessed=bytes_accessed),
    )(up_nhwc, down_nhwc, wu, wdn, b[None, :])
    return y.reshape(n, h, wd, cout)


# ---------------------------------------------------------------------------
# UpConv forward (matches the PyTorch module, merge_mode='concat',
# up_mode='transpose')
# ---------------------------------------------------------------------------
@functools.partial(jax.jit, static_argnames=("merge_mode",))
def upconv_forward(from_down_nchw, from_up_nchw, params, merge_mode="concat"):
    from_down = jnp.transpose(from_down_nchw, (0, 2, 3, 1)).astype(jnp.float32)
    from_up = jnp.transpose(from_up_nchw, (0, 2, 3, 1)).astype(jnp.float32)

    up = upconv2x2_transpose(from_up, params["up_w"], params["up_b"])
    if merge_mode == "concat":
        # torch.cat((from_up, from_down), dim=1) fused into conv1 (no HBM concat).
        x = conv3x3_relu_concat(up, from_down, params["conv1_w"], params["conv1_b"])
    else:
        x = conv3x3_relu(up + from_down, params["conv1_w"], params["conv1_b"])
    x = conv3x3_relu(x, params["conv2_w"], params["conv2_b"])
    return jnp.transpose(x, (0, 3, 1, 2))  # back to NCHW


# ---------------------------------------------------------------------------
# Pure-JAX reference (for correctness check)
# ---------------------------------------------------------------------------
def upconv_forward_ref(from_down_nchw, from_up_nchw, params):
    fd = jnp.transpose(from_down_nchw, (0, 2, 3, 1)).astype(jnp.float32)
    fu = jnp.transpose(from_up_nchw, (0, 2, 3, 1)).astype(jnp.float32)
    n, h, w, _ = fu.shape
    cout = params["up_w"].shape[1]
    t = jnp.einsum("nhwc,cokl->nhkwlo", fu, params["up_w"])
    up = t.reshape(n, 2 * h, 2 * w, cout) + params["up_b"]
    x = jnp.concatenate([up, fd], axis=-1)

    def conv(x, wt, b):
        y = jax.lax.conv_general_dilated(
            x, wt, (1, 1), "SAME",
            dimension_numbers=("NHWC", "HWIO", "NHWC"))
        return jax.nn.relu(y + b)

    x = conv(x, params["conv1_w"], params["conv1_b"])
    x = conv(x, params["conv2_w"], params["conv2_b"])
    return jnp.transpose(x, (0, 3, 1, 2))


# ---------------------------------------------------------------------------
# Main
# ---------------------------------------------------------------------------
if __name__ == "__main__":
    key = jax.random.PRNGKey(0)
    keys = jax.random.split(key, 8)

    N = 2
    in_channels = 8    # decoder-side channels (from_up)
    out_channels = 4   # module output channels
    Hs, Ws = 8, 8      # from_up spatial; from_down is 2x (16, 16)

    params = {
        # ConvTranspose2d(in_channels, out_channels, 2, stride=2): (Cin, Cout, 2, 2)
        "up_w": 0.1 * jax.random.normal(keys[0], (in_channels, out_channels, 2, 2), jnp.float32),
        "up_b": 0.1 * jax.random.normal(keys[1], (out_channels,), jnp.float32),
        # conv1: Conv2d(2*out_channels, out_channels, 3, pad=1)  (HWIO)
        "conv1_w": 0.1 * jax.random.normal(keys[2], (3, 3, 2 * out_channels, out_channels), jnp.float32),
        "conv1_b": 0.1 * jax.random.normal(keys[3], (out_channels,), jnp.float32),
        # conv2: Conv2d(out_channels, out_channels, 3, pad=1)  (HWIO)
        "conv2_w": 0.1 * jax.random.normal(keys[4], (3, 3, out_channels, out_channels), jnp.float32),
        "conv2_b": 0.1 * jax.random.normal(keys[5], (out_channels,), jnp.float32),
    }

    from_up = jax.random.normal(keys[6], (N, in_channels, Hs, Ws), jnp.float32)             # NCHW
    from_down = jax.random.normal(keys[7], (N, out_channels, 2 * Hs, 2 * Ws), jnp.float32)  # NCHW

    out = upconv_forward(from_down, from_up, params)
    out = jax.block_until_ready(out)

    ref = upconv_forward_ref(from_down, from_up, params)
    assert out.shape == (N, out_channels, 2 * Hs, 2 * Ws), out.shape
    assert jnp.allclose(out, ref, rtol=1e-4, atol=1e-4), float(jnp.max(jnp.abs(out - ref)))

    print("KERNEL_OK")
</pallas_src>

<mosaic_0001>
module attributes {stable_mosaic.version = 11 : i64} {
  func.func @_upconv_rows_kernel(%arg0: i32, %arg1: i32, %arg2: memref<1x8x8x8xf32, #tpu.memory_space<vmem>>, %arg3: memref<8x16xf32, #tpu.memory_space<vmem>>, %arg4: memref<1x16xf32, #tpu.memory_space<vmem>>, %arg5: memref<1x16x8x8xf32, #tpu.memory_space<vmem>>) attributes {dimension_semantics = [#tpu.dimension_semantics<parallel>, #tpu.dimension_semantics<parallel>], iteration_bounds = array<i64: 2, 1>, scalar_prefetch = 0 : i64, scratch_operands = 0 : i64, tpu.core_type = #tpu.core_type<tc>, window_params = [{transform_indices = @transform_0, window_bounds = array<i64: 1, 8, 8, 8>}, {pipeline_mode = #tpu.pipeline_mode<synchronous>, transform_indices = @transform_1, window_bounds = array<i64: 8, 16>}, {pipeline_mode = #tpu.pipeline_mode<synchronous>, transform_indices = @transform_2, window_bounds = array<i64: 1, 16>}, {transform_indices = @transform_3, window_bounds = array<i64: 1, 16, 8, 8>}]} {
    %c0 = arith.constant 0 : index
    %c0_0 = arith.constant 0 : index
    %c0_1 = arith.constant 0 : index
    %c0_2 = arith.constant 0 : index
    %0 = vector.load %arg2[%c0, %c0_0, %c0_1, %c0_2] : memref<1x8x8x8xf32, #tpu.memory_space<vmem>>, vector<1x8x8x8xf32>
    %1 = vector.shape_cast %0 : vector<1x8x8x8xf32> to vector<64x8xf32>
    %c0_3 = arith.constant 0 : index
    %c0_4 = arith.constant 0 : index
    %2 = vector.load %arg3[%c0_3, %c0_4] : memref<8x16xf32, #tpu.memory_space<vmem>>, vector<8x16xf32>
    %cst = arith.constant dense<0.000000e+00> : vector<64x16xf32>
    %3 = tpu.matmul %1, %2, %cst {dimension_numbers = #tpu.dot_dimension_numbers<[1], [0], [0], [1], [0, 0, 1, 1], [], []>} : vector<64x8xf32>, vector<8x16xf32>, vector<64x16xf32> -> vector<64x16xf32>
    %c0_5 = arith.constant 0 : index
    %c0_6 = arith.constant 0 : index
    %4 = vector.load %arg4[%c0_5, %c0_6] : memref<1x16xf32, #tpu.memory_space<vmem>>, vector<1x16xf32>
    %5 = vector.broadcast %4 : vector<1x16xf32> to vector<64x16xf32>
    %6 = arith.addf %3, %5 : vector<64x16xf32>
    %7 = vector.extract_strided_slice %6 {offsets = [0, 0], sizes = [8, 16], strides = [1, 1]} : vector<64x16xf32> to vector<8x16xf32>
    %8 = vector.extract_strided_slice %7 {offsets = [0, 0], sizes = [8, 8], strides = [1, 1]} : vector<8x16xf32> to vector<8x8xf32>
    %c0_7 = arith.constant 0 : index
    %c0_8 = arith.constant 0 : index
    %c0_9 = arith.constant 0 : index
    %c0_10 = arith.constant 0 : index
    %9 = vector.load %arg5[%c0_7, %c0_8, %c0_9, %c0_10] : memref<1x16x8x8xf32, #tpu.memory_space<vmem>>, vector<1x1x8x8xf32>
    %10 = vector.shape_cast %9 : vector<1x1x8x8xf32> to vector<8x8xf32>
    %11 = vector.shape_cast %8 : vector<8x8xf32> to vector<1x1x8x8xf32>
    tpu.vector_store %arg5[%c0_7, %c0_8, %c0_9, %c0_10], %11 {strides = array<i32>} : memref<1x16x8x8xf32, #tpu.memory_space<vmem>>, vector<1x1x8x8xf32>,
    %12 = vector.extract_strided_slice %7 {offsets = [0, 8], sizes = [8, 8], strides = [1, 1]} : vector<8x16xf32> to vector<8x8xf32>
    %c0_11 = arith.constant 0 : index
    %c1 = arith.constant 1 : index
    %c0_12 = arith.constant 0 : index
    %c0_13 = arith.constant 0 : index
    %13 = vector.load %arg5[%c0_11, %c1, %c0_12, %c0_13] : memref<1x16x8x8xf32, #tpu.memory_space<vmem>>, vector<1x1x8x8xf32>
    %14 = vector.shape_cast %13 : vector<1x1x8x8xf32> to vector<8x8xf32>
    %15 = vector.shape_cast %12 : vector<8x8xf32> to vector<1x1x8x8xf32>
    tpu.vector_store %arg5[%c0_11, %c1, %c0_12, %c0_13], %15 {strides = array<i32>} : memref<1x16x8x8xf32, #tpu.memory_space<vmem>>, vector<1x1x8x8xf32>,
    %16 = vector.extract_strided_slice %6 {offsets = [8, 0], sizes = [8, 16], strides = [1, 1]} : vector<64x16xf32> to vector<8x16xf32>
    %17 = vector.extract_strided_slice %16 {offsets = [0, 0], sizes = [8, 8], strides = [1, 1]} : vector<8x16xf32> to vector<8x8xf32>
    %c0_14 = arith.constant 0 : index
    %c2 = arith.constant 2 : index
    %c0_15 = arith.constant 0 : index
    %c0_16 = arith.constant 0 : index
    %18 = vector.load %arg5[%c0_14, %c2, %c0_15, %c0_16] : memref<1x16x8x8xf32, #tpu.memory_space<vmem>>, vector<1x1x8x8xf32>
    %19 = vector.shape_cast %18 : vector<1x1x8x8xf32> to vector<8x8xf32>
    %20 = vector.shape_cast %17 : vector<8x8xf32> to vector<1x1x8x8xf32>
    tpu.vector_store %arg5[%c0_14, %c2, %c0_15, %c0_16], %20 {strides = array<i32>} : memref<1x16x8x8xf32, #tpu.memory_space<vmem>>, vector<1x1x8x8xf32>,
    %21 = vector.extract_strided_slice %16 {offsets = [0, 8], sizes = [8, 8], strides = [1, 1]} : vector<8x16xf32> to vector<8x8xf32>
    %c0_17 = arith.constant 0 : index
    %c3 = arith.constant 3 : index
    %c0_18 = arith.constant 0 : index
    %c0_19 = arith.constant 0 : index
    %22 = vector.load %arg5[%c0_17, %c3, %c0_18, %c0_19] : memref<1x16x8x8xf32, #tpu.memory_space<vmem>>, vector<1x1x8x8xf32>
    %23 = vector.shape_cast %22 : vector<1x1x8x8xf32> to vector<8x8xf32>
    %24 = vector.shape_cast %21 : vector<8x8xf32> to vector<1x1x8x8xf32>
    tpu.vector_store %arg5[%c0_17, %c3, %c0_18, %c0_19], %24 {strides = array<i32>} : memref<1x16x8x8xf32, #tpu.memory_space<vmem>>, vector<1x1x8x8xf32>,
    %25 = vector.extract_strided_slice %6 {offsets = [16, 0], sizes = [8, 16], strides = [1, 1]} : vector<64x16xf32> to vector<8x16xf32>
    %26 = vector.extract_strided_slice %25 {offsets = [0, 0], sizes = [8, 8], strides = [1, 1]} : vector<8x16xf32> to vector<8x8xf32>
    %c0_20 = arith.constant 0 : index
    %c4 = arith.constant 4 : index
    %c0_21 = arith.constant 0 : index
    %c0_22 = arith.constant 0 : index
    %27 = vector.load %arg5[%c0_20, %c4, %c0_21, %c0_22] : memref<1x16x8x8xf32, #tpu.memory_space<vmem>>, vector<1x1x8x8xf32>
    %28 = vector.shape_cast %27 : vector<1x1x8x8xf32> to vector<8x8xf32>
    %29 = vector.shape_cast %26 : vector<8x8xf32> to vector<1x1x8x8xf32>
    tpu.vector_store %arg5[%c0_20, %c4, %c0_21, %c0_22], %29 {strides = array<i32>} : memref<1x16x8x8xf32, #tpu.memory_space<vmem>>, vector<1x1x8x8xf32>,
    %30 = vector.extract_strided_slice %25 {offsets = [0, 8], sizes = [8, 8], strides = [1, 1]} : vector<8x16xf32> to vector<8x8xf32>
    %c0_23 = arith.constant 0 : index
    %c5 = arith.constant 5 : index
    %c0_24 = arith.constant 0 : index
    %c0_25 = arith.constant 0 : index
    %31 = vector.load %arg5[%c0_23, %c5, %c0_24, %c0_25] : memref<1x16x8x8xf32, #tpu.memory_space<vmem>>, vector<1x1x8x8xf32>
    %32 = vector.shape_cast %31 : vector<1x1x8x8xf32> to vector<8x8xf32>
    %33 = vector.shape_cast %30 : vector<8x8xf32> to vector<1x1x8x8xf32>
    tpu.vector_store %arg5[%c0_23, %c5, %c0_24, %c0_25], %33 {strides = array<i32>} : memref<1x16x8x8xf32, #tpu.memory_space<vmem>>, vector<1x1x8x8xf32>,
    %34 = vector.extract_strided_slice %6 {offsets = [24, 0], sizes = [8, 16], strides = [1, 1]} : vector<64x16xf32> to vector<8x16xf32>
    %35 = vector.extract_strided_slice %34 {offsets = [0, 0], sizes = [8, 8], strides = [1, 1]} : vector<8x16xf32> to vector<8x8xf32>
    %c0_26 = arith.constant 0 : index
    %c6 = arith.constant 6 : index
    %c0_27 = arith.constant 0 : index
    %c0_28 = arith.constant 0 : index
    %36 = vector.load %arg5[%c0_26, %c6, %c0_27, %c0_28] : memref<1x16x8x8xf32, #tpu.memory_space<vmem>>, vector<1x1x8x8xf32>
    %37 = vector.shape_cast %36 : vector<1x1x8x8xf32> to vector<8x8xf32>
    %38 = vector.shape_cast %35 : vector<8x8xf32> to vector<1x1x8x8xf32>
    tpu.vector_store %arg5[%c0_26, %c6, %c0_27, %c0_28], %38 {strides = array<i32>} : memref<1x16x8x8xf32, #tpu.memory_space<vmem>>, vector<1x1x8x8xf32>,
    %39 = vector.extract_strided_slice %34 {offsets = [0, 8], sizes = [8, 8], strides = [1, 1]} : vector<8x16xf32> to vector<8x8xf32>
    %c0_29 = arith.constant 0 : index
    %c7 = arith.constant 7 : index
    %c0_30 = arith.constant 0 : index
    %c0_31 = arith.constant 0 : index
    %40 = vector.load %arg5[%c0_29, %c7, %c0_30, %c0_31] : memref<1x16x8x8xf32, #tpu.memory_space<vmem>>, vector<1x1x8x8xf32>
    %41 = vector.shape_cast %40 : vector<1x1x8x8xf32> to vector<8x8xf32>
    %42 = vector.shape_cast %39 : vector<8x8xf32> to vector<1x1x8x8xf32>
    tpu.vector_store %arg5[%c0_29, %c7, %c0_30, %c0_31], %42 {strides = array<i32>} : memref<1x16x8x8xf32, #tpu.memory_space<vmem>>, vector<1x1x8x8xf32>,
    %43 = vector.extract_strided_slice %6 {offsets = [32, 0], sizes = [8, 16], strides = [1, 1]} : vector<64x16xf32> to vector<8x16xf32>
    %44 = vector.extract_strided_slice %43 {offsets = [0, 0], sizes = [8, 8], strides = [1, 1]} : vector<8x16xf32> to vector<8x8xf32>
    %c0_32 = arith.constant 0 : index
    %c8 = arith.constant 8 : index
    %c0_33 = arith.constant 0 : index
    %c0_34 = arith.constant 0 : index
    %45 = vector.load %arg5[%c0_32, %c8, %c0_33, %c0_34] : memref<1x16x8x8xf32, #tpu.memory_space<vmem>>, vector<1x1x8x8xf32>
    %46 = vector.shape_cast %45 : vector<1x1x8x8xf32> to vector<8x8xf32>
    %47 = vector.shape_cast %44 : vector<8x8xf32> to vector<1x1x8x8xf32>
    tpu.vector_store %arg5[%c0_32, %c8, %c0_33, %c0_34], %47 {strides = array<i32>} : memref<1x16x8x8xf32, #tpu.memory_space<vmem>>, vector<1x1x8x8xf32>,
    %48 = vector.extract_strided_slice %43 {offsets = [0, 8], sizes = [8, 8], strides = [1, 1]} : vector<8x16xf32> to vector<8x8xf32>
    %c0_35 = arith.constant 0 : index
    %c9 = arith.constant 9 : index
    %c0_36 = arith.constant 0 : index
    %c0_37 = arith.constant 0 : index
    %49 = vector.load %arg5[%c0_35, %c9, %c0_36, %c0_37] : memref<1x16x8x8xf32, #tpu.memory_space<vmem>>, vector<1x1x8x8xf32>
    %50 = vector.shape_cast %49 : vector<1x1x8x8xf32> to vector<8x8xf32>
    %51 = vector.shape_cast %48 : vector<8x8xf32> to vector<1x1x8x8xf32>
    tpu.vector_store %arg5[%c0_35, %c9, %c0_36, %c0_37], %51 {strides = array<i32>} : memref<1x16x8x8xf32, #tpu.memory_space<vmem>>, vector<1x1x8x8xf32>,
    %52 = vector.extract_strided_slice %6 {offsets = [40, 0], sizes = [8, 16], strides = [1, 1]} : vector<64x16xf32> to vector<8x16xf32>
    %53 = vector.extract_strided_slice %52 {offsets = [0, 0], sizes = [8, 8], strides = [1, 1]} : vector<8x16xf32> to vector<8x8xf32>
    %c0_38 = arith.constant 0 : index
    %c10 = arith.constant 10 : index
    %c0_39 = arith.constant 0 : index
    %c0_40 = arith.constant 0 : index
    %54 = vector.load %arg5[%c0_38, %c10, %c0_39, %c0_40] : memref<1x16x8x8xf32, #tpu.memory_space<vmem>>, vector<1x1x8x8xf32>
    %55 = vector.shape_cast %54 : vector<1x1x8x8xf32> to vector<8x8xf32>
    %56 = vector.shape_cast %53 : vector<8x8xf32> to vector<1x1x8x8xf32>
    tpu.vector_store %arg5[%c0_38, %c10, %c0_39, %c0_40], %56 {strides = array<i32>} : memref<1x16x8x8xf32, #tpu.memory_space<vmem>>, vector<1x1x8x8xf32>,
    %57 = vector.extract_strided_slice %52 {offsets = [0, 8], sizes = [8, 8], strides = [1, 1]} : vector<8x16xf32> to vector<8x8xf32>
    %c0_41 = arith.constant 0 : index
    %c11 = arith.constant 11 : index
    %c0_42 = arith.constant 0 : index
    %c0_43 = arith.constant 0 : index
    %58 = vector.load %arg5[%c0_41, %c11, %c0_42, %c0_43] : memref<1x16x8x8xf32, #tpu.memory_space<vmem>>, vector<1x1x8x8xf32>
    %59 = vector.shape_cast %58 : vector<1x1x8x8xf32> to vector<8x8xf32>
    %60 = vector.shape_cast %57 : vector<8x8xf32> to vector<1x1x8x8xf32>
    tpu.vector_store %arg5[%c0_41, %c11, %c0_42, %c0_43], %60 {strides = array<i32>} : memref<1x16x8x8xf32, #tpu.memory_space<vmem>>, vector<1x1x8x8xf32>,
    %61 = vector.extract_strided_slice %6 {offsets = [48, 0], sizes = [8, 16], strides = [1, 1]} : vector<64x16xf32> to vector<8x16xf32>
    %62 = vector.extract_strided_slice %61 {offsets = [0, 0], sizes = [8, 8], strides = [1, 1]} : vector<8x16xf32> to vector<8x8xf32>
    %c0_44 = arith.constant 0 : index
    %c12 = arith.constant 12 : index
    %c0_45 = arith.constant 0 : index
    %c0_46 = arith.constant 0 : index
    %63 = vector.load %arg5[%c0_44, %c12, %c0_45, %c0_46] : memref<1x16x8x8xf32, #tpu.memory_space<vmem>>, vector<1x1x8x8xf32>
    %64 = vector.shape_cast %63 : vector<1x1x8x8xf32> to vector<8x8xf32>
    %65 = vector.shape_cast %62 : vector<8x8xf32> to vector<1x1x8x8xf32>
    tpu.vector_store %arg5[%c0_44, %c12, %c0_45, %c0_46], %65 {strides = array<i32>} : memref<1x16x8x8xf32, #tpu.memory_space<vmem>>, vector<1x1x8x8xf32>,
    %66 = vector.extract_strided_slice %61 {offsets = [0, 8], sizes = [8, 8], strides = [1, 1]} : vector<8x16xf32> to vector<8x8xf32>
    %c0_47 = arith.constant 0 : index
    %c13 = arith.constant 13 : index
    %c0_48 = arith.constant 0 : index
    %c0_49 = arith.constant 0 : index
    %67 = vector.load %arg5[%c0_47, %c13, %c0_48, %c0_49] : memref<1x16x8x8xf32, #tpu.memory_space<vmem>>, vector<1x1x8x8xf32>
    %68 = vector.shape_cast %67 : vector<1x1x8x8xf32> to vector<8x8xf32>
    %69 = vector.shape_cast %66 : vector<8x8xf32> to vector<1x1x8x8xf32>
    tpu.vector_store %arg5[%c0_47, %c13, %c0_48, %c0_49], %69 {strides = array<i32>} : memref<1x16x8x8xf32, #tpu.memory_space<vmem>>, vector<1x1x8x8xf32>,
    %70 = vector.extract_strided_slice %6 {offsets = [56, 0], sizes = [8, 16], strides = [1, 1]} : vector<64x16xf32> to vector<8x16xf32>
    %71 = vector.extract_strided_slice %70 {offsets = [0, 0], sizes = [8, 8], strides = [1, 1]} : vector<8x16xf32> to vector<8x8xf32>
    %c0_50 = arith.constant 0 : index
    %c14 = arith.constant 14 : index
    %c0_51 = arith.constant 0 : index
    %c0_52 = arith.constant 0 : index
    %72 = vector.load %arg5[%c0_50, %c14, %c0_51, %c0_52] : memref<1x16x8x8xf32, #tpu.memory_space<vmem>>, vector<1x1x8x8xf32>
    %73 = vector.shape_cast %72 : vector<1x1x8x8xf32> to vector<8x8xf32>
    %74 = vector.shape_cast %71 : vector<8x8xf32> to vector<1x1x8x8xf32>
    tpu.vector_store %arg5[%c0_50, %c14, %c0_51, %c0_52], %74 {strides = array<i32>} : memref<1x16x8x8xf32, #tpu.memory_space<vmem>>, vector<1x1x8x8xf32>,
    %75 = vector.extract_strided_slice %70 {offsets = [0, 8], sizes = [8, 8], strides = [1, 1]} : vector<8x16xf32> to vector<8x8xf32>
    %c0_53 = arith.constant 0 : index
    %c15 = arith.constant 15 : index
    %c0_54 = arith.constant 0 : index
    %c0_55 = arith.constant 0 : index
    %76 = vector.load %arg5[%c0_53, %c15, %c0_54, %c0_55] : memref<1x16x8x8xf32, #tpu.memory_space<vmem>>, vector<1x1x8x8xf32>
    %77 = vector.shape_cast %76 : vector<1x1x8x8xf32> to vector<8x8xf32>
    %78 = vector.shape_cast %75 : vector<8x8xf32> to vector<1x1x8x8xf32>
    tpu.vector_store %arg5[%c0_53, %c15, %c0_54, %c0_55], %78 {strides = array<i32>} : memref<1x16x8x8xf32, #tpu.memory_space<vmem>>, vector<1x1x8x8xf32>,
    return
  }
  func.func @transform_0(%arg0: i32, %arg1: i32) -> (i32, i32, i32, i32) {
    %c0_i32 = arith.constant 0 : i32
    %c0_i32_0 = arith.constant 0 : i32
    %c0_i32_1 = arith.constant 0 : i32
    return %arg0, %arg1, %c0_i32, %c0_i32_0 : i32, i32, i32, i32
  }
  func.func @transform_1(%arg0: i32, %arg1: i32) -> (i32, i32) {
    %c0_i32 = arith.constant 0 : i32
    %c0_i32_0 = arith.constant 0 : i32
    %c0_i32_1 = arith.constant 0 : i32
    return %c0_i32, %c0_i32_0 : i32, i32
  }
  func.func @transform_2(%arg0: i32, %arg1: i32) -> (i32, i32) {
    %c0_i32 = arith.constant 0 : i32
    %c0_i32_0 = arith.constant 0 : i32
    %c0_i32_1 = arith.constant 0 : i32
    return %c0_i32, %c0_i32_0 : i32, i32
  }
  func.func @transform_3(%arg0: i32, %arg1: i32) -> (i32, i32, i32, i32) {
    %c0_i32 = arith.constant 0 : i32
    %c0_i32_0 = arith.constant 0 : i32
    %c0_i32_1 = arith.constant 0 : i32
    return %arg0, %arg1, %c0_i32, %c0_i32_0 : i32, i32, i32, i32
  }
}

module attributes {stable_mosaic.version = 11 : i64} {
  func.func @_conv3x3_relu_dual_kernel(%arg0: i32, %arg1: memref<1x16x16x4xf32, #tpu.memory_space<vmem>>, %arg2: memref<1x16x16x4xf32, #tpu.memory_space<vmem>>, %arg3: memref<36x4xf32, #tpu.memory_space<vmem>>, %arg4: memref<36x4xf32, #tpu.memory_space<vmem>>, %arg5: memref<1x4xf32, #tpu.memory_space<vmem>>, %arg6: memref<1x256x4xf32, #tpu.memory_space<vmem>>, %arg7: memref<18x18x4xf32, #tpu.memory_space<vmem>>, %arg8: memref<18x18x4xf32, #tpu.memory_space<vmem>>) attributes {dimension_semantics = [#tpu.dimension_semantics<parallel>], iteration_bounds = array<i64: 2>, scalar_prefetch = 0 : i64, scratch_operands = 2 : i64, tpu.core_type = #tpu.core_type<tc>, window_params = [{transform_indices = @transform_0, window_bounds = array<i64: 1, 16, 16, 4>}, {transform_indices = @transform_1, window_bounds = array<i64: 1, 16, 16, 4>}, {pipeline_mode = #tpu.pipeline_mode<synchronous>, transform_indices = @transform_2, window_bounds = array<i64: 36, 4>}, {pipeline_mode = #tpu.pipeline_mode<synchronous>, transform_indices = @transform_3, window_bounds = array<i64: 36, 4>}, {pipeline_mode = #tpu.pipeline_mode<synchronous>, transform_indices = @transform_4, window_bounds = array<i64: 1, 4>}, {transform_indices = @transform_5, window_bounds = array<i64: 1, 256, 4>}]} {
    %cst = arith.constant 0.000000e+00 : f32
    %0 = vector.broadcast %cst : f32 to vector<18x18x4xf32>
    %c0 = arith.constant 0 : index
    %c0_0 = arith.constant 0 : index
    %c0_1 = arith.constant 0 : index
    %1 = vector.load %arg7[%c0, %c0_0, %c0_1] : memref<18x18x4xf32, #tpu.memory_space<vmem>>, vector<18x18x4xf32>
    tpu.vector_store %arg7[%c0, %c0_0, %c0_1], %0 {strides = array<i32>} : memref<18x18x4xf32, #tpu.memory_space<vmem>>, vector<18x18x4xf32>,
    %cst_2 = arith.constant 0.000000e+00 : f32
    %2 = vector.broadcast %cst_2 : f32 to vector<18x18x4xf32>
    %c0_3 = arith.constant 0 : index
    %c0_4 = arith.constant 0 : index
    %c0_5 = arith.constant 0 : index
    %3 = vector.load %arg8[%c0_3, %c0_4, %c0_5] : memref<18x18x4xf32, #tpu.memory_space<vmem>>, vector<18x18x4xf32>
    tpu.vector_store %arg8[%c0_3, %c0_4, %c0_5], %2 {strides = array<i32>} : memref<18x18x4xf32, #tpu.memory_space<vmem>>, vector<18x18x4xf32>,
    %c0_6 = arith.constant 0 : index
    %c0_7 = arith.constant 0 : index
    %c0_8 = arith.constant 0 : index
    %c0_9 = arith.constant 0 : index
    %4 = vector.load %arg1[%c0_6, %c0_7, %c0_8, %c0_9] : memref<1x16x16x4xf32, #tpu.memory_space<vmem>>, vector<1x16x16x4xf32>
    %5 = vector.shape_cast %4 : vector<1x16x16x4xf32> to vector<16x16x4xf32>
    %c1 = arith.constant 1 : index
    %c1_10 = arith.constant 1 : index
    %c0_11 = arith.constant 0 : index
    %6 = vector.load %arg7[%c1, %c1_10, %c0_11] : memref<18x18x4xf32, #tpu.memory_space<vmem>>, vector<16x16x4xf32>
    tpu.vector_store %arg7[%c1, %c1_10, %c0_11], %5 {strides = array<i32>} : memref<18x18x4xf32, #tpu.memory_space<vmem>>, vector<16x16x4xf32>,
    %c0_12 = arith.constant 0 : index
    %c0_13 = arith.constant 0 : index
    %c0_14 = arith.constant 0 : index
    %c0_15 = arith.constant 0 : index
    %7 = vector.load %arg2[%c0_12, %c0_13, %c0_14, %c0_15] : memref<1x16x16x4xf32, #tpu.memory_space<vmem>>, vector<1x16x16x4xf32>
    %8 = vector.shape_cast %7 : vector<1x16x16x4xf32> to vector<16x16x4xf32>
    %c1_16 = arith.constant 1 : index
    %c1_17 = arith.constant 1 : index
    %c0_18 = arith.constant 0 : index
    %9 = vector.load %arg8[%c1_16, %c1_17, %c0_18] : memref<18x18x4xf32, #tpu.memory_space<vmem>>, vector<16x16x4xf32>
    tpu.vector_store %arg8[%c1_16, %c1_17, %c0_18], %8 {strides = array<i32>} : memref<18x18x4xf32, #tpu.memory_space<vmem>>, vector<16x16x4xf32>,
    %c0_19 = arith.constant 0 : index
    %c0_20 = arith.constant 0 : index
    %c0_21 = arith.constant 0 : index
    %10 = vector.load %arg7[%c0_19, %c0_20, %c0_21] : memref<18x18x4xf32, #tpu.memory_space<vmem>>, vector<16x16x4xf32>
    %c0_22 = arith.constant 0 : index
    %c1_23 = arith.constant 1 : index
    %c0_24 = arith.constant 0 : index
    %11 = vector.load %arg7[%c0_22, %c1_23, %c0_24] : memref<18x18x4xf32, #tpu.memory_space<vmem>>, vector<16x16x4xf32>
    %c0_25 = arith.constant 0 : index
    %c2 = arith.constant 2 : index
    %c0_26 = arith.constant 0 : index
    %12 = vector.load %arg7[%c0_25, %c2, %c0_26] : memref<18x18x4xf32, #tpu.memory_space<vmem>>, vector<16x16x4xf32>
    %c1_27 = arith.constant 1 : index
    %c0_28 = arith.constant 0 : index
    %c0_29 = arith.constant 0 : index
    %13 = vector.load %arg7[%c1_27, %c0_28, %c0_29] : memref<18x18x4xf32, #tpu.memory_space<vmem>>, vector<16x16x4xf32>
    %c1_30 = arith.constant 1 : index
    %c1_31 = arith.constant 1 : index
    %c0_32 = arith.constant 0 : index
    %14 = vector.load %arg7[%c1_30, %c1_31, %c0_32] : memref<18x18x4xf32, #tpu.memory_space<vmem>>, vector<16x16x4xf32>
    %c1_33 = arith.constant 1 : index
    %c2_34 = arith.constant 2 : index
    %c0_35 = arith.constant 0 : index
    %15 = vector.load %arg7[%c1_33, %c2_34, %c0_35] : memref<18x18x4xf32, #tpu.memory_space<vmem>>, vector<16x16x4xf32>
    %c2_36 = arith.constant 2 : index
    %c0_37 = arith.constant 0 : index
    %c0_38 = arith.constant 0 : index
    %16 = vector.load %arg7[%c2_36, %c0_37, %c0_38] : memref<18x18x4xf32, #tpu.memory_space<vmem>>, vector<16x16x4xf32>
    %c2_39 = arith.constant 2 : index
    %c1_40 = arith.constant 1 : index
    %c0_41 = arith.constant 0 : index
    %17 = vector.load %arg7[%c2_39, %c1_40, %c0_41] : memref<18x18x4xf32, #tpu.memory_space<vmem>>, vector<16x16x4xf32>
    %c2_42 = arith.constant 2 : index
    %c2_43 = arith.constant 2 : index
    %c0_44 = arith.constant 0 : index
    %18 = vector.load %arg7[%c2_42, %c2_43, %c0_44] : memref<18x18x4xf32, #tpu.memory_space<vmem>>, vector<16x16x4xf32>
    %19 = tpu.concatenate %10, %11, %12, %13, %14, %15, %16, %17, %18 in 2 : vector<16x16x4xf32>, vector<16x16x4xf32>, vector<16x16x4xf32>, vector<16x16x4xf32>, vector<16x16x4xf32>, vector<16x16x4xf32>, vector<16x16x4xf32>, vector<16x16x4xf32>, vector<16x16x4xf32> -> vector<16x16x36xf32>
    %20 = vector.shape_cast %19 : vector<16x16x36xf32> to vector<256x36xf32>
    %c0_45 = arith.constant 0 : index
    %c0_46 = arith.constant 0 : index
    %21 = vector.load %arg3[%c0_45, %c0_46] : memref<36x4xf32, #tpu.memory_space<vmem>>, vector<36x4xf32>
    %cst_47 = arith.constant dense<0.000000e+00> : vector<256x4xf32>
    %22 = tpu.matmul %20, %21, %cst_47 {dimension_numbers = #tpu.dot_dimension_numbers<[1], [0], [0], [1], [0, 0, 1, 1], [], []>} : vector<256x36xf32>, vector<36x4xf32>, vector<256x4xf32> -> vector<256x4xf32>
    %c0_48 = arith.constant 0 : index
    %c0_49 = arith.constant 0 : index
    %c0_50 = arith.constant 0 : index
    %23 = vector.load %arg8[%c0_48, %c0_49, %c0_50] : memref<18x18x4xf32, #tpu.memory_space<vmem>>, vector<16x16x4xf32>
    %c0_51 = arith.constant 0 : index
    %c1_52 = arith.constant 1 : index
    %c0_53 = arith.constant 0 : index
    %24 = vector.load %arg8[%c0_51, %c1_52, %c0_53] : memref<18x18x4xf32, #tpu.memory_space<vmem>>, vector<16x16x4xf32>
    %c0_54 = arith.constant 0 : index
    %c2_55 = arith.constant 2 : index
    %c0_56 = arith.constant 0 : index
    %25 = vector.load %arg8[%c0_54, %c2_55, %c0_56] : memref<18x18x4xf32, #tpu.memory_space<vmem>>, vector<16x16x4xf32>
    %c1_57 = arith.constant 1 : index
    %c0_58 = arith.constant 0 : index
    %c0_59 = arith.constant 0 : index
    %26 = vector.load %arg8[%c1_57, %c0_58, %c0_59] : memref<18x18x4xf32, #tpu.memory_space<vmem>>, vector<16x16x4xf32>
    %c1_60 = arith.constant 1 : index
    %c1_61 = arith.constant 1 : index
    %c0_62 = arith.constant 0 : index
    %27 = vector.load %arg8[%c1_60, %c1_61, %c0_62] : memref<18x18x4xf32, #tpu.memory_space<vmem>>, vector<16x16x4xf32>
    %c1_63 = arith.constant 1 : index
    %c2_64 = arith.constant 2 : index
    %c0_65 = arith.constant 0 : index
    %28 = vector.load %arg8[%c1_63, %c2_64, %c0_65] : memref<18x18x4xf32, #tpu.memory_space<vmem>>, vector<16x16x4xf32>
    %c2_66 = arith.constant 2 : index
    %c0_67 = arith.constant 0 : index
    %c0_68 = arith.constant 0 : index
    %29 = vector.load %arg8[%c2_66, %c0_67, %c0_68] : memref<18x18x4xf32, #tpu.memory_space<vmem>>, vector<16x16x4xf32>
    %c2_69 = arith.constant 2 : index
    %c1_70 = arith.constant 1 : index
    %c0_71 = arith.constant 0 : index
    %30 = vector.load %arg8[%c2_69, %c1_70, %c0_71] : memref<18x18x4xf32, #tpu.memory_space<vmem>>, vector<16x16x4xf32>
    %c2_72 = arith.constant 2 : index
    %c2_73 = arith.constant 2 : index
    %c0_74 = arith.constant 0 : index
    %31 = vector.load %arg8[%c2_72, %c2_73, %c0_74] : memref<18x18x4xf32, #tpu.memory_space<vmem>>, vector<16x16x4xf32>
    %32 = tpu.concatenate %23, %24, %25, %26, %27, %28, %29, %30, %31 in 2 : vector<16x16x4xf32>, vector<16x16x4xf32>, vector<16x16x4xf32>, vector<16x16x4xf32>, vector<16x16x4xf32>, vector<16x16x4xf32>, vector<16x16x4xf32>, vector<16x16x4xf32>, vector<16x16x4xf32> -> vector<16x16x36xf32>
    %33 = vector.shape_cast %32 : vector<16x16x36xf32> to vector<256x36xf32>
    %c0_75 = arith.constant 0 : index
    %c0_76 = arith.constant 0 : index
    %34 = vector.load %arg4[%c0_75, %c0_76] : memref<36x4xf32, #tpu.memory_space<vmem>>, vector<36x4xf32>
    %cst_77 = arith.constant dense<0.000000e+00> : vector<256x4xf32>
    %35 = tpu.matmul %33, %34, %cst_77 {dimension_numbers = #tpu.dot_dimension_numbers<[1], [0], [0], [1], [0, 0, 1, 1], [], []>} : vector<256x36xf32>, vector<36x4xf32>, vector<256x4xf32> -> vector<256x4xf32>
    %36 = arith.addf %22, %35 : vector<256x4xf32>
    %c0_78 = arith.constant 0 : index
    %c0_79 = arith.constant 0 : index
    %37 = vector.load %arg5[%c0_78, %c0_79] : memref<1x4xf32, #tpu.memory_space<vmem>>, vector<1x4xf32>
    %38 = vector.broadcast %37 : vector<1x4xf32> to vector<256x4xf32>
    %39 = arith.addf %36, %38 : vector<256x4xf32>
    %cst_80 = arith.constant 0.000000e+00 : f32
    %40 = vector.broadcast %cst_80 : f32 to vector<256x4xf32>
    %41 = arith.maximumf %39, %40 : vector<256x4xf32>
    %c0_81 = arith.constant 0 : index
    %c0_82 = arith.constant 0 : index
    %c0_83 = arith.constant 0 : index
    %42 = vector.load %arg6[%c0_81, %c0_82, %c0_83] : memref<1x256x4xf32, #tpu.memory_space<vmem>>, vector<1x256x4xf32>
    %43 = vector.shape_cast %42 : vector<1x256x4xf32> to vector<256x4xf32>
    %44 = vector.shape_cast %41 : vector<256x4xf32> to vector<1x256x4xf32>
    tpu.vector_store %arg6[%c0_81, %c0_82, %c0_83], %44 {strides = array<i32>} : memref<1x256x4xf32, #tpu.memory_space<vmem>>, vector<1x256x4xf32>,
    return
  }
  func.func @transform_0(%arg0: i32) -> (i32, i32, i32, i32) {
    %c0_i32 = arith.constant 0 : i32
    %c0_i32_0 = arith.constant 0 : i32
    %c0_i32_1 = arith.constant 0 : i32
    %c0_i32_2 = arith.constant 0 : i32
    return %arg0, %c0_i32, %c0_i32_0, %c0_i32_1 : i32, i32, i32, i32
  }
  func.func @transform_1(%arg0: i32) -> (i32, i32, i32, i32) {
    %c0_i32 = arith.constant 0 : i32
    %c0_i32_0 = arith.constant 0 : i32
    %c0_i32_1 = arith.constant 0 : i32
    %c0_i32_2 = arith.constant 0 : i32
    return %arg0, %c0_i32, %c0_i32_0, %c0_i32_1 : i32, i32, i32, i32
  }
  func.func @transform_2(%arg0: i32) -> (i32, i32) {
    %c0_i32 = arith.constant 0 : i32
    %c0_i32_0 = arith.constant 0 : i32
    %c0_i32_1 = arith.constant 0 : i32
    return %c0_i32, %c0_i32_0 : i32, i32
  }
  func.func @transform_3(%arg0: i32) -> (i32, i32) {
    %c0_i32 = arith.constant 0 : i32
    %c0_i32_0 = arith.constant 0 : i32
    %c0_i32_1 = arith.constant 0 : i32
    return %c0_i32, %c0_i32_0 : i32, i32
  }
  func.func @transform_4(%arg0: i32) -> (i32, i32) {
    %c0_i32 = arith.constant 0 : i32
    %c0_i32_0 = arith.constant 0 : i32
    %c0_i32_1 = arith.constant 0 : i32
    return %c0_i32, %c0_i32_0 : i32, i32
  }
  func.func @transform_5(%arg0: i32) -> (i32, i32, i32) {
    %c0_i32 = arith.constant 0 : i32
    %c0_i32_0 = arith.constant 0 : i32
    %c0_i32_1 = arith.constant 0 : i32
    return %arg0, %c0_i32, %c0_i32_0 : i32, i32, i32
  }
}

module attributes {stable_mosaic.version = 11 : i64} {
  func.func @_conv3x3_relu_kernel(%arg0: i32, %arg1: memref<1x16x16x4xf32, #tpu.memory_space<vmem>>, %arg2: memref<36x4xf32, #tpu.memory_space<vmem>>, %arg3: memref<1x4xf32, #tpu.memory_space<vmem>>, %arg4: memref<1x256x4xf32, #tpu.memory_space<vmem>>, %arg5: memref<18x18x4xf32, #tpu.memory_space<vmem>>) attributes {dimension_semantics = [#tpu.dimension_semantics<parallel>], iteration_bounds = array<i64: 2>, scalar_prefetch = 0 : i64, scratch_operands = 1 : i64, tpu.core_type = #tpu.core_type<tc>, window_params = [{transform_indices = @transform_0, window_bounds = array<i64: 1, 16, 16, 4>}, {pipeline_mode = #tpu.pipeline_mode<synchronous>, transform_indices = @transform_1, window_bounds = array<i64: 36, 4>}, {pipeline_mode = #tpu.pipeline_mode<synchronous>, transform_indices = @transform_2, window_bounds = array<i64: 1, 4>}, {transform_indices = @transform_3, window_bounds = array<i64: 1, 256, 4>}]} {
    %cst = arith.constant 0.000000e+00 : f32
    %0 = vector.broadcast %cst : f32 to vector<18x18x4xf32>
    %c0 = arith.constant 0 : index
    %c0_0 = arith.constant 0 : index
    %c0_1 = arith.constant 0 : index
    %1 = vector.load %arg5[%c0, %c0_0, %c0_1] : memref<18x18x4xf32, #tpu.memory_space<vmem>>, vector<18x18x4xf32>
    tpu.vector_store %arg5[%c0, %c0_0, %c0_1], %0 {strides = array<i32>} : memref<18x18x4xf32, #tpu.memory_space<vmem>>, vector<18x18x4xf32>,
    %c0_2 = arith.constant 0 : index
    %c0_3 = arith.constant 0 : index
    %c0_4 = arith.constant 0 : index
    %c0_5 = arith.constant 0 : index
    %2 = vector.load %arg1[%c0_2, %c0_3, %c0_4, %c0_5] : memref<1x16x16x4xf32, #tpu.memory_space<vmem>>, vector<1x16x16x4xf32>
    %3 = vector.shape_cast %2 : vector<1x16x16x4xf32> to vector<16x16x4xf32>
    %c1 = arith.constant 1 : index
    %c1_6 = arith.constant 1 : index
    %c0_7 = arith.constant 0 : index
    %4 = vector.load %arg5[%c1, %c1_6, %c0_7] : memref<18x18x4xf32, #tpu.memory_space<vmem>>, vector<16x16x4xf32>
    tpu.vector_store %arg5[%c1, %c1_6, %c0_7], %3 {strides = array<i32>} : memref<18x18x4xf32, #tpu.memory_space<vmem>>, vector<16x16x4xf32>,
    %c0_8 = arith.constant 0 : index
    %c0_9 = arith.constant 0 : index
    %c0_10 = arith.constant 0 : index
    %5 = vector.load %arg5[%c0_8, %c0_9, %c0_10] : memref<18x18x4xf32, #tpu.memory_space<vmem>>, vector<16x16x4xf32>
    %c0_11 = arith.constant 0 : index
    %c1_12 = arith.constant 1 : index
    %c0_13 = arith.constant 0 : index
    %6 = vector.load %arg5[%c0_11, %c1_12, %c0_13] : memref<18x18x4xf32, #tpu.memory_space<vmem>>, vector<16x16x4xf32>
    %c0_14 = arith.constant 0 : index
    %c2 = arith.constant 2 : index
    %c0_15 = arith.constant 0 : index
    %7 = vector.load %arg5[%c0_14, %c2, %c0_15] : memref<18x18x4xf32, #tpu.memory_space<vmem>>, vector<16x16x4xf32>
    %c1_16 = arith.constant 1 : index
    %c0_17 = arith.constant 0 : index
    %c0_18 = arith.constant 0 : index
    %8 = vector.load %arg5[%c1_16, %c0_17, %c0_18] : memref<18x18x4xf32, #tpu.memory_space<vmem>>, vector<16x16x4xf32>
    %c1_19 = arith.constant 1 : index
    %c1_20 = arith.constant 1 : index
    %c0_21 = arith.constant 0 : index
    %9 = vector.load %arg5[%c1_19, %c1_20, %c0_21] : memref<18x18x4xf32, #tpu.memory_space<vmem>>, vector<16x16x4xf32>
    %c1_22 = arith.constant 1 : index
    %c2_23 = arith.constant 2 : index
    %c0_24 = arith.constant 0 : index
    %10 = vector.load %arg5[%c1_22, %c2_23, %c0_24] : memref<18x18x4xf32, #tpu.memory_space<vmem>>, vector<16x16x4xf32>
    %c2_25 = arith.constant 2 : index
    %c0_26 = arith.constant 0 : index
    %c0_27 = arith.constant 0 : index
    %11 = vector.load %arg5[%c2_25, %c0_26, %c0_27] : memref<18x18x4xf32, #tpu.memory_space<vmem>>, vector<16x16x4xf32>
    %c2_28 = arith.constant 2 : index
    %c1_29 = arith.constant 1 : index
    %c0_30 = arith.constant 0 : index
    %12 = vector.load %arg5[%c2_28, %c1_29, %c0_30] : memref<18x18x4xf32, #tpu.memory_space<vmem>>, vector<16x16x4xf32>
    %c2_31 = arith.constant 2 : index
    %c2_32 = arith.constant 2 : index
    %c0_33 = arith.constant 0 : index
    %13 = vector.load %arg5[%c2_31, %c2_32, %c0_33] : memref<18x18x4xf32, #tpu.memory_space<vmem>>, vector<16x16x4xf32>
    %14 = tpu.concatenate %5, %6, %7, %8, %9, %10, %11, %12, %13 in 2 : vector<16x16x4xf32>, vector<16x16x4xf32>, vector<16x16x4xf32>, vector<16x16x4xf32>, vector<16x16x4xf32>, vector<16x16x4xf32>, vector<16x16x4xf32>, vector<16x16x4xf32>, vector<16x16x4xf32> -> vector<16x16x36xf32>
    %15 = vector.shape_cast %14 : vector<16x16x36xf32> to vector<256x36xf32>
    %c0_34 = arith.constant 0 : index
    %c0_35 = arith.constant 0 : index
    %16 = vector.load %arg2[%c0_34, %c0_35] : memref<36x4xf32, #tpu.memory_space<vmem>>, vector<36x4xf32>
    %cst_36 = arith.constant dense<0.000000e+00> : vector<256x4xf32>
    %17 = tpu.matmul %15, %16, %cst_36 {dimension_numbers = #tpu.dot_dimension_numbers<[1], [0], [0], [1], [0, 0, 1, 1], [], []>} : vector<256x36xf32>, vector<36x4xf32>, vector<256x4xf32> -> vector<256x4xf32>
    %c0_37 = arith.constant 0 : index
    %c0_38 = arith.constant 0 : index
    %18 = vector.load %arg3[%c0_37, %c0_38] : memref<1x4xf32, #tpu.memory_space<vmem>>, vector<1x4xf32>
    %19 = vector.broadcast %18 : vector<1x4xf32> to vector<256x4xf32>
    %20 = arith.addf %17, %19 : vector<256x4xf32>
    %cst_39 = arith.constant 0.000000e+00 : f32
    %21 = vector.broadcast %cst_39 : f32 to vector<256x4xf32>
    %22 = arith.maximumf %20, %21 : vector<256x4xf32>
    %c0_40 = arith.constant 0 : index
    %c0_41 = arith.constant 0 : index
    %c0_42 = arith.constant 0 : index
    %23 = vector.load %arg4[%c0_40, %c0_41, %c0_42] : memref<1x256x4xf32, #tpu.memory_space<vmem>>, vector<1x256x4xf32>
    %24 = vector.shape_cast %23 : vector<1x256x4xf32> to vector<256x4xf32>
    %25 = vector.shape_cast %22 : vector<256x4xf32> to vector<1x256x4xf32>
    tpu.vector_store %arg4[%c0_40, %c0_41, %c0_42], %25 {strides = array<i32>} : memref<1x256x4xf32, #tpu.memory_space<vmem>>, vector<1x256x4xf32>,
    return
  }
  func.func @transform_0(%arg0: i32) -> (i32, i32, i32, i32) {
    %c0_i32 = arith.constant 0 : i32
    %c0_i32_0 = arith.constant 0 : i32
    %c0_i32_1 = arith.constant 0 : i32
    %c0_i32_2 = arith.constant 0 : i32
    return %arg0, %c0_i32, %c0_i32_0, %c0_i32_1 : i32, i32, i32, i32
  }
  func.func @transform_1(%arg0: i32) -> (i32, i32) {
    %c0_i32 = arith.constant 0 : i32
    %c0_i32_0 = arith.constant 0 : i32
    %c0_i32_1 = arith.constant 0 : i32
    return %c0_i32, %c0_i32_0 : i32, i32
  }
  func.func @transform_2(%arg0: i32) -> (i32, i32) {
    %c0_i32 = arith.constant 0 : i32
    %c0_i32_0 = arith.constant 0 : i32
    %c0_i32_1 = arith.constant 0 : i32
    return %c0_i32, %c0_i32_0 : i32, i32
  }
  func.func @transform_3(%arg0: i32) -> (i32, i32, i32) {
    %c0_i32 = arith.constant 0 : i32
    %c0_i32_0 = arith.constant 0 : i32
    %c0_i32_1 = arith.constant 0 : i32
    return %arg0, %c0_i32, %c0_i32_0 : i32, i32, i32
  }
}

</mosaic_0001>

<llo_original>
// kernel: tile.8
$region0: #{tile.8}
  #allocation0 [shape = 's32[1]{0}', space=sflag, size = 0x4, scoped, tag = 'scoped memory for tile.8']
  %s0 = inlined_call_operand.vmem [shape: f32[4], index: 0, kind: input, shape index: {}]
  %s1 = inlined_call_operand.vmem [shape: f32[4,4], index: 1, kind: output, shape index: {}]
  // Predicated region
  $region2: #{tile.8} parent=0 // pred_check
    _
  $region3: #{tile.8} parent=0 // pred_check_branch
    %3 = sbr.rel (0) target = $region5
  $region4: #{tile.8} parent=0 // pred_region
    _
  $region5: #{tile.8} parent=0 // pred_fallthru
    _
  %v4 = vld [vmem:[%s0] ss:$0 sm:$0xff]
  %5 = vst [vmem:[%s1] sm:$0xf] %v4

// kernel: tile.9
$region0: #{tile.9}
  %s0 = inlined_call_operand.vmem [shape: f32[4,4], index: 0, kind: input, shape index: {}]
  %s1 = inlined_call_operand.vmem [shape: f32[1,16], index: 1, kind: output, shape index: {}]
  $region1: #{tile.9} parent=0
    #allocation0 [shape = 'u8[4096]{0}', space=vmem, size = 0x1000, scoped, tag = 'scoped mem for output reshape']
    #allocation1 [shape = 'u8[4096]{0}', space=vmem, size = 0x1000, scoped, tag = 'scoped mem for input reshape']
    %s3 = sshllo.u32 0, 4
    %v4 = vld [vmem:[%s0] sm:%s3]
    %5 = vst [vmem:[#allocation1] sm:%s3] %v4
    %v6 = vld [vmem:[#allocation1] sm:$0x1]
    %vm7 = vcmask 31744
    %8 = vst.msk [vmem:[#allocation0] sm:$0x1] %vm7, %v6
    %s9 = scalar_lea.vmem [#allocation1], 3
    %v10 = vld [vmem:[%s9] sm:$0x1]
    %11 = vrot.lane.b32.xlu0 %v10, 12
    %v12 = vpop.permute.xlu0 %11
    %vm13 = vcmask 130144
    %14 = vst.msk [vmem:[#allocation0] sm:$0x1] %vm13, %v12
    %s15 = scalar_lea.vmem [#allocation1], 2
    %v16 = vld [vmem:[%s15] sm:$0x1]
    %17 = vrot.lane.b32.xlu0 %v16, 8
    %v18 = vpop.permute.xlu0 %17
    %vm19 = vcmask 97344
    %20 = vst.msk [vmem:[#allocation0] sm:$0x1] %vm19, %v18
    %s21 = scalar_lea.vmem [#allocation1], 1
    %v22 = vld [vmem:[%s21] sm:$0x1]
    %23 = vrot.lane.b32.xlu0 %v22, 4
    %v24 = vpop.permute.xlu0 %23
    %vm25 = vcmask 64544
    %26 = vst.msk [vmem:[#allocation0] sm:$0x1] %vm25, %v24
    %s28 = sshllo.u32 0, 1
    %v30 = vld [vmem:[#allocation0] sm:%s28]
    %s31 = sshllo.u32 0, 1
    %32 = vst [vmem:[%s1] sm:%s31] %v30

// kernel: upconv_forward.3
$region0: #{upconv_forward.3}
  #allocation0 [shape = 'u32[]', space=smem, size = 0x4, offset = 0x4, fixed_abs, tag = 'smem constant byte address 0x4 - core index']
  #allocation1 [shape = 'u32[144,128]{1,0:T(1,128)}', space=vmem, size = 0x12000, scoped, tag = 'internal scratch']
  %s0 = inlined_call_operand.vmem [shape: f32[2,8,8,8], index: 0, kind: input, shape index: {}]
  %s1 = inlined_call_operand.vmem [shape: f32[8,16], index: 1, kind: input, shape index: {}]
  %s2 = inlined_call_operand.vmem [shape: f32[1,16], index: 2, kind: input, shape index: {}]
  %s3 = inlined_call_operand.vmem [shape: f32[2,16,8,8], index: 3, kind: output, shape index: {}]
  %s4 = sld [smem:[#allocation0]]
  $region45: #{upconv_forward.3} parent=0
    _
  %s6 = ssub.s32 1, %s4
  %s7 = scalar_select 0, %s6, %s4
  loop: start=0, step=1, limit=4
  $region2: #{upconv_forward.3} parent=0 // loop_pre_header
    _
  $region3: #{upconv_forward.3} parent=0 // loop_header
    %s9 = sphi 0, %s13
    %p10 = scmp.ge.s32.totalorder %s9, 4
    %s16 = sphi 0, %s28
    %s17 = sphi 0, %s24
    %s18 = sphi 0, %s16
    %s19 = sphi 0, %s17
    %s20 = sphi 0, %s18
    %s21 = sphi 0, %s19
    %s33 = sphi 0, %s35
    %s36 = sphi 0, %s33
    %s37 = sphi 0, %s36
    %s53 = sphi 0, %s37
    %s57 = sphi 0, %s57
    %s59 = sphi 0, %s57
    %s60 = sphi 0, %s59
    %s74 = sphi 0, %s60
    %s78 = sphi 0, %s78
    %s80 = sphi 0, %s78
    %s81 = sphi 0, %s80
    %s95 = sphi 0, %s81
    %s103 = sphi 0, %s105
    %s106 = sphi 0, %s103
    %s107 = sphi 0, %s106
    %s123 = sphi 0, %s107
  $region4: #{upconv_forward.3} parent=0 // loop_header_branch
    %12 = sbr.rel (%p10) target = $region8
  $region5: #{upconv_forward.3} parent=0 // loop_body
    %s14 = ssub.s32 %s9, 1
    %s15 = ssub.s32 %s9, 2
    %s22 = sadd.s32 1, %s17
    %p23 = scmp.ge.s32.totalorder %s22, 1
    %s24 = scalar_select %p23, 0, %s22
    %s25 = sadd.s32 1, %s16
    %s26 = scalar_select %p23, %s25, %s16
    %p27 = scmp.ge.s32.totalorder %s26, 2
    %s28 = scalar_select %p27, 0, %s26
    %s29 = ssub.s32 %s16, %s28
    %s30 = ssub.s32 %s17, %s24
    %s31 = sor.u32 %s29, %s30
    %p32 = scmp.eq.s32.totalorder %s31, 0
    %s34 = sadd.s32 %s33, 1
    %s35 = scalar_select %p32, %s33, %s34
    %p38 = pneg %p32
    %p39 = scmp.eq.s32.totalorder %s9, 1
    %p40 = por %p38, %p39
    %p41 = scmp.ne.s32.totalorder %s33, %s36
    %p42 = scmp.eq.s32.totalorder %s9, 0
    %p43 = por %p41, %p42
    %p44 = scmp.ne.s32.totalorder %s33, %s36
    %p45 = scmp.eq.s32.totalorder %s14, 1
    %p46 = por %p44, %p45
    %p47 = scmp.ne.s32.totalorder %s36, %s37
    %p48 = scmp.eq.s32.totalorder %s14, 0
    %p49 = por %p47, %p48
    %p50 = scmp.ne.s32.totalorder %s36, %s37
    %p51 = scmp.eq.s32.totalorder %s15, 1
    %p52 = por %p50, %p51
    %p54 = scmp.ne.s32.totalorder %s37, %s53
    %p55 = scmp.eq.s32.totalorder %s15, 0
    %p56 = por %p54, %p55
    %s58 = sadd.s32 %s57, 1
    %p61 = scmp.eq.s32.totalorder %s9, 1
    %p62 = scmp.ne.s32.totalorder %s57, %s59
    %p63 = scmp.eq.s32.totalorder %s9, 0
    %p64 = por %p62, %p63
    %p65 = scmp.ne.s32.totalorder %s57, %s59
    %p66 = scmp.eq.s32.totalorder %s14, 1
    %p67 = por %p65, %p66
    %p68 = scmp.ne.s32.totalorder %s59, %s60
    %p69 = scmp.eq.s32.totalorder %s14, 0
    %p70 = por %p68, %p69
    %p71 = scmp.ne.s32.totalorder %s59, %s60
    %p72 = scmp.eq.s32.totalorder %s15, 1
    %p73 = por %p71, %p72
    %p75 = scmp.ne.s32.totalorder %s60, %s74
    %p76 = scmp.eq.s32.totalorder %s15, 0
    %p77 = por %p75, %p76
    %s79 = sadd.s32 %s78, 1
    %p82 = scmp.eq.s32.totalorder %s9, 1
    %p83 = scmp.ne.s32.totalorder %s78, %s80
    %p84 = scmp.eq.s32.totalorder %s9, 0
    %p85 = por %p83, %p84
    %p86 = scmp.ne.s32.totalorder %s78, %s80
    %p87 = scmp.eq.s32.totalorder %s14, 1
    %p88 = por %p86, %p87
    %p89 = scmp.ne.s32.totalorder %s80, %s81
    %p90 = scmp.eq.s32.totalorder %s14, 0
    %p91 = por %p89, %p90
    %p92 = scmp.ne.s32.totalorder %s80, %s81
    %p93 = scmp.eq.s32.totalorder %s15, 1
    %p94 = por %p92, %p93
    %p96 = scmp.ne.s32.totalorder %s81, %s95
    %p97 = scmp.eq.s32.totalorder %s15, 0
    %p98 = por %p96, %p97
    %s99 = ssub.s32 %s16, %s28
    %s100 = ssub.s32 %s17, %s24
    %s101 = sor.u32 %s99, %s100
    %p102 = scmp.eq.s32.totalorder %s101, 0
    %s104 = sadd.s32 %s103, 1
    %s105 = scalar_select %p102, %s103, %s104
    %p108 = pneg %p102
    %p109 = scmp.eq.s32.totalorder %s9, 1
    %p110 = por %p108, %p109
    %p111 = scmp.ne.s32.totalorder %s103, %s106
    %p112 = scmp.eq.s32.totalorder %s9, 0
    %p113 = por %p111, %p112
    %p114 = scmp.ne.s32.totalorder %s103, %s106
    %p115 = scmp.eq.s32.totalorder %s14, 1
    %p116 = por %p114, %p115
    %p117 = scmp.ne.s32.totalorder %s106, %s107
    %p118 = scmp.eq.s32.totalorder %s14, 0
    %p119 = por %p117, %p118
    %p120 = scmp.ne.s32.totalorder %s106, %s107
    %p121 = scmp.eq.s32.totalorder %s15, 1
    %p122 = por %p120, %p121
    %p124 = scmp.ne.s32.totalorder %s107, %s123
    %p125 = scmp.eq.s32.totalorder %s15, 0
    %p126 = por %p124, %p125
    %p127 = scmp.le.s32.totalorder 1, %s9
    %p128 = scmp.lt.s32.totalorder %s9, 3
    %p129 = pnand %p127, %p128
    %p130 = pneg %p129
    // Predicated region
    $region9: #{upconv_forward.3} parent=5 // pred_check
      _
    $region10: #{upconv_forward.3} parent=5 // pred_check_branch
      %132 = sbr.rel (%p129) target = $region12
    $region11: #{upconv_forward.3} parent=5 // pred_region
      %s133 = ssub.s32 %s9, 1
      // Predicated region
      $region13: #{upconv_forward.3} parent=11 // pred_check
        %p134 = pneg %p70
      $region14: #{upconv_forward.3} parent=11 // pred_check_branch
        %136 = sbr.rel (%p134) target = $region16
      $region15: #{upconv_forward.3} parent=11 // pred_region
        _
      $region16: #{upconv_forward.3} parent=11 // pred_fallthru
        _
      // Predicated region
      $region17: #{upconv_forward.3} parent=11 // pred_check
        %p137 = pneg %p91
      $region18: #{upconv_forward.3} parent=11 // pred_check_branch
        %139 = sbr.rel (%p137) target = $region20
      $region19: #{upconv_forward.3} parent=11 // pred_region
        _
      $region20: #{upconv_forward.3} parent=11 // pred_fallthru
        _
    $region12: #{upconv_forward.3} parent=5 // pred_fallthru
      _
    %p140 = scmp.lt.s32.totalorder %s9, 2
    // Predicated region
    $region21: #{upconv_forward.3} parent=5 // pred_check
      %p141 = pneg %p140
    $region22: #{upconv_forward.3} parent=5 // pred_check_branch
      %143 = sbr.rel (%p141) target = $region24
    $region23: #{upconv_forward.3} parent=5 // pred_region
      // Predicated region
      $region25: #{upconv_forward.3} parent=23 // pred_check
        %p144 = pneg %p43
      $region26: #{upconv_forward.3} parent=23 // pred_check_branch
        %146 = sbr.rel (%p144) target = $region28
      $region27: #{upconv_forward.3} parent=23 // pred_region
        %s147 = smul.u32 8, %s17
        %p148 = scmp.lt.s32.totalorder %s16, 1
        %s149 = scalar_select %p148, %s16, 1
        %p150 = scmp.lt.s32.totalorder %s147, 7
        %s151 = scalar_select %p150, %s147, 7
        %s152 = smul.addr %s149, 8
        %s153 = sadd.s32 %s151, %s152
        %s154 = smul.addr %s153, 8
        %s155 = scalar_lea.vmem %s0, %s154
        %s156 = smul.u32 8, %s17
      $region28: #{upconv_forward.3} parent=23 // pred_fallthru
        _
    $region24: #{upconv_forward.3} parent=5 // pred_fallthru
      _
    %p157 = scmp.le.s32.totalorder 1, %s9
    %p158 = scmp.lt.s32.totalorder %s9, 3
    %p159 = pnand %p157, %p158
    %p160 = pneg %p159
    // Predicated region
    $region29: #{upconv_forward.3} parent=5 // pred_check
      _
    $region30: #{upconv_forward.3} parent=5 // pred_check_branch
      %162 = sbr.rel (%p159) target = $region32
    $region31: #{upconv_forward.3} parent=5 // pred_region
      %s163 = ssub.s32 %s9, 1
      %s164 = smul.u32 8, %s19
      %p165 = scmp.lt.s32.totalorder %s18, 1
      %s166 = scalar_select %p165, %s18, 1
      %p167 = scmp.lt.s32.totalorder %s164, 7
      %s168 = scalar_select %p167, %s164, 7
      %s169 = smul.addr %s166, 8
      %s170 = sadd.s32 %s168, %s169
      %s171 = smul.addr %s170, 8
      %s172 = scalar_lea.vmem %s0, %s171
      %p173 = pneg %p49
      %p174 = pneg %p46
      %p175 = pneg %p70
      %p176 = pneg %p67
      %p177 = pneg %p91
      %p178 = pneg %p88
      %p179 = pneg %p119
      %p180 = pneg %p116
      %s181 = smul.u32 16, %s19
      %p182 = scmp.lt.s32.totalorder %s18, 1
      %s183 = scalar_select %p182, %s18, 1
      %p184 = scmp.lt.s32.totalorder %s181, 15
      %s185 = scalar_select %p184, %s181, 15
      %s186 = smul.addr %s183, 16
      %s187 = sadd.s32 %s185, %s186
      %s188 = smul.addr %s187, 8
      %s189 = scalar_lea.vmem %s3, %s188
      %s190 = smul.u32 8, %s19
      %p191 = scmp.lt.s32.totalorder %s18, 1
      %s192 = scalar_select %p191, %s18, 1
      %p193 = scmp.lt.s32.totalorder %s190, 7
      %s194 = scalar_select %p193, %s190, 7
      %s195 = smul.addr %s192, 8
      %s196 = sadd.s32 %s194, %s195
      %s197 = smul.addr %s196, 8
      %s198 = scalar_lea.vmem %s0, %s197
      %s199 = smul.u32 8, %s19
      %s200 = smul.u32 16, %s19
      %p201 = scmp.lt.s32.totalorder %s18, 1
      %s202 = scalar_select %p201, %s18, 1
      %p203 = scmp.lt.s32.totalorder %s200, 15
      %s204 = scalar_select %p203, %s200, 15
      %s205 = smul.addr %s202, 16
      %s206 = sadd.s32 %s204, %s205
      %s207 = smul.addr %s206, 8
      %s208 = scalar_lea.vmem %s3, %s207
      %s209 = smul.u32 16, %s19
      %v210 = vld [vmem:[%s198] sm:$0xff]
      %v211 = vld [vmem:[%s198 + $0x8] sm:$0xff]
      %v212 = vld [vmem:[%s198 + $0x10] sm:$0xff]
      %v213 = vld [vmem:[%s198 + $0x18] sm:$0xff]
      %v214 = vld [vmem:[%s198 + $0x20] sm:$0xff]
      %v215 = vld [vmem:[%s198 + $0x28] sm:$0xff]
      %v216 = vld [vmem:[%s198 + $0x30] sm:$0xff]
      %v217 = vld [vmem:[%s198 + $0x38] sm:$0xff]
      %v218 = vld [vmem:[%s1] sm:$0xff]
      %v219 = vld [vmem:[%s2] sm:$0x1]
      %v221 = vlaneseq
      %v222 = vshrl.u32 %v221, 7
      %v223 = vsub.s32 0, %v222
      %v224 = vrot.slane %v219, %v223
      %vm226 = vcmask 64512
      %v228 = vsel %vm226, %v210, 0
      %v231 = vsel %vm226, %v211, 0
      %v234 = vsel %vm226, %v212, 0
      %v237 = vsel %vm226, %v213, 0
      %v240 = vsel %vm226, %v214, 0
      %v243 = vsel %vm226, %v215, 0
      %v246 = vsel %vm226, %v216, 0
      %v249 = vsel %vm226, %v217, 0
      %251 = vmatprep.subr.mxu0 0.0
      %252 = vmatpush1.msra.mxu0 %v218
      %253 = vmatprep.subr.mxu0 0.0
      %254 = vmatpush1.msra.mxu0 0.0
      %255 = vmatprep.subr.mxu0 0.0
      %256 = vmatpush1.msra.mxu0 0.0
      %257 = vmatprep.subr.mxu0 0.0
      %258 = vmatpush1.msra.mxu0 0.0
      %259 = vmatprep.subr.mxu0 0.0
      %260 = vmatpush1.msra.mxu0 0.0
      %261 = vmatprep.subr.mxu0 0.0
      %262 = vmatpush1.msra.mxu0 0.0
      %263 = vmatprep.subr.mxu0 0.0
      %264 = vmatpush1.msra.mxu0 0.0
      %265 = vmatprep.subr.mxu0 0.0
      %266 = vmatpush1.msra.mxu0 0.0
      %267 = vmatprep.subr.mxu0 0.0
      %268 = vmatpush1.msra.mxu0 0.0
      %269 = vmatprep.subr.mxu0 0.0
      %270 = vmatpush1.msra.mxu0 0.0
      %271 = vmatprep.subr.mxu0 0.0
      %272 = vmatpush1.msra.mxu0 0.0
      %273 = vmatprep.subr.mxu0 0.0
      %274 = vmatpush1.msra.mxu0 0.0
      %275 = vmatprep.subr.mxu0 0.0
      %276 = vmatpush1.msra.mxu0 0.0
      %277 = vmatprep.subr.mxu0 0.0
      %278 = vmatpush1.msra.mxu0 0.0
      %279 = vmatprep.subr.mxu0 0.0
      %280 = vmatpush1.msra.mxu0 0.0
      %281 = vmatprep.subr.mxu0 0.0
      %282 = vmatpush1.msra.mxu0 0.0
      %283 = vmatprep.subr.mxu0 0.0
      %284 = vmatpush1.msra.mxu0 0.0
      %285 = vmatprep.subr.mxu0 0.0
      %286 = vmatpush1.msra.mxu0 0.0
      %287 = vmatprep.subr.mxu0 0.0
      %288 = vmatpush1.msra.mxu0 0.0
      %289 = vmatprep.subr.mxu0 0.0
      %290 = vmatpush1.msra.mxu0 0.0
      %291 = vmatprep.subr.mxu0 0.0
      %292 = vmatpush1.msra.mxu0 0.0
      %293 = vmatprep.subr.mxu0 0.0
      %294 = vmatpush1.msra.mxu0 0.0
      %295 = vmatprep.subr.mxu0 0.0
      %296 = vmatpush1.msra.mxu0 0.0
      %297 = vmatprep.subr.mxu0 0.0
      %298 = vmatpush1.msra.mxu0 0.0
      %299 = vmatprep.subr.mxu0 0.0
      %300 = vmatpush1.msra.mxu0 0.0
      %301 = vmatprep.subr.mxu0 0.0
      %302 = vmatpush1.msra.mxu0 0.0
      %303 = vmatprep.subr.mxu0 0.0
      %304 = vmatpush1.msra.mxu0 0.0
      %305 = vmatprep.subr.mxu0 0.0
      %306 = vmatpush1.msra.mxu0 0.0
      %307 = vmatprep.subr.mxu0 0.0
      %308 = vmatpush1.msra.mxu0 0.0
      %309 = vmatprep.subr.mxu0 0.0
      %310 = vmatpush1.msra.mxu0 0.0
      %311 = vmatprep.subr.mxu0 0.0
      %312 = vmatpush1.msra.mxu0 0.0
      %313 = vmatprep.subr.mxu0 0.0
      %314 = vmatpush1.msra.mxu0 0.0
      %315 = vmatprep.mubr.f32.mxu0 0.0
      %316 = vmatmul.mubr.f32.gmra.mrb[0].mxu0 %v228
      %v317 = vpop.f32.mrb[0].mxu0
      %v318 = vadd.f32 %v224, %v317
      %v319 = vpop.f32.mrb[0].mxu0
      %320 = vmatprep.mubr.f32.mxu0 0.0
      %321 = vmatmul.mubr.f32.gmra.mrb[0].mxu0 %v231
      %v322 = vpop.f32.mrb[0].mxu0
      %v323 = vadd.f32 %v224, %v322
      %v324 = vpop.f32.mrb[0].mxu0
      %325 = vmatprep.mubr.f32.mxu0 0.0
      %326 = vmatmul.mubr.f32.gmra.mrb[0].mxu0 %v234
      %v327 = vpop.f32.mrb[0].mxu0
      %v328 = vadd.f32 %v224, %v327
      %v329 = vpop.f32.mrb[0].mxu0
      %330 = vmatprep.mubr.f32.mxu0 0.0
      %331 = vmatmul.mubr.f32.gmra.mrb[0].mxu0 %v237
      %v332 = vpop.f32.mrb[0].mxu0
      %v333 = vadd.f32 %v224, %v332
      %v334 = vpop.f32.mrb[0].mxu0
      %335 = vmatprep.mubr.f32.mxu0 0.0
      %336 = vmatmul.mubr.f32.gmra.mrb[0].mxu0 %v240
      %v337 = vpop.f32.mrb[0].mxu0
      %v338 = vadd.f32 %v224, %v337
      %v339 = vpop.f32.mrb[0].mxu0
      %340 = vmatprep.mubr.f32.mxu0 0.0
      %341 = vmatmul.mubr.f32.gmra.mrb[0].mxu0 %v243
      %v342 = vpop.f32.mrb[0].mxu0
      %v343 = vadd.f32 %v224, %v342
      %v344 = vpop.f32.mrb[0].mxu0
      %345 = vmatprep.mubr.f32.mxu0 0.0
      %346 = vmatmul.mubr.f32.gmra.mrb[0].mxu0 %v246
      %v347 = vpop.f32.mrb[0].mxu0
      %v348 = vadd.f32 %v224, %v347
      %v349 = vpop.f32.mrb[0].mxu0
      %350 = vmatprep.mubr.f32.mxu0 0.0
      %351 = vmatmul.mubr.f32.gmra.mrb[0].mxu0 %v249
      %v352 = vpop.f32.mrb[0].mxu0
      %v353 = vadd.f32 %v224, %v352
      %v354 = vpop.f32.mrb[0].mxu0
      %355 = vdwg.mxu0
      %356 = vst.msk [vmem:[%s208] sm:$0xff] %vm226, %v318
      %358 = vrot.lane.b32.xlu0 %v318, 120
      %v359 = vpop.permute.xlu0 %358
      %s361 = scalar_lea.vmem %s208, 8
      %362 = vst.msk [vmem:[%s361] sm:$0xff] %vm226, %v359
      %s363 = scalar_lea.vmem %s208, 16
      %364 = vst.msk [vmem:[%s363] sm:$0xff] %vm226, %v323
      %366 = vrot.lane.b32.xlu0 %v323, 120
      %v367 = vpop.permute.xlu0 %366
      %s369 = scalar_lea.vmem %s208, 24
      %370 = vst.msk [vmem:[%s369] sm:$0xff] %vm226, %v367
      %s371 = scalar_lea.vmem %s208, 32
      %372 = vst.msk [vmem:[%s371] sm:$0xff] %vm226, %v328
      %374 = vrot.lane.b32.xlu0 %v328, 120
      %v375 = vpop.permute.xlu0 %374
      %s377 = scalar_lea.vmem %s208, 40
      %378 = vst.msk [vmem:[%s377] sm:$0xff] %vm226, %v375
      %s379 = scalar_lea.vmem %s208, 48
      %380 = vst.msk [vmem:[%s379] sm:$0xff] %vm226, %v333
      %382 = vrot.lane.b32.xlu0 %v333, 120
      %v383 = vpop.permute.xlu0 %382
      %s385 = scalar_lea.vmem %s208, 56
      %386 = vst.msk [vmem:[%s385] sm:$0xff] %vm226, %v383
      %s387 = scalar_lea.vmem %s208, 64
      %388 = vst.msk [vmem:[%s387] sm:$0xff] %vm226, %v338
      %390 = vrot.lane.b32.xlu0 %v338, 120
      %v391 = vpop.permute.xlu0 %390
      %s393 = scalar_lea.vmem %s208, 72
      %394 = vst.msk [vmem:[%s393] sm:$0xff] %vm226, %v391
      %s395 = scalar_lea.vmem %s208, 80
      %396 = vst.msk [vmem:[%s395] sm:$0xff] %vm226, %v343
      %398 = vrot.lane.b32.xlu0 %v343, 120
      %v399 = vpop.permute.xlu0 %398
      %s401 = scalar_lea.vmem %s208, 88
      %402 = vst.msk [vmem:[%s401] sm:$0xff] %vm226, %v399
      %s403 = scalar_lea.vmem %s208, 96
      %404 = vst.msk [vmem:[%s403] sm:$0xff] %vm226, %v348
      %406 = vrot.lane.b32.xlu0 %v348, 120
      %v407 = vpop.permute.xlu0 %406
      %s409 = scalar_lea.vmem %s208, 104
      %410 = vst.msk [vmem:[%s409] sm:$0xff] %vm226, %v407
      %s411 = scalar_lea.vmem %s208, 112
      %412 = vst.msk [vmem:[%s411] sm:$0xff] %vm226, %v353
      %414 = vrot.lane.b32.xlu0 %v353, 120
      %v415 = vpop.permute.xlu0 %414
      %s417 = scalar_lea.vmem %s208, 120
      %418 = vst.msk [vmem:[%s417] sm:$0xff] %vm226, %v415
      %s419 = smul.u32 16, %s19
      %p420 = scmp.lt.s32.totalorder %s18, 1
      %s421 = scalar_select %p420, %s18, 1
      %p422 = scmp.lt.s32.totalorder %s419, 15
      %s423 = scalar_select %p422, %s419, 15
      %s424 = smul.addr %s421, 16
      %s425 = sadd.s32 %s423, %s424
      %s426 = smul.addr %s425, 8
      %s427 = scalar_lea.vmem %s3, %s426
      // Predicated region
      $region33: #{upconv_forward.3} parent=31 // pred_check
        %p428 = pneg %p116
      $region34: #{upconv_forward.3} parent=31 // pred_check_branch
        %430 = sbr.rel (%p428) target = $region36
      $region35: #{upconv_forward.3} parent=31 // pred_region
        %s431 = smul.u32 16, %s19
      $region36: #{upconv_forward.3} parent=31 // pred_fallthru
        _
    $region32: #{upconv_forward.3} parent=5 // pred_fallthru
      _
    %p432 = scmp.le.s32.totalorder 2, %s9
    // Predicated region
    $region37: #{upconv_forward.3} parent=5 // pred_check
      %p433 = pneg %p432
    $region38: #{upconv_forward.3} parent=5 // pred_check_branch
      %435 = sbr.rel (%p433) target = $region40
    $region39: #{upconv_forward.3} parent=5 // pred_region
      %s436 = ssub.s32 %s9, 2
      // Predicated region
      $region41: #{upconv_forward.3} parent=39 // pred_check
        %p437 = pneg %p122
      $region42: #{upconv_forward.3} parent=39 // pred_check_branch
        %439 = sbr.rel (%p437) target = $region44
      $region43: #{upconv_forward.3} parent=39 // pred_region
        %s440 = smul.u32 16, %s21
        %p441 = scmp.lt.s32.totalorder %s20, 1
        %s442 = scalar_select %p441, %s20, 1
        %p443 = scmp.lt.s32.totalorder %s440, 15
        %s444 = scalar_select %p443, %s440, 15
        %s445 = smul.addr %s442, 16
        %s446 = sadd.s32 %s444, %s445
        %s447 = smul.addr %s446, 8
        %s448 = scalar_lea.vmem %s3, %s447
      $region44: #{upconv_forward.3} parent=39 // pred_fallthru
        _
    $region40: #{upconv_forward.3} parent=5 // pred_fallthru
      _
  $region6: #{upconv_forward.3} parent=0 // loop_footer
    %s13 = sadd.s32 1, %s9
  $region7: #{upconv_forward.3} parent=0 // loop_footer_branch
    %8 = sbr.rel target = $region3
  $region8: #{upconv_forward.3} parent=0 // loop_exit
    _

// kernel: upconv_forward.5
$region0: #{upconv_forward.5}
  #allocation0 [shape = 'u32[]', space=smem, size = 0x4, offset = 0x4, fixed_abs, tag = 'smem constant byte address 0x4 - core index']
  #allocation1 [shape = 'u32[144,128]{1,0:T(1,128)}', space=vmem, size = 0x12000, scoped, tag = 'internal scratch']
  #allocation2 [shape = 'f32[18,18,4]{2,1,0:T(8,128)}', space=vmem, size = 0x36000, scoped, tag = 'scratch operand']
  %s0 = inlined_call_operand.vmem [shape: f32[2,16,16,4], index: 0, kind: input, shape index: {}]
  %s1 = inlined_call_operand.vmem [shape: f32[36,4], index: 1, kind: input, shape index: {}]
  %s2 = inlined_call_operand.vmem [shape: f32[1,4], index: 2, kind: input, shape index: {}]
  %s3 = inlined_call_operand.vmem [shape: f32[2,256,4], index: 3, kind: output, shape index: {}]
  %s4 = sld [smem:[#allocation0]]
  $region45: #{upconv_forward.5} parent=0
    _
  %s6 = ssub.s32 1, %s4
  %s7 = scalar_select 0, %s6, %s4
  loop: start=0, step=1, limit=4
  $region2: #{upconv_forward.5} parent=0 // loop_pre_header
    _
  $region3: #{upconv_forward.5} parent=0 // loop_header
    %s9 = sphi 0, %s13
    %p10 = scmp.ge.s32.totalorder %s9, 4
    %s19 = sphi 0, %s21
    %s22 = sphi 0, %s19
    %s23 = sphi 0, %s22
    %s39 = sphi 0, %s23
    %s43 = sphi 0, %s43
    %s45 = sphi 0, %s43
    %s46 = sphi 0, %s45
    %s60 = sphi 0, %s46
    %s64 = sphi 0, %s64
    %s66 = sphi 0, %s64
    %s67 = sphi 0, %s66
    %s81 = sphi 0, %s67
    %s87 = sphi 0, %s89
    %s90 = sphi 0, %s87
    %s91 = sphi 0, %s90
    %s107 = sphi 0, %s91
  $region4: #{upconv_forward.5} parent=0 // loop_header_branch
    %12 = sbr.rel (%p10) target = $region8
  $region5: #{upconv_forward.5} parent=0 // loop_body
    %s14 = ssub.s32 %s9, 1
    %s15 = ssub.s32 %s9, 2
    %s16 = sadd.s32 %s9, 1
    %s17 = ssub.s32 %s9, %s16
    %p18 = scmp.eq.s32.totalorder %s17, 0
    %s20 = sadd.s32 %s19, 1
    %s21 = scalar_select %p18, %s19, %s20
    %p24 = pneg %p18
    %p25 = scmp.eq.s32.totalorder %s9, 1
    %p26 = por %p24, %p25
    %p27 = scmp.ne.s32.totalorder %s19, %s22
    %p28 = scmp.eq.s32.totalorder %s9, 0
    %p29 = por %p27, %p28
    %p30 = scmp.ne.s32.totalorder %s19, %s22
    %p31 = scmp.eq.s32.totalorder %s14, 1
    %p32 = por %p30, %p31
    %p33 = scmp.ne.s32.totalorder %s22, %s23
    %p34 = scmp.eq.s32.totalorder %s14, 0
    %p35 = por %p33, %p34
    %p36 = scmp.ne.s32.totalorder %s22, %s23
    %p37 = scmp.eq.s32.totalorder %s15, 1
    %p38 = por %p36, %p37
    %p40 = scmp.ne.s32.totalorder %s23, %s39
    %p41 = scmp.eq.s32.totalorder %s15, 0
    %p42 = por %p40, %p41
    %s44 = sadd.s32 %s43, 1
    %p47 = scmp.eq.s32.totalorder %s9, 1
    %p48 = scmp.ne.s32.totalorder %s43, %s45
    %p49 = scmp.eq.s32.totalorder %s9, 0
    %p50 = por %p48, %p49
    %p51 = scmp.ne.s32.totalorder %s43, %s45
    %p52 = scmp.eq.s32.totalorder %s14, 1
    %p53 = por %p51, %p52
    %p54 = scmp.ne.s32.totalorder %s45, %s46
    %p55 = scmp.eq.s32.totalorder %s14, 0
    %p56 = por %p54, %p55
    %p57 = scmp.ne.s32.totalorder %s45, %s46
    %p58 = scmp.eq.s32.totalorder %s15, 1
    %p59 = por %p57, %p58
    %p61 = scmp.ne.s32.totalorder %s46, %s60
    %p62 = scmp.eq.s32.totalorder %s15, 0
    %p63 = por %p61, %p62
    %s65 = sadd.s32 %s64, 1
    %p68 = scmp.eq.s32.totalorder %s9, 1
    %p69 = scmp.ne.s32.totalorder %s64, %s66
    %p70 = scmp.eq.s32.totalorder %s9, 0
    %p71 = por %p69, %p70
    %p72 = scmp.ne.s32.totalorder %s64, %s66
    %p73 = scmp.eq.s32.totalorder %s14, 1
    %p74 = por %p72, %p73
    %p75 = scmp.ne.s32.totalorder %s66, %s67
    %p76 = scmp.eq.s32.totalorder %s14, 0
    %p77 = por %p75, %p76
    %p78 = scmp.ne.s32.totalorder %s66, %s67
    %p79 = scmp.eq.s32.totalorder %s15, 1
    %p80 = por %p78, %p79
    %p82 = scmp.ne.s32.totalorder %s67, %s81
    %p83 = scmp.eq.s32.totalorder %s15, 0
    %p84 = por %p82, %p83
    %s85 = ssub.s32 %s9, %s16
    %p86 = scmp.eq.s32.totalorder %s85, 0
    %s88 = sadd.s32 %s87, 1
    %s89 = scalar_select %p86, %s87, %s88
    %p92 = pneg %p86
    %p93 = scmp.eq.s32.totalorder %s9, 1
    %p94 = por %p92, %p93
    %p95 = scmp.ne.s32.totalorder %s87, %s90
    %p96 = scmp.eq.s32.totalorder %s9, 0
    %p97 = por %p95, %p96
    %p98 = scmp.ne.s32.totalorder %s87, %s90
    %p99 = scmp.eq.s32.totalorder %s14, 1
    %p100 = por %p98, %p99
    %p101 = scmp.ne.s32.totalorder %s90, %s91
    %p102 = scmp.eq.s32.totalorder %s14, 0
    %p103 = por %p101, %p102
    %p104 = scmp.ne.s32.totalorder %s90, %s91
    %p105 = scmp.eq.s32.totalorder %s15, 1
    %p106 = por %p104, %p105
    %p108 = scmp.ne.s32.totalorder %s91, %s107
    %p109 = scmp.eq.s32.totalorder %s15, 0
    %p110 = por %p108, %p109
    %p111 = scmp.le.s32.totalorder 1, %s9
    %p112 = scmp.lt.s32.totalorder %s9, 3
    %p113 = pnand %p111, %p112
    %p114 = pneg %p113
    // Predicated region
    $region9: #{upconv_forward.5} parent=5 // pred_check
      _
    $region10: #{upconv_forward.5} parent=5 // pred_check_branch
      %116 = sbr.rel (%p113) target = $region12
    $region11: #{upconv_forward.5} parent=5 // pred_region
      %s117 = ssub.s32 %s9, 1
      // Predicated region
      $region13: #{upconv_forward.5} parent=11 // pred_check
        %p118 = pneg %p56
      $region14: #{upconv_forward.5} parent=11 // pred_check_branch
        %120 = sbr.rel (%p118) target = $region16
      $region15: #{upconv_forward.5} parent=11 // pred_region
        _
      $region16: #{upconv_forward.5} parent=11 // pred_fallthru
        _
      // Predicated region
      $region17: #{upconv_forward.5} parent=11 // pred_check
        %p121 = pneg %p77
      $region18: #{upconv_forward.5} parent=11 // pred_check_branch
        %123 = sbr.rel (%p121) target = $region20
      $region19: #{upconv_forward.5} parent=11 // pred_region
        _
      $region20: #{upconv_forward.5} parent=11 // pred_fallthru
        _
    $region12: #{upconv_forward.5} parent=5 // pred_fallthru
      _
    %p124 = scmp.lt.s32.totalorder %s9, 2
    // Predicated region
    $region21: #{upconv_forward.5} parent=5 // pred_check
      %p125 = pneg %p124
    $region22: #{upconv_forward.5} parent=5 // pred_check_branch
      %127 = sbr.rel (%p125) target = $region24
    $region23: #{upconv_forward.5} parent=5 // pred_region
      // Predicated region
      $region25: #{upconv_forward.5} parent=23 // pred_check
        %p128 = pneg %p29
      $region26: #{upconv_forward.5} parent=23 // pred_check_branch
        %130 = sbr.rel (%p128) target = $region28
      $region27: #{upconv_forward.5} parent=23 // pred_region
        %p131 = scmp.lt.s32.totalorder %s9, 1
        %s132 = scalar_select %p131, %s9, 1
        %s133 = smul.addr %s132, 32
        %s134 = smul.addr %s133, 8
        %s135 = scalar_lea.vmem %s0, %s134
      $region28: #{upconv_forward.5} parent=23 // pred_fallthru
        _
    $region24: #{upconv_forward.5} parent=5 // pred_fallthru
      _
    %p136 = scmp.le.s32.totalorder 1, %s9
    %p137 = scmp.lt.s32.totalorder %s9, 3
    %p138 = pnand %p136, %p137
    %p139 = pneg %p138
    // Predicated region
    $region29: #{upconv_forward.5} parent=5 // pred_check
      _
    $region30: #{upconv_forward.5} parent=5 // pred_check_branch
      %141 = sbr.rel (%p138) target = $region32
    $region31: #{upconv_forward.5} parent=5 // pred_region
      %s142 = ssub.s32 %s9, 1
      %p143 = scmp.lt.s32.totalorder %s14, 1
      %s144 = scalar_select %p143, %s14, 1
      %s145 = smul.addr %s144, 32
      %s146 = smul.addr %s145, 8
      %s147 = scalar_lea.vmem %s0, %s146
      %p148 = pneg %p35
      %p149 = pneg %p32
      %p150 = pneg %p56
      %p151 = pneg %p53
      %p152 = pneg %p77
      %p153 = pneg %p74
      %p154 = pneg %p103
      %p155 = pneg %p100
      %p156 = scmp.lt.s32.totalorder %s14, 1
      %s157 = scalar_select %p156, %s14, 1
      %s158 = smul.addr %s157, 32
      %s159 = smul.addr %s158, 8
      %s160 = scalar_lea.vmem %s3, %s159
      %p161 = scmp.lt.s32.totalorder %s14, 1
      %s162 = scalar_select %p161, %s14, 1
      %s163 = smul.addr %s162, 32
      %s164 = smul.addr %s163, 8
      %s165 = scalar_lea.vmem %s0, %s164
      %p166 = scmp.lt.s32.totalorder %s14, 1
      %s167 = scalar_select %p166, %s14, 1
      %s168 = smul.addr %s167, 32
      %s169 = smul.addr %s168, 8
      %s170 = scalar_lea.vmem %s3, %s169
      %vm171 = vcmask 31744
      %172 = vst.msk [vmem:[#allocation2] sm:$0xff] %vm171, 0.0
      %173 = vst.msk [vmem:[#allocation2 + $0x8] sm:$0xff] %vm171, 0.0
      %vm174 = vcmask 25600
      %175 = vst.msk [vmem:[#allocation2 + $0x10] sm:$0x3] %vm174, 0.0
      %176 = vst.msk [vmem:[#allocation2 + $0x18] sm:$0xff] %vm171, 0.0
      %177 = vst.msk [vmem:[#allocation2 + $0x20] sm:$0xff] %vm171, 0.0
      %178 = vst.msk [vmem:[#allocation2 + $0x28] sm:$0x3] %vm174, 0.0
      %179 = vst.msk [vmem:[#allocation2 + $0x30] sm:$0xff] %vm171, 0.0
      %180 = vst.msk [vmem:[#allocation2 + $0x38] sm:$0xff] %vm171, 0.0
      %181 = vst.msk [vmem:[#allocation2 + $0x40] sm:$0x3] %vm174, 0.0
      %182 = vst.msk [vmem:[#allocation2 + $0x48] sm:$0xff] %vm171, 0.0
      %183 = vst.msk [vmem:[#allocation2 + $0x50] sm:$0xff] %vm171, 0.0
      %184 = vst.msk [vmem:[#allocation2 + $0x58] sm:$0x3] %vm174, 0.0
      %185 = vst.msk [vmem:[#allocation2 + $0x60] sm:$0xff] %vm171, 0.0
      %186 = vst.msk [vmem:[#allocation2 + $0x68] sm:$0xff] %vm171, 0.0
      %187 = vst.msk [vmem:[#allocation2 + $0x70] sm:$0x3] %vm174, 0.0
      %188 = vst.msk [vmem:[#allocation2 + $0x78] sm:$0xff] %vm171, 0.0
      %189 = vst.msk [vmem:[#allocation2 + $0x80] sm:$0xff] %vm171, 0.0
      %190 = vst.msk [vmem:[#allocation2 + $0x88] sm:$0x3] %vm174, 0.0
      %191 = vst.msk [vmem:[#allocation2 + $0x90] sm:$0xff] %vm171, 0.0
      %192 = vst.msk [vmem:[#allocation2 + $0x98] sm:$0xff] %vm171, 0.0
      %193 = vst.msk [vmem:[#allocation2 + $0xa0] sm:$0x3] %vm174, 0.0
      %194 = vst.msk [vmem:[#allocation2 + $0xa8] sm:$0xff] %vm171, 0.0
      %195 = vst.msk [vmem:[#allocation2 + $0xb0] sm:$0xff] %vm171, 0.0
      %196 = vst.msk [vmem:[#allocation2 + $0xb8] sm:$0x3] %vm174, 0.0
      %197 = vst.msk [vmem:[#allocation2 + $0xc0] sm:$0xff] %vm171, 0.0
      %198 = vst.msk [vmem:[#allocation2 + $0xc8] sm:$0xff] %vm171, 0.0
      %199 = vst.msk [vmem:[#allocation2 + $0xd0] sm:$0x3] %vm174, 0.0
      %200 = vst.msk [vmem:[#allocation2 + $0xd8] sm:$0xff] %vm171, 0.0
      %201 = vst.msk [vmem:[#allocation2 + $0xe0] sm:$0xff] %vm171, 0.0
      %202 = vst.msk [vmem:[#allocation2 + $0xe8] sm:$0x3] %vm174, 0.0
      %203 = vst.msk [vmem:[#allocation2 + $0xf0] sm:$0xff] %vm171, 0.0
      %204 = vst.msk [vmem:[#allocation2 + $0xf8] sm:$0xff] %vm171, 0.0
      %205 = vst.msk [vmem:[#allocation2 + $0x100] sm:$0x3] %vm174, 0.0
      %206 = vst.msk [vmem:[#allocation2 + $0x108] sm:$0xff] %vm171, 0.0
      %207 = vst.msk [vmem:[#allocation2 + $0x110] sm:$0xff] %vm171, 0.0
      %208 = vst.msk [vmem:[#allocation2 + $0x118] sm:$0x3] %vm174, 0.0
      %209 = vst.msk [vmem:[#allocation2 + $0x120] sm:$0xff] %vm171, 0.0
      %210 = vst.msk [vmem:[#allocation2 + $0x128] sm:$0xff] %vm171, 0.0
      %211 = vst.msk [vmem:[#allocation2 + $0x130] sm:$0x3] %vm174, 0.0
      %212 = vst.msk [vmem:[#allocation2 + $0x138] sm:$0xff] %vm171, 0.0
      %213 = vst.msk [vmem:[#allocation2 + $0x140] sm:$0xff] %vm171, 0.0
      %214 = vst.msk [vmem:[#allocation2 + $0x148] sm:$0x3] %vm174, 0.0
      %215 = vst.msk [vmem:[#allocation2 + $0x150] sm:$0xff] %vm171, 0.0
      %216 = vst.msk [vmem:[#allocation2 + $0x158] sm:$0xff] %vm171, 0.0
      %217 = vst.msk [vmem:[#allocation2 + $0x160] sm:$0x3] %vm174, 0.0
      %218 = vst.msk [vmem:[#allocation2 + $0x168] sm:$0xff] %vm171, 0.0
      %219 = vst.msk [vmem:[#allocation2 + $0x170] sm:$0xff] %vm171, 0.0
      %220 = vst.msk [vmem:[#allocation2 + $0x178] sm:$0x3] %vm174, 0.0
      %221 = vst.msk [vmem:[#allocation2 + $0x180] sm:$0xff] %vm171, 0.0
      %222 = vst.msk [vmem:[#allocation2 + $0x188] sm:$0xff] %vm171, 0.0
      %223 = vst.msk [vmem:[#allocation2 + $0x190] sm:$0x3] %vm174, 0.0
      %224 = vst.msk [vmem:[#allocation2 + $0x198] sm:$0xff] %vm171, 0.0
      %225 = vst.msk [vmem:[#allocation2 + $0x1a0] sm:$0xff] %vm171, 0.0
      %226 = vst.msk [vmem:[#allocation2 + $0x1a8] sm:$0x3] %vm174, 0.0
      %v227 = vld [vmem:[%s165] sm:$0xff]
      %v228 = vld [vmem:[%s165 + $0x8] sm:$0xff]
      %v229 = vld [vmem:[%s165 + $0x10] sm:$0xff]
      %v230 = vld [vmem:[%s165 + $0x18] sm:$0xff]
      %v231 = vld [vmem:[%s165 + $0x20] sm:$0xff]
      %v232 = vld [vmem:[%s165 + $0x28] sm:$0xff]
      %v233 = vld [vmem:[%s165 + $0x30] sm:$0xff]
      %v234 = vld [vmem:[%s165 + $0x38] sm:$0xff]
      %v235 = vld [vmem:[%s165 + $0x40] sm:$0xff]
      %v236 = vld [vmem:[%s165 + $0x48] sm:$0xff]
      %v237 = vld [vmem:[%s165 + $0x50] sm:$0xff]
      %v238 = vld [vmem:[%s165 + $0x58] sm:$0xff]
      %v239 = vld [vmem:[%s165 + $0x60] sm:$0xff]
      %v240 = vld [vmem:[%s165 + $0x68] sm:$0xff]
      %v241 = vld [vmem:[%s165 + $0x70] sm:$0xff]
      %v242 = vld [vmem:[%s165 + $0x78] sm:$0xff]
      %v243 = vld [vmem:[%s165 + $0x80] sm:$0xff]
      %v244 = vld [vmem:[%s165 + $0x88] sm:$0xff]
      %v245 = vld [vmem:[%s165 + $0x90] sm:$0xff]
      %v246 = vld [vmem:[%s165 + $0x98] sm:$0xff]
      %v247 = vld [vmem:[%s165 + $0xa0] sm:$0xff]
      %v248 = vld [vmem:[%s165 + $0xa8] sm:$0xff]
      %v249 = vld [vmem:[%s165 + $0xb0] sm:$0xff]
      %v250 = vld [vmem:[%s165 + $0xb8] sm:$0xff]
      %v251 = vld [vmem:[%s165 + $0xc0] sm:$0xff]
      %v252 = vld [vmem:[%s165 + $0xc8] sm:$0xff]
      %v253 = vld [vmem:[%s165 + $0xd0] sm:$0xff]
      %v254 = vld [vmem:[%s165 + $0xd8] sm:$0xff]
      %v255 = vld [vmem:[%s165 + $0xe0] sm:$0xff]
      %v256 = vld [vmem:[%s165 + $0xe8] sm:$0xff]
      %v257 = vld [vmem:[%s165 + $0xf0] sm:$0xff]
      %v258 = vld [vmem:[%s165 + $0xf8] sm:$0xff]
      %s259 = scalar_lea.vmem [#allocation2], 24
      %260 = vst.msk [vmem:[%s259 + $0x1] sm:$0xff] %vm171, %v227
      %261 = vst.msk [vmem:[%s259 + $0x9] sm:$0xff] %vm171, %v228
      %262 = vst.msk [vmem:[%s259 + $0x19] sm:$0xff] %vm171, %v229
      %263 = vst.msk [vmem:[%s259 + $0x21] sm:$0xff] %vm171, %v230
      %264 = vst.msk [vmem:[%s259 + $0x31] sm:$0xff] %vm171, %v231
      %265 = vst.msk [vmem:[%s259 + $0x39] sm:$0xff] %vm171, %v232
      %266 = vst.msk [vmem:[%s259 + $0x49] sm:$0xff] %vm171, %v233
      %267 = vst.msk [vmem:[%s259 + $0x51] sm:$0xff] %vm171, %v234
      %268 = vst.msk [vmem:[%s259 + $0x61] sm:$0xff] %vm171, %v235
      %269 = vst.msk [vmem:[%s259 + $0x69] sm:$0xff] %vm171, %v236
      %270 = vst.msk [vmem:[%s259 + $0x79] sm:$0xff] %vm171, %v237
      %271 = vst.msk [vmem:[%s259 + $0x81] sm:$0xff] %vm171, %v238
      %272 = vst.msk [vmem:[%s259 + $0x91] sm:$0xff] %vm171, %v239
      %273 = vst.msk [vmem:[%s259 + $0x99] sm:$0xff] %vm171, %v240
      %274 = vst.msk [vmem:[%s259 + $0xa9] sm:$0xff] %vm171, %v241
      %275 = vst.msk [vmem:[%s259 + $0xb1] sm:$0xff] %vm171, %v242
      %276 = vst.msk [vmem:[%s259 + $0xc1] sm:$0xff] %vm171, %v243
      %277 = vst.msk [vmem:[%s259 + $0xc9] sm:$0xff] %vm171, %v244
      %278 = vst.msk [vmem:[%s259 + $0xd9] sm:$0xff] %vm171, %v245
      %279 = vst.msk [vmem:[%s259 + $0xe1] sm:$0xff] %vm171, %v246
      %280 = vst.msk [vmem:[%s259 + $0xf1] sm:$0xff] %vm171, %v247
      %281 = vst.msk [vmem:[%s259 + $0xf9] sm:$0xff] %vm171, %v248
      %282 = vst.msk [vmem:[%s259 + $0x109] sm:$0xff] %vm171, %v249
      %283 = vst.msk [vmem:[%s259 + $0x111] sm:$0xff] %vm171, %v250
      %284 = vst.msk [vmem:[%s259 + $0x121] sm:$0xff] %vm171, %v251
      %285 = vst.msk [vmem:[%s259 + $0x129] sm:$0xff] %vm171, %v252
      %286 = vst.msk [vmem:[%s259 + $0x139] sm:$0xff] %vm171, %v253
      %287 = vst.msk [vmem:[%s259 + $0x141] sm:$0xff] %vm171, %v254
      %288 = vst.msk [vmem:[%s259 + $0x151] sm:$0xff] %vm171, %v255
      %289 = vst.msk [vmem:[%s259 + $0x159] sm:$0xff] %vm171, %v256
      %290 = vst.msk [vmem:[%s259 + $0x169] sm:$0xff] %vm171, %v257
      %291 = vst.msk [vmem:[%s259 + $0x171] sm:$0xff] %vm171, %v258
      %v292 = vld [vmem:[#allocation2] sm:$0xff]
      %v293 = vld [vmem:[#allocation2 + $0x8] sm:$0xff]
      %v294 = vld [vmem:[#allocation2 + $0x18] sm:$0xff]
      %v295 = vld [vmem:[#allocation2 + $0x20] sm:$0xff]
      %v296 = vld [vmem:[#allocation2 + $0x30] sm:$0xff]
      %v297 = vld [vmem:[#allocation2 + $0x38] sm:$0xff]
      %v298 = vld [vmem:[#allocation2 + $0x48] sm:$0xff]
      %v299 = vld [vmem:[#allocation2 + $0x50] sm:$0xff]
      %v300 = vld [vmem:[#allocation2 + $0x60] sm:$0xff]
      %v301 = vld [vmem:[#allocation2 + $0x68] sm:$0xff]
      %v302 = vld [vmem:[#allocation2 + $0x78] sm:$0xff]
      %v303 = vld [vmem:[#allocation2 + $0x80] sm:$0xff]
      %v304 = vld [vmem:[#allocation2 + $0x90] sm:$0xff]
      %v305 = vld [vmem:[#allocation2 + $0x98] sm:$0xff]
      %v306 = vld [vmem:[#allocation2 + $0xa8] sm:$0xff]
      %v307 = vld [vmem:[#allocation2 + $0xb0] sm:$0xff]
      %v308 = vld [vmem:[#allocation2 + $0xc0] sm:$0xff]
      %v309 = vld [vmem:[#allocation2 + $0xc8] sm:$0xff]
      %v310 = vld [vmem:[#allocation2 + $0xd8] sm:$0xff]
      %v311 = vld [vmem:[#allocation2 + $0xe0] sm:$0xff]
      %v312 = vld [vmem:[#allocation2 + $0xf0] sm:$0xff]
      %v313 = vld [vmem:[#allocation2 + $0xf8] sm:$0xff]
      %v314 = vld [vmem:[#allocation2 + $0x108] sm:$0xff]
      %v315 = vld [vmem:[#allocation2 + $0x110] sm:$0xff]
      %v316 = vld [vmem:[#allocation2 + $0x120] sm:$0xff]
      %v317 = vld [vmem:[#allocation2 + $0x128] sm:$0xff]
      %v318 = vld [vmem:[#allocation2 + $0x138] sm:$0xff]
      %v319 = vld [vmem:[#allocation2 + $0x140] sm:$0xff]
      %v320 = vld [vmem:[#allocation2 + $0x150] sm:$0xff]
      %v321 = vld [vmem:[#allocation2 + $0x158] sm:$0xff]
      %v322 = vld [vmem:[#allocation2 + $0x168] sm:$0xff]
      %v323 = vld [vmem:[#allocation2 + $0x170] sm:$0xff]
      %v324 = vld [vmem:[#allocation2 + $0x1] sm:$0xff]
      %v325 = vld [vmem:[#allocation2 + $0x9] sm:$0xff]
      %v326 = vld [vmem:[#allocation2 + $0x19] sm:$0xff]
      %v327 = vld [vmem:[#allocation2 + $0x21] sm:$0xff]
      %v328 = vld [vmem:[#allocation2 + $0x31] sm:$0xff]
      %v329 = vld [vmem:[#allocation2 + $0x39] sm:$0xff]
      %v330 = vld [vmem:[#allocation2 + $0x49] sm:$0xff]
      %v331 = vld [vmem:[#allocation2 + $0x51] sm:$0xff]
      %v332 = vld [vmem:[#allocation2 + $0x61] sm:$0xff]
      %v333 = vld [vmem:[#allocation2 + $0x69] sm:$0xff]
      %v334 = vld [vmem:[#allocation2 + $0x79] sm:$0xff]
      %v335 = vld [vmem:[#allocation2 + $0x81] sm:$0xff]
      %v336 = vld [vmem:[#allocation2 + $0x91] sm:$0xff]
      %v337 = vld [vmem:[#allocation2 + $0x99] sm:$0xff]
      %v338 = vld [vmem:[#allocation2 + $0xa9] sm:$0xff]
      %v339 = vld [vmem:[#allocation2 + $0xb1] sm:$0xff]
      %v340 = vld [vmem:[#allocation2 + $0xc1] sm:$0xff]
      %v341 = vld [vmem:[#allocation2 + $0xc9] sm:$0xff]
      %v342 = vld [vmem:[#allocation2 + $0xd9] sm:$0xff]
      %v343 = vld [vmem:[#allocation2 + $0xe1] sm:$0xff]
      %v344 = vld [vmem:[#allocation2 + $0xf1] sm:$0xff]
      %v345 = vld [vmem:[#allocation2 + $0xf9] sm:$0xff]
      %v346 = vld [vmem:[#allocation2 + $0x109] sm:$0xff]
      %v347 = vld [vmem:[#allocation2 + $0x111] sm:$0xff]
      %v348 = vld [vmem:[#allocation2 + $0x121] sm:$0xff]
      %v349 = vld [vmem:[#allocation2 + $0x129] sm:$0xff]
      %v350 = vld [vmem:[#allocation2 + $0x139] sm:$0xff]
      %v351 = vld [vmem:[#allocation2 + $0x141] sm:$0xff]
      %v352 = vld [vmem:[#allocation2 + $0x151] sm:$0xff]
      %v353 = vld [vmem:[#allocation2 + $0x159] sm:$0xff]
      %v354 = vld [vmem:[#allocation2 + $0x169] sm:$0xff]
      %v355 = vld [vmem:[#allocation2 + $0x171] sm:$0xff]
      %v356 = vld [vmem:[#allocation2 + $0x2] sm:$0xff]
      %v357 = vld [vmem:[#allocation2 + $0xa] sm:$0xff]
      %v358 = vld [vmem:[#allocation2 + $0x1a] sm:$0xff]
      %v359 = vld [vmem:[#allocation2 + $0x22] sm:$0xff]
      %v360 = vld [vmem:[#allocation2 + $0x32] sm:$0xff]
      %v361 = vld [vmem:[#allocation2 + $0x3a] sm:$0xff]
      %v362 = vld [vmem:[#allocation2 + $0x4a] sm:$0xff]
      %v363 = vld [vmem:[#allocation2 + $0x52] sm:$0xff]
      %v364 = vld [vmem:[#allocation2 + $0x62] sm:$0xff]
      %v365 = vld [vmem:[#allocation2 + $0x6a] sm:$0xff]
      %v366 = vld [vmem:[#allocation2 + $0x7a] sm:$0xff]
      %v367 = vld [vmem:[#allocation2 + $0x82] sm:$0xff]
      %v368 = vld [vmem:[#allocation2 + $0x92] sm:$0xff]
      %v369 = vld [vmem:[#allocation2 + $0x9a] sm:$0xff]
      %v370 = vld [vmem:[#allocation2 + $0xaa] sm:$0xff]
      %v371 = vld [vmem:[#allocation2 + $0xb2] sm:$0xff]
      %v372 = vld [vmem:[#allocation2 + $0xc2] sm:$0xff]
      %v373 = vld [vmem:[#allocation2 + $0xca] sm:$0xff]
      %v374 = vld [vmem:[#allocation2 + $0xda] sm:$0xff]
      %v375 = vld [vmem:[#allocation2 + $0xe2] sm:$0xff]
      %v376 = vld [vmem:[#allocation2 + $0xf2] sm:$0xff]
      %v377 = vld [vmem:[#allocation2 + $0xfa] sm:$0xff]
      %v378 = vld [vmem:[#allocation2 + $0x10a] sm:$0xff]
      %v379 = vld [vmem:[#allocation2 + $0x112] sm:$0xff]
      %v380 = vld [vmem:[#allocation2 + $0x122] sm:$0xff]
      %v381 = vld [vmem:[#allocation2 + $0x12a] sm:$0xff]
      %v382 = vld [vmem:[#allocation2 + $0x13a] sm:$0xff]
      %v383 = vld [vmem:[#allocation2 + $0x142] sm:$0xff]
      %v384 = vld [vmem:[#allocation2 + $0x152] sm:$0xff]
      %v385 = vld [vmem:[#allocation2 + $0x15a] sm:$0xff]
      %v386 = vld [vmem:[#allocation2 + $0x16a] sm:$0xff]
      %v387 = vld [vmem:[#allocation2 + $0x172] sm:$0xff]
      %v388 = vld [vmem:[%s259] sm:$0xff]
      %v389 = vld [vmem:[%s259 + $0x8] sm:$0xff]
      %v390 = vld [vmem:[%s259 + $0x18] sm:$0xff]
      %v391 = vld [vmem:[%s259 + $0x20] sm:$0xff]
      %v392 = vld [vmem:[%s259 + $0x30] sm:$0xff]
      %v393 = vld [vmem:[%s259 + $0x38] sm:$0xff]
      %v394 = vld [vmem:[%s259 + $0x48] sm:$0xff]
      %v395 = vld [vmem:[%s259 + $0x50] sm:$0xff]
      %v396 = vld [vmem:[%s259 + $0x60] sm:$0xff]
      %v397 = vld [vmem:[%s259 + $0x68] sm:$0xff]
      %v398 = vld [vmem:[%s259 + $0x78] sm:$0xff]
      %v399 = vld [vmem:[%s259 + $0x80] sm:$0xff]
      %v400 = vld [vmem:[%s259 + $0x90] sm:$0xff]
      %v401 = vld [vmem:[%s259 + $0x98] sm:$0xff]
      %v402 = vld [vmem:[%s259 + $0xa8] sm:$0xff]
      %v403 = vld [vmem:[%s259 + $0xb0] sm:$0xff]
      %v404 = vld [vmem:[%s259 + $0xc0] sm:$0xff]
      %v405 = vld [vmem:[%s259 + $0xc8] sm:$0xff]
      %v406 = vld [vmem:[%s259 + $0xd8] sm:$0xff]
      %v407 = vld [vmem:[%s259 + $0xe0] sm:$0xff]
      %v408 = vld [vmem:[%s259 + $0xf0] sm:$0xff]
      %v409 = vld [vmem:[%s259 + $0xf8] sm:$0xff]
      %v410 = vld [vmem:[%s259 + $0x108] sm:$0xff]
      %v411 = vld [vmem:[%s259 + $0x110] sm:$0xff]
      %v412 = vld [vmem:[%s259 + $0x120] sm:$0xff]
      %v413 = vld [vmem:[%s259 + $0x128] sm:$0xff]
      %v414 = vld [vmem:[%s259 + $0x138] sm:$0xff]
      %v415 = vld [vmem:[%s259 + $0x140] sm:$0xff]
      %v416 = vld [vmem:[%s259 + $0x150] sm:$0xff]
      %v417 = vld [vmem:[%s259 + $0x158] sm:$0xff]
      %v418 = vld [vmem:[%s259 + $0x168] sm:$0xff]
      %v419 = vld [vmem:[%s259 + $0x170] sm:$0xff]
      %v420 = vld [vmem:[%s259 + $0x1] sm:$0xff]
      %v421 = vld [vmem:[%s259 + $0x9] sm:$0xff]
      %v422 = vld [vmem:[%s259 + $0x19] sm:$0xff]
      %v423 = vld [vmem:[%s259 + $0x21] sm:$0xff]
      %v424 = vld [vmem:[%s259 + $0x31] sm:$0xff]
      %v425 = vld [vmem:[%s259 + $0x39] sm:$0xff]
      %v426 = vld [vmem:[%s259 + $0x49] sm:$0xff]
      %v427 = vld [vmem:[%s259 + $0x51] sm:$0xff]
      %v428 = vld [vmem:[%s259 + $0x61] sm:$0xff]
      %v429 = vld [vmem:[%s259 + $0x69] sm:$0xff]
      %v430 = vld [vmem:[%s259 + $0x79] sm:$0xff]
      %v431 = vld [vmem:[%s259 + $0x81] sm:$0xff]
      %v432 = vld [vmem:[%s259 + $0x91] sm:$0xff]
      %v433 = vld [vmem:[%s259 + $0x99] sm:$0xff]
      %v434 = vld [vmem:[%s259 + $0xa9] sm:$0xff]
      %v435 = vld [vmem:[%s259 + $0xb1] sm:$0xff]
      %v436 = vld [vmem:[%s259 + $0xc1] sm:$0xff]
      %v437 = vld [vmem:[%s259 + $0xc9] sm:$0xff]
      %v438 = vld [vmem:[%s259 + $0xd9] sm:$0xff]
      %v439 = vld [vmem:[%s259 + $0xe1] sm:$0xff]
      %v440 = vld [vmem:[%s259 + $0xf1] sm:$0xff]
      %v441 = vld [vmem:[%s259 + $0xf9] sm:$0xff]
      %v442 = vld [vmem:[%s259 + $0x109] sm:$0xff]
      %v443 = vld [vmem:[%s259 + $0x111] sm:$0xff]
      %v444 = vld [vmem:[%s259 + $0x121] sm:$0xff]
      %v445 = vld [vmem:[%s259 + $0x129] sm:$0xff]
      %v446 = vld [vmem:[%s259 + $0x139] sm:$0xff]
      %v447 = vld [vmem:[%s259 + $0x141] sm:$0xff]
      %v448 = vld [vmem:[%s259 + $0x151] sm:$0xff]
      %v449 = vld [vmem:[%s259 + $0x159] sm:$0xff]
      %v450 = vld [vmem:[%s259 + $0x169] sm:$0xff]
      %v451 = vld [vmem:[%s259 + $0x171] sm:$0xff]
      %v452 = vld [vmem:[%s259 + $0x2] sm:$0xff]
      %v453 = vld [vmem:[%s259 + $0xa] sm:$0xff]
      %v454 = vld [vmem:[%s259 + $0x1a] sm:$0xff]
      %v455 = vld [vmem:[%s259 + $0x22] sm:$0xff]
      %v456 = vld [vmem:[%s259 + $0x32] sm:$0xff]
      %v457 = vld [vmem:[%s259 + $0x3a] sm:$0xff]
      %v458 = vld [vmem:[%s259 + $0x4a] sm:$0xff]
      %v459 = vld [vmem:[%s259 + $0x52] sm:$0xff]
      %v460 = vld [vmem:[%s259 + $0x62] sm:$0xff]
      %v461 = vld [vmem:[%s259 + $0x6a] sm:$0xff]
      %v462 = vld [vmem:[%s259 + $0x7a] sm:$0xff]
      %v463 = vld [vmem:[%s259 + $0x82] sm:$0xff]
      %v464 = vld [vmem:[%s259 + $0x92] sm:$0xff]
      %v465 = vld [vmem:[%s259 + $0x9a] sm:$0xff]
      %v466 = vld [vmem:[%s259 + $0xaa] sm:$0xff]
      %v467 = vld [vmem:[%s259 + $0xb2] sm:$0xff]
      %v468 = vld [vmem:[%s259 + $0xc2] sm:$0xff]
      %v469 = vld [vmem:[%s259 + $0xca] sm:$0xff]
      %v470 = vld [vmem:[%s259 + $0xda] sm:$0xff]
      %v471 = vld [vmem:[%s259 + $0xe2] sm:$0xff]
      %v472 = vld [vmem:[%s259 + $0xf2] sm:$0xff]
      %v473 = vld [vmem:[%s259 + $0xfa] sm:$0xff]
      %v474 = vld [vmem:[%s259 + $0x10a] sm:$0xff]
      %v475 = vld [vmem:[%s259 + $0x112] sm:$0xff]
      %v476 = vld [vmem:[%s259 + $0x122] sm:$0xff]
      %v477 = vld [vmem:[%s259 + $0x12a] sm:$0xff]
      %v478 = vld [vmem:[%s259 + $0x13a] sm:$0xff]
      %v479 = vld [vmem:[%s259 + $0x142] sm:$0xff]
      %v480 = vld [vmem:[%s259 + $0x152] sm:$0xff]
      %v481 = vld [vmem:[%s259 + $0x15a] sm:$0xff]
      %v482 = vld [vmem:[%s259 + $0x16a] sm:$0xff]
      %v483 = vld [vmem:[%s259 + $0x172] sm:$0xff]
      %s484 = scalar_lea.vmem [#allocation2], 48
      %v485 = vld [vmem:[%s484] sm:$0xff]
      %v486 = vld [vmem:[%s484 + $0x8] sm:$0xff]
      %v487 = vld [vmem:[%s484 + $0x18] sm:$0xff]
      %v488 = vld [vmem:[%s484 + $0x20] sm:$0xff]
      %v489 = vld [vmem:[%s484 + $0x30] sm:$0xff]
      %v490 = vld [vmem:[%s484 + $0x38] sm:$0xff]
      %v491 = vld [vmem:[%s484 + $0x48] sm:$0xff]
      %v492 = vld [vmem:[%s484 + $0x50] sm:$0xff]
      %v493 = vld [vmem:[%s484 + $0x60] sm:$0xff]
      %v494 = vld [vmem:[%s484 + $0x68] sm:$0xff]
      %v495 = vld [vmem:[%s484 + $0x78] sm:$0xff]
      %v496 = vld [vmem:[%s484 + $0x80] sm:$0xff]
      %v497 = vld [vmem:[%s484 + $0x90] sm:$0xff]
      %v498 = vld [vmem:[%s484 + $0x98] sm:$0xff]
      %v499 = vld [vmem:[%s484 + $0xa8] sm:$0xff]
      %v500 = vld [vmem:[%s484 + $0xb0] sm:$0xff]
      %v501 = vld [vmem:[%s484 + $0xc0] sm:$0xff]
      %v502 = vld [vmem:[%s484 + $0xc8] sm:$0xff]
      %v503 = vld [vmem:[%s484 + $0xd8] sm:$0xff]
      %v504 = vld [vmem:[%s484 + $0xe0] sm:$0xff]
      %v505 = vld [vmem:[%s484 + $0xf0] sm:$0xff]
      %v506 = vld [vmem:[%s484 + $0xf8] sm:$0xff]
      %v507 = vld [vmem:[%s484 + $0x108] sm:$0xff]
      %v508 = vld [vmem:[%s484 + $0x110] sm:$0xff]
      %v509 = vld [vmem:[%s484 + $0x120] sm:$0xff]
      %v510 = vld [vmem:[%s484 + $0x128] sm:$0xff]
      %v511 = vld [vmem:[%s484 + $0x138] sm:$0xff]
      %v512 = vld [vmem:[%s484 + $0x140] sm:$0xff]
      %v513 = vld [vmem:[%s484 + $0x150] sm:$0xff]
      %v514 = vld [vmem:[%s484 + $0x158] sm:$0xff]
      %v515 = vld [vmem:[%s484 + $0x168] sm:$0xff]
      %v516 = vld [vmem:[%s484 + $0x170] sm:$0xff]
      %v517 = vld [vmem:[%s484 + $0x1] sm:$0xff]
      %v518 = vld [vmem:[%s484 + $0x9] sm:$0xff]
      %v519 = vld [vmem:[%s484 + $0x19] sm:$0xff]
      %v520 = vld [vmem:[%s484 + $0x21] sm:$0xff]
      %v521 = vld [vmem:[%s484 + $0x31] sm:$0xff]
      %v522 = vld [vmem:[%s484 + $0x39] sm:$0xff]
      %v523 = vld [vmem:[%s484 + $0x49] sm:$0xff]
      %v524 = vld [vmem:[%s484 + $0x51] sm:$0xff]
      %v525 = vld [vmem:[%s484 + $0x61] sm:$0xff]
      %v526 = vld [vmem:[%s484 + $0x69] sm:$0xff]
      %v527 = vld [vmem:[%s484 + $0x79] sm:$0xff]
      %v528 = vld [vmem:[%s484 + $0x81] sm:$0xff]
      %v529 = vld [vmem:[%s484 + $0x91] sm:$0xff]
      %v530 = vld [vmem:[%s484 + $0x99] sm:$0xff]
      %v531 = vld [vmem:[%s484 + $0xa9] sm:$0xff]
      %v532 = vld [vmem:[%s484 + $0xb1] sm:$0xff]
      %v533 = vld [vmem:[%s484 + $0xc1] sm:$0xff]
      %v534 = vld [vmem:[%s484 + $0xc9] sm:$0xff]
      %v535 = vld [vmem:[%s484 + $0xd9] sm:$0xff]
      %v536 = vld [vmem:[%s484 + $0xe1] sm:$0xff]
      %v537 = vld [vmem:[%s484 + $0xf1] sm:$0xff]
      %v538 = vld [vmem:[%s484 + $0xf9] sm:$0xff]
      %v539 = vld [vmem:[%s484 + $0x109] sm:$0xff]
      %v540 = vld [vmem:[%s484 + $0x111] sm:$0xff]
      %v541 = vld [vmem:[%s484 + $0x121] sm:$0xff]
      %v542 = vld [vmem:[%s484 + $0x129] sm:$0xff]
      %v543 = vld [vmem:[%s484 + $0x139] sm:$0xff]
      %v544 = vld [vmem:[%s484 + $0x141] sm:$0xff]
      %v545 = vld [vmem:[%s484 + $0x151] sm:$0xff]
      %v546 = vld [vmem:[%s484 + $0x159] sm:$0xff]
      %v547 = vld [vmem:[%s484 + $0x169] sm:$0xff]
      %v548 = vld [vmem:[%s484 + $0x171] sm:$0xff]
      %v549 = vld [vmem:[%s484 + $0x2] sm:$0xff]
      %v550 = vld [vmem:[%s484 + $0xa] sm:$0xff]
      %v551 = vld [vmem:[%s484 + $0x1a] sm:$0xff]
      %v552 = vld [vmem:[%s484 + $0x22] sm:$0xff]
      %v553 = vld [vmem:[%s484 + $0x32] sm:$0xff]
      %v554 = vld [vmem:[%s484 + $0x3a] sm:$0xff]
      %v555 = vld [vmem:[%s484 + $0x4a] sm:$0xff]
      %v556 = vld [vmem:[%s484 + $0x52] sm:$0xff]
      %v557 = vld [vmem:[%s484 + $0x62] sm:$0xff]
      %v558 = vld [vmem:[%s484 + $0x6a] sm:$0xff]
      %v559 = vld [vmem:[%s484 + $0x7a] sm:$0xff]
      %v560 = vld [vmem:[%s484 + $0x82] sm:$0xff]
      %v561 = vld [vmem:[%s484 + $0x92] sm:$0xff]
      %v562 = vld [vmem:[%s484 + $0x9a] sm:$0xff]
      %v563 = vld [vmem:[%s484 + $0xaa] sm:$0xff]
      %v564 = vld [vmem:[%s484 + $0xb2] sm:$0xff]
      %v565 = vld [vmem:[%s484 + $0xc2] sm:$0xff]
      %v566 = vld [vmem:[%s484 + $0xca] sm:$0xff]
      %v567 = vld [vmem:[%s484 + $0xda] sm:$0xff]
      %v568 = vld [vmem:[%s484 + $0xe2] sm:$0xff]
      %v569 = vld [vmem:[%s484 + $0xf2] sm:$0xff]
      %v570 = vld [vmem:[%s484 + $0xfa] sm:$0xff]
      %v571 = vld [vmem:[%s484 + $0x10a] sm:$0xff]
      %v572 = vld [vmem:[%s484 + $0x112] sm:$0xff]
      %v573 = vld [vmem:[%s484 + $0x122] sm:$0xff]
      %v574 = vld [vmem:[%s484 + $0x12a] sm:$0xff]
      %v575 = vld [vmem:[%s484 + $0x13a] sm:$0xff]
      %v576 = vld [vmem:[%s484 + $0x142] sm:$0xff]
      %v577 = vld [vmem:[%s484 + $0x152] sm:$0xff]
      %v578 = vld [vmem:[%s484 + $0x15a] sm:$0xff]
      %v579 = vld [vmem:[%s484 + $0x16a] sm:$0xff]
      %v580 = vld [vmem:[%s484 + $0x172] sm:$0xff]
      %613 = vrot.lane.b32.xlu0 %v324, 4
      %v614 = vpop.permute.xlu0 %613
      %615 = vrot.lane.b32.xlu0 %v325, 4
      %v616 = vpop.permute.xlu0 %615
      %617 = vrot.lane.b32.xlu0 %v326, 4
      %v618 = vpop.permute.xlu0 %617
      %619 = vrot.lane.b32.xlu0 %v327, 4
      %v620 = vpop.permute.xlu0 %619
      %621 = vrot.lane.b32.xlu0 %v328, 4
      %v622 = vpop.permute.xlu0 %621
      %623 = vrot.lane.b32.xlu0 %v329, 4
      %v624 = vpop.permute.xlu0 %623
      %625 = vrot.lane.b32.xlu0 %v330, 4
      %v626 = vpop.permute.xlu0 %625
      %627 = vrot.lane.b32.xlu0 %v331, 4
      %v628 = vpop.permute.xlu0 %627
      %629 = vrot.lane.b32.xlu0 %v332, 4
      %v630 = vpop.permute.xlu0 %629
      %631 = vrot.lane.b32.xlu0 %v333, 4
      %v632 = vpop.permute.xlu0 %631
      %633 = vrot.lane.b32.xlu0 %v334, 4
      %v634 = vpop.permute.xlu0 %633
      %635 = vrot.lane.b32.xlu0 %v335, 4
      %v636 = vpop.permute.xlu0 %635
      %637 = vrot.lane.b32.xlu0 %v336, 4
      %v638 = vpop.permute.xlu0 %637
      %639 = vrot.lane.b32.xlu0 %v337, 4
      %v640 = vpop.permute.xlu0 %639
      %641 = vrot.lane.b32.xlu0 %v338, 4
      %v642 = vpop.permute.xlu0 %641
      %643 = vrot.lane.b32.xlu0 %v339, 4
      %v644 = vpop.permute.xlu0 %643
      %645 = vrot.lane.b32.xlu0 %v340, 4
      %v646 = vpop.permute.xlu0 %645
      %647 = vrot.lane.b32.xlu0 %v341, 4
      %v648 = vpop.permute.xlu0 %647
      %649 = vrot.lane.b32.xlu0 %v342, 4
      %v650 = vpop.permute.xlu0 %649
      %651 = vrot.lane.b32.xlu0 %v343, 4
      %v652 = vpop.permute.xlu0 %651
      %653 = vrot.lane.b32.xlu0 %v344, 4
      %v654 = vpop.permute.xlu0 %653
      %655 = vrot.lane.b32.xlu0 %v345, 4
      %v656 = vpop.permute.xlu0 %655
      %657 = vrot.lane.b32.xlu0 %v346, 4
      %v658 = vpop.permute.xlu0 %657
      %659 = vrot.lane.b32.xlu0 %v347, 4
      %v660 = vpop.permute.xlu0 %659
      %661 = vrot.lane.b32.xlu0 %v348, 4
      %v662 = vpop.permute.xlu0 %661
      %663 = vrot.lane.b32.xlu0 %v349, 4
      %v664 = vpop.permute.xlu0 %663
      %665 = vrot.lane.b32.xlu0 %v350, 4
      %v666 = vpop.permute.xlu0 %665
      %667 = vrot.lane.b32.xlu0 %v351, 4
      %v668 = vpop.permute.xlu0 %667
      %669 = vrot.lane.b32.xlu0 %v352, 4
      %v670 = vpop.permute.xlu0 %669
      %671 = vrot.lane.b32.xlu0 %v353, 4
      %v672 = vpop.permute.xlu0 %671
      %673 = vrot.lane.b32.xlu0 %v354, 4
      %v674 = vpop.permute.xlu0 %673
      %675 = vrot.lane.b32.xlu0 %v355, 4
      %v676 = vpop.permute.xlu0 %675
      %741 = vrot.lane.b32.xlu0 %v356, 8
      %v742 = vpop.permute.xlu0 %741
      %743 = vrot.lane.b32.xlu0 %v357, 8
      %v744 = vpop.permute.xlu0 %743
      %745 = vrot.lane.b32.xlu0 %v358, 8
      %v746 = vpop.permute.xlu0 %745
      %747 = vrot.lane.b32.xlu0 %v359, 8
      %v748 = vpop.permute.xlu0 %747
      %749 = vrot.lane.b32.xlu0 %v360, 8
      %v750 = vpop.permute.xlu0 %749
      %751 = vrot.lane.b32.xlu0 %v361, 8
      %v752 = vpop.permute.xlu0 %751
      %753 = vrot.lane.b32.xlu0 %v362, 8
      %v754 = vpop.permute.xlu0 %753
      %755 = vrot.lane.b32.xlu0 %v363, 8
      %v756 = vpop.permute.xlu0 %755
      %757 = vrot.lane.b32.xlu0 %v364, 8
      %v758 = vpop.permute.xlu0 %757
      %759 = vrot.lane.b32.xlu0 %v365, 8
      %v760 = vpop.permute.xlu0 %759
      %761 = vrot.lane.b32.xlu0 %v366, 8
      %v762 = vpop.permute.xlu0 %761
      %763 = vrot.lane.b32.xlu0 %v367, 8
      %v764 = vpop.permute.xlu0 %763
      %765 = vrot.lane.b32.xlu0 %v368, 8
      %v766 = vpop.permute.xlu0 %765
      %767 = vrot.lane.b32.xlu0 %v369, 8
      %v768 = vpop.permute.xlu0 %767
      %769 = vrot.lane.b32.xlu0 %v370, 8
      %v770 = vpop.permute.xlu0 %769
      %771 = vrot.lane.b32.xlu0 %v371, 8
      %v772 = vpop.permute.xlu0 %771
      %773 = vrot.lane.b32.xlu0 %v372, 8
      %v774 = vpop.permute.xlu0 %773
      %775 = vrot.lane.b32.xlu0 %v373, 8
      %v776 = vpop.permute.xlu0 %775
      %777 = vrot.lane.b32.xlu0 %v374, 8
      %v778 = vpop.permute.xlu0 %777
      %779 = vrot.lane.b32.xlu0 %v375, 8
      %v780 = vpop.permute.xlu0 %779
      %781 = vrot.lane.b32.xlu0 %v376, 8
      %v782 = vpop.permute.xlu0 %781
      %783 = vrot.lane.b32.xlu0 %v377, 8
      %v784 = vpop.permute.xlu0 %783
      %785 = vrot.lane.b32.xlu0 %v378, 8
      %v786 = vpop.permute.xlu0 %785
      %787 = vrot.lane.b32.xlu0 %v379, 8
      %v788 = vpop.permute.xlu0 %787
      %789 = vrot.lane.b32.xlu0 %v380, 8
      %v790 = vpop.permute.xlu0 %789
      %791 = vrot.lane.b32.xlu0 %v381, 8
      %v792 = vpop.permute.xlu0 %791
      %793 = vrot.lane.b32.xlu0 %v382, 8
      %v794 = vpop.permute.xlu0 %793
      %795 = vrot.lane.b32.xlu0 %v383, 8
      %v796 = vpop.permute.xlu0 %795
      %797 = vrot.lane.b32.xlu0 %v384, 8
      %v798 = vpop.permute.xlu0 %797
      %799 = vrot.lane.b32.xlu0 %v385, 8
      %v800 = vpop.permute.xlu0 %799
      %801 = vrot.lane.b32.xlu0 %v386, 8
      %v802 = vpop.permute.xlu0 %801
      %803 = vrot.lane.b32.xlu0 %v387, 8
      %v804 = vpop.permute.xlu0 %803
      %869 = vrot.lane.b32.xlu0 %v388, 12
      %v870 = vpop.permute.xlu0 %869
      %871 = vrot.lane.b32.xlu0 %v389, 12
      %v872 = vpop.permute.xlu0 %871
      %873 = vrot.lane.b32.xlu0 %v390, 12
      %v874 = vpop.permute.xlu0 %873
      %875 = vrot.lane.b32.xlu0 %v391, 12
      %v876 = vpop.permute.xlu0 %875
      %877 = vrot.lane.b32.xlu0 %v392, 12
      %v878 = vpop.permute.xlu0 %877
      %879 = vrot.lane.b32.xlu0 %v393, 12
      %v880 = vpop.permute.xlu0 %879
      %881 = vrot.lane.b32.xlu0 %v394, 12
      %v882 = vpop.permute.xlu0 %881
      %883 = vrot.lane.b32.xlu0 %v395, 12
      %v884 = vpop.permute.xlu0 %883
      %885 = vrot.lane.b32.xlu0 %v396, 12
      %v886 = vpop.permute.xlu0 %885
      %887 = vrot.lane.b32.xlu0 %v397, 12
      %v888 = vpop.permute.xlu0 %887
      %889 = vrot.lane.b32.xlu0 %v398, 12
      %v890 = vpop.permute.xlu0 %889
      %891 = vrot.lane.b32.xlu0 %v399, 12
      %v892 = vpop.permute.xlu0 %891
      %893 = vrot.lane.b32.xlu0 %v400, 12
      %v894 = vpop.permute.xlu0 %893
      %895 = vrot.lane.b32.xlu0 %v401, 12
      %v896 = vpop.permute.xlu0 %895
      %897 = vrot.lane.b32.xlu0 %v402, 12
      %v898 = vpop.permute.xlu0 %897
      %899 = vrot.lane.b32.xlu0 %v403, 12
      %v900 = vpop.permute.xlu0 %899
      %901 = vrot.lane.b32.xlu0 %v404, 12
      %v902 = vpop.permute.xlu0 %901
      %903 = vrot.lane.b32.xlu0 %v405, 12
      %v904 = vpop.permute.xlu0 %903
      %905 = vrot.lane.b32.xlu0 %v406, 12
      %v906 = vpop.permute.xlu0 %905
      %907 = vrot.lane.b32.xlu0 %v407, 12
      %v908 = vpop.permute.xlu0 %907
      %909 = vrot.lane.b32.xlu0 %v408, 12
      %v910 = vpop.permute.xlu0 %909
      %911 = vrot.lane.b32.xlu0 %v409, 12
      %v912 = vpop.permute.xlu0 %911
      %913 = vrot.lane.b32.xlu0 %v410, 12
      %v914 = vpop.permute.xlu0 %913
      %915 = vrot.lane.b32.xlu0 %v411, 12
      %v916 = vpop.permute.xlu0 %915
      %917 = vrot.lane.b32.xlu0 %v412, 12
      %v918 = vpop.permute.xlu0 %917
      %919 = vrot.lane.b32.xlu0 %v413, 12
      %v920 = vpop.permute.xlu0 %919
      %921 = vrot.lane.b32.xlu0 %v414, 12
      %v922 = vpop.permute.xlu0 %921
      %923 = vrot.lane.b32.xlu0 %v415, 12
      %v924 = vpop.permute.xlu0 %923
      %925 = vrot.lane.b32.xlu0 %v416, 12
      %v926 = vpop.permute.xlu0 %925
      %927 = vrot.lane.b32.xlu0 %v417, 12
      %v928 = vpop.permute.xlu0 %927
      %929 = vrot.lane.b32.xlu0 %v418, 12
      %v930 = vpop.permute.xlu0 %929
      %931 = vrot.lane.b32.xlu0 %v419, 12
      %v932 = vpop.permute.xlu0 %931
      %997 = vrot.lane.b32.xlu0 %v420, 16
      %v998 = vpop.permute.xlu0 %997
      %999 = vrot.lane.b32.xlu0 %v421, 16
      %v1000 = vpop.permute.xlu0 %999
      %1001 = vrot.lane.b32.xlu0 %v422, 16
      %v1002 = vpop.permute.xlu0 %1001
      %1003 = vrot.lane.b32.xlu0 %v423, 16
      %v1004 = vpop.permute.xlu0 %1003
      %1005 = vrot.lane.b32.xlu0 %v424, 16
      %v1006 = vpop.permute.xlu0 %1005
      %1007 = vrot.lane.b32.xlu0 %v425, 16
      %v1008 = vpop.permute.xlu0 %1007
      %1009 = vrot.lane.b32.xlu0 %v426, 16
      %v1010 = vpop.permute.xlu0 %1009
      %1011 = vrot.lane.b32.xlu0 %v427, 16
      %v1012 = vpop.permute.xlu0 %1011
      %1013 = vrot.lane.b32.xlu0 %v428, 16
      %v1014 = vpop.permute.xlu0 %1013
      %1015 = vrot.lane.b32.xlu0 %v429, 16
      %v1016 = vpop.permute.xlu0 %1015
      %1017 = vrot.lane.b32.xlu0 %v430, 16
      %v1018 = vpop.permute.xlu0 %1017
      %1019 = vrot.lane.b32.xlu0 %v431, 16
      %v1020 = vpop.permute.xlu0 %1019
      %1021 = vrot.lane.b32.xlu0 %v432, 16
      %v1022 = vpop.permute.xlu0 %1021
      %1023 = vrot.lane.b32.xlu0 %v433, 16
      %v1024 = vpop.permute.xlu0 %1023
      %1025 = vrot.lane.b32.xlu0 %v434, 16
      %v1026 = vpop.permute.xlu0 %1025
      %1027 = vrot.lane.b32.xlu0 %v435, 16
      %v1028 = vpop.permute.xlu0 %1027
      %1029 = vrot.lane.b32.xlu0 %v436, 16
      %v1030 = vpop.permute.xlu0 %1029
      %1031 = vrot.lane.b32.xlu0 %v437, 16
      %v1032 = vpop.permute.xlu0 %1031
      %1033 = vrot.lane.b32.xlu0 %v438, 16
      %v1034 = vpop.permute.xlu0 %1033
      %1035 = vrot.lane.b32.xlu0 %v439, 16
      %v1036 = vpop.permute.xlu0 %1035
      %1037 = vrot.lane.b32.xlu0 %v440, 16
      %v1038 = vpop.permute.xlu0 %1037
      %1039 = vrot.lane.b32.xlu0 %v441, 16
      %v1040 = vpop.permute.xlu0 %1039
      %1041 = vrot.lane.b32.xlu0 %v442, 16
      %v1042 = vpop.permute.xlu0 %1041
      %1043 = vrot.lane.b32.xlu0 %v443, 16
      %v1044 = vpop.permute.xlu0 %1043
      %1045 = vrot.lane.b32.xlu0 %v444, 16
      %v1046 = vpop.permute.xlu0 %1045
      %1047 = vrot.lane.b32.xlu0 %v445, 16
      %v1048 = vpop.permute.xlu0 %1047
      %1049 = vrot.lane.b32.xlu0 %v446, 16
      %v1050 = vpop.permute.xlu0 %1049
      %1051 = vrot.lane.b32.xlu0 %v447, 16
      %v1052 = vpop.permute.xlu0 %1051
      %1053 = vrot.lane.b32.xlu0 %v448, 16
      %v1054 = vpop.permute.xlu0 %1053
      %1055 = vrot.lane.b32.xlu0 %v449, 16
      %v1056 = vpop.permute.xlu0 %1055
      %1057 = vrot.lane.b32.xlu0 %v450, 16
      %v1058 = vpop.permute.xlu0 %1057
      %1059 = vrot.lane.b32.xlu0 %v451, 16
      %v1060 = vpop.permute.xlu0 %1059
      %1125 = vrot.lane.b32.xlu0 %v452, 20
      %v1126 = vpop.permute.xlu0 %1125
      %1127 = vrot.lane.b32.xlu0 %v453, 20
      %v1128 = vpop.permute.xlu0 %1127
      %1129 = vrot.lane.b32.xlu0 %v454, 20
      %v1130 = vpop.permute.xlu0 %1129
      %1131 = vrot.lane.b32.xlu0 %v455, 20
      %v1132 = vpop.permute.xlu0 %1131
      %1133 = vrot.lane.b32.xlu0 %v456, 20
      %v1134 = vpop.permute.xlu0 %1133
      %1135 = vrot.lane.b32.xlu0 %v457, 20
      %v1136 = vpop.permute.xlu0 %1135
      %1137 = vrot.lane.b32.xlu0 %v458, 20
      %v1138 = vpop.permute.xlu0 %1137
      %1139 = vrot.lane.b32.xlu0 %v459, 20
      %v1140 = vpop.permute.xlu0 %1139
      %1141 = vrot.lane.b32.xlu0 %v460, 20
      %v1142 = vpop.permute.xlu0 %1141
      %1143 = vrot.lane.b32.xlu0 %v461, 20
      %v1144 = vpop.permute.xlu0 %1143
      %1145 = vrot.lane.b32.xlu0 %v462, 20
      %v1146 = vpop.permute.xlu0 %1145
      %1147 = vrot.lane.b32.xlu0 %v463, 20
      %v1148 = vpop.permute.xlu0 %1147
      %1149 = vrot.lane.b32.xlu0 %v464, 20
      %v1150 = vpop.permute.xlu0 %1149
      %1151 = vrot.lane.b32.xlu0 %v465, 20
      %v1152 = vpop.permute.xlu0 %1151
      %1153 = vrot.lane.b32.xlu0 %v466, 20
      %v1154 = vpop.permute.xlu0 %1153
      %1155 = vrot.lane.b32.xlu0 %v467, 20
      %v1156 = vpop.permute.xlu0 %1155
      %1157 = vrot.lane.b32.xlu0 %v468, 20
      %v1158 = vpop.permute.xlu0 %1157
      %1159 = vrot.lane.b32.xlu0 %v469, 20
      %v1160 = vpop.permute.xlu0 %1159
      %1161 = vrot.lane.b32.xlu0 %v470, 20
      %v1162 = vpop.permute.xlu0 %1161
      %1163 = vrot.lane.b32.xlu0 %v471, 20
      %v1164 = vpop.permute.xlu0 %1163
      %1165 = vrot.lane.b32.xlu0 %v472, 20
      %v1166 = vpop.permute.xlu0 %1165
      %1167 = vrot.lane.b32.xlu0 %v473, 20
      %v1168 = vpop.permute.xlu0 %1167
      %1169 = vrot.lane.b32.xlu0 %v474, 20
      %v1170 = vpop.permute.xlu0 %1169
      %1171 = vrot.lane.b32.xlu0 %v475, 20
      %v1172 = vpop.permute.xlu0 %1171
      %1173 = vrot.lane.b32.xlu0 %v476, 20
      %v1174 = vpop.permute.xlu0 %1173
      %1175 = vrot.lane.b32.xlu0 %v477, 20
      %v1176 = vpop.permute.xlu0 %1175
      %1177 = vrot.lane.b32.xlu0 %v478, 20
      %v1178 = vpop.permute.xlu0 %1177
      %1179 = vrot.lane.b32.xlu0 %v479, 20
      %v1180 = vpop.permute.xlu0 %1179
      %1181 = vrot.lane.b32.xlu0 %v480, 20
      %v1182 = vpop.permute.xlu0 %1181
      %1183 = vrot.lane.b32.xlu0 %v481, 20
      %v1184 = vpop.permute.xlu0 %1183
      %1185 = vrot.lane.b32.xlu0 %v482, 20
      %v1186 = vpop.permute.xlu0 %1185
      %1187 = vrot.lane.b32.xlu0 %v483, 20
      %v1188 = vpop.permute.xlu0 %1187
      %1253 = vrot.lane.b32.xlu0 %v485, 24
      %v1254 = vpop.permute.xlu0 %1253
      %1255 = vrot.lane.b32.xlu0 %v486, 24
      %v1256 = vpop.permute.xlu0 %1255
      %1257 = vrot.lane.b32.xlu0 %v487, 24
      %v1258 = vpop.permute.xlu0 %1257
      %1259 = vrot.lane.b32.xlu0 %v488, 24
      %v1260 = vpop.permute.xlu0 %1259
      %1261 = vrot.lane.b32.xlu0 %v489, 24
      %v1262 = vpop.permute.xlu0 %1261
      %1263 = vrot.lane.b32.xlu0 %v490, 24
      %v1264 = vpop.permute.xlu0 %1263
      %1265 = vrot.lane.b32.xlu0 %v491, 24
      %v1266 = vpop.permute.xlu0 %1265
      %1267 = vrot.lane.b32.xlu0 %v492, 24
      %v1268 = vpop.permute.xlu0 %1267
      %1269 = vrot.lane.b32.xlu0 %v493, 24
      %v1270 = vpop.permute.xlu0 %1269
      %1271 = vrot.lane.b32.xlu0 %v494, 24
      %v1272 = vpop.permute.xlu0 %1271
      %1273 = vrot.lane.b32.xlu0 %v495, 24
      %v1274 = vpop.permute.xlu0 %1273
      %1275 = vrot.lane.b32.xlu0 %v496, 24
      %v1276 = vpop.permute.xlu0 %1275
      %1277 = vrot.lane.b32.xlu0 %v497, 24
      %v1278 = vpop.permute.xlu0 %1277
      %1279 = vrot.lane.b32.xlu0 %v498, 24
      %v1280 = vpop.permute.xlu0 %1279
      %1281 = vrot.lane.b32.xlu0 %v499, 24
      %v1282 = vpop.permute.xlu0 %1281
      %1283 = vrot.lane.b32.xlu0 %v500, 24
      %v1284 = vpop.permute.xlu0 %1283
      %1285 = vrot.lane.b32.xlu0 %v501, 24
      %v1286 = vpop.permute.xlu0 %1285
      %1287 = vrot.lane.b32.xlu0 %v502, 24
      %v1288 = vpop.permute.xlu0 %1287
      %1289 = vrot.lane.b32.xlu0 %v503, 24
      %v1290 = vpop.permute.xlu0 %1289
      %1291 = vrot.lane.b32.xlu0 %v504, 24
      %v1292 = vpop.permute.xlu0 %1291
      %1293 = vrot.lane.b32.xlu0 %v505, 24
      %v1294 = vpop.permute.xlu0 %1293
      %1295 = vrot.lane.b32.xlu0 %v506, 24
      %v1296 = vpop.permute.xlu0 %1295
      %1297 = vrot.lane.b32.xlu0 %v507, 24
      %v1298 = vpop.permute.xlu0 %1297
      %1299 = vrot.lane.b32.xlu0 %v508, 24
      %v1300 = vpop.permute.xlu0 %1299
      %1301 = vrot.lane.b32.xlu0 %v509, 24
      %v1302 = vpop.permute.xlu0 %1301
      %1303 = vrot.lane.b32.xlu0 %v510, 24
      %v1304 = vpop.permute.xlu0 %1303
      %1305 = vrot.lane.b32.xlu0 %v511, 24
      %v1306 = vpop.permute.xlu0 %1305
      %1307 = vrot.lane.b32.xlu0 %v512, 24
      %v1308 = vpop.permute.xlu0 %1307
      %1309 = vrot.lane.b32.xlu0 %v513, 24
      %v1310 = vpop.permute.xlu0 %1309
      %1311 = vrot.lane.b32.xlu0 %v514, 24
      %v1312 = vpop.permute.xlu0 %1311
      %1313 = vrot.lane.b32.xlu0 %v515, 24
      %v1314 = vpop.permute.xlu0 %1313
      %1315 = vrot.lane.b32.xlu0 %v516, 24
      %v1316 = vpop.permute.xlu0 %1315
      %1381 = vrot.lane.b32.xlu0 %v517, 28
      %v1382 = vpop.permute.xlu0 %1381
      %1383 = vrot.lane.b32.xlu0 %v518, 28
      %v1384 = vpop.permute.xlu0 %1383
      %1385 = vrot.lane.b32.xlu0 %v519, 28
      %v1386 = vpop.permute.xlu0 %1385
      %1387 = vrot.lane.b32.xlu0 %v520, 28
      %v1388 = vpop.permute.xlu0 %1387
      %1389 = vrot.lane.b32.xlu0 %v521, 28
      %v1390 = vpop.permute.xlu0 %1389
      %1391 = vrot.lane.b32.xlu0 %v522, 28
      %v1392 = vpop.permute.xlu0 %1391
      %1393 = vrot.lane.b32.xlu0 %v523, 28
      %v1394 = vpop.permute.xlu0 %1393
      %1395 = vrot.lane.b32.xlu0 %v524, 28
      %v1396 = vpop.permute.xlu0 %1395
      %1397 = vrot.lane.b32.xlu0 %v525, 28
      %v1398 = vpop.permute.xlu0 %1397
      %1399 = vrot.lane.b32.xlu0 %v526, 28
      %v1400 = vpop.permute.xlu0 %1399
      %1401 = vrot.lane.b32.xlu0 %v527, 28
      %v1402 = vpop.permute.xlu0 %1401
      %1403 = vrot.lane.b32.xlu0 %v528, 28
      %v1404 = vpop.permute.xlu0 %1403
      %1405 = vrot.lane.b32.xlu0 %v529, 28
      %v1406 = vpop.permute.xlu0 %1405
      %1407 = vrot.lane.b32.xlu0 %v530, 28
      %v1408 = vpop.permute.xlu0 %1407
      %1409 = vrot.lane.b32.xlu0 %v531, 28
      %v1410 = vpop.permute.xlu0 %1409
      %1411 = vrot.lane.b32.xlu0 %v532, 28
      %v1412 = vpop.permute.xlu0 %1411
      %1413 = vrot.lane.b32.xlu0 %v533, 28
      %v1414 = vpop.permute.xlu0 %1413
      %1415 = vrot.lane.b32.xlu0 %v534, 28
      %v1416 = vpop.permute.xlu0 %1415
      %1417 = vrot.lane.b32.xlu0 %v535, 28
      %v1418 = vpop.permute.xlu0 %1417
      %1419 = vrot.lane.b32.xlu0 %v536, 28
      %v1420 = vpop.permute.xlu0 %1419
      %1421 = vrot.lane.b32.xlu0 %v537, 28
      %v1422 = vpop.permute.xlu0 %1421
      %1423 = vrot.lane.b32.xlu0 %v538, 28
      %v1424 = vpop.permute.xlu0 %1423
      %1425 = vrot.lane.b32.xlu0 %v539, 28
      %v1426 = vpop.permute.xlu0 %1425
      %1427 = vrot.lane.b32.xlu0 %v540, 28
      %v1428 = vpop.permute.xlu0 %1427
      %1429 = vrot.lane.b32.xlu0 %v541, 28
      %v1430 = vpop.permute.xlu0 %1429
      %1431 = vrot.lane.b32.xlu0 %v542, 28
      %v1432 = vpop.permute.xlu0 %1431
      %1433 = vrot.lane.b32.xlu0 %v543, 28
      %v1434 = vpop.permute.xlu0 %1433
      %1435 = vrot.lane.b32.xlu0 %v544, 28
      %v1436 = vpop.permute.xlu0 %1435
      %1437 = vrot.lane.b32.xlu0 %v545, 28
      %v1438 = vpop.permute.xlu0 %1437
      %1439 = vrot.lane.b32.xlu0 %v546, 28
      %v1440 = vpop.permute.xlu0 %1439
      %1441 = vrot.lane.b32.xlu0 %v547, 28
      %v1442 = vpop.permute.xlu0 %1441
      %1443 = vrot.lane.b32.xlu0 %v548, 28
      %v1444 = vpop.permute.xlu0 %1443
      %1509 = vrot.lane.b32.xlu0 %v549, 32
      %v1510 = vpop.permute.xlu0 %1509
      %1511 = vrot.lane.b32.xlu0 %v550, 32
      %v1512 = vpop.permute.xlu0 %1511
      %1513 = vrot.lane.b32.xlu0 %v551, 32
      %v1514 = vpop.permute.xlu0 %1513
      %1515 = vrot.lane.b32.xlu0 %v552, 32
      %v1516 = vpop.permute.xlu0 %1515
      %1517 = vrot.lane.b32.xlu0 %v553, 32
      %v1518 = vpop.permute.xlu0 %1517
      %1519 = vrot.lane.b32.xlu0 %v554, 32
      %v1520 = vpop.permute.xlu0 %1519
      %1521 = vrot.lane.b32.xlu0 %v555, 32
      %v1522 = vpop.permute.xlu0 %1521
      %1523 = vrot.lane.b32.xlu0 %v556, 32
      %v1524 = vpop.permute.xlu0 %1523
      %1525 = vrot.lane.b32.xlu0 %v557, 32
      %v1526 = vpop.permute.xlu0 %1525
      %1527 = vrot.lane.b32.xlu0 %v558, 32
      %v1528 = vpop.permute.xlu0 %1527
      %1529 = vrot.lane.b32.xlu0 %v559, 32
      %v1530 = vpop.permute.xlu0 %1529
      %1531 = vrot.lane.b32.xlu0 %v560, 32
      %v1532 = vpop.permute.xlu0 %1531
      %1533 = vrot.lane.b32.xlu0 %v561, 32
      %v1534 = vpop.permute.xlu0 %1533
      %1535 = vrot.lane.b32.xlu0 %v562, 32
      %v1536 = vpop.permute.xlu0 %1535
      %1537 = vrot.lane.b32.xlu0 %v563, 32
      %v1538 = vpop.permute.xlu0 %1537
      %1539 = vrot.lane.b32.xlu0 %v564, 32
      %v1540 = vpop.permute.xlu0 %1539
      %1541 = vrot.lane.b32.xlu0 %v565, 32
      %v1542 = vpop.permute.xlu0 %1541
      %1543 = vrot.lane.b32.xlu0 %v566, 32
      %v1544 = vpop.permute.xlu0 %1543
      %1545 = vrot.lane.b32.xlu0 %v567, 32
      %v1546 = vpop.permute.xlu0 %1545
      %1547 = vrot.lane.b32.xlu0 %v568, 32
      %v1548 = vpop.permute.xlu0 %1547
      %1549 = vrot.lane.b32.xlu0 %v569, 32
      %v1550 = vpop.permute.xlu0 %1549
      %1551 = vrot.lane.b32.xlu0 %v570, 32
      %v1552 = vpop.permute.xlu0 %1551
      %1553 = vrot.lane.b32.xlu0 %v571, 32
      %v1554 = vpop.permute.xlu0 %1553
      %1555 = vrot.lane.b32.xlu0 %v572, 32
      %v1556 = vpop.permute.xlu0 %1555
      %1557 = vrot.lane.b32.xlu0 %v573, 32
      %v1558 = vpop.permute.xlu0 %1557
      %1559 = vrot.lane.b32.xlu0 %v574, 32
      %v1560 = vpop.permute.xlu0 %1559
      %1561 = vrot.lane.b32.xlu0 %v575, 32
      %v1562 = vpop.permute.xlu0 %1561
      %1563 = vrot.lane.b32.xlu0 %v576, 32
      %v1564 = vpop.permute.xlu0 %1563
      %1565 = vrot.lane.b32.xlu0 %v577, 32
      %v1566 = vpop.permute.xlu0 %1565
      %1567 = vrot.lane.b32.xlu0 %v578, 32
      %v1568 = vpop.permute.xlu0 %1567
      %1569 = vrot.lane.b32.xlu0 %v579, 32
      %v1570 = vpop.permute.xlu0 %1569
      %1571 = vrot.lane.b32.xlu0 %v580, 32
      %v1572 = vpop.permute.xlu0 %1571
      %v1605 = vsel %vm171, %v292, %v614
      %v1606 = vsel %vm171, %v293, %v616
      %v1607 = vsel %vm171, %v294, %v618
      %v1608 = vsel %vm171, %v295, %v620
      %v1609 = vsel %vm171, %v296, %v622
      %v1610 = vsel %vm171, %v297, %v624
      %v1611 = vsel %vm171, %v298, %v626
      %v1612 = vsel %vm171, %v299, %v628
      %v1613 = vsel %vm171, %v300, %v630
      %v1614 = vsel %vm171, %v301, %v632
      %v1615 = vsel %vm171, %v302, %v634
      %v1616 = vsel %vm171, %v303, %v636
      %v1617 = vsel %vm171, %v304, %v638
      %v1618 = vsel %vm171, %v305, %v640
      %v1619 = vsel %vm171, %v306, %v642
      %v1620 = vsel %vm171, %v307, %v644
      %v1621 = vsel %vm171, %v308, %v646
      %v1622 = vsel %vm171, %v309, %v648
      %v1623 = vsel %vm171, %v310, %v650
      %v1624 = vsel %vm171, %v311, %v652
      %v1625 = vsel %vm171, %v312, %v654
      %v1626 = vsel %vm171, %v313, %v656
      %v1627 = vsel %vm171, %v314, %v658
      %v1628 = vsel %vm171, %v315, %v660
      %v1629 = vsel %vm171, %v316, %v662
      %v1630 = vsel %vm171, %v317, %v664
      %v1631 = vsel %vm171, %v318, %v666
      %v1632 = vsel %vm171, %v319, %v668
      %v1633 = vsel %vm171, %v320, %v670
      %v1634 = vsel %vm171, %v321, %v672
      %v1635 = vsel %vm171, %v322, %v674
      %v1636 = vsel %vm171, %v323, %v676
      %vm1637 = vcmask 64512
      %v1638 = vsel %vm1637, %v1605, %v742
      %v1639 = vsel %vm1637, %v1606, %v744
      %v1640 = vsel %vm1637, %v1607, %v746
      %v1641 = vsel %vm1637, %v1608, %v748
      %v1642 = vsel %vm1637, %v1609, %v750
      %v1643 = vsel %vm1637, %v1610, %v752
      %v1644 = vsel %vm1637, %v1611, %v754
      %v1645 = vsel %vm1637, %v1612, %v756
      %v1646 = vsel %vm1637, %v1613, %v758
      %v1647 = vsel %vm1637, %v1614, %v760
      %v1648 = vsel %vm1637, %v1615, %v762
      %v1649 = vsel %vm1637, %v1616, %v764
      %v1650 = vsel %vm1637, %v1617, %v766
      %v1651 = vsel %vm1637, %v1618, %v768
      %v1652 = vsel %vm1637, %v1619, %v770
      %v1653 = vsel %vm1637, %v1620, %v772
      %v1654 = vsel %vm1637, %v1621, %v774
      %v1655 = vsel %vm1637, %v1622, %v776
      %v1656 = vsel %vm1637, %v1623, %v778
      %v1657 = vsel %vm1637, %v1624, %v780
      %v1658 = vsel %vm1637, %v1625, %v782
      %v1659 = vsel %vm1637, %v1626, %v784
      %v1660 = vsel %vm1637, %v1627, %v786
      %v1661 = vsel %vm1637, %v1628, %v788
      %v1662 = vsel %vm1637, %v1629, %v790
      %v1663 = vsel %vm1637, %v1630, %v792
      %v1664 = vsel %vm1637, %v1631, %v794
      %v1665 = vsel %vm1637, %v1632, %v796
      %v1666 = vsel %vm1637, %v1633, %v798
      %v1667 = vsel %vm1637, %v1634, %v800
      %v1668 = vsel %vm1637, %v1635, %v802
      %v1669 = vsel %vm1637, %v1636, %v804
      %vm1670 = vcmask 97280
      %v1671 = vsel %vm1670, %v1638, %v870
      %v1672 = vsel %vm1670, %v1639, %v872
      %v1673 = vsel %vm1670, %v1640, %v874
      %v1674 = vsel %vm1670, %v1641, %v876
      %v1675 = vsel %vm1670, %v1642, %v878
      %v1676 = vsel %vm1670, %v1643, %v880
      %v1677 = vsel %vm1670, %v1644, %v882
      %v1678 = vsel %vm1670, %v1645, %v884
      %v1679 = vsel %vm1670, %v1646, %v886
      %v1680 = vsel %vm1670, %v1647, %v888
      %v1681 = vsel %vm1670, %v1648, %v890
      %v1682 = vsel %vm1670, %v1649, %v892
      %v1683 = vsel %vm1670, %v1650, %v894
      %v1684 = vsel %vm1670, %v1651, %v896
      %v1685 = vsel %vm1670, %v1652, %v898
      %v1686 = vsel %vm1670, %v1653, %v900
      %v1687 = vsel %vm1670, %v1654, %v902
      %v1688 = vsel %vm1670, %v1655, %v904
      %v1689 = vsel %vm1670, %v1656, %v906
      %v1690 = vsel %vm1670, %v1657, %v908
      %v1691 = vsel %vm1670, %v1658, %v910
      %v1692 = vsel %vm1670, %v1659, %v912
      %v1693 = vsel %vm1670, %v1660, %v914
      %v1694 = vsel %vm1670, %v1661, %v916
      %v1695 = vsel %vm1670, %v1662, %v918
      %v1696 = vsel %vm1670, %v1663, %v920
      %v1697 = vsel %vm1670, %v1664, %v922
      %v1698 = vsel %vm1670, %v1665, %v924
      %v1699 = vsel %vm1670, %v1666, %v926
      %v1700 = vsel %vm1670, %v1667, %v928
      %v1701 = vsel %vm1670, %v1668, %v930
      %v1702 = vsel %vm1670, %v1669, %v932
      %vm1703 = vcmask 130048
      %v1704 = vsel %vm1703, %v1671, %v998
      %v1705 = vsel %vm1703, %v1672, %v1000
      %v1706 = vsel %vm1703, %v1673, %v1002
      %v1707 = vsel %vm1703, %v1674, %v1004
      %v1708 = vsel %vm1703, %v1675, %v1006
      %v1709 = vsel %vm1703, %v1676, %v1008
      %v1710 = vsel %vm1703, %v1677, %v1010
      %v1711 = vsel %vm1703, %v1678, %v1012
      %v1712 = vsel %vm1703, %v1679, %v1014
      %v1713 = vsel %vm1703, %v1680, %v1016
      %v1714 = vsel %vm1703, %v1681, %v1018
      %v1715 = vsel %vm1703, %v1682, %v1020
      %v1716 = vsel %vm1703, %v1683, %v1022
      %v1717 = vsel %vm1703, %v1684, %v1024
      %v1718 = vsel %vm1703, %v1685, %v1026
      %v1719 = vsel %vm1703, %v1686, %v1028
      %v1720 = vsel %vm1703, %v1687, %v1030
      %v1721 = vsel %vm1703, %v1688, %v1032
      %v1722 = vsel %vm1703, %v1689, %v1034
      %v1723 = vsel %vm1703, %v1690, %v1036
      %v1724 = vsel %vm1703, %v1691, %v1038
      %v1725 = vsel %vm1703, %v1692, %v1040
      %v1726 = vsel %vm1703, %v1693, %v1042
      %v1727 = vsel %vm1703, %v1694, %v1044
      %v1728 = vsel %vm1703, %v1695, %v1046
      %v1729 = vsel %vm1703, %v1696, %v1048
      %v1730 = vsel %vm1703, %v1697, %v1050
      %v1731 = vsel %vm1703, %v1698, %v1052
      %v1732 = vsel %vm1703, %v1699, %v1054
      %v1733 = vsel %vm1703, %v1700, %v1056
      %v1734 = vsel %vm1703, %v1701, %v1058
      %v1735 = vsel %vm1703, %v1702, %v1060
      %vm1736 = vcmask 162816
      %v1737 = vsel %vm1736, %v1704, %v1126
      %v1738 = vsel %vm1736, %v1705, %v1128
      %v1739 = vsel %vm1736, %v1706, %v1130
      %v1740 = vsel %vm1736, %v1707, %v1132
      %v1741 = vsel %vm1736, %v1708, %v1134
      %v1742 = vsel %vm1736, %v1709, %v1136
      %v1743 = vsel %vm1736, %v1710, %v1138
      %v1744 = vsel %vm1736, %v1711, %v1140
      %v1745 = vsel %vm1736, %v1712, %v1142
      %v1746 = vsel %vm1736, %v1713, %v1144
      %v1747 = vsel %vm1736, %v1714, %v1146
      %v1748 = vsel %vm1736, %v1715, %v1148
      %v1749 = vsel %vm1736, %v1716, %v1150
      %v1750 = vsel %vm1736, %v1717, %v1152
      %v1751 = vsel %vm1736, %v1718, %v1154
      %v1752 = vsel %vm1736, %v1719, %v1156
      %v1753 = vsel %vm1736, %v1720, %v1158
      %v1754 = vsel %vm1736, %v1721, %v1160
      %v1755 = vsel %vm1736, %v1722, %v1162
      %v1756 = vsel %vm1736, %v1723, %v1164
      %v1757 = vsel %vm1736, %v1724, %v1166
      %v1758 = vsel %vm1736, %v1725, %v1168
      %v1759 = vsel %vm1736, %v1726, %v1170
      %v1760 = vsel %vm1736, %v1727, %v1172
      %v1761 = vsel %vm1736, %v1728, %v1174
      %v1762 = vsel %vm1736, %v1729, %v1176
      %v1763 = vsel %vm1736, %v1730, %v1178
      %v1764 = vsel %vm1736, %v1731, %v1180
      %v1765 = vsel %vm1736, %v1732, %v1182
      %v1766 = vsel %vm1736, %v1733, %v1184
      %v1767 = vsel %vm1736, %v1734, %v1186
      %v1768 = vsel %vm1736, %v1735, %v1188
      %vm1769 = vcmask 195584
      %v1770 = vsel %vm1769, %v1737, %v1254
      %v1771 = vsel %vm1769, %v1738, %v1256
      %v1772 = vsel %vm1769, %v1739, %v1258
      %v1773 = vsel %vm1769, %v1740, %v1260
      %v1774 = vsel %vm1769, %v1741, %v1262
      %v1775 = vsel %vm1769, %v1742, %v1264
      %v1776 = vsel %vm1769, %v1743, %v1266
      %v1777 = vsel %vm1769, %v1744, %v1268
      %v1778 = vsel %vm1769, %v1745, %v1270
      %v1779 = vsel %vm1769, %v1746, %v1272
      %v1780 = vsel %vm1769, %v1747, %v1274
      %v1781 = vsel %vm1769, %v1748, %v1276
      %v1782 = vsel %vm1769, %v1749, %v1278
      %v1783 = vsel %vm1769, %v1750, %v1280
      %v1784 = vsel %vm1769, %v1751, %v1282
      %v1785 = vsel %vm1769, %v1752, %v1284
      %v1786 = vsel %vm1769, %v1753, %v1286
      %v1787 = vsel %vm1769, %v1754, %v1288
      %v1788 = vsel %vm1769, %v1755, %v1290
      %v1789 = vsel %vm1769, %v1756, %v1292
      %v1790 = vsel %vm1769, %v1757, %v1294
      %v1791 = vsel %vm1769, %v1758, %v1296
      %v1792 = vsel %vm1769, %v1759, %v1298
      %v1793 = vsel %vm1769, %v1760, %v1300
      %v1794 = vsel %vm1769, %v1761, %v1302
      %v1795 = vsel %vm1769, %v1762, %v1304
      %v1796 = vsel %vm1769, %v1763, %v1306
      %v1797 = vsel %vm1769, %v1764, %v1308
      %v1798 = vsel %vm1769, %v1765, %v1310
      %v1799 = vsel %vm1769, %v1766, %v1312
      %v1800 = vsel %vm1769, %v1767, %v1314
      %v1801 = vsel %vm1769, %v1768, %v1316
      %vm1802 = vcmask 228352
      %v1803 = vsel %vm1802, %v1770, %v1382
      %v1804 = vsel %vm1802, %v1771, %v1384
      %v1805 = vsel %vm1802, %v1772, %v1386
      %v1806 = vsel %vm1802, %v1773, %v1388
      %v1807 = vsel %vm1802, %v1774, %v1390
      %v1808 = vsel %vm1802, %v1775, %v1392
      %v1809 = vsel %vm1802, %v1776, %v1394
      %v1810 = vsel %vm1802, %v1777, %v1396
      %v1811 = vsel %vm1802, %v1778, %v1398
      %v1812 = vsel %vm1802, %v1779, %v1400
      %v1813 = vsel %vm1802, %v1780, %v1402
      %v1814 = vsel %vm1802, %v1781, %v1404
      %v1815 = vsel %vm1802, %v1782, %v1406
      %v1816 = vsel %vm1802, %v1783, %v1408
      %v1817 = vsel %vm1802, %v1784, %v1410
      %v1818 = vsel %vm1802, %v1785, %v1412
      %v1819 = vsel %vm1802, %v1786, %v1414
      %v1820 = vsel %vm1802, %v1787, %v1416
      %v1821 = vsel %vm1802, %v1788, %v1418
      %v1822 = vsel %vm1802, %v1789, %v1420
      %v1823 = vsel %vm1802, %v1790, %v1422
      %v1824 = vsel %vm1802, %v1791, %v1424
      %v1825 = vsel %vm1802, %v1792, %v1426
      %v1826 = vsel %vm1802, %v1793, %v1428
      %v1827 = vsel %vm1802, %v1794, %v1430
      %v1828 = vsel %vm1802, %v1795, %v1432
      %v1829 = vsel %vm1802, %v1796, %v1434
      %v1830 = vsel %vm1802, %v1797, %v1436
      %v1831 = vsel %vm1802, %v1798, %v1438
      %v1832 = vsel %vm1802, %v1799, %v1440
      %v1833 = vsel %vm1802, %v1800, %v1442
      %v1834 = vsel %vm1802, %v1801, %v1444
      %vm1835 = vcmask 261120
      %v1836 = vsel %vm1835, %v1803, %v1510
      %v1837 = vsel %vm1835, %v1804, %v1512
      %v1838 = vsel %vm1835, %v1805, %v1514
      %v1839 = vsel %vm1835, %v1806, %v1516
      %v1840 = vsel %vm1835, %v1807, %v1518
      %v1841 = vsel %vm1835, %v1808, %v1520
      %v1842 = vsel %vm1835, %v1809, %v1522
      %v1843 = vsel %vm1835, %v1810, %v1524
      %v1844 = vsel %vm1835, %v1811, %v1526
      %v1845 = vsel %vm1835, %v1812, %v1528
      %v1846 = vsel %vm1835, %v1813, %v1530
      %v1847 = vsel %vm1835, %v1814, %v1532
      %v1848 = vsel %vm1835, %v1815, %v1534
      %v1849 = vsel %vm1835, %v1816, %v1536
      %v1850 = vsel %vm1835, %v1817, %v1538
      %v1851 = vsel %vm1835, %v1818, %v1540
      %v1852 = vsel %vm1835, %v1819, %v1542
      %v1853 = vsel %vm1835, %v1820, %v1544
      %v1854 = vsel %vm1835, %v1821, %v1546
      %v1855 = vsel %vm1835, %v1822, %v1548
      %v1856 = vsel %vm1835, %v1823, %v1550
      %v1857 = vsel %vm1835, %v1824, %v1552
      %v1858 = vsel %vm1835, %v1825, %v1554
      %v1859 = vsel %vm1835, %v1826, %v1556
      %v1860 = vsel %vm1835, %v1827, %v1558
      %v1861 = vsel %vm1835, %v1828, %v1560
      %v1862 = vsel %vm1835, %v1829, %v1562
      %v1863 = vsel %vm1835, %v1830, %v1564
      %v1864 = vsel %vm1835, %v1831, %v1566
      %v1865 = vsel %vm1835, %v1832, %v1568
      %v1866 = vsel %vm1835, %v1833, %v1570
      %v1867 = vsel %vm1835, %v1834, %v1572
      %v1868 = vld [vmem:[%s1] sm:$0xff]
      %v1869 = vld [vmem:[%s1 + $0x8] sm:$0xff]
      %v1870 = vld [vmem:[%s1 + $0x10] sm:$0xff]
      %v1871 = vld [vmem:[%s1 + $0x18] sm:$0xff]
      %v1872 = vld [vmem:[%s1 + $0x20] sm:$0xf]
      %v1873 = vld [vmem:[%s2] sm:$0x1]
      %v1875 = vlaneseq
      %v1876 = vshrl.u32 %v1875, 7
      %v1877 = vsub.s32 0, %v1876
      %v1878 = vrot.slane %v1873, %v1877
      %vm1880 = vcmask 293888
      %v1882 = vsel %vm1880, %v1836, 0
      %v1885 = vsel %vm1880, %v1837, 0
      %v1888 = vsel %vm1880, %v1838, 0
      %v1891 = vsel %vm1880, %v1839, 0
      %v1894 = vsel %vm1880, %v1840, 0
      %v1897 = vsel %vm1880, %v1841, 0
      %v1900 = vsel %vm1880, %v1842, 0
      %v1903 = vsel %vm1880, %v1843, 0
      %v1906 = vsel %vm1880, %v1844, 0
      %v1909 = vsel %vm1880, %v1845, 0
      %v1912 = vsel %vm1880, %v1846, 0
      %v1915 = vsel %vm1880, %v1847, 0
      %v1918 = vsel %vm1880, %v1848, 0
      %v1921 = vsel %vm1880, %v1849, 0
      %v1924 = vsel %vm1880, %v1850, 0
      %v1927 = vsel %vm1880, %v1851, 0
      %v1930 = vsel %vm1880, %v1852, 0
      %v1933 = vsel %vm1880, %v1853, 0
      %v1936 = vsel %vm1880, %v1854, 0
      %v1939 = vsel %vm1880, %v1855, 0
      %v1942 = vsel %vm1880, %v1856, 0
      %v1945 = vsel %vm1880, %v1857, 0
      %v1948 = vsel %vm1880, %v1858, 0
      %v1951 = vsel %vm1880, %v1859, 0
      %v1954 = vsel %vm1880, %v1860, 0
      %v1957 = vsel %vm1880, %v1861, 0
      %v1960 = vsel %vm1880, %v1862, 0
      %v1963 = vsel %vm1880, %v1863, 0
      %v1966 = vsel %vm1880, %v1864, 0
      %v1969 = vsel %vm1880, %v1865, 0
      %v1972 = vsel %vm1880, %v1866, 0
      %v1975 = vsel %vm1880, %v1867, 0
      %vm1977 = vcmask 1043456
      %v1979 = vsel %vm1977, %v1872, 0
      %1981 = vmatprep.subr.mxu0 0.0
      %1982 = vmatpush1.msra.mxu0 %v1868
      %1983 = vmatprep.subr.mxu0 0.0
      %1984 = vmatpush1.msra.mxu0 %v1869
      %1985 = vmatprep.subr.mxu0 0.0
      %1986 = vmatpush1.msra.mxu0 %v1870
      %1987 = vmatprep.subr.mxu0 0.0
      %1988 = vmatpush1.msra.mxu0 %v1871
      %1989 = vmatprep.subr.mxu0 0.0
      %1990 = vmatpush1.msra.mxu0 %v1979
      %1991 = vmatprep.subr.mxu0 0.0
      %1992 = vmatpush1.msra.mxu0 0.0
      %1993 = vmatprep.subr.mxu0 0.0
      %1994 = vmatpush1.msra.mxu0 0.0
      %1995 = vmatprep.subr.mxu0 0.0
      %1996 = vmatpush1.msra.mxu0 0.0
      %1997 = vmatprep.subr.mxu0 0.0
      %1998 = vmatpush1.msra.mxu0 0.0
      %1999 = vmatprep.subr.mxu0 0.0
      %2000 = vmatpush1.msra.mxu0 0.0
      %2001 = vmatprep.subr.mxu0 0.0
      %2002 = vmatpush1.msra.mxu0 0.0
      %2003 = vmatprep.subr.mxu0 0.0
      %2004 = vmatpush1.msra.mxu0 0.0
      %2005 = vmatprep.subr.mxu0 0.0
      %2006 = vmatpush1.msra.mxu0 0.0
      %2007 = vmatprep.subr.mxu0 0.0
      %2008 = vmatpush1.msra.mxu0 0.0
      %2009 = vmatprep.subr.mxu0 0.0
      %2010 = vmatpush1.msra.mxu0 0.0
      %2011 = vmatprep.subr.mxu0 0.0
      %2012 = vmatpush1.msra.mxu0 0.0
      %2013 = vmatprep.subr.mxu0 0.0
      %2014 = vmatpush1.msra.mxu0 0.0
      %2015 = vmatprep.subr.mxu0 0.0
      %2016 = vmatpush1.msra.mxu0 0.0
      %2017 = vmatprep.subr.mxu0 0.0
      %2018 = vmatpush1.msra.mxu0 0.0
      %2019 = vmatprep.subr.mxu0 0.0
      %2020 = vmatpush1.msra.mxu0 0.0
      %2021 = vmatprep.subr.mxu0 0.0
      %2022 = vmatpush1.msra.mxu0 0.0
      %2023 = vmatprep.subr.mxu0 0.0
      %2024 = vmatpush1.msra.mxu0 0.0
      %2025 = vmatprep.subr.mxu0 0.0
      %2026 = vmatpush1.msra.mxu0 0.0
      %2027 = vmatprep.subr.mxu0 0.0
      %2028 = vmatpush1.msra.mxu0 0.0
      %2029 = vmatprep.subr.mxu0 0.0
      %2030 = vmatpush1.msra.mxu0 0.0
      %2031 = vmatprep.subr.mxu0 0.0
      %2032 = vmatpush1.msra.mxu0 0.0
      %2033 = vmatprep.subr.mxu0 0.0
      %2034 = vmatpush1.msra.mxu0 0.0
      %2035 = vmatprep.subr.mxu0 0.0
      %2036 = vmatpush1.msra.mxu0 0.0
      %2037 = vmatprep.subr.mxu0 0.0
      %2038 = vmatpush1.msra.mxu0 0.0
      %2039 = vmatprep.subr.mxu0 0.0
      %2040 = vmatpush1.msra.mxu0 0.0
      %2041 = vmatprep.subr.mxu0 0.0
      %2042 = vmatpush1.msra.mxu0 0.0
      %2043 = vmatprep.subr.mxu0 0.0
      %2044 = vmatpush1.msra.mxu0 0.0
      %2045 = vmatprep.mubr.f32.mxu0 0.0
      %2046 = vmatmul.mubr.f32.gmra.mrb[0].mxu0 %v1882
      %v2047 = vpop.f32.mrb[0].mxu0
      %v2048 = vadd.f32 %v1878, %v2047
      %v2049 = vpop.f32.mrb[0].mxu0
      %2050 = vmatprep.mubr.f32.mxu0 0.0
      %2051 = vmatmul.mubr.f32.gmra.mrb[0].mxu0 %v1885
      %v2052 = vpop.f32.mrb[0].mxu0
      %v2053 = vadd.f32 %v1878, %v2052
      %v2054 = vpop.f32.mrb[0].mxu0
      %2055 = vmatprep.mubr.f32.mxu0 0.0
      %2056 = vmatmul.mubr.f32.gmra.mrb[0].mxu0 %v1888
      %v2057 = vpop.f32.mrb[0].mxu0
      %v2058 = vadd.f32 %v1878, %v2057
      %v2059 = vpop.f32.mrb[0].mxu0
      %2060 = vmatprep.mubr.f32.mxu0 0.0
      %2061 = vmatmul.mubr.f32.gmra.mrb[0].mxu0 %v1891
      %v2062 = vpop.f32.mrb[0].mxu0
      %v2063 = vadd.f32 %v1878, %v2062
      %v2064 = vpop.f32.mrb[0].mxu0
      %2065 = vmatprep.mubr.f32.mxu0 0.0
      %2066 = vmatmul.mubr.f32.gmra.mrb[0].mxu0 %v1894
      %v2067 = vpop.f32.mrb[0].mxu0
      %v2068 = vadd.f32 %v1878, %v2067
      %v2069 = vpop.f32.mrb[0].mxu0
      %2070 = vmatprep.mubr.f32.mxu0 0.0
      %2071 = vmatmul.mubr.f32.gmra.mrb[0].mxu0 %v1897
      %v2072 = vpop.f32.mrb[0].mxu0
      %v2073 = vadd.f32 %v1878, %v2072
      %v2074 = vpop.f32.mrb[0].mxu0
      %2075 = vmatprep.mubr.f32.mxu0 0.0
      %2076 = vmatmul.mubr.f32.gmra.mrb[0].mxu0 %v1900
      %v2077 = vpop.f32.mrb[0].mxu0
      %v2078 = vadd.f32 %v1878, %v2077
      %v2079 = vpop.f32.mrb[0].mxu0
      %2080 = vmatprep.mubr.f32.mxu0 0.0
      %2081 = vmatmul.mubr.f32.gmra.mrb[0].mxu0 %v1903
      %v2082 = vpop.f32.mrb[0].mxu0
      %v2083 = vadd.f32 %v1878, %v2082
      %v2084 = vpop.f32.mrb[0].mxu0
      %2085 = vmatprep.mubr.f32.mxu0 0.0
      %2086 = vmatmul.mubr.f32.gmra.mrb[0].mxu0 %v1906
      %v2087 = vpop.f32.mrb[0].mxu0
      %v2088 = vadd.f32 %v1878, %v2087
      %v2089 = vpop.f32.mrb[0].mxu0
      %2090 = vmatprep.mubr.f32.mxu0 0.0
      %2091 = vmatmul.mubr.f32.gmra.mrb[0].mxu0 %v1909
      %v2092 = vpop.f32.mrb[0].mxu0
      %v2093 = vadd.f32 %v1878, %v2092
      %v2094 = vpop.f32.mrb[0].mxu0
      %2095 = vmatprep.mubr.f32.mxu0 0.0
      %2096 = vmatmul.mubr.f32.gmra.mrb[0].mxu0 %v1912
      %v2097 = vpop.f32.mrb[0].mxu0
      %v2098 = vadd.f32 %v1878, %v2097
      %v2099 = vpop.f32.mrb[0].mxu0
      %2100 = vmatprep.mubr.f32.mxu0 0.0
      %2101 = vmatmul.mubr.f32.gmra.mrb[0].mxu0 %v1915
      %v2102 = vpop.f32.mrb[0].mxu0
      %v2103 = vadd.f32 %v1878, %v2102
      %v2104 = vpop.f32.mrb[0].mxu0
      %2105 = vmatprep.mubr.f32.mxu0 0.0
      %2106 = vmatmul.mubr.f32.gmra.mrb[0].mxu0 %v1918
      %v2107 = vpop.f32.mrb[0].mxu0
      %v2108 = vadd.f32 %v1878, %v2107
      %v2109 = vpop.f32.mrb[0].mxu0
      %2110 = vmatprep.mubr.f32.mxu0 0.0
      %2111 = vmatmul.mubr.f32.gmra.mrb[0].mxu0 %v1921
      %v2112 = vpop.f32.mrb[0].mxu0
      %v2113 = vadd.f32 %v1878, %v2112
      %v2114 = vpop.f32.mrb[0].mxu0
      %2115 = vmatprep.mubr.f32.mxu0 0.0
      %2116 = vmatmul.mubr.f32.gmra.mrb[0].mxu0 %v1924
      %v2117 = vpop.f32.mrb[0].mxu0
      %v2118 = vadd.f32 %v1878, %v2117
      %v2119 = vpop.f32.mrb[0].mxu0
      %2120 = vmatprep.mubr.f32.mxu0 0.0
      %2121 = vmatmul.mubr.f32.gmra.mrb[0].mxu0 %v1927
      %v2122 = vpop.f32.mrb[0].mxu0
      %v2123 = vadd.f32 %v1878, %v2122
      %v2124 = vpop.f32.mrb[0].mxu0
      %2125 = vmatprep.mubr.f32.mxu0 0.0
      %2126 = vmatmul.mubr.f32.gmra.mrb[0].mxu0 %v1930
      %v2127 = vpop.f32.mrb[0].mxu0
      %v2128 = vadd.f32 %v1878, %v2127
      %v2129 = vpop.f32.mrb[0].mxu0
      %2130 = vmatprep.mubr.f32.mxu0 0.0
      %2131 = vmatmul.mubr.f32.gmra.mrb[0].mxu0 %v1933
      %v2132 = vpop.f32.mrb[0].mxu0
      %v2133 = vadd.f32 %v1878, %v2132
      %v2134 = vpop.f32.mrb[0].mxu0
      %2135 = vmatprep.mubr.f32.mxu0 0.0
      %2136 = vmatmul.mubr.f32.gmra.mrb[0].mxu0 %v1936
      %v2137 = vpop.f32.mrb[0].mxu0
      %v2138 = vadd.f32 %v1878, %v2137
      %v2139 = vpop.f32.mrb[0].mxu0
      %2140 = vmatprep.mubr.f32.mxu0 0.0
      %2141 = vmatmul.mubr.f32.gmra.mrb[0].mxu0 %v1939
      %v2142 = vpop.f32.mrb[0].mxu0
      %v2143 = vadd.f32 %v1878, %v2142
      %v2144 = vpop.f32.mrb[0].mxu0
      %2145 = vmatprep.mubr.f32.mxu0 0.0
      %2146 = vmatmul.mubr.f32.gmra.mrb[0].mxu0 %v1942
      %v2147 = vpop.f32.mrb[0].mxu0
      %v2148 = vadd.f32 %v1878, %v2147
      %v2149 = vpop.f32.mrb[0].mxu0
      %2150 = vmatprep.mubr.f32.mxu0 0.0
      %2151 = vmatmul.mubr.f32.gmra.mrb[0].mxu0 %v1945
      %v2152 = vpop.f32.mrb[0].mxu0
      %v2153 = vadd.f32 %v1878, %v2152
      %v2154 = vpop.f32.mrb[0].mxu0
      %2155 = vmatprep.mubr.f32.mxu0 0.0
      %2156 = vmatmul.mubr.f32.gmra.mrb[0].mxu0 %v1948
      %v2157 = vpop.f32.mrb[0].mxu0
      %v2158 = vadd.f32 %v1878, %v2157
      %v2159 = vpop.f32.mrb[0].mxu0
      %2160 = vmatprep.mubr.f32.mxu0 0.0
      %2161 = vmatmul.mubr.f32.gmra.mrb[0].mxu0 %v1951
      %v2162 = vpop.f32.mrb[0].mxu0
      %v2163 = vadd.f32 %v1878, %v2162
      %v2164 = vpop.f32.mrb[0].mxu0
      %2165 = vmatprep.mubr.f32.mxu0 0.0
      %2166 = vmatmul.mubr.f32.gmra.mrb[0].mxu0 %v1954
      %v2167 = vpop.f32.mrb[0].mxu0
      %v2168 = vadd.f32 %v1878, %v2167
      %v2169 = vpop.f32.mrb[0].mxu0
      %2170 = vmatprep.mubr.f32.mxu0 0.0
      %2171 = vmatmul.mubr.f32.gmra.mrb[0].mxu0 %v1957
      %v2172 = vpop.f32.mrb[0].mxu0
      %v2173 = vadd.f32 %v1878, %v2172
      %v2174 = vpop.f32.mrb[0].mxu0
      %2175 = vmatprep.mubr.f32.mxu0 0.0
      %2176 = vmatmul.mubr.f32.gmra.mrb[0].mxu0 %v1960
      %v2177 = vpop.f32.mrb[0].mxu0
      %v2178 = vadd.f32 %v1878, %v2177
      %v2179 = vpop.f32.mrb[0].mxu0
      %2180 = vmatprep.mubr.f32.mxu0 0.0
      %2181 = vmatmul.mubr.f32.gmra.mrb[0].mxu0 %v1963
      %v2182 = vpop.f32.mrb[0].mxu0
      %v2183 = vadd.f32 %v1878, %v2182
      %v2184 = vpop.f32.mrb[0].mxu0
      %2185 = vmatprep.mubr.f32.mxu0 0.0
      %2186 = vmatmul.mubr.f32.gmra.mrb[0].mxu0 %v1966
      %v2187 = vpop.f32.mrb[0].mxu0
      %v2188 = vadd.f32 %v1878, %v2187
      %v2189 = vpop.f32.mrb[0].mxu0
      %2190 = vmatprep.mubr.f32.mxu0 0.0
      %2191 = vmatmul.mubr.f32.gmra.mrb[0].mxu0 %v1969
      %v2192 = vpop.f32.mrb[0].mxu0
      %v2193 = vadd.f32 %v1878, %v2192
      %v2194 = vpop.f32.mrb[0].mxu0
      %2195 = vmatprep.mubr.f32.mxu0 0.0
      %2196 = vmatmul.mubr.f32.gmra.mrb[0].mxu0 %v1972
      %v2197 = vpop.f32.mrb[0].mxu0
      %v2198 = vadd.f32 %v1878, %v2197
      %v2199 = vpop.f32.mrb[0].mxu0
      %2200 = vmatprep.mubr.f32.mxu0 0.0
      %2201 = vmatmul.mubr.f32.gmra.mrb[0].mxu0 %v1975
      %v2202 = vpop.f32.mrb[0].mxu0
      %v2203 = vadd.f32 %v1878, %v2202
      %v2204 = vpop.f32.mrb[0].mxu0
      %2205 = vdwg.mxu0
      %v2206 = vmax.f32 %v2048, 0.0
      %v2207 = vmax.f32 %v2053, 0.0
      %v2208 = vmax.f32 %v2058, 0.0
      %v2209 = vmax.f32 %v2063, 0.0
      %v2210 = vmax.f32 %v2068, 0.0
      %v2211 = vmax.f32 %v2073, 0.0
      %v2212 = vmax.f32 %v2078, 0.0
      %v2213 = vmax.f32 %v2083, 0.0
      %v2214 = vmax.f32 %v2088, 0.0
      %v2215 = vmax.f32 %v2093, 0.0
      %v2216 = vmax.f32 %v2098, 0.0
      %v2217 = vmax.f32 %v2103, 0.0
      %v2218 = vmax.f32 %v2108, 0.0
      %v2219 = vmax.f32 %v2113, 0.0
      %v2220 = vmax.f32 %v2118, 0.0
      %v2221 = vmax.f32 %v2123, 0.0
      %v2222 = vmax.f32 %v2128, 0.0
      %v2223 = vmax.f32 %v2133, 0.0
      %v2224 = vmax.f32 %v2138, 0.0
      %v2225 = vmax.f32 %v2143, 0.0
      %v2226 = vmax.f32 %v2148, 0.0
      %v2227 = vmax.f32 %v2153, 0.0
      %v2228 = vmax.f32 %v2158, 0.0
      %v2229 = vmax.f32 %v2163, 0.0
      %v2230 = vmax.f32 %v2168, 0.0
      %v2231 = vmax.f32 %v2173, 0.0
      %v2232 = vmax.f32 %v2178, 0.0
      %v2233 = vmax.f32 %v2183, 0.0
      %v2234 = vmax.f32 %v2188, 0.0
      %v2235 = vmax.f32 %v2193, 0.0
      %v2236 = vmax.f32 %v2198, 0.0
      %v2237 = vmax.f32 %v2203, 0.0
      %2238 = vst.msk [vmem:[%s170] sm:$0xff] %vm171, %v2206
      %2239 = vst.msk [vmem:[%s170 + $0x8] sm:$0xff] %vm171, %v2207
      %2240 = vst.msk [vmem:[%s170 + $0x10] sm:$0xff] %vm171, %v2208
      %2241 = vst.msk [vmem:[%s170 + $0x18] sm:$0xff] %vm171, %v2209
      %2242 = vst.msk [vmem:[%s170 + $0x20] sm:$0xff] %vm171, %v2210
      %2243 = vst.msk [vmem:[%s170 + $0x28] sm:$0xff] %vm171, %v2211
      %2244 = vst.msk [vmem:[%s170 + $0x30] sm:$0xff] %vm171, %v2212
      %2245 = vst.msk [vmem:[%s170 + $0x38] sm:$0xff] %vm171, %v2213
      %2246 = vst.msk [vmem:[%s170 + $0x40] sm:$0xff] %vm171, %v2214
      %2247 = vst.msk [vmem:[%s170 + $0x48] sm:$0xff] %vm171, %v2215
      %2248 = vst.msk [vmem:[%s170 + $0x50] sm:$0xff] %vm171, %v2216
      %2249 = vst.msk [vmem:[%s170 + $0x58] sm:$0xff] %vm171, %v2217
      %2250 = vst.msk [vmem:[%s170 + $0x60] sm:$0xff] %vm171, %v2218
      %2251 = vst.msk [vmem:[%s170 + $0x68] sm:$0xff] %vm171, %v2219
      %2252 = vst.msk [vmem:[%s170 + $0x70] sm:$0xff] %vm171, %v2220
      %2253 = vst.msk [vmem:[%s170 + $0x78] sm:$0xff] %vm171, %v2221
      %2254 = vst.msk [vmem:[%s170 + $0x80] sm:$0xff] %vm171, %v2222
      %2255 = vst.msk [vmem:[%s170 + $0x88] sm:$0xff] %vm171, %v2223
      %2256 = vst.msk [vmem:[%s170 + $0x90] sm:$0xff] %vm171, %v2224
      %2257 = vst.msk [vmem:[%s170 + $0x98] sm:$0xff] %vm171, %v2225
      %2258 = vst.msk [vmem:[%s170 + $0xa0] sm:$0xff] %vm171, %v2226
      %2259 = vst.msk [vmem:[%s170 + $0xa8] sm:$0xff] %vm171, %v2227
      %2260 = vst.msk [vmem:[%s170 + $0xb0] sm:$0xff] %vm171, %v2228
      %2261 = vst.msk [vmem:[%s170 + $0xb8] sm:$0xff] %vm171, %v2229
      %2262 = vst.msk [vmem:[%s170 + $0xc0] sm:$0xff] %vm171, %v2230
      %2263 = vst.msk [vmem:[%s170 + $0xc8] sm:$0xff] %vm171, %v2231
      %2264 = vst.msk [vmem:[%s170 + $0xd0] sm:$0xff] %vm171, %v2232
      %2265 = vst.msk [vmem:[%s170 + $0xd8] sm:$0xff] %vm171, %v2233
      %2266 = vst.msk [vmem:[%s170 + $0xe0] sm:$0xff] %vm171, %v2234
      %2267 = vst.msk [vmem:[%s170 + $0xe8] sm:$0xff] %vm171, %v2235
      %2268 = vst.msk [vmem:[%s170 + $0xf0] sm:$0xff] %vm171, %v2236
      %2269 = vst.msk [vmem:[%s170 + $0xf8] sm:$0xff] %vm171, %v2237
      %p2270 = scmp.lt.s32.totalorder %s14, 1
      %s2271 = scalar_select %p2270, %s14, 1
      %s2272 = smul.addr %s2271, 32
      %s2273 = smul.addr %s2272, 8
      %s2274 = scalar_lea.vmem %s3, %s2273
      // Predicated region
      $region33: #{upconv_forward.5} parent=31 // pred_check
        %p2275 = pneg %p100
      $region34: #{upconv_forward.5} parent=31 // pred_check_branch
        %2277 = sbr.rel (%p2275) target = $region36
      $region35: #{upconv_forward.5} parent=31 // pred_region
        _
      $region36: #{upconv_forward.5} parent=31 // pred_fallthru
        _
    $region32: #{upconv_forward.5} parent=5 // pred_fallthru
      _
    %p2278 = scmp.le.s32.totalorder 2, %s9
    // Predicated region
    $region37: #{upconv_forward.5} parent=5 // pred_check
      %p2279 = pneg %p2278
    $region38: #{upconv_forward.5} parent=5 // pred_check_branch
      %2281 = sbr.rel (%p2279) target = $region40
    $region39: #{upconv_forward.5} parent=5 // pred_region
      %s2282 = ssub.s32 %s9, 2
      // Predicated region
      $region41: #{upconv_forward.5} parent=39 // pred_check
        %p2283 = pneg %p106
      $region42: #{upconv_forward.5} parent=39 // pred_check_branch
        %2285 = sbr.rel (%p2283) target = $region44
      $region43: #{upconv_forward.5} parent=39 // pred_region
        %p2286 = scmp.lt.s32.totalorder %s15, 1
        %s2287 = scalar_select %p2286, %s15, 1
        %s2288 = smul.addr %s2287, 32
        %s2289 = smul.addr %s2288, 8
        %s2290 = scalar_lea.vmem %s3, %s2289
      $region44: #{upconv_forward.5} parent=39 // pred_fallthru
        _
    $region40: #{upconv_forward.5} parent=5 // pred_fallthru
      _
  $region6: #{upconv_forward.5} parent=0 // loop_footer
    %s13 = sadd.s32 1, %s9
  $region7: #{upconv_forward.5} parent=0 // loop_footer_branch
    %8 = sbr.rel target = $region3
  $region8: #{upconv_forward.5} parent=0 // loop_exit
    _

// kernel: upconv_forward.4
$region0: #{upconv_forward.4}
  #allocation0 [shape = 'u32[]', space=smem, size = 0x4, offset = 0x4, fixed_abs, tag = 'smem constant byte address 0x4 - core index']
  #allocation1 [shape = 'u32[144,128]{1,0:T(1,128)}', space=vmem, size = 0x12000, scoped, tag = 'internal scratch']
  #allocation2 [shape = 'f32[18,18,4]{2,1,0:T(8,128)}', space=vmem, size = 0x36000, scoped, tag = 'scratch operand']
  #allocation3 [shape = 'f32[18,18,4]{2,1,0:T(8,128)}', space=vmem, size = 0x36000, scoped, tag = 'scratch operand']
  %s0 = inlined_call_operand.vmem [shape: f32[2,16,16,4], index: 0, kind: input, shape index: {}]
  %s1 = inlined_call_operand.vmem [shape: f32[2,16,16,4], index: 1, kind: input, shape index: {}]
  %s2 = inlined_call_operand.vmem [shape: f32[36,4], index: 2, kind: input, shape index: {}]
  %s3 = inlined_call_operand.vmem [shape: f32[36,4], index: 3, kind: input, shape index: {}]
  %s4 = inlined_call_operand.vmem [shape: f32[1,4], index: 4, kind: input, shape index: {}]
  %s5 = inlined_call_operand.vmem [shape: f32[2,256,4], index: 5, kind: output, shape index: {}]
  %s6 = sld [smem:[#allocation0]]
  $region53: #{upconv_forward.4} parent=0
    _
  %s8 = ssub.s32 1, %s6
  %s9 = scalar_select 0, %s8, %s6
  loop: start=0, step=1, limit=4
  $region2: #{upconv_forward.4} parent=0 // loop_pre_header
    _
  $region3: #{upconv_forward.4} parent=0 // loop_header
    %s11 = sphi 0, %s15
    %p12 = scmp.ge.s32.totalorder %s11, 4
    %s21 = sphi 0, %s23
    %s24 = sphi 0, %s21
    %s25 = sphi 0, %s24
    %s41 = sphi 0, %s25
    %s47 = sphi 0, %s49
    %s50 = sphi 0, %s47
    %s51 = sphi 0, %s50
    %s67 = sphi 0, %s51
    %s71 = sphi 0, %s71
    %s73 = sphi 0, %s71
    %s74 = sphi 0, %s73
    %s88 = sphi 0, %s74
    %s92 = sphi 0, %s92
    %s94 = sphi 0, %s92
    %s95 = sphi 0, %s94
    %s109 = sphi 0, %s95
    %s113 = sphi 0, %s113
    %s115 = sphi 0, %s113
    %s116 = sphi 0, %s115
    %s130 = sphi 0, %s116
    %s136 = sphi 0, %s138
    %s139 = sphi 0, %s136
    %s140 = sphi 0, %s139
    %s156 = sphi 0, %s140
  $region4: #{upconv_forward.4} parent=0 // loop_header_branch
    %14 = sbr.rel (%p12) target = $region8
  $region5: #{upconv_forward.4} parent=0 // loop_body
    %s16 = ssub.s32 %s11, 1
    %s17 = ssub.s32 %s11, 2
    %s18 = sadd.s32 %s11, 1
    %s19 = ssub.s32 %s11, %s18
    %p20 = scmp.eq.s32.totalorder %s19, 0
    %s22 = sadd.s32 %s21, 1
    %s23 = scalar_select %p20, %s21, %s22
    %p26 = pneg %p20
    %p27 = scmp.eq.s32.totalorder %s11, 1
    %p28 = por %p26, %p27
    %p29 = scmp.ne.s32.totalorder %s21, %s24
    %p30 = scmp.eq.s32.totalorder %s11, 0
    %p31 = por %p29, %p30
    %p32 = scmp.ne.s32.totalorder %s21, %s24
    %p33 = scmp.eq.s32.totalorder %s16, 1
    %p34 = por %p32, %p33
    %p35 = scmp.ne.s32.totalorder %s24, %s25
    %p36 = scmp.eq.s32.totalorder %s16, 0
    %p37 = por %p35, %p36
    %p38 = scmp.ne.s32.totalorder %s24, %s25
    %p39 = scmp.eq.s32.totalorder %s17, 1
    %p40 = por %p38, %p39
    %p42 = scmp.ne.s32.totalorder %s25, %s41
    %p43 = scmp.eq.s32.totalorder %s17, 0
    %p44 = por %p42, %p43
    %s45 = ssub.s32 %s11, %s18
    %p46 = scmp.eq.s32.totalorder %s45, 0
    %s48 = sadd.s32 %s47, 1
    %s49 = scalar_select %p46, %s47, %s48
    %p52 = pneg %p46
    %p53 = scmp.eq.s32.totalorder %s11, 1
    %p54 = por %p52, %p53
    %p55 = scmp.ne.s32.totalorder %s47, %s50
    %p56 = scmp.eq.s32.totalorder %s11, 0
    %p57 = por %p55, %p56
    %p58 = scmp.ne.s32.totalorder %s47, %s50
    %p59 = scmp.eq.s32.totalorder %s16, 1
    %p60 = por %p58, %p59
    %p61 = scmp.ne.s32.totalorder %s50, %s51
    %p62 = scmp.eq.s32.totalorder %s16, 0
    %p63 = por %p61, %p62
    %p64 = scmp.ne.s32.totalorder %s50, %s51
    %p65 = scmp.eq.s32.totalorder %s17, 1
    %p66 = por %p64, %p65
    %p68 = scmp.ne.s32.totalorder %s51, %s67
    %p69 = scmp.eq.s32.totalorder %s17, 0
    %p70 = por %p68, %p69
    %s72 = sadd.s32 %s71, 1
    %p75 = scmp.eq.s32.totalorder %s11, 1
    %p76 = scmp.ne.s32.totalorder %s71, %s73
    %p77 = scmp.eq.s32.totalorder %s11, 0
    %p78 = por %p76, %p77
    %p79 = scmp.ne.s32.totalorder %s71, %s73
    %p80 = scmp.eq.s32.totalorder %s16, 1
    %p81 = por %p79, %p80
    %p82 = scmp.ne.s32.totalorder %s73, %s74
    %p83 = scmp.eq.s32.totalorder %s16, 0
    %p84 = por %p82, %p83
    %p85 = scmp.ne.s32.totalorder %s73, %s74
    %p86 = scmp.eq.s32.totalorder %s17, 1
    %p87 = por %p85, %p86
    %p89 = scmp.ne.s32.totalorder %s74, %s88
    %p90 = scmp.eq.s32.totalorder %s17, 0
    %p91 = por %p89, %p90
    %s93 = sadd.s32 %s92, 1
    %p96 = scmp.eq.s32.totalorder %s11, 1
    %p97 = scmp.ne.s32.totalorder %s92, %s94
    %p98 = scmp.eq.s32.totalorder %s11, 0
    %p99 = por %p97, %p98
    %p100 = scmp.ne.s32.totalorder %s92, %s94
    %p101 = scmp.eq.s32.totalorder %s16, 1
    %p102 = por %p100, %p101
    %p103 = scmp.ne.s32.totalorder %s94, %s95
    %p104 = scmp.eq.s32.totalorder %s16, 0
    %p105 = por %p103, %p104
    %p106 = scmp.ne.s32.totalorder %s94, %s95
    %p107 = scmp.eq.s32.totalorder %s17, 1
    %p108 = por %p106, %p107
    %p110 = scmp.ne.s32.totalorder %s95, %s109
    %p111 = scmp.eq.s32.totalorder %s17, 0
    %p112 = por %p110, %p111
    %s114 = sadd.s32 %s113, 1
    %p117 = scmp.eq.s32.totalorder %s11, 1
    %p118 = scmp.ne.s32.totalorder %s113, %s115
    %p119 = scmp.eq.s32.totalorder %s11, 0
    %p120 = por %p118, %p119
    %p121 = scmp.ne.s32.totalorder %s113, %s115
    %p122 = scmp.eq.s32.totalorder %s16, 1
    %p123 = por %p121, %p122
    %p124 = scmp.ne.s32.totalorder %s115, %s116
    %p125 = scmp.eq.s32.totalorder %s16, 0
    %p126 = por %p124, %p125
    %p127 = scmp.ne.s32.totalorder %s115, %s116
    %p128 = scmp.eq.s32.totalorder %s17, 1
    %p129 = por %p127, %p128
    %p131 = scmp.ne.s32.totalorder %s116, %s130
    %p132 = scmp.eq.s32.totalorder %s17, 0
    %p133 = por %p131, %p132
    %s134 = ssub.s32 %s11, %s18
    %p135 = scmp.eq.s32.totalorder %s134, 0
    %s137 = sadd.s32 %s136, 1
    %s138 = scalar_select %p135, %s136, %s137
    %p141 = pneg %p135
    %p142 = scmp.eq.s32.totalorder %s11, 1
    %p143 = por %p141, %p142
    %p144 = scmp.ne.s32.totalorder %s136, %s139
    %p145 = scmp.eq.s32.totalorder %s11, 0
    %p146 = por %p144, %p145
    %p147 = scmp.ne.s32.totalorder %s136, %s139
    %p148 = scmp.eq.s32.totalorder %s16, 1
    %p149 = por %p147, %p148
    %p150 = scmp.ne.s32.totalorder %s139, %s140
    %p151 = scmp.eq.s32.totalorder %s16, 0
    %p152 = por %p150, %p151
    %p153 = scmp.ne.s32.totalorder %s139, %s140
    %p154 = scmp.eq.s32.totalorder %s17, 1
    %p155 = por %p153, %p154
    %p157 = scmp.ne.s32.totalorder %s140, %s156
    %p158 = scmp.eq.s32.totalorder %s17, 0
    %p159 = por %p157, %p158
    %p160 = scmp.le.s32.totalorder 1, %s11
    %p161 = scmp.lt.s32.totalorder %s11, 3
    %p162 = pnand %p160, %p161
    %p163 = pneg %p162
    // Predicated region
    $region9: #{upconv_forward.4} parent=5 // pred_check
      _
    $region10: #{upconv_forward.4} parent=5 // pred_check_branch
      %165 = sbr.rel (%p162) target = $region12
    $region11: #{upconv_forward.4} parent=5 // pred_region
      %s166 = ssub.s32 %s11, 1
      // Predicated region
      $region13: #{upconv_forward.4} parent=11 // pred_check
        %p167 = pneg %p84
      $region14: #{upconv_forward.4} parent=11 // pred_check_branch
        %169 = sbr.rel (%p167) target = $region16
      $region15: #{upconv_forward.4} parent=11 // pred_region
        _
      $region16: #{upconv_forward.4} parent=11 // pred_fallthru
        _
      // Predicated region
      $region17: #{upconv_forward.4} parent=11 // pred_check
        %p170 = pneg %p105
      $region18: #{upconv_forward.4} parent=11 // pred_check_branch
        %172 = sbr.rel (%p170) target = $region20
      $region19: #{upconv_forward.4} parent=11 // pred_region
        _
      $region20: #{upconv_forward.4} parent=11 // pred_fallthru
        _
      // Predicated region
      $region21: #{upconv_forward.4} parent=11 // pred_check
        %p173 = pneg %p126
      $region22: #{upconv_forward.4} parent=11 // pred_check_branch
        %175 = sbr.rel (%p173) target = $region24
      $region23: #{upconv_forward.4} parent=11 // pred_region
        _
      $region24: #{upconv_forward.4} parent=11 // pred_fallthru
        _
    $region12: #{upconv_forward.4} parent=5 // pred_fallthru
      _
    %p176 = scmp.lt.s32.totalorder %s11, 2
    // Predicated region
    $region25: #{upconv_forward.4} parent=5 // pred_check
      %p177 = pneg %p176
    $region26: #{upconv_forward.4} parent=5 // pred_check_branch
      %179 = sbr.rel (%p177) target = $region28
    $region27: #{upconv_forward.4} parent=5 // pred_region
      // Predicated region
      $region29: #{upconv_forward.4} parent=27 // pred_check
        %p180 = pneg %p31
      $region30: #{upconv_forward.4} parent=27 // pred_check_branch
        %182 = sbr.rel (%p180) target = $region32
      $region31: #{upconv_forward.4} parent=27 // pred_region
        %p183 = scmp.lt.s32.totalorder %s11, 1
        %s184 = scalar_select %p183, %s11, 1
        %s185 = smul.addr %s184, 32
        %s186 = smul.addr %s185, 8
        %s187 = scalar_lea.vmem %s0, %s186
      $region32: #{upconv_forward.4} parent=27 // pred_fallthru
        _
      // Predicated region
      $region33: #{upconv_forward.4} parent=27 // pred_check
        %p188 = pneg %p57
      $region34: #{upconv_forward.4} parent=27 // pred_check_branch
        %190 = sbr.rel (%p188) target = $region36
      $region35: #{upconv_forward.4} parent=27 // pred_region
        %p191 = scmp.lt.s32.totalorder %s11, 1
        %s192 = scalar_select %p191, %s11, 1
        %s193 = smul.addr %s192, 32
        %s194 = smul.addr %s193, 8
        %s195 = scalar_lea.vmem %s1, %s194
      $region36: #{upconv_forward.4} parent=27 // pred_fallthru
        _
    $region28: #{upconv_forward.4} parent=5 // pred_fallthru
      _
    %p196 = scmp.le.s32.totalorder 1, %s11
    %p197 = scmp.lt.s32.totalorder %s11, 3
    %p198 = pnand %p196, %p197
    %p199 = pneg %p198
    // Predicated region
    $region37: #{upconv_forward.4} parent=5 // pred_check
      _
    $region38: #{upconv_forward.4} parent=5 // pred_check_branch
      %201 = sbr.rel (%p198) target = $region40
    $region39: #{upconv_forward.4} parent=5 // pred_region
      %s202 = ssub.s32 %s11, 1
      %p203 = scmp.lt.s32.totalorder %s16, 1
      %s204 = scalar_select %p203, %s16, 1
      %s205 = smul.addr %s204, 32
      %s206 = smul.addr %s205, 8
      %s207 = scalar_lea.vmem %s0, %s206
      %p208 = pneg %p37
      %p209 = pneg %p34
      %p210 = scmp.lt.s32.totalorder %s16, 1
      %s211 = scalar_select %p210, %s16, 1
      %s212 = smul.addr %s211, 32
      %s213 = smul.addr %s212, 8
      %s214 = scalar_lea.vmem %s1, %s213
      %p215 = pneg %p63
      %p216 = pneg %p60
      %p217 = pneg %p84
      %p218 = pneg %p81
      %p219 = pneg %p105
      %p220 = pneg %p102
      %p221 = pneg %p126
      %p222 = pneg %p123
      %p223 = pneg %p152
      %p224 = pneg %p149
      %p225 = scmp.lt.s32.totalorder %s16, 1
      %s226 = scalar_select %p225, %s16, 1
      %s227 = smul.addr %s226, 32
      %s228 = smul.addr %s227, 8
      %s229 = scalar_lea.vmem %s5, %s228
      %p230 = scmp.lt.s32.totalorder %s16, 1
      %s231 = scalar_select %p230, %s16, 1
      %s232 = smul.addr %s231, 32
      %s233 = smul.addr %s232, 8
      %s234 = scalar_lea.vmem %s0, %s233
      %p235 = scmp.lt.s32.totalorder %s16, 1
      %s236 = scalar_select %p235, %s16, 1
      %s237 = smul.addr %s236, 32
      %s238 = smul.addr %s237, 8
      %s239 = scalar_lea.vmem %s1, %s238
      %p240 = scmp.lt.s32.totalorder %s16, 1
      %s241 = scalar_select %p240, %s16, 1
      %s242 = smul.addr %s241, 32
      %s243 = smul.addr %s242, 8
      %s244 = scalar_lea.vmem %s5, %s243
      %vm245 = vcmask 31744
      %246 = vst.msk [vmem:[#allocation2] sm:$0xff] %vm245, 0.0
      %247 = vst.msk [vmem:[#allocation2 + $0x8] sm:$0xff] %vm245, 0.0
      %vm248 = vcmask 25600
      %249 = vst.msk [vmem:[#allocation2 + $0x10] sm:$0x3] %vm248, 0.0
      %250 = vst.msk [vmem:[#allocation2 + $0x18] sm:$0xff] %vm245, 0.0
      %251 = vst.msk [vmem:[#allocation2 + $0x20] sm:$0xff] %vm245, 0.0
      %252 = vst.msk [vmem:[#allocation2 + $0x28] sm:$0x3] %vm248, 0.0
      %253 = vst.msk [vmem:[#allocation2 + $0x30] sm:$0xff] %vm245, 0.0
      %254 = vst.msk [vmem:[#allocation2 + $0x38] sm:$0xff] %vm245, 0.0
      %255 = vst.msk [vmem:[#allocation2 + $0x40] sm:$0x3] %vm248, 0.0
      %256 = vst.msk [vmem:[#allocation2 + $0x48] sm:$0xff] %vm245, 0.0
      %257 = vst.msk [vmem:[#allocation2 + $0x50] sm:$0xff] %vm245, 0.0
      %258 = vst.msk [vmem:[#allocation2 + $0x58] sm:$0x3] %vm248, 0.0
      %259 = vst.msk [vmem:[#allocation2 + $0x60] sm:$0xff] %vm245, 0.0
      %260 = vst.msk [vmem:[#allocation2 + $0x68] sm:$0xff] %vm245, 0.0
      %261 = vst.msk [vmem:[#allocation2 + $0x70] sm:$0x3] %vm248, 0.0
      %262 = vst.msk [vmem:[#allocation2 + $0x78] sm:$0xff] %vm245, 0.0
      %263 = vst.msk [vmem:[#allocation2 + $0x80] sm:$0xff] %vm245, 0.0
      %264 = vst.msk [vmem:[#allocation2 + $0x88] sm:$0x3] %vm248, 0.0
      %265 = vst.msk [vmem:[#allocation2 + $0x90] sm:$0xff] %vm245, 0.0
      %266 = vst.msk [vmem:[#allocation2 + $0x98] sm:$0xff] %vm245, 0.0
      %267 = vst.msk [vmem:[#allocation2 + $0xa0] sm:$0x3] %vm248, 0.0
      %268 = vst.msk [vmem:[#allocation2 + $0xa8] sm:$0xff] %vm245, 0.0
      %269 = vst.msk [vmem:[#allocation2 + $0xb0] sm:$0xff] %vm245, 0.0
      %270 = vst.msk [vmem:[#allocation2 + $0xb8] sm:$0x3] %vm248, 0.0
      %271 = vst.msk [vmem:[#allocation2 + $0xc0] sm:$0xff] %vm245, 0.0
      %272 = vst.msk [vmem:[#allocation2 + $0xc8] sm:$0xff] %vm245, 0.0
      %273 = vst.msk [vmem:[#allocation2 + $0xd0] sm:$0x3] %vm248, 0.0
      %274 = vst.msk [vmem:[#allocation2 + $0xd8] sm:$0xff] %vm245, 0.0
      %275 = vst.msk [vmem:[#allocation2 + $0xe0] sm:$0xff] %vm245, 0.0
      %276 = vst.msk [vmem:[#allocation2 + $0xe8] sm:$0x3] %vm248, 0.0
      %277 = vst.msk [vmem:[#allocation2 + $0xf0] sm:$0xff] %vm245, 0.0
      %278 = vst.msk [vmem:[#allocation2 + $0xf8] sm:$0xff] %vm245, 0.0
      %279 = vst.msk [vmem:[#allocation2 + $0x100] sm:$0x3] %vm248, 0.0
      %280 = vst.msk [vmem:[#allocation2 + $0x108] sm:$0xff] %vm245, 0.0
      %281 = vst.msk [vmem:[#allocation2 + $0x110] sm:$0xff] %vm245, 0.0
      %282 = vst.msk [vmem:[#allocation2 + $0x118] sm:$0x3] %vm248, 0.0
      %283 = vst.msk [vmem:[#allocation2 + $0x120] sm:$0xff] %vm245, 0.0
      %284 = vst.msk [vmem:[#allocation2 + $0x128] sm:$0xff] %vm245, 0.0
      %285 = vst.msk [vmem:[#allocation2 + $0x130] sm:$0x3] %vm248, 0.0
      %286 = vst.msk [vmem:[#allocation2 + $0x138] sm:$0xff] %vm245, 0.0
      %287 = vst.msk [vmem:[#allocation2 + $0x140] sm:$0xff] %vm245, 0.0
      %288 = vst.msk [vmem:[#allocation2 + $0x148] sm:$0x3] %vm248, 0.0
      %289 = vst.msk [vmem:[#allocation2 + $0x150] sm:$0xff] %vm245, 0.0
      %290 = vst.msk [vmem:[#allocation2 + $0x158] sm:$0xff] %vm245, 0.0
      %291 = vst.msk [vmem:[#allocation2 + $0x160] sm:$0x3] %vm248, 0.0
      %292 = vst.msk [vmem:[#allocation2 + $0x168] sm:$0xff] %vm245, 0.0
      %293 = vst.msk [vmem:[#allocation2 + $0x170] sm:$0xff] %vm245, 0.0
      %294 = vst.msk [vmem:[#allocation2 + $0x178] sm:$0x3] %vm248, 0.0
      %295 = vst.msk [vmem:[#allocation2 + $0x180] sm:$0xff] %vm245, 0.0
      %296 = vst.msk [vmem:[#allocation2 + $0x188] sm:$0xff] %vm245, 0.0
      %297 = vst.msk [vmem:[#allocation2 + $0x190] sm:$0x3] %vm248, 0.0
      %298 = vst.msk [vmem:[#allocation2 + $0x198] sm:$0xff] %vm245, 0.0
      %299 = vst.msk [vmem:[#allocation2 + $0x1a0] sm:$0xff] %vm245, 0.0
      %300 = vst.msk [vmem:[#allocation2 + $0x1a8] sm:$0x3] %vm248, 0.0
      %301 = vst.msk [vmem:[#allocation3] sm:$0xff] %vm245, 0.0
      %302 = vst.msk [vmem:[#allocation3 + $0x8] sm:$0xff] %vm245, 0.0
      %303 = vst.msk [vmem:[#allocation3 + $0x10] sm:$0x3] %vm248, 0.0
      %304 = vst.msk [vmem:[#allocation3 + $0x18] sm:$0xff] %vm245, 0.0
      %305 = vst.msk [vmem:[#allocation3 + $0x20] sm:$0xff] %vm245, 0.0
      %306 = vst.msk [vmem:[#allocation3 + $0x28] sm:$0x3] %vm248, 0.0
      %307 = vst.msk [vmem:[#allocation3 + $0x30] sm:$0xff] %vm245, 0.0
      %308 = vst.msk [vmem:[#allocation3 + $0x38] sm:$0xff] %vm245, 0.0
      %309 = vst.msk [vmem:[#allocation3 + $0x40] sm:$0x3] %vm248, 0.0
      %310 = vst.msk [vmem:[#allocation3 + $0x48] sm:$0xff] %vm245, 0.0
      %311 = vst.msk [vmem:[#allocation3 + $0x50] sm:$0xff] %vm245, 0.0
      %312 = vst.msk [vmem:[#allocation3 + $0x58] sm:$0x3] %vm248, 0.0
      %313 = vst.msk [vmem:[#allocation3 + $0x60] sm:$0xff] %vm245, 0.0
      %314 = vst.msk [vmem:[#allocation3 + $0x68] sm:$0xff] %vm245, 0.0
      %315 = vst.msk [vmem:[#allocation3 + $0x70] sm:$0x3] %vm248, 0.0
      %316 = vst.msk [vmem:[#allocation3 + $0x78] sm:$0xff] %vm245, 0.0
      %317 = vst.msk [vmem:[#allocation3 + $0x80] sm:$0xff] %vm245, 0.0
      %318 = vst.msk [vmem:[#allocation3 + $0x88] sm:$0x3] %vm248, 0.0
      %319 = vst.msk [vmem:[#allocation3 + $0x90] sm:$0xff] %vm245, 0.0
      %320 = vst.msk [vmem:[#allocation3 + $0x98] sm:$0xff] %vm245, 0.0
      %321 = vst.msk [vmem:[#allocation3 + $0xa0] sm:$0x3] %vm248, 0.0
      %322 = vst.msk [vmem:[#allocation3 + $0xa8] sm:$0xff] %vm245, 0.0
      %323 = vst.msk [vmem:[#allocation3 + $0xb0] sm:$0xff] %vm245, 0.0
      %324 = vst.msk [vmem:[#allocation3 + $0xb8] sm:$0x3] %vm248, 0.0
      %325 = vst.msk [vmem:[#allocation3 + $0xc0] sm:$0xff] %vm245, 0.0
      %326 = vst.msk [vmem:[#allocation3 + $0xc8] sm:$0xff] %vm245, 0.0
      %327 = vst.msk [vmem:[#allocation3 + $0xd0] sm:$0x3] %vm248, 0.0
      %328 = vst.msk [vmem:[#allocation3 + $0xd8] sm:$0xff] %vm245, 0.0
      %329 = vst.msk [vmem:[#allocation3 + $0xe0] sm:$0xff] %vm245, 0.0
      %330 = vst.msk [vmem:[#allocation3 + $0xe8] sm:$0x3] %vm248, 0.0
      %331 = vst.msk [vmem:[#allocation3 + $0xf0] sm:$0xff] %vm245, 0.0
      %332 = vst.msk [vmem:[#allocation3 + $0xf8] sm:$0xff] %vm245, 0.0
      %333 = vst.msk [vmem:[#allocation3 + $0x100] sm:$0x3] %vm248, 0.0
      %334 = vst.msk [vmem:[#allocation3 + $0x108] sm:$0xff] %vm245, 0.0
      %335 = vst.msk [vmem:[#allocation3 + $0x110] sm:$0xff] %vm245, 0.0
      %336 = vst.msk [vmem:[#allocation3 + $0x118] sm:$0x3] %vm248, 0.0
      %337 = vst.msk [vmem:[#allocation3 + $0x120] sm:$0xff] %vm245, 0.0
      %338 = vst.msk [vmem:[#allocation3 + $0x128] sm:$0xff] %vm245, 0.0
      %339 = vst.msk [vmem:[#allocation3 + $0x130] sm:$0x3] %vm248, 0.0
      %340 = vst.msk [vmem:[#allocation3 + $0x138] sm:$0xff] %vm245, 0.0
      %341 = vst.msk [vmem:[#allocation3 + $0x140] sm:$0xff] %vm245, 0.0
      %342 = vst.msk [vmem:[#allocation3 + $0x148] sm:$0x3] %vm248, 0.0
      %343 = vst.msk [vmem:[#allocation3 + $0x150] sm:$0xff] %vm245, 0.0
      %344 = vst.msk [vmem:[#allocation3 + $0x158] sm:$0xff] %vm245, 0.0
      %345 = vst.msk [vmem:[#allocation3 + $0x160] sm:$0x3] %vm248, 0.0
      %346 = vst.msk [vmem:[#allocation3 + $0x168] sm:$0xff] %vm245, 0.0
      %347 = vst.msk [vmem:[#allocation3 + $0x170] sm:$0xff] %vm245, 0.0
      %348 = vst.msk [vmem:[#allocation3 + $0x178] sm:$0x3] %vm248, 0.0
      %349 = vst.msk [vmem:[#allocation3 + $0x180] sm:$0xff] %vm245, 0.0
      %350 = vst.msk [vmem:[#allocation3 + $0x188] sm:$0xff] %vm245, 0.0
      %351 = vst.msk [vmem:[#allocation3 + $0x190] sm:$0x3] %vm248, 0.0
      %352 = vst.msk [vmem:[#allocation3 + $0x198] sm:$0xff] %vm245, 0.0
      %353 = vst.msk [vmem:[#allocation3 + $0x1a0] sm:$0xff] %vm245, 0.0
      %354 = vst.msk [vmem:[#allocation3 + $0x1a8] sm:$0x3] %vm248, 0.0
      %v355 = vld [vmem:[%s234] sm:$0xff]
      %v356 = vld [vmem:[%s234 + $0x8] sm:$0xff]
      %v357 = vld [vmem:[%s234 + $0x10] sm:$0xff]
      %v358 = vld [vmem:[%s234 + $0x18] sm:$0xff]
      %v359 = vld [vmem:[%s234 + $0x20] sm:$0xff]
      %v360 = vld [vmem:[%s234 + $0x28] sm:$0xff]
      %v361 = vld [vmem:[%s234 + $0x30] sm:$0xff]
      %v362 = vld [vmem:[%s234 + $0x38] sm:$0xff]
      %v363 = vld [vmem:[%s234 + $0x40] sm:$0xff]
      %v364 = vld [vmem:[%s234 + $0x48] sm:$0xff]
      %v365 = vld [vmem:[%s234 + $0x50] sm:$0xff]
      %v366 = vld [vmem:[%s234 + $0x58] sm:$0xff]
      %v367 = vld [vmem:[%s234 + $0x60] sm:$0xff]
      %v368 = vld [vmem:[%s234 + $0x68] sm:$0xff]
      %v369 = vld [vmem:[%s234 + $0x70] sm:$0xff]
      %v370 = vld [vmem:[%s234 + $0x78] sm:$0xff]
      %v371 = vld [vmem:[%s234 + $0x80] sm:$0xff]
      %v372 = vld [vmem:[%s234 + $0x88] sm:$0xff]
      %v373 = vld [vmem:[%s234 + $0x90] sm:$0xff]
      %v374 = vld [vmem:[%s234 + $0x98] sm:$0xff]
      %v375 = vld [vmem:[%s234 + $0xa0] sm:$0xff]
      %v376 = vld [vmem:[%s234 + $0xa8] sm:$0xff]
      %v377 = vld [vmem:[%s234 + $0xb0] sm:$0xff]
      %v378 = vld [vmem:[%s234 + $0xb8] sm:$0xff]
      %v379 = vld [vmem:[%s234 + $0xc0] sm:$0xff]
      %v380 = vld [vmem:[%s234 + $0xc8] sm:$0xff]
      %v381 = vld [vmem:[%s234 + $0xd0] sm:$0xff]
      %v382 = vld [vmem:[%s234 + $0xd8] sm:$0xff]
      %v383 = vld [vmem:[%s234 + $0xe0] sm:$0xff]
      %v384 = vld [vmem:[%s234 + $0xe8] sm:$0xff]
      %v385 = vld [vmem:[%s234 + $0xf0] sm:$0xff]
      %v386 = vld [vmem:[%s234 + $0xf8] sm:$0xff]
      %s387 = scalar_lea.vmem [#allocation2], 24
      %388 = vst.msk [vmem:[%s387 + $0x1] sm:$0xff] %vm245, %v355
      %389 = vst.msk [vmem:[%s387 + $0x9] sm:$0xff] %vm245, %v356
      %390 = vst.msk [vmem:[%s387 + $0x19] sm:$0xff] %vm245, %v357
      %391 = vst.msk [vmem:[%s387 + $0x21] sm:$0xff] %vm245, %v358
      %392 = vst.msk [vmem:[%s387 + $0x31] sm:$0xff] %vm245, %v359
      %393 = vst.msk [vmem:[%s387 + $0x39] sm:$0xff] %vm245, %v360
      %394 = vst.msk [vmem:[%s387 + $0x49] sm:$0xff] %vm245, %v361
      %395 = vst.msk [vmem:[%s387 + $0x51] sm:$0xff] %vm245, %v362
      %396 = vst.msk [vmem:[%s387 + $0x61] sm:$0xff] %vm245, %v363
      %397 = vst.msk [vmem:[%s387 + $0x69] sm:$0xff] %vm245, %v364
      %398 = vst.msk [vmem:[%s387 + $0x79] sm:$0xff] %vm245, %v365
      %399 = vst.msk [vmem:[%s387 + $0x81] sm:$0xff] %vm245, %v366
      %400 = vst.msk [vmem:[%s387 + $0x91] sm:$0xff] %vm245, %v367
      %401 = vst.msk [vmem:[%s387 + $0x99] sm:$0xff] %vm245, %v368
      %402 = vst.msk [vmem:[%s387 + $0xa9] sm:$0xff] %vm245, %v369
      %403 = vst.msk [vmem:[%s387 + $0xb1] sm:$0xff] %vm245, %v370
      %404 = vst.msk [vmem:[%s387 + $0xc1] sm:$0xff] %vm245, %v371
      %405 = vst.msk [vmem:[%s387 + $0xc9] sm:$0xff] %vm245, %v372
      %406 = vst.msk [vmem:[%s387 + $0xd9] sm:$0xff] %vm245, %v373
      %407 = vst.msk [vmem:[%s387 + $0xe1] sm:$0xff] %vm245, %v374
      %408 = vst.msk [vmem:[%s387 + $0xf1] sm:$0xff] %vm245, %v375
      %409 = vst.msk [vmem:[%s387 + $0xf9] sm:$0xff] %vm245, %v376
      %410 = vst.msk [vmem:[%s387 + $0x109] sm:$0xff] %vm245, %v377
      %411 = vst.msk [vmem:[%s387 + $0x111] sm:$0xff] %vm245, %v378
      %412 = vst.msk [vmem:[%s387 + $0x121] sm:$0xff] %vm245, %v379
      %413 = vst.msk [vmem:[%s387 + $0x129] sm:$0xff] %vm245, %v380
      %414 = vst.msk [vmem:[%s387 + $0x139] sm:$0xff] %vm245, %v381
      %415 = vst.msk [vmem:[%s387 + $0x141] sm:$0xff] %vm245, %v382
      %416 = vst.msk [vmem:[%s387 + $0x151] sm:$0xff] %vm245, %v383
      %417 = vst.msk [vmem:[%s387 + $0x159] sm:$0xff] %vm245, %v384
      %418 = vst.msk [vmem:[%s387 + $0x169] sm:$0xff] %vm245, %v385
      %419 = vst.msk [vmem:[%s387 + $0x171] sm:$0xff] %vm245, %v386
      %v420 = vld [vmem:[%s239] sm:$0xff]
      %v421 = vld [vmem:[%s239 + $0x8] sm:$0xff]
      %v422 = vld [vmem:[%s239 + $0x10] sm:$0xff]
      %v423 = vld [vmem:[%s239 + $0x18] sm:$0xff]
      %v424 = vld [vmem:[%s239 + $0x20] sm:$0xff]
      %v425 = vld [vmem:[%s239 + $0x28] sm:$0xff]
      %v426 = vld [vmem:[%s239 + $0x30] sm:$0xff]
      %v427 = vld [vmem:[%s239 + $0x38] sm:$0xff]
      %v428 = vld [vmem:[%s239 + $0x40] sm:$0xff]
      %v429 = vld [vmem:[%s239 + $0x48] sm:$0xff]
      %v430 = vld [vmem:[%s239 + $0x50] sm:$0xff]
      %v431 = vld [vmem:[%s239 + $0x58] sm:$0xff]
      %v432 = vld [vmem:[%s239 + $0x60] sm:$0xff]
      %v433 = vld [vmem:[%s239 + $0x68] sm:$0xff]
      %v434 = vld [vmem:[%s239 + $0x70] sm:$0xff]
      %v435 = vld [vmem:[%s239 + $0x78] sm:$0xff]
      %v436 = vld [vmem:[%s239 + $0x80] sm:$0xff]
      %v437 = vld [vmem:[%s239 + $0x88] sm:$0xff]
      %v438 = vld [vmem:[%s239 + $0x90] sm:$0xff]
      %v439 = vld [vmem:[%s239 + $0x98] sm:$0xff]
      %v440 = vld [vmem:[%s239 + $0xa0] sm:$0xff]
      %v441 = vld [vmem:[%s239 + $0xa8] sm:$0xff]
      %v442 = vld [vmem:[%s239 + $0xb0] sm:$0xff]
      %v443 = vld [vmem:[%s239 + $0xb8] sm:$0xff]
      %v444 = vld [vmem:[%s239 + $0xc0] sm:$0xff]
      %v445 = vld [vmem:[%s239 + $0xc8] sm:$0xff]
      %v446 = vld [vmem:[%s239 + $0xd0] sm:$0xff]
      %v447 = vld [vmem:[%s239 + $0xd8] sm:$0xff]
      %v448 = vld [vmem:[%s239 + $0xe0] sm:$0xff]
      %v449 = vld [vmem:[%s239 + $0xe8] sm:$0xff]
      %v450 = vld [vmem:[%s239 + $0xf0] sm:$0xff]
      %v451 = vld [vmem:[%s239 + $0xf8] sm:$0xff]
      %s452 = scalar_lea.vmem [#allocation3], 24
      %453 = vst.msk [vmem:[%s452 + $0x1] sm:$0xff] %vm245, %v420
      %454 = vst.msk [vmem:[%s452 + $0x9] sm:$0xff] %vm245, %v421
      %455 = vst.msk [vmem:[%s452 + $0x19] sm:$0xff] %vm245, %v422
      %456 = vst.msk [vmem:[%s452 + $0x21] sm:$0xff] %vm245, %v423
      %457 = vst.msk [vmem:[%s452 + $0x31] sm:$0xff] %vm245, %v424
      %458 = vst.msk [vmem:[%s452 + $0x39] sm:$0xff] %vm245, %v425
      %459 = vst.msk [vmem:[%s452 + $0x49] sm:$0xff] %vm245, %v426
      %460 = vst.msk [vmem:[%s452 + $0x51] sm:$0xff] %vm245, %v427
      %461 = vst.msk [vmem:[%s452 + $0x61] sm:$0xff] %vm245, %v428
      %462 = vst.msk [vmem:[%s452 + $0x69] sm:$0xff] %vm245, %v429
      %463 = vst.msk [vmem:[%s452 + $0x79] sm:$0xff] %vm245, %v430
      %464 = vst.msk [vmem:[%s452 + $0x81] sm:$0xff] %vm245, %v431
      %465 = vst.msk [vmem:[%s452 + $0x91] sm:$0xff] %vm245, %v432
      %466 = vst.msk [vmem:[%s452 + $0x99] sm:$0xff] %vm245, %v433
      %467 = vst.msk [vmem:[%s452 + $0xa9] sm:$0xff] %vm245, %v434
      %468 = vst.msk [vmem:[%s452 + $0xb1] sm:$0xff] %vm245, %v435
      %469 = vst.msk [vmem:[%s452 + $0xc1] sm:$0xff] %vm245, %v436
      %470 = vst.msk [vmem:[%s452 + $0xc9] sm:$0xff] %vm245, %v437
      %471 = vst.msk [vmem:[%s452 + $0xd9] sm:$0xff] %vm245, %v438
      %472 = vst.msk [vmem:[%s452 + $0xe1] sm:$0xff] %vm245, %v439
      %473 = vst.msk [vmem:[%s452 + $0xf1] sm:$0xff] %vm245, %v440
      %474 = vst.msk [vmem:[%s452 + $0xf9] sm:$0xff] %vm245, %v441
      %475 = vst.msk [vmem:[%s452 + $0x109] sm:$0xff] %vm245, %v442
      %476 = vst.msk [vmem:[%s452 + $0x111] sm:$0xff] %vm245, %v443
      %477 = vst.msk [vmem:[%s452 + $0x121] sm:$0xff] %vm245, %v444
      %478 = vst.msk [vmem:[%s452 + $0x129] sm:$0xff] %vm245, %v445
      %479 = vst.msk [vmem:[%s452 + $0x139] sm:$0xff] %vm245, %v446
      %480 = vst.msk [vmem:[%s452 + $0x141] sm:$0xff] %vm245, %v447
      %481 = vst.msk [vmem:[%s452 + $0x151] sm:$0xff] %vm245, %v448
      %482 = vst.msk [vmem:[%s452 + $0x159] sm:$0xff] %vm245, %v449
      %483 = vst.msk [vmem:[%s452 + $0x169] sm:$0xff] %vm245, %v450
      %484 = vst.msk [vmem:[%s452 + $0x171] sm:$0xff] %vm245, %v451
      %v485 = vld [vmem:[#allocation2] sm:$0xff]
      %v486 = vld [vmem:[#allocation2 + $0x8] sm:$0xff]
      %v487 = vld [vmem:[#allocation2 + $0x18] sm:$0xff]
      %v488 = vld [vmem:[#allocation2 + $0x20] sm:$0xff]
      %v489 = vld [vmem:[#allocation2 + $0x30] sm:$0xff]
      %v490 = vld [vmem:[#allocation2 + $0x38] sm:$0xff]
      %v491 = vld [vmem:[#allocation2 + $0x48] sm:$0xff]
      %v492 = vld [vmem:[#allocation2 + $0x50] sm:$0xff]
      %v493 = vld [vmem:[#allocation2 + $0x60] sm:$0xff]
      %v494 = vld [vmem:[#allocation2 + $0x68] sm:$0xff]
      %v495 = vld [vmem:[#allocation2 + $0x78] sm:$0xff]
      %v496 = vld [vmem:[#allocation2 + $0x80] sm:$0xff]
      %v497 = vld [vmem:[#allocation2 + $0x90] sm:$0xff]
      %v498 = vld [vmem:[#allocation2 + $0x98] sm:$0xff]
      %v499 = vld [vmem:[#allocation2 + $0xa8] sm:$0xff]
      %v500 = vld [vmem:[#allocation2 + $0xb0] sm:$0xff]
      %v501 = vld [vmem:[#allocation2 + $0xc0] sm:$0xff]
      %v502 = vld [vmem:[#allocation2 + $0xc8] sm:$0xff]
      %v503 = vld [vmem:[#allocation2 + $0xd8] sm:$0xff]
      %v504 = vld [vmem:[#allocation2 + $0xe0] sm:$0xff]
      %v505 = vld [vmem:[#allocation2 + $0xf0] sm:$0xff]
      %v506 = vld [vmem:[#allocation2 + $0xf8] sm:$0xff]
      %v507 = vld [vmem:[#allocation2 + $0x108] sm:$0xff]
      %v508 = vld [vmem:[#allocation2 + $0x110] sm:$0xff]
      %v509 = vld [vmem:[#allocation2 + $0x120] sm:$0xff]
      %v510 = vld [vmem:[#allocation2 + $0x128] sm:$0xff]
      %v511 = vld [vmem:[#allocation2 + $0x138] sm:$0xff]
      %v512 = vld [vmem:[#allocation2 + $0x140] sm:$0xff]
      %v513 = vld [vmem:[#allocation2 + $0x150] sm:$0xff]
      %v514 = vld [vmem:[#allocation2 + $0x158] sm:$0xff]
      %v515 = vld [vmem:[#allocation2 + $0x168] sm:$0xff]
      %v516 = vld [vmem:[#allocation2 + $0x170] sm:$0xff]
      %v517 = vld [vmem:[#allocation2 + $0x1] sm:$0xff]
      %v518 = vld [vmem:[#allocation2 + $0x9] sm:$0xff]
      %v519 = vld [vmem:[#allocation2 + $0x19] sm:$0xff]
      %v520 = vld [vmem:[#allocation2 + $0x21] sm:$0xff]
      %v521 = vld [vmem:[#allocation2 + $0x31] sm:$0xff]
      %v522 = vld [vmem:[#allocation2 + $0x39] sm:$0xff]
      %v523 = vld [vmem:[#allocation2 + $0x49] sm:$0xff]
      %v524 = vld [vmem:[#allocation2 + $0x51] sm:$0xff]
      %v525 = vld [vmem:[#allocation2 + $0x61] sm:$0xff]
      %v526 = vld [vmem:[#allocation2 + $0x69] sm:$0xff]
      %v527 = vld [vmem:[#allocation2 + $0x79] sm:$0xff]
      %v528 = vld [vmem:[#allocation2 + $0x81] sm:$0xff]
      %v529 = vld [vmem:[#allocation2 + $0x91] sm:$0xff]
      %v530 = vld [vmem:[#allocation2 + $0x99] sm:$0xff]
      %v531 = vld [vmem:[#allocation2 + $0xa9] sm:$0xff]
      %v532 = vld [vmem:[#allocation2 + $0xb1] sm:$0xff]
      %v533 = vld [vmem:[#allocation2 + $0xc1] sm:$0xff]
      %v534 = vld [vmem:[#allocation2 + $0xc9] sm:$0xff]
      %v535 = vld [vmem:[#allocation2 + $0xd9] sm:$0xff]
      %v536 = vld [vmem:[#allocation2 + $0xe1] sm:$0xff]
      %v537 = vld [vmem:[#allocation2 + $0xf1] sm:$0xff]
      %v538 = vld [vmem:[#allocation2 + $0xf9] sm:$0xff]
      %v539 = vld [vmem:[#allocation2 + $0x109] sm:$0xff]
      %v540 = vld [vmem:[#allocation2 + $0x111] sm:$0xff]
      %v541 = vld [vmem:[#allocation2 + $0x121] sm:$0xff]
      %v542 = vld [vmem:[#allocation2 + $0x129] sm:$0xff]
      %v543 = vld [vmem:[#allocation2 + $0x139] sm:$0xff]
      %v544 = vld [vmem:[#allocation2 + $0x141] sm:$0xff]
      %v545 = vld [vmem:[#allocation2 + $0x151] sm:$0xff]
      %v546 = vld [vmem:[#allocation2 + $0x159] sm:$0xff]
      %v547 = vld [vmem:[#allocation2 + $0x169] sm:$0xff]
      %v548 = vld [vmem:[#allocation2 + $0x171] sm:$0xff]
      %v549 = vld [vmem:[#allocation2 + $0x2] sm:$0xff]
      %v550 = vld [vmem:[#allocation2 + $0xa] sm:$0xff]
      %v551 = vld [vmem:[#allocation2 + $0x1a] sm:$0xff]
      %v552 = vld [vmem:[#allocation2 + $0x22] sm:$0xff]
      %v553 = vld [vmem:[#allocation2 + $0x32] sm:$0xff]
      %v554 = vld [vmem:[#allocation2 + $0x3a] sm:$0xff]
      %v555 = vld [vmem:[#allocation2 + $0x4a] sm:$0xff]
      %v556 = vld [vmem:[#allocation2 + $0x52] sm:$0xff]
      %v557 = vld [vmem:[#allocation2 + $0x62] sm:$0xff]
      %v558 = vld [vmem:[#allocation2 + $0x6a] sm:$0xff]
      %v559 = vld [vmem:[#allocation2 + $0x7a] sm:$0xff]
      %v560 = vld [vmem:[#allocation2 + $0x82] sm:$0xff]
      %v561 = vld [vmem:[#allocation2 + $0x92] sm:$0xff]
      %v562 = vld [vmem:[#allocation2 + $0x9a] sm:$0xff]
      %v563 = vld [vmem:[#allocation2 + $0xaa] sm:$0xff]
      %v564 = vld [vmem:[#allocation2 + $0xb2] sm:$0xff]
      %v565 = vld [vmem:[#allocation2 + $0xc2] sm:$0xff]
      %v566 = vld [vmem:[#allocation2 + $0xca] sm:$0xff]
      %v567 = vld [vmem:[#allocation2 + $0xda] sm:$0xff]
      %v568 = vld [vmem:[#allocation2 + $0xe2] sm:$0xff]
      %v569 = vld [vmem:[#allocation2 + $0xf2] sm:$0xff]
      %v570 = vld [vmem:[#allocation2 + $0xfa] sm:$0xff]
      %v571 = vld [vmem:[#allocation2 + $0x10a] sm:$0xff]
      %v572 = vld [vmem:[#allocation2 + $0x112] sm:$0xff]
      %v573 = vld [vmem:[#allocation2 + $0x122] sm:$0xff]
      %v574 = vld [vmem:[#allocation2 + $0x12a] sm:$0xff]
      %v575 = vld [vmem:[#allocation2 + $0x13a] sm:$0xff]
      %v576 = vld [vmem:[#allocation2 + $0x142] sm:$0xff]
      %v577 = vld [vmem:[#allocation2 + $0x152] sm:$0xff]
      %v578 = vld [vmem:[#allocation2 + $0x15a] sm:$0xff]
      %v579 = vld [vmem:[#allocation2 + $0x16a] sm:$0xff]
      %v580 = vld [vmem:[#allocation2 + $0x172] sm:$0xff]
      %v581 = vld [vmem:[%s387] sm:$0xff]
      %v582 = vld [vmem:[%s387 + $0x8] sm:$0xff]
      %v583 = vld [vmem:[%s387 + $0x18] sm:$0xff]
      %v584 = vld [vmem:[%s387 + $0x20] sm:$0xff]
      %v585 = vld [vmem:[%s387 + $0x30] sm:$0xff]
      %v586 = vld [vmem:[%s387 + $0x38] sm:$0xff]
      %v587 = vld [vmem:[%s387 + $0x48] sm:$0xff]
      %v588 = vld [vmem:[%s387 + $0x50] sm:$0xff]
      %v589 = vld [vmem:[%s387 + $0x60] sm:$0xff]
      %v590 = vld [vmem:[%s387 + $0x68] sm:$0xff]
      %v591 = vld [vmem:[%s387 + $0x78] sm:$0xff]
      %v592 = vld [vmem:[%s387 + $0x80] sm:$0xff]
      %v593 = vld [vmem:[%s387 + $0x90] sm:$0xff]
      %v594 = vld [vmem:[%s387 + $0x98] sm:$0xff]
      %v595 = vld [vmem:[%s387 + $0xa8] sm:$0xff]
      %v596 = vld [vmem:[%s387 + $0xb0] sm:$0xff]
      %v597 = vld [vmem:[%s387 + $0xc0] sm:$0xff]
      %v598 = vld [vmem:[%s387 + $0xc8] sm:$0xff]
      %v599 = vld [vmem:[%s387 + $0xd8] sm:$0xff]
      %v600 = vld [vmem:[%s387 + $0xe0] sm:$0xff]
      %v601 = vld [vmem:[%s387 + $0xf0] sm:$0xff]
      %v602 = vld [vmem:[%s387 + $0xf8] sm:$0xff]
      %v603 = vld [vmem:[%s387 + $0x108] sm:$0xff]
      %v604 = vld [vmem:[%s387 + $0x110] sm:$0xff]
      %v605 = vld [vmem:[%s387 + $0x120] sm:$0xff]
      %v606 = vld [vmem:[%s387 + $0x128] sm:$0xff]
      %v607 = vld [vmem:[%s387 + $0x138] sm:$0xff]
      %v608 = vld [vmem:[%s387 + $0x140] sm:$0xff]
      %v609 = vld [vmem:[%s387 + $0x150] sm:$0xff]
      %v610 = vld [vmem:[%s387 + $0x158] sm:$0xff]
      %v611 = vld [vmem:[%s387 + $0x168] sm:$0xff]
      %v612 = vld [vmem:[%s387 + $0x170] sm:$0xff]
      %v613 = vld [vmem:[%s387 + $0x1] sm:$0xff]
      %v614 = vld [vmem:[%s387 + $0x9] sm:$0xff]
      %v615 = vld [vmem:[%s387 + $0x19] sm:$0xff]
      %v616 = vld [vmem:[%s387 + $0x21] sm:$0xff]
      %v617 = vld [vmem:[%s387 + $0x31] sm:$0xff]
      %v618 = vld [vmem:[%s387 + $0x39] sm:$0xff]
      %v619 = vld [vmem:[%s387 + $0x49] sm:$0xff]
      %v620 = vld [vmem:[%s387 + $0x51] sm:$0xff]
      %v621 = vld [vmem:[%s387 + $0x61] sm:$0xff]
      %v622 = vld [vmem:[%s387 + $0x69] sm:$0xff]
      %v623 = vld [vmem:[%s387 + $0x79] sm:$0xff]
      %v624 = vld [vmem:[%s387 + $0x81] sm:$0xff]
      %v625 = vld [vmem:[%s387 + $0x91] sm:$0xff]
      %v626 = vld [vmem:[%s387 + $0x99] sm:$0xff]
      %v627 = vld [vmem:[%s387 + $0xa9] sm:$0xff]
      %v628 = vld [vmem:[%s387 + $0xb1] sm:$0xff]
      %v629 = vld [vmem:[%s387 + $0xc1] sm:$0xff]
      %v630 = vld [vmem:[%s387 + $0xc9] sm:$0xff]
      %v631 = vld [vmem:[%s387 + $0xd9] sm:$0xff]
      %v632 = vld [vmem:[%s387 + $0xe1] sm:$0xff]
      %v633 = vld [vmem:[%s387 + $0xf1] sm:$0xff]
      %v634 = vld [vmem:[%s387 + $0xf9] sm:$0xff]
      %v635 = vld [vmem:[%s387 + $0x109] sm:$0xff]
      %v636 = vld [vmem:[%s387 + $0x111] sm:$0xff]
      %v637 = vld [vmem:[%s387 + $0x121] sm:$0xff]
      %v638 = vld [vmem:[%s387 + $0x129] sm:$0xff]
      %v639 = vld [vmem:[%s387 + $0x139] sm:$0xff]
      %v640 = vld [vmem:[%s387 + $0x141] sm:$0xff]
      %v641 = vld [vmem:[%s387 + $0x151] sm:$0xff]
      %v642 = vld [vmem:[%s387 + $0x159] sm:$0xff]
      %v643 = vld [vmem:[%s387 + $0x169] sm:$0xff]
      %v644 = vld [vmem:[%s387 + $0x171] sm:$0xff]
      %v645 = vld [vmem:[%s387 + $0x2] sm:$0xff]
      %v646 = vld [vmem:[%s387 + $0xa] sm:$0xff]
      %v647 = vld [vmem:[%s387 + $0x1a] sm:$0xff]
      %v648 = vld [vmem:[%s387 + $0x22] sm:$0xff]
      %v649 = vld [vmem:[%s387 + $0x32] sm:$0xff]
      %v650 = vld [vmem:[%s387 + $0x3a] sm:$0xff]
      %v651 = vld [vmem:[%s387 + $0x4a] sm:$0xff]
      %v652 = vld [vmem:[%s387 + $0x52] sm:$0xff]
      %v653 = vld [vmem:[%s387 + $0x62] sm:$0xff]
      %v654 = vld [vmem:[%s387 + $0x6a] sm:$0xff]
      %v655 = vld [vmem:[%s387 + $0x7a] sm:$0xff]
      %v656 = vld [vmem:[%s387 + $0x82] sm:$0xff]
      %v657 = vld [vmem:[%s387 + $0x92] sm:$0xff]
      %v658 = vld [vmem:[%s387 + $0x9a] sm:$0xff]
      %v659 = vld [vmem:[%s387 + $0xaa] sm:$0xff]
      %v660 = vld [vmem:[%s387 + $0xb2] sm:$0xff]
      %v661 = vld [vmem:[%s387 + $0xc2] sm:$0xff]
      %v662 = vld [vmem:[%s387 + $0xca] sm:$0xff]
      %v663 = vld [vmem:[%s387 + $0xda] sm:$0xff]
      %v664 = vld [vmem:[%s387 + $0xe2] sm:$0xff]
      %v665 = vld [vmem:[%s387 + $0xf2] sm:$0xff]
      %v666 = vld [vmem:[%s387 + $0xfa] sm:$0xff]
      %v667 = vld [vmem:[%s387 + $0x10a] sm:$0xff]
      %v668 = vld [vmem:[%s387 + $0x112] sm:$0xff]
      %v669 = vld [vmem:[%s387 + $0x122] sm:$0xff]
      %v670 = vld [vmem:[%s387 + $0x12a] sm:$0xff]
      %v671 = vld [vmem:[%s387 + $0x13a] sm:$0xff]
      %v672 = vld [vmem:[%s387 + $0x142] sm:$0xff]
      %v673 = vld [vmem:[%s387 + $0x152] sm:$0xff]
      %v674 = vld [vmem:[%s387 + $0x15a] sm:$0xff]
      %v675 = vld [vmem:[%s387 + $0x16a] sm:$0xff]
      %v676 = vld [vmem:[%s387 + $0x172] sm:$0xff]
      %s677 = scalar_lea.vmem [#allocation2], 48
      %v678 = vld [vmem:[%s677] sm:$0xff]
      %v679 = vld [vmem:[%s677 + $0x8] sm:$0xff]
      %v680 = vld [vmem:[%s677 + $0x18] sm:$0xff]
      %v681 = vld [vmem:[%s677 + $0x20] sm:$0xff]
      %v682 = vld [vmem:[%s677 + $0x30] sm:$0xff]
      %v683 = vld [vmem:[%s677 + $0x38] sm:$0xff]
      %v684 = vld [vmem:[%s677 + $0x48] sm:$0xff]
      %v685 = vld [vmem:[%s677 + $0x50] sm:$0xff]
      %v686 = vld [vmem:[%s677 + $0x60] sm:$0xff]
      %v687 = vld [vmem:[%s677 + $0x68] sm:$0xff]
      %v688 = vld [vmem:[%s677 + $0x78] sm:$0xff]
      %v689 = vld [vmem:[%s677 + $0x80] sm:$0xff]
      %v690 = vld [vmem:[%s677 + $0x90] sm:$0xff]
      %v691 = vld [vmem:[%s677 + $0x98] sm:$0xff]
      %v692 = vld [vmem:[%s677 + $0xa8] sm:$0xff]
      %v693 = vld [vmem:[%s677 + $0xb0] sm:$0xff]
      %v694 = vld [vmem:[%s677 + $0xc0] sm:$0xff]
      %v695 = vld [vmem:[%s677 + $0xc8] sm:$0xff]
      %v696 = vld [vmem:[%s677 + $0xd8] sm:$0xff]
      %v697 = vld [vmem:[%s677 + $0xe0] sm:$0xff]
      %v698 = vld [vmem:[%s677 + $0xf0] sm:$0xff]
      %v699 = vld [vmem:[%s677 + $0xf8] sm:$0xff]
      %v700 = vld [vmem:[%s677 + $0x108] sm:$0xff]
      %v701 = vld [vmem:[%s677 + $0x110] sm:$0xff]
      %v702 = vld [vmem:[%s677 + $0x120] sm:$0xff]
      %v703 = vld [vmem:[%s677 + $0x128] sm:$0xff]
      %v704 = vld [vmem:[%s677 + $0x138] sm:$0xff]
      %v705 = vld [vmem:[%s677 + $0x140] sm:$0xff]
      %v706 = vld [vmem:[%s677 + $0x150] sm:$0xff]
      %v707 = vld [vmem:[%s677 + $0x158] sm:$0xff]
      %v708 = vld [vmem:[%s677 + $0x168] sm:$0xff]
      %v709 = vld [vmem:[%s677 + $0x170] sm:$0xff]
      %v710 = vld [vmem:[%s677 + $0x1] sm:$0xff]
      %v711 = vld [vmem:[%s677 + $0x9] sm:$0xff]
      %v712 = vld [vmem:[%s677 + $0x19] sm:$0xff]
      %v713 = vld [vmem:[%s677 + $0x21] sm:$0xff]
      %v714 = vld [vmem:[%s677 + $0x31] sm:$0xff]
      %v715 = vld [vmem:[%s677 + $0x39] sm:$0xff]
      %v716 = vld [vmem:[%s677 + $0x49] sm:$0xff]
      %v717 = vld [vmem:[%s677 + $0x51] sm:$0xff]
      %v718 = vld [vmem:[%s677 + $0x61] sm:$0xff]
      %v719 = vld [vmem:[%s677 + $0x69] sm:$0xff]
      %v720 = vld [vmem:[%s677 + $0x79] sm:$0xff]
      %v721 = vld [vmem:[%s677 + $0x81] sm:$0xff]
      %v722 = vld [vmem:[%s677 + $0x91] sm:$0xff]
      %v723 = vld [vmem:[%s677 + $0x99] sm:$0xff]
      %v724 = vld [vmem:[%s677 + $0xa9] sm:$0xff]
      %v725 = vld [vmem:[%s677 + $0xb1] sm:$0xff]
      %v726 = vld [vmem:[%s677 + $0xc1] sm:$0xff]
      %v727 = vld [vmem:[%s677 + $0xc9] sm:$0xff]
      %v728 = vld [vmem:[%s677 + $0xd9] sm:$0xff]
      %v729 = vld [vmem:[%s677 + $0xe1] sm:$0xff]
      %v730 = vld [vmem:[%s677 + $0xf1] sm:$0xff]
      %v731 = vld [vmem:[%s677 + $0xf9] sm:$0xff]
      %v732 = vld [vmem:[%s677 + $0x109] sm:$0xff]
      %v733 = vld [vmem:[%s677 + $0x111] sm:$0xff]
      %v734 = vld [vmem:[%s677 + $0x121] sm:$0xff]
      %v735 = vld [vmem:[%s677 + $0x129] sm:$0xff]
      %v736 = vld [vmem:[%s677 + $0x139] sm:$0xff]
      %v737 = vld [vmem:[%s677 + $0x141] sm:$0xff]
      %v738 = vld [vmem:[%s677 + $0x151] sm:$0xff]
      %v739 = vld [vmem:[%s677 + $0x159] sm:$0xff]
      %v740 = vld [vmem:[%s677 + $0x169] sm:$0xff]
      %v741 = vld [vmem:[%s677 + $0x171] sm:$0xff]
      %v742 = vld [vmem:[%s677 + $0x2] sm:$0xff]
      %v743 = vld [vmem:[%s677 + $0xa] sm:$0xff]
      %v744 = vld [vmem:[%s677 + $0x1a] sm:$0xff]
      %v745 = vld [vmem:[%s677 + $0x22] sm:$0xff]
      %v746 = vld [vmem:[%s677 + $0x32] sm:$0xff]
      %v747 = vld [vmem:[%s677 + $0x3a] sm:$0xff]
      %v748 = vld [vmem:[%s677 + $0x4a] sm:$0xff]
      %v749 = vld [vmem:[%s677 + $0x52] sm:$0xff]
      %v750 = vld [vmem:[%s677 + $0x62] sm:$0xff]
      %v751 = vld [vmem:[%s677 + $0x6a] sm:$0xff]
      %v752 = vld [vmem:[%s677 + $0x7a] sm:$0xff]
      %v753 = vld [vmem:[%s677 + $0x82] sm:$0xff]
      %v754 = vld [vmem:[%s677 + $0x92] sm:$0xff]
      %v755 = vld [vmem:[%s677 + $0x9a] sm:$0xff]
      %v756 = vld [vmem:[%s677 + $0xaa] sm:$0xff]
      %v757 = vld [vmem:[%s677 + $0xb2] sm:$0xff]
      %v758 = vld [vmem:[%s677 + $0xc2] sm:$0xff]
      %v759 = vld [vmem:[%s677 + $0xca] sm:$0xff]
      %v760 = vld [vmem:[%s677 + $0xda] sm:$0xff]
      %v761 = vld [vmem:[%s677 + $0xe2] sm:$0xff]
      %v762 = vld [vmem:[%s677 + $0xf2] sm:$0xff]
      %v763 = vld [vmem:[%s677 + $0xfa] sm:$0xff]
      %v764 = vld [vmem:[%s677 + $0x10a] sm:$0xff]
      %v765 = vld [vmem:[%s677 + $0x112] sm:$0xff]
      %v766 = vld [vmem:[%s677 + $0x122] sm:$0xff]
      %v767 = vld [vmem:[%s677 + $0x12a] sm:$0xff]
      %v768 = vld [vmem:[%s677 + $0x13a] sm:$0xff]
      %v769 = vld [vmem:[%s677 + $0x142] sm:$0xff]
      %v770 = vld [vmem:[%s677 + $0x152] sm:$0xff]
      %v771 = vld [vmem:[%s677 + $0x15a] sm:$0xff]
      %v772 = vld [vmem:[%s677 + $0x16a] sm:$0xff]
      %v773 = vld [vmem:[%s677 + $0x172] sm:$0xff]
      %806 = vrot.lane.b32.xlu0 %v517, 4
      %v807 = vpop.permute.xlu0 %806
      %808 = vrot.lane.b32.xlu0 %v518, 4
      %v809 = vpop.permute.xlu0 %808
      %810 = vrot.lane.b32.xlu0 %v519, 4
      %v811 = vpop.permute.xlu0 %810
      %812 = vrot.lane.b32.xlu0 %v520, 4
      %v813 = vpop.permute.xlu0 %812
      %814 = vrot.lane.b32.xlu0 %v521, 4
      %v815 = vpop.permute.xlu0 %814
      %816 = vrot.lane.b32.xlu0 %v522, 4
      %v817 = vpop.permute.xlu0 %816
      %818 = vrot.lane.b32.xlu0 %v523, 4
      %v819 = vpop.permute.xlu0 %818
      %820 = vrot.lane.b32.xlu0 %v524, 4
      %v821 = vpop.permute.xlu0 %820
      %822 = vrot.lane.b32.xlu0 %v525, 4
      %v823 = vpop.permute.xlu0 %822
      %824 = vrot.lane.b32.xlu0 %v526, 4
      %v825 = vpop.permute.xlu0 %824
      %826 = vrot.lane.b32.xlu0 %v527, 4
      %v827 = vpop.permute.xlu0 %826
      %828 = vrot.lane.b32.xlu0 %v528, 4
      %v829 = vpop.permute.xlu0 %828
      %830 = vrot.lane.b32.xlu0 %v529, 4
      %v831 = vpop.permute.xlu0 %830
      %832 = vrot.lane.b32.xlu0 %v530, 4
      %v833 = vpop.permute.xlu0 %832
      %834 = vrot.lane.b32.xlu0 %v531, 4
      %v835 = vpop.permute.xlu0 %834
      %836 = vrot.lane.b32.xlu0 %v532, 4
      %v837 = vpop.permute.xlu0 %836
      %838 = vrot.lane.b32.xlu0 %v533, 4
      %v839 = vpop.permute.xlu0 %838
      %840 = vrot.lane.b32.xlu0 %v534, 4
      %v841 = vpop.permute.xlu0 %840
      %842 = vrot.lane.b32.xlu0 %v535, 4
      %v843 = vpop.permute.xlu0 %842
      %844 = vrot.lane.b32.xlu0 %v536, 4
      %v845 = vpop.permute.xlu0 %844
      %846 = vrot.lane.b32.xlu0 %v537, 4
      %v847 = vpop.permute.xlu0 %846
      %848 = vrot.lane.b32.xlu0 %v538, 4
      %v849 = vpop.permute.xlu0 %848
      %850 = vrot.lane.b32.xlu0 %v539, 4
      %v851 = vpop.permute.xlu0 %850
      %852 = vrot.lane.b32.xlu0 %v540, 4
      %v853 = vpop.permute.xlu0 %852
      %854 = vrot.lane.b32.xlu0 %v541, 4
      %v855 = vpop.permute.xlu0 %854
      %856 = vrot.lane.b32.xlu0 %v542, 4
      %v857 = vpop.permute.xlu0 %856
      %858 = vrot.lane.b32.xlu0 %v543, 4
      %v859 = vpop.permute.xlu0 %858
      %860 = vrot.lane.b32.xlu0 %v544, 4
      %v861 = vpop.permute.xlu0 %860
      %862 = vrot.lane.b32.xlu0 %v545, 4
      %v863 = vpop.permute.xlu0 %862
      %864 = vrot.lane.b32.xlu0 %v546, 4
      %v865 = vpop.permute.xlu0 %864
      %866 = vrot.lane.b32.xlu0 %v547, 4
      %v867 = vpop.permute.xlu0 %866
      %868 = vrot.lane.b32.xlu0 %v548, 4
      %v869 = vpop.permute.xlu0 %868
      %934 = vrot.lane.b32.xlu0 %v549, 8
      %v935 = vpop.permute.xlu0 %934
      %936 = vrot.lane.b32.xlu0 %v550, 8
      %v937 = vpop.permute.xlu0 %936
      %938 = vrot.lane.b32.xlu0 %v551, 8
      %v939 = vpop.permute.xlu0 %938
      %940 = vrot.lane.b32.xlu0 %v552, 8
      %v941 = vpop.permute.xlu0 %940
      %942 = vrot.lane.b32.xlu0 %v553, 8
      %v943 = vpop.permute.xlu0 %942
      %944 = vrot.lane.b32.xlu0 %v554, 8
      %v945 = vpop.permute.xlu0 %944
      %946 = vrot.lane.b32.xlu0 %v555, 8
      %v947 = vpop.permute.xlu0 %946
      %948 = vrot.lane.b32.xlu0 %v556, 8
      %v949 = vpop.permute.xlu0 %948
      %950 = vrot.lane.b32.xlu0 %v557, 8
      %v951 = vpop.permute.xlu0 %950
      %952 = vrot.lane.b32.xlu0 %v558, 8
      %v953 = vpop.permute.xlu0 %952
      %954 = vrot.lane.b32.xlu0 %v559, 8
      %v955 = vpop.permute.xlu0 %954
      %956 = vrot.lane.b32.xlu0 %v560, 8
      %v957 = vpop.permute.xlu0 %956
      %958 = vrot.lane.b32.xlu0 %v561, 8
      %v959 = vpop.permute.xlu0 %958
      %960 = vrot.lane.b32.xlu0 %v562, 8
      %v961 = vpop.permute.xlu0 %960
      %962 = vrot.lane.b32.xlu0 %v563, 8
      %v963 = vpop.permute.xlu0 %962
      %964 = vrot.lane.b32.xlu0 %v564, 8
      %v965 = vpop.permute.xlu0 %964
      %966 = vrot.lane.b32.xlu0 %v565, 8
      %v967 = vpop.permute.xlu0 %966
      %968 = vrot.lane.b32.xlu0 %v566, 8
      %v969 = vpop.permute.xlu0 %968
      %970 = vrot.lane.b32.xlu0 %v567, 8
      %v971 = vpop.permute.xlu0 %970
      %972 = vrot.lane.b32.xlu0 %v568, 8
      %v973 = vpop.permute.xlu0 %972
      %974 = vrot.lane.b32.xlu0 %v569, 8
      %v975 = vpop.permute.xlu0 %974
      %976 = vrot.lane.b32.xlu0 %v570, 8
      %v977 = vpop.permute.xlu0 %976
      %978 = vrot.lane.b32.xlu0 %v571, 8
      %v979 = vpop.permute.xlu0 %978
      %980 = vrot.lane.b32.xlu0 %v572, 8
      %v981 = vpop.permute.xlu0 %980
      %982 = vrot.lane.b32.xlu0 %v573, 8
      %v983 = vpop.permute.xlu0 %982
      %984 = vrot.lane.b32.xlu0 %v574, 8
      %v985 = vpop.permute.xlu0 %984
      %986 = vrot.lane.b32.xlu0 %v575, 8
      %v987 = vpop.permute.xlu0 %986
      %988 = vrot.lane.b32.xlu0 %v576, 8
      %v989 = vpop.permute.xlu0 %988
      %990 = vrot.lane.b32.xlu0 %v577, 8
      %v991 = vpop.permute.xlu0 %990
      %992 = vrot.lane.b32.xlu0 %v578, 8
      %v993 = vpop.permute.xlu0 %992
      %994 = vrot.lane.b32.xlu0 %v579, 8
      %v995 = vpop.permute.xlu0 %994
      %996 = vrot.lane.b32.xlu0 %v580, 8
      %v997 = vpop.permute.xlu0 %996
      %1062 = vrot.lane.b32.xlu0 %v581, 12
      %v1063 = vpop.permute.xlu0 %1062
      %1064 = vrot.lane.b32.xlu0 %v582, 12
      %v1065 = vpop.permute.xlu0 %1064
      %1066 = vrot.lane.b32.xlu0 %v583, 12
      %v1067 = vpop.permute.xlu0 %1066
      %1068 = vrot.lane.b32.xlu0 %v584, 12
      %v1069 = vpop.permute.xlu0 %1068
      %1070 = vrot.lane.b32.xlu0 %v585, 12
      %v1071 = vpop.permute.xlu0 %1070
      %1072 = vrot.lane.b32.xlu0 %v586, 12
      %v1073 = vpop.permute.xlu0 %1072
      %1074 = vrot.lane.b32.xlu0 %v587, 12
      %v1075 = vpop.permute.xlu0 %1074
      %1076 = vrot.lane.b32.xlu0 %v588, 12
      %v1077 = vpop.permute.xlu0 %1076
      %1078 = vrot.lane.b32.xlu0 %v589, 12
      %v1079 = vpop.permute.xlu0 %1078
      %1080 = vrot.lane.b32.xlu0 %v590, 12
      %v1081 = vpop.permute.xlu0 %1080
      %1082 = vrot.lane.b32.xlu0 %v591, 12
      %v1083 = vpop.permute.xlu0 %1082
      %1084 = vrot.lane.b32.xlu0 %v592, 12
      %v1085 = vpop.permute.xlu0 %1084
      %1086 = vrot.lane.b32.xlu0 %v593, 12
      %v1087 = vpop.permute.xlu0 %1086
      %1088 = vrot.lane.b32.xlu0 %v594, 12
      %v1089 = vpop.permute.xlu0 %1088
      %1090 = vrot.lane.b32.xlu0 %v595, 12
      %v1091 = vpop.permute.xlu0 %1090
      %1092 = vrot.lane.b32.xlu0 %v596, 12
      %v1093 = vpop.permute.xlu0 %1092
      %1094 = vrot.lane.b32.xlu0 %v597, 12
      %v1095 = vpop.permute.xlu0 %1094
      %1096 = vrot.lane.b32.xlu0 %v598, 12
      %v1097 = vpop.permute.xlu0 %1096
      %1098 = vrot.lane.b32.xlu0 %v599, 12
      %v1099 = vpop.permute.xlu0 %1098
      %1100 = vrot.lane.b32.xlu0 %v600, 12
      %v1101 = vpop.permute.xlu0 %1100
      %1102 = vrot.lane.b32.xlu0 %v601, 12
      %v1103 = vpop.permute.xlu0 %1102
      %1104 = vrot.lane.b32.xlu0 %v602, 12
      %v1105 = vpop.permute.xlu0 %1104
      %1106 = vrot.lane.b32.xlu0 %v603, 12
      %v1107 = vpop.permute.xlu0 %1106
      %1108 = vrot.lane.b32.xlu0 %v604, 12
      %v1109 = vpop.permute.xlu0 %1108
      %1110 = vrot.lane.b32.xlu0 %v605, 12
      %v1111 = vpop.permute.xlu0 %1110
      %1112 = vrot.lane.b32.xlu0 %v606, 12
      %v1113 = vpop.permute.xlu0 %1112
      %1114 = vrot.lane.b32.xlu0 %v607, 12
      %v1115 = vpop.permute.xlu0 %1114
      %1116 = vrot.lane.b32.xlu0 %v608, 12
      %v1117 = vpop.permute.xlu0 %1116
      %1118 = vrot.lane.b32.xlu0 %v609, 12
      %v1119 = vpop.permute.xlu0 %1118
      %1120 = vrot.lane.b32.xlu0 %v610, 12
      %v1121 = vpop.permute.xlu0 %1120
      %1122 = vrot.lane.b32.xlu0 %v611, 12
      %v1123 = vpop.permute.xlu0 %1122
      %1124 = vrot.lane.b32.xlu0 %v612, 12
      %v1125 = vpop.permute.xlu0 %1124
      %1190 = vrot.lane.b32.xlu0 %v613, 16
      %v1191 = vpop.permute.xlu0 %1190
      %1192 = vrot.lane.b32.xlu0 %v614, 16
      %v1193 = vpop.permute.xlu0 %1192
      %1194 = vrot.lane.b32.xlu0 %v615, 16
      %v1195 = vpop.permute.xlu0 %1194
      %1196 = vrot.lane.b32.xlu0 %v616, 16
      %v1197 = vpop.permute.xlu0 %1196
      %1198 = vrot.lane.b32.xlu0 %v617, 16
      %v1199 = vpop.permute.xlu0 %1198
      %1200 = vrot.lane.b32.xlu0 %v618, 16
      %v1201 = vpop.permute.xlu0 %1200
      %1202 = vrot.lane.b32.xlu0 %v619, 16
      %v1203 = vpop.permute.xlu0 %1202
      %1204 = vrot.lane.b32.xlu0 %v620, 16
      %v1205 = vpop.permute.xlu0 %1204
      %1206 = vrot.lane.b32.xlu0 %v621, 16
      %v1207 = vpop.permute.xlu0 %1206
      %1208 = vrot.lane.b32.xlu0 %v622, 16
      %v1209 = vpop.permute.xlu0 %1208
      %1210 = vrot.lane.b32.xlu0 %v623, 16
      %v1211 = vpop.permute.xlu0 %1210
      %1212 = vrot.lane.b32.xlu0 %v624, 16
      %v1213 = vpop.permute.xlu0 %1212
      %1214 = vrot.lane.b32.xlu0 %v625, 16
      %v1215 = vpop.permute.xlu0 %1214
      %1216 = vrot.lane.b32.xlu0 %v626, 16
      %v1217 = vpop.permute.xlu0 %1216
      %1218 = vrot.lane.b32.xlu0 %v627, 16
      %v1219 = vpop.permute.xlu0 %1218
      %1220 = vrot.lane.b32.xlu0 %v628, 16
      %v1221 = vpop.permute.xlu0 %1220
      %1222 = vrot.lane.b32.xlu0 %v629, 16
      %v1223 = vpop.permute.xlu0 %1222
      %1224 = vrot.lane.b32.xlu0 %v630, 16
      %v1225 = vpop.permute.xlu0 %1224
      %1226 = vrot.lane.b32.xlu0 %v631, 16
      %v1227 = vpop.permute.xlu0 %1226
      %1228 = vrot.lane.b32.xlu0 %v632, 16
      %v1229 = vpop.permute.xlu0 %1228
      %1230 = vrot.lane.b32.xlu0 %v633, 16
      %v1231 = vpop.permute.xlu0 %1230
      %1232 = vrot.lane.b32.xlu0 %v634, 16
      %v1233 = vpop.permute.xlu0 %1232
      %1234 = vrot.lane.b32.xlu0 %v635, 16
      %v1235 = vpop.permute.xlu0 %1234
      %1236 = vrot.lane.b32.xlu0 %v636, 16
      %v1237 = vpop.permute.xlu0 %1236
      %1238 = vrot.lane.b32.xlu0 %v637, 16
      %v1239 = vpop.permute.xlu0 %1238
      %1240 = vrot.lane.b32.xlu0 %v638, 16
      %v1241 = vpop.permute.xlu0 %1240
      %1242 = vrot.lane.b32.xlu0 %v639, 16
      %v1243 = vpop.permute.xlu0 %1242
      %1244 = vrot.lane.b32.xlu0 %v640, 16
      %v1245 = vpop.permute.xlu0 %1244
      %1246 = vrot.lane.b32.xlu0 %v641, 16
      %v1247 = vpop.permute.xlu0 %1246
      %1248 = vrot.lane.b32.xlu0 %v642, 16
      %v1249 = vpop.permute.xlu0 %1248
      %1250 = vrot.lane.b32.xlu0 %v643, 16
      %v1251 = vpop.permute.xlu0 %1250
      %1252 = vrot.lane.b32.xlu0 %v644, 16
      %v1253 = vpop.permute.xlu0 %1252
      %1318 = vrot.lane.b32.xlu0 %v645, 20
      %v1319 = vpop.permute.xlu0 %1318
      %1320 = vrot.lane.b32.xlu0 %v646, 20
      %v1321 = vpop.permute.xlu0 %1320
      %1322 = vrot.lane.b32.xlu0 %v647, 20
      %v1323 = vpop.permute.xlu0 %1322
      %1324 = vrot.lane.b32.xlu0 %v648, 20
      %v1325 = vpop.permute.xlu0 %1324
      %1326 = vrot.lane.b32.xlu0 %v649, 20
      %v1327 = vpop.permute.xlu0 %1326
      %1328 = vrot.lane.b32.xlu0 %v650, 20
      %v1329 = vpop.permute.xlu0 %1328
      %1330 = vrot.lane.b32.xlu0 %v651, 20
      %v1331 = vpop.permute.xlu0 %1330
      %1332 = vrot.lane.b32.xlu0 %v652, 20
      %v1333 = vpop.permute.xlu0 %1332
      %1334 = vrot.lane.b32.xlu0 %v653, 20
      %v1335 = vpop.permute.xlu0 %1334
      %1336 = vrot.lane.b32.xlu0 %v654, 20
      %v1337 = vpop.permute.xlu0 %1336
      %1338 = vrot.lane.b32.xlu0 %v655, 20
      %v1339 = vpop.permute.xlu0 %1338
      %1340 = vrot.lane.b32.xlu0 %v656, 20
      %v1341 = vpop.permute.xlu0 %1340
      %1342 = vrot.lane.b32.xlu0 %v657, 20
      %v1343 = vpop.permute.xlu0 %1342
      %1344 = vrot.lane.b32.xlu0 %v658, 20
      %v1345 = vpop.permute.xlu0 %1344
      %1346 = vrot.lane.b32.xlu0 %v659, 20
      %v1347 = vpop.permute.xlu0 %1346
      %1348 = vrot.lane.b32.xlu0 %v660, 20
      %v1349 = vpop.permute.xlu0 %1348
      %1350 = vrot.lane.b32.xlu0 %v661, 20
      %v1351 = vpop.permute.xlu0 %1350
      %1352 = vrot.lane.b32.xlu0 %v662, 20
      %v1353 = vpop.permute.xlu0 %1352
      %1354 = vrot.lane.b32.xlu0 %v663, 20
      %v1355 = vpop.permute.xlu0 %1354
      %1356 = vrot.lane.b32.xlu0 %v664, 20
      %v1357 = vpop.permute.xlu0 %1356
      %1358 = vrot.lane.b32.xlu0 %v665, 20
      %v1359 = vpop.permute.xlu0 %1358
      %1360 = vrot.lane.b32.xlu0 %v666, 20
      %v1361 = vpop.permute.xlu0 %1360
      %1362 = vrot.lane.b32.xlu0 %v667, 20
      %v1363 = vpop.permute.xlu0 %1362
      %1364 = vrot.lane.b32.xlu0 %v668, 20
      %v1365 = vpop.permute.xlu0 %1364
      %1366 = vrot.lane.b32.xlu0 %v669, 20
      %v1367 = vpop.permute.xlu0 %1366
      %1368 = vrot.lane.b32.xlu0 %v670, 20
      %v1369 = vpop.permute.xlu0 %1368
      %1370 = vrot.lane.b32.xlu0 %v671, 20
      %v1371 = vpop.permute.xlu0 %1370
      %1372 = vrot.lane.b32.xlu0 %v672, 20
      %v1373 = vpop.permute.xlu0 %1372
      %1374 = vrot.lane.b32.xlu0 %v673, 20
      %v1375 = vpop.permute.xlu0 %1374
      %1376 = vrot.lane.b32.xlu0 %v674, 20
      %v1377 = vpop.permute.xlu0 %1376
      %1378 = vrot.lane.b32.xlu0 %v675, 20
      %v1379 = vpop.permute.xlu0 %1378
      %1380 = vrot.lane.b32.xlu0 %v676, 20
      %v1381 = vpop.permute.xlu0 %1380
      %1446 = vrot.lane.b32.xlu0 %v678, 24
      %v1447 = vpop.permute.xlu0 %1446
      %1448 = vrot.lane.b32.xlu0 %v679, 24
      %v1449 = vpop.permute.xlu0 %1448
      %1450 = vrot.lane.b32.xlu0 %v680, 24
      %v1451 = vpop.permute.xlu0 %1450
      %1452 = vrot.lane.b32.xlu0 %v681, 24
      %v1453 = vpop.permute.xlu0 %1452
      %1454 = vrot.lane.b32.xlu0 %v682, 24
      %v1455 = vpop.permute.xlu0 %1454
      %1456 = vrot.lane.b32.xlu0 %v683, 24
      %v1457 = vpop.permute.xlu0 %1456
      %1458 = vrot.lane.b32.xlu0 %v684, 24
      %v1459 = vpop.permute.xlu0 %1458
      %1460 = vrot.lane.b32.xlu0 %v685, 24
      %v1461 = vpop.permute.xlu0 %1460
      %1462 = vrot.lane.b32.xlu0 %v686, 24
      %v1463 = vpop.permute.xlu0 %1462
      %1464 = vrot.lane.b32.xlu0 %v687, 24
      %v1465 = vpop.permute.xlu0 %1464
      %1466 = vrot.lane.b32.xlu0 %v688, 24
      %v1467 = vpop.permute.xlu0 %1466
      %1468 = vrot.lane.b32.xlu0 %v689, 24
      %v1469 = vpop.permute.xlu0 %1468
      %1470 = vrot.lane.b32.xlu0 %v690, 24
      %v1471 = vpop.permute.xlu0 %1470
      %1472 = vrot.lane.b32.xlu0 %v691, 24
      %v1473 = vpop.permute.xlu0 %1472
      %1474 = vrot.lane.b32.xlu0 %v692, 24
      %v1475 = vpop.permute.xlu0 %1474
      %1476 = vrot.lane.b32.xlu0 %v693, 24
      %v1477 = vpop.permute.xlu0 %1476
      %1478 = vrot.lane.b32.xlu0 %v694, 24
      %v1479 = vpop.permute.xlu0 %1478
      %1480 = vrot.lane.b32.xlu0 %v695, 24
      %v1481 = vpop.permute.xlu0 %1480
      %1482 = vrot.lane.b32.xlu0 %v696, 24
      %v1483 = vpop.permute.xlu0 %1482
      %1484 = vrot.lane.b32.xlu0 %v697, 24
      %v1485 = vpop.permute.xlu0 %1484
      %1486 = vrot.lane.b32.xlu0 %v698, 24
      %v1487 = vpop.permute.xlu0 %1486
      %1488 = vrot.lane.b32.xlu0 %v699, 24
      %v1489 = vpop.permute.xlu0 %1488
      %1490 = vrot.lane.b32.xlu0 %v700, 24
      %v1491 = vpop.permute.xlu0 %1490
      %1492 = vrot.lane.b32.xlu0 %v701, 24
      %v1493 = vpop.permute.xlu0 %1492
      %1494 = vrot.lane.b32.xlu0 %v702, 24
      %v1495 = vpop.permute.xlu0 %1494
      %1496 = vrot.lane.b32.xlu0 %v703, 24
      %v1497 = vpop.permute.xlu0 %1496
      %1498 = vrot.lane.b32.xlu0 %v704, 24
      %v1499 = vpop.permute.xlu0 %1498
      %1500 = vrot.lane.b32.xlu0 %v705, 24
      %v1501 = vpop.permute.xlu0 %1500
      %1502 = vrot.lane.b32.xlu0 %v706, 24
      %v1503 = vpop.permute.xlu0 %1502
      %1504 = vrot.lane.b32.xlu0 %v707, 24
      %v1505 = vpop.permute.xlu0 %1504
      %1506 = vrot.lane.b32.xlu0 %v708, 24
      %v1507 = vpop.permute.xlu0 %1506
      %1508 = vrot.lane.b32.xlu0 %v709, 24
      %v1509 = vpop.permute.xlu0 %1508
      %1574 = vrot.lane.b32.xlu0 %v710, 28
      %v1575 = vpop.permute.xlu0 %1574
      %1576 = vrot.lane.b32.xlu0 %v711, 28
      %v1577 = vpop.permute.xlu0 %1576
      %1578 = vrot.lane.b32.xlu0 %v712, 28
      %v1579 = vpop.permute.xlu0 %1578
      %1580 = vrot.lane.b32.xlu0 %v713, 28
      %v1581 = vpop.permute.xlu0 %1580
      %1582 = vrot.lane.b32.xlu0 %v714, 28
      %v1583 = vpop.permute.xlu0 %1582
      %1584 = vrot.lane.b32.xlu0 %v715, 28
      %v1585 = vpop.permute.xlu0 %1584
      %1586 = vrot.lane.b32.xlu0 %v716, 28
      %v1587 = vpop.permute.xlu0 %1586
      %1588 = vrot.lane.b32.xlu0 %v717, 28
      %v1589 = vpop.permute.xlu0 %1588
      %1590 = vrot.lane.b32.xlu0 %v718, 28
      %v1591 = vpop.permute.xlu0 %1590
      %1592 = vrot.lane.b32.xlu0 %v719, 28
      %v1593 = vpop.permute.xlu0 %1592
      %1594 = vrot.lane.b32.xlu0 %v720, 28
      %v1595 = vpop.permute.xlu0 %1594
      %1596 = vrot.lane.b32.xlu0 %v721, 28
      %v1597 = vpop.permute.xlu0 %1596
      %1598 = vrot.lane.b32.xlu0 %v722, 28
      %v1599 = vpop.permute.xlu0 %1598
      %1600 = vrot.lane.b32.xlu0 %v723, 28
      %v1601 = vpop.permute.xlu0 %1600
      %1602 = vrot.lane.b32.xlu0 %v724, 28
      %v1603 = vpop.permute.xlu0 %1602
      %1604 = vrot.lane.b32.xlu0 %v725, 28
      %v1605 = vpop.permute.xlu0 %1604
      %1606 = vrot.lane.b32.xlu0 %v726, 28
      %v1607 = vpop.permute.xlu0 %1606
      %1608 = vrot.lane.b32.xlu0 %v727, 28
      %v1609 = vpop.permute.xlu0 %1608
      %1610 = vrot.lane.b32.xlu0 %v728, 28
      %v1611 = vpop.permute.xlu0 %1610
      %1612 = vrot.lane.b32.xlu0 %v729, 28
      %v1613 = vpop.permute.xlu0 %1612
      %1614 = vrot.lane.b32.xlu0 %v730, 28
      %v1615 = vpop.permute.xlu0 %1614
      %1616 = vrot.lane.b32.xlu0 %v731, 28
      %v1617 = vpop.permute.xlu0 %1616
      %1618 = vrot.lane.b32.xlu0 %v732, 28
      %v1619 = vpop.permute.xlu0 %1618
      %1620 = vrot.lane.b32.xlu0 %v733, 28
      %v1621 = vpop.permute.xlu0 %1620
      %1622 = vrot.lane.b32.xlu0 %v734, 28
      %v1623 = vpop.permute.xlu0 %1622
      %1624 = vrot.lane.b32.xlu0 %v735, 28
      %v1625 = vpop.permute.xlu0 %1624
      %1626 = vrot.lane.b32.xlu0 %v736, 28
      %v1627 = vpop.permute.xlu0 %1626
      %1628 = vrot.lane.b32.xlu0 %v737, 28
      %v1629 = vpop.permute.xlu0 %1628
      %1630 = vrot.lane.b32.xlu0 %v738, 28
      %v1631 = vpop.permute.xlu0 %1630
      %1632 = vrot.lane.b32.xlu0 %v739, 28
      %v1633 = vpop.permute.xlu0 %1632
      %1634 = vrot.lane.b32.xlu0 %v740, 28
      %v1635 = vpop.permute.xlu0 %1634
      %1636 = vrot.lane.b32.xlu0 %v741, 28
      %v1637 = vpop.permute.xlu0 %1636
      %1702 = vrot.lane.b32.xlu0 %v742, 32
      %v1703 = vpop.permute.xlu0 %1702
      %1704 = vrot.lane.b32.xlu0 %v743, 32
      %v1705 = vpop.permute.xlu0 %1704
      %1706 = vrot.lane.b32.xlu0 %v744, 32
      %v1707 = vpop.permute.xlu0 %1706
      %1708 = vrot.lane.b32.xlu0 %v745, 32
      %v1709 = vpop.permute.xlu0 %1708
      %1710 = vrot.lane.b32.xlu0 %v746, 32
      %v1711 = vpop.permute.xlu0 %1710
      %1712 = vrot.lane.b32.xlu0 %v747, 32
      %v1713 = vpop.permute.xlu0 %1712
      %1714 = vrot.lane.b32.xlu0 %v748, 32
      %v1715 = vpop.permute.xlu0 %1714
      %1716 = vrot.lane.b32.xlu0 %v749, 32
      %v1717 = vpop.permute.xlu0 %1716
      %1718 = vrot.lane.b32.xlu0 %v750, 32
      %v1719 = vpop.permute.xlu0 %1718
      %1720 = vrot.lane.b32.xlu0 %v751, 32
      %v1721 = vpop.permute.xlu0 %1720
      %1722 = vrot.lane.b32.xlu0 %v752, 32
      %v1723 = vpop.permute.xlu0 %1722
      %1724 = vrot.lane.b32.xlu0 %v753, 32
      %v1725 = vpop.permute.xlu0 %1724
      %1726 = vrot.lane.b32.xlu0 %v754, 32
      %v1727 = vpop.permute.xlu0 %1726
      %1728 = vrot.lane.b32.xlu0 %v755, 32
      %v1729 = vpop.permute.xlu0 %1728
      %1730 = vrot.lane.b32.xlu0 %v756, 32
      %v1731 = vpop.permute.xlu0 %1730
      %1732 = vrot.lane.b32.xlu0 %v757, 32
      %v1733 = vpop.permute.xlu0 %1732
      %1734 = vrot.lane.b32.xlu0 %v758, 32
      %v1735 = vpop.permute.xlu0 %1734
      %1736 = vrot.lane.b32.xlu0 %v759, 32
      %v1737 = vpop.permute.xlu0 %1736
      %1738 = vrot.lane.b32.xlu0 %v760, 32
      %v1739 = vpop.permute.xlu0 %1738
      %1740 = vrot.lane.b32.xlu0 %v761, 32
      %v1741 = vpop.permute.xlu0 %1740
      %1742 = vrot.lane.b32.xlu0 %v762, 32
      %v1743 = vpop.permute.xlu0 %1742
      %1744 = vrot.lane.b32.xlu0 %v763, 32
      %v1745 = vpop.permute.xlu0 %1744
      %1746 = vrot.lane.b32.xlu0 %v764, 32
      %v1747 = vpop.permute.xlu0 %1746
      %1748 = vrot.lane.b32.xlu0 %v765, 32
      %v1749 = vpop.permute.xlu0 %1748
      %1750 = vrot.lane.b32.xlu0 %v766, 32
      %v1751 = vpop.permute.xlu0 %1750
      %1752 = vrot.lane.b32.xlu0 %v767, 32
      %v1753 = vpop.permute.xlu0 %1752
      %1754 = vrot.lane.b32.xlu0 %v768, 32
      %v1755 = vpop.permute.xlu0 %1754
      %1756 = vrot.lane.b32.xlu0 %v769, 32
      %v1757 = vpop.permute.xlu0 %1756
      %1758 = vrot.lane.b32.xlu0 %v770, 32
      %v1759 = vpop.permute.xlu0 %1758
      %1760 = vrot.lane.b32.xlu0 %v771, 32
      %v1761 = vpop.permute.xlu0 %1760
      %1762 = vrot.lane.b32.xlu0 %v772, 32
      %v1763 = vpop.permute.xlu0 %1762
      %1764 = vrot.lane.b32.xlu0 %v773, 32
      %v1765 = vpop.permute.xlu0 %1764
      %v1798 = vsel %vm245, %v485, %v807
      %v1799 = vsel %vm245, %v486, %v809
      %v1800 = vsel %vm245, %v487, %v811
      %v1801 = vsel %vm245, %v488, %v813
      %v1802 = vsel %vm245, %v489, %v815
      %v1803 = vsel %vm245, %v490, %v817
      %v1804 = vsel %vm245, %v491, %v819
      %v1805 = vsel %vm245, %v492, %v821
      %v1806 = vsel %vm245, %v493, %v823
      %v1807 = vsel %vm245, %v494, %v825
      %v1808 = vsel %vm245, %v495, %v827
      %v1809 = vsel %vm245, %v496, %v829
      %v1810 = vsel %vm245, %v497, %v831
      %v1811 = vsel %vm245, %v498, %v833
      %v1812 = vsel %vm245, %v499, %v835
      %v1813 = vsel %vm245, %v500, %v837
      %v1814 = vsel %vm245, %v501, %v839
      %v1815 = vsel %vm245, %v502, %v841
      %v1816 = vsel %vm245, %v503, %v843
      %v1817 = vsel %vm245, %v504, %v845
      %v1818 = vsel %vm245, %v505, %v847
      %v1819 = vsel %vm245, %v506, %v849
      %v1820 = vsel %vm245, %v507, %v851
      %v1821 = vsel %vm245, %v508, %v853
      %v1822 = vsel %vm245, %v509, %v855
      %v1823 = vsel %vm245, %v510, %v857
      %v1824 = vsel %vm245, %v511, %v859
      %v1825 = vsel %vm245, %v512, %v861
      %v1826 = vsel %vm245, %v513, %v863
      %v1827 = vsel %vm245, %v514, %v865
      %v1828 = vsel %vm245, %v515, %v867
      %v1829 = vsel %vm245, %v516, %v869
      %vm1830 = vcmask 64512
      %v1831 = vsel %vm1830, %v1798, %v935
      %v1832 = vsel %vm1830, %v1799, %v937
      %v1833 = vsel %vm1830, %v1800, %v939
      %v1834 = vsel %vm1830, %v1801, %v941
      %v1835 = vsel %vm1830, %v1802, %v943
      %v1836 = vsel %vm1830, %v1803, %v945
      %v1837 = vsel %vm1830, %v1804, %v947
      %v1838 = vsel %vm1830, %v1805, %v949
      %v1839 = vsel %vm1830, %v1806, %v951
      %v1840 = vsel %vm1830, %v1807, %v953
      %v1841 = vsel %vm1830, %v1808, %v955
      %v1842 = vsel %vm1830, %v1809, %v957
      %v1843 = vsel %vm1830, %v1810, %v959
      %v1844 = vsel %vm1830, %v1811, %v961
      %v1845 = vsel %vm1830, %v1812, %v963
      %v1846 = vsel %vm1830, %v1813, %v965
      %v1847 = vsel %vm1830, %v1814, %v967
      %v1848 = vsel %vm1830, %v1815, %v969
      %v1849 = vsel %vm1830, %v1816, %v971
      %v1850 = vsel %vm1830, %v1817, %v973
      %v1851 = vsel %vm1830, %v1818, %v975
      %v1852 = vsel %vm1830, %v1819, %v977
      %v1853 = vsel %vm1830, %v1820, %v979
      %v1854 = vsel %vm1830, %v1821, %v981
      %v1855 = vsel %vm1830, %v1822, %v983
      %v1856 = vsel %vm1830, %v1823, %v985
      %v1857 = vsel %vm1830, %v1824, %v987
      %v1858 = vsel %vm1830, %v1825, %v989
      %v1859 = vsel %vm1830, %v1826, %v991
      %v1860 = vsel %vm1830, %v1827, %v993
      %v1861 = vsel %vm1830, %v1828, %v995
      %v1862 = vsel %vm1830, %v1829, %v997
      %vm1863 = vcmask 97280
      %v1864 = vsel %vm1863, %v1831, %v1063
      %v1865 = vsel %vm1863, %v1832, %v1065
      %v1866 = vsel %vm1863, %v1833, %v1067
      %v1867 = vsel %vm1863, %v1834, %v1069
      %v1868 = vsel %vm1863, %v1835, %v1071
      %v1869 = vsel %vm1863, %v1836, %v1073
      %v1870 = vsel %vm1863, %v1837, %v1075
      %v1871 = vsel %vm1863, %v1838, %v1077
      %v1872 = vsel %vm1863, %v1839, %v1079
      %v1873 = vsel %vm1863, %v1840, %v1081
      %v1874 = vsel %vm1863, %v1841, %v1083
      %v1875 = vsel %vm1863, %v1842, %v1085
      %v1876 = vsel %vm1863, %v1843, %v1087
      %v1877 = vsel %vm1863, %v1844, %v1089
      %v1878 = vsel %vm1863, %v1845, %v1091
      %v1879 = vsel %vm1863, %v1846, %v1093
      %v1880 = vsel %vm1863, %v1847, %v1095
      %v1881 = vsel %vm1863, %v1848, %v1097
      %v1882 = vsel %vm1863, %v1849, %v1099
      %v1883 = vsel %vm1863, %v1850, %v1101
      %v1884 = vsel %vm1863, %v1851, %v1103
      %v1885 = vsel %vm1863, %v1852, %v1105
      %v1886 = vsel %vm1863, %v1853, %v1107
      %v1887 = vsel %vm1863, %v1854, %v1109
      %v1888 = vsel %vm1863, %v1855, %v1111
      %v1889 = vsel %vm1863, %v1856, %v1113
      %v1890 = vsel %vm1863, %v1857, %v1115
      %v1891 = vsel %vm1863, %v1858, %v1117
      %v1892 = vsel %vm1863, %v1859, %v1119
      %v1893 = vsel %vm1863, %v1860, %v1121
      %v1894 = vsel %vm1863, %v1861, %v1123
      %v1895 = vsel %vm1863, %v1862, %v1125
      %vm1896 = vcmask 130048
      %v1897 = vsel %vm1896, %v1864, %v1191
      %v1898 = vsel %vm1896, %v1865, %v1193
      %v1899 = vsel %vm1896, %v1866, %v1195
      %v1900 = vsel %vm1896, %v1867, %v1197
      %v1901 = vsel %vm1896, %v1868, %v1199
      %v1902 = vsel %vm1896, %v1869, %v1201
      %v1903 = vsel %vm1896, %v1870, %v1203
      %v1904 = vsel %vm1896, %v1871, %v1205
      %v1905 = vsel %vm1896, %v1872, %v1207
      %v1906 = vsel %vm1896, %v1873, %v1209
      %v1907 = vsel %vm1896, %v1874, %v1211
      %v1908 = vsel %vm1896, %v1875, %v1213
      %v1909 = vsel %vm1896, %v1876, %v1215
      %v1910 = vsel %vm1896, %v1877, %v1217
      %v1911 = vsel %vm1896, %v1878, %v1219
      %v1912 = vsel %vm1896, %v1879, %v1221
      %v1913 = vsel %vm1896, %v1880, %v1223
      %v1914 = vsel %vm1896, %v1881, %v1225
      %v1915 = vsel %vm1896, %v1882, %v1227
      %v1916 = vsel %vm1896, %v1883, %v1229
      %v1917 = vsel %vm1896, %v1884, %v1231
      %v1918 = vsel %vm1896, %v1885, %v1233
      %v1919 = vsel %vm1896, %v1886, %v1235
      %v1920 = vsel %vm1896, %v1887, %v1237
      %v1921 = vsel %vm1896, %v1888, %v1239
      %v1922 = vsel %vm1896, %v1889, %v1241
      %v1923 = vsel %vm1896, %v1890, %v1243
      %v1924 = vsel %vm1896, %v1891, %v1245
      %v1925 = vsel %vm1896, %v1892, %v1247
      %v1926 = vsel %vm1896, %v1893, %v1249
      %v1927 = vsel %vm1896, %v1894, %v1251
      %v1928 = vsel %vm1896, %v1895, %v1253
      %vm1929 = vcmask 162816
      %v1930 = vsel %vm1929, %v1897, %v1319
      %v1931 = vsel %vm1929, %v1898, %v1321
      %v1932 = vsel %vm1929, %v1899, %v1323
      %v1933 = vsel %vm1929, %v1900, %v1325
      %v1934 = vsel %vm1929, %v1901, %v1327
      %v1935 = vsel %vm1929, %v1902, %v1329
      %v1936 = vsel %vm1929, %v1903, %v1331
      %v1937 = vsel %vm1929, %v1904, %v1333
      %v1938 = vsel %vm1929, %v1905, %v1335
      %v1939 = vsel %vm1929, %v1906, %v1337
      %v1940 = vsel %vm1929, %v1907, %v1339
      %v1941 = vsel %vm1929, %v1908, %v1341
      %v1942 = vsel %vm1929, %v1909, %v1343
      %v1943 = vsel %vm1929, %v1910, %v1345
      %v1944 = vsel %vm1929, %v1911, %v1347
      %v1945 = vsel %vm1929, %v1912, %v1349
      %v1946 = vsel %vm1929, %v1913, %v1351
      %v1947 = vsel %vm1929, %v1914, %v1353
      %v1948 = vsel %vm1929, %v1915, %v1355
      %v1949 = vsel %vm1929, %v1916, %v1357
      %v1950 = vsel %vm1929, %v1917, %v1359
      %v1951 = vsel %vm1929, %v1918, %v1361
      %v1952 = vsel %vm1929, %v1919, %v1363
      %v1953 = vsel %vm1929, %v1920, %v1365
      %v1954 = vsel %vm1929, %v1921, %v1367
      %v1955 = vsel %vm1929, %v1922, %v1369
      %v1956 = vsel %vm1929, %v1923, %v1371
      %v1957 = vsel %vm1929, %v1924, %v1373
      %v1958 = vsel %vm1929, %v1925, %v1375
      %v1959 = vsel %vm1929, %v1926, %v1377
      %v1960 = vsel %vm1929, %v1927, %v1379
      %v1961 = vsel %vm1929, %v1928, %v1381
      %vm1962 = vcmask 195584
      %v1963 = vsel %vm1962, %v1930, %v1447
      %v1964 = vsel %vm1962, %v1931, %v1449
      %v1965 = vsel %vm1962, %v1932, %v1451
      %v1966 = vsel %vm1962, %v1933, %v1453
      %v1967 = vsel %vm1962, %v1934, %v1455
      %v1968 = vsel %vm1962, %v1935, %v1457
      %v1969 = vsel %vm1962, %v1936, %v1459
      %v1970 = vsel %vm1962, %v1937, %v1461
      %v1971 = vsel %vm1962, %v1938, %v1463
      %v1972 = vsel %vm1962, %v1939, %v1465
      %v1973 = vsel %vm1962, %v1940, %v1467
      %v1974 = vsel %vm1962, %v1941, %v1469
      %v1975 = vsel %vm1962, %v1942, %v1471
      %v1976 = vsel %vm1962, %v1943, %v1473
      %v1977 = vsel %vm1962, %v1944, %v1475
      %v1978 = vsel %vm1962, %v1945, %v1477
      %v1979 = vsel %vm1962, %v1946, %v1479
      %v1980 = vsel %vm1962, %v1947, %v1481
      %v1981 = vsel %vm1962, %v1948, %v1483
      %v1982 = vsel %vm1962, %v1949, %v1485
      %v1983 = vsel %vm1962, %v1950, %v1487
      %v1984 = vsel %vm1962, %v1951, %v1489
      %v1985 = vsel %vm1962, %v1952, %v1491
      %v1986 = vsel %vm1962, %v1953, %v1493
      %v1987 = vsel %vm1962, %v1954, %v1495
      %v1988 = vsel %vm1962, %v1955, %v1497
      %v1989 = vsel %vm1962, %v1956, %v1499
      %v1990 = vsel %vm1962, %v1957, %v1501
      %v1991 = vsel %vm1962, %v1958, %v1503
      %v1992 = vsel %vm1962, %v1959, %v1505
      %v1993 = vsel %vm1962, %v1960, %v1507
      %v1994 = vsel %vm1962, %v1961, %v1509
      %vm1995 = vcmask 228352
      %v1996 = vsel %vm1995, %v1963, %v1575
      %v1997 = vsel %vm1995, %v1964, %v1577
      %v1998 = vsel %vm1995, %v1965, %v1579
      %v1999 = vsel %vm1995, %v1966, %v1581
      %v2000 = vsel %vm1995, %v1967, %v1583
      %v2001 = vsel %vm1995, %v1968, %v1585
      %v2002 = vsel %vm1995, %v1969, %v1587
      %v2003 = vsel %vm1995, %v1970, %v1589
      %v2004 = vsel %vm1995, %v1971, %v1591
      %v2005 = vsel %vm1995, %v1972, %v1593
      %v2006 = vsel %vm1995, %v1973, %v1595
      %v2007 = vsel %vm1995, %v1974, %v1597
      %v2008 = vsel %vm1995, %v1975, %v1599
      %v2009 = vsel %vm1995, %v1976, %v1601
      %v2010 = vsel %vm1995, %v1977, %v1603
      %v2011 = vsel %vm1995, %v1978, %v1605
      %v2012 = vsel %vm1995, %v1979, %v1607
      %v2013 = vsel %vm1995, %v1980, %v1609
      %v2014 = vsel %vm1995, %v1981, %v1611
      %v2015 = vsel %vm1995, %v1982, %v1613
      %v2016 = vsel %vm1995, %v1983, %v1615
      %v2017 = vsel %vm1995, %v1984, %v1617
      %v2018 = vsel %vm1995, %v1985, %v1619
      %v2019 = vsel %vm1995, %v1986, %v1621
      %v2020 = vsel %vm1995, %v1987, %v1623
      %v2021 = vsel %vm1995, %v1988, %v1625
      %v2022 = vsel %vm1995, %v1989, %v1627
      %v2023 = vsel %vm1995, %v1990, %v1629
      %v2024 = vsel %vm1995, %v1991, %v1631
      %v2025 = vsel %vm1995, %v1992, %v1633
      %v2026 = vsel %vm1995, %v1993, %v1635
      %v2027 = vsel %vm1995, %v1994, %v1637
      %vm2028 = vcmask 261120
      %v2029 = vsel %vm2028, %v1996, %v1703
      %v2030 = vsel %vm2028, %v1997, %v1705
      %v2031 = vsel %vm2028, %v1998, %v1707
      %v2032 = vsel %vm2028, %v1999, %v1709
      %v2033 = vsel %vm2028, %v2000, %v1711
      %v2034 = vsel %vm2028, %v2001, %v1713
      %v2035 = vsel %vm2028, %v2002, %v1715
      %v2036 = vsel %vm2028, %v2003, %v1717
      %v2037 = vsel %vm2028, %v2004, %v1719
      %v2038 = vsel %vm2028, %v2005, %v1721
      %v2039 = vsel %vm2028, %v2006, %v1723
      %v2040 = vsel %vm2028, %v2007, %v1725
      %v2041 = vsel %vm2028, %v2008, %v1727
      %v2042 = vsel %vm2028, %v2009, %v1729
      %v2043 = vsel %vm2028, %v2010, %v1731
      %v2044 = vsel %vm2028, %v2011, %v1733
      %v2045 = vsel %vm2028, %v2012, %v1735
      %v2046 = vsel %vm2028, %v2013, %v1737
      %v2047 = vsel %vm2028, %v2014, %v1739
      %v2048 = vsel %vm2028, %v2015, %v1741
      %v2049 = vsel %vm2028, %v2016, %v1743
      %v2050 = vsel %vm2028, %v2017, %v1745
      %v2051 = vsel %vm2028, %v2018, %v1747
      %v2052 = vsel %vm2028, %v2019, %v1749
      %v2053 = vsel %vm2028, %v2020, %v1751
      %v2054 = vsel %vm2028, %v2021, %v1753
      %v2055 = vsel %vm2028, %v2022, %v1755
      %v2056 = vsel %vm2028, %v2023, %v1757
      %v2057 = vsel %vm2028, %v2024, %v1759
      %v2058 = vsel %vm2028, %v2025, %v1761
      %v2059 = vsel %vm2028, %v2026, %v1763
      %v2060 = vsel %vm2028, %v2027, %v1765
      %v2061 = vld [vmem:[%s2] sm:$0xff]
      %v2062 = vld [vmem:[%s2 + $0x8] sm:$0xff]
      %v2063 = vld [vmem:[%s2 + $0x10] sm:$0xff]
      %v2064 = vld [vmem:[%s2 + $0x18] sm:$0xff]
      %v2065 = vld [vmem:[%s2 + $0x20] sm:$0xf]
      %v2066 = vld [vmem:[#allocation3] sm:$0xff]
      %v2067 = vld [vmem:[#allocation3 + $0x8] sm:$0xff]
      %v2068 = vld [vmem:[#allocation3 + $0x18] sm:$0xff]
      %v2069 = vld [vmem:[#allocation3 + $0x20] sm:$0xff]
      %v2070 = vld [vmem:[#allocation3 + $0x30] sm:$0xff]
      %v2071 = vld [vmem:[#allocation3 + $0x38] sm:$0xff]
      %v2072 = vld [vmem:[#allocation3 + $0x48] sm:$0xff]
      %v2073 = vld [vmem:[#allocation3 + $0x50] sm:$0xff]
      %v2074 = vld [vmem:[#allocation3 + $0x60] sm:$0xff]
      %v2075 = vld [vmem:[#allocation3 + $0x68] sm:$0xff]
      %v2076 = vld [vmem:[#allocation3 + $0x78] sm:$0xff]
      %v2077 = vld [vmem:[#allocation3 + $0x80] sm:$0xff]
      %v2078 = vld [vmem:[#allocation3 + $0x90] sm:$0xff]
      %v2079 = vld [vmem:[#allocation3 + $0x98] sm:$0xff]
      %v2080 = vld [vmem:[#allocation3 + $0xa8] sm:$0xff]
      %v2081 = vld [vmem:[#allocation3 + $0xb0] sm:$0xff]
      %v2082 = vld [vmem:[#allocation3 + $0xc0] sm:$0xff]
      %v2083 = vld [vmem:[#allocation3 + $0xc8] sm:$0xff]
      %v2084 = vld [vmem:[#allocation3 + $0xd8] sm:$0xff]
      %v2085 = vld [vmem:[#allocation3 + $0xe0] sm:$0xff]
      %v2086 = vld [vmem:[#allocation3 + $0xf0] sm:$0xff]
      %v2087 = vld [vmem:[#allocation3 + $0xf8] sm:$0xff]
      %v2088 = vld [vmem:[#allocation3 + $0x108] sm:$0xff]
      %v2089 = vld [vmem:[#allocation3 + $0x110] sm:$0xff]
      %v2090 = vld [vmem:[#allocation3 + $0x120] sm:$0xff]
      %v2091 = vld [vmem:[#allocation3 + $0x128] sm:$0xff]
      %v2092 = vld [vmem:[#allocation3 + $0x138] sm:$0xff]
      %v2093 = vld [vmem:[#allocation3 + $0x140] sm:$0xff]
      %v2094 = vld [vmem:[#allocation3 + $0x150] sm:$0xff]
      %v2095 = vld [vmem:[#allocation3 + $0x158] sm:$0xff]
      %v2096 = vld [vmem:[#allocation3 + $0x168] sm:$0xff]
      %v2097 = vld [vmem:[#allocation3 + $0x170] sm:$0xff]
      %v2098 = vld [vmem:[#allocation3 + $0x1] sm:$0xff]
      %v2099 = vld [vmem:[#allocation3 + $0x9] sm:$0xff]
      %v2100 = vld [vmem:[#allocation3 + $0x19] sm:$0xff]
      %v2101 = vld [vmem:[#allocation3 + $0x21] sm:$0xff]
      %v2102 = vld [vmem:[#allocation3 + $0x31] sm:$0xff]
      %v2103 = vld [vmem:[#allocation3 + $0x39] sm:$0xff]
      %v2104 = vld [vmem:[#allocation3 + $0x49] sm:$0xff]
      %v2105 = vld [vmem:[#allocation3 + $0x51] sm:$0xff]
      %v2106 = vld [vmem:[#allocation3 + $0x61] sm:$0xff]
      %v2107 = vld [vmem:[#allocation3 + $0x69] sm:$0xff]
      %v2108 = vld [vmem:[#allocation3 + $0x79] sm:$0xff]
      %v2109 = vld [vmem:[#allocation3 + $0x81] sm:$0xff]
      %v2110 = vld [vmem:[#allocation3 + $0x91] sm:$0xff]
      %v2111 = vld [vmem:[#allocation3 + $0x99] sm:$0xff]
      %v2112 = vld [vmem:[#allocation3 + $0xa9] sm:$0xff]
      %v2113 = vld [vmem:[#allocation3 + $0xb1] sm:$0xff]
      %v2114 = vld [vmem:[#allocation3 + $0xc1] sm:$0xff]
      %v2115 = vld [vmem:[#allocation3 + $0xc9] sm:$0xff]
      %v2116 = vld [vmem:[#allocation3 + $0xd9] sm:$0xff]
      %v2117 = vld [vmem:[#allocation3 + $0xe1] sm:$0xff]
      %v2118 = vld [vmem:[#allocation3 + $0xf1] sm:$0xff]
      %v2119 = vld [vmem:[#allocation3 + $0xf9] sm:$0xff]
      %v2120 = vld [vmem:[#allocation3 + $0x109] sm:$0xff]
      %v2121 = vld [vmem:[#allocation3 + $0x111] sm:$0xff]
      %v2122 = vld [vmem:[#allocation3 + $0x121] sm:$0xff]
      %v2123 = vld [vmem:[#allocation3 + $0x129] sm:$0xff]
      %v2124 = vld [vmem:[#allocation3 + $0x139] sm:$0xff]
      %v2125 = vld [vmem:[#allocation3 + $0x141] sm:$0xff]
      %v2126 = vld [vmem:[#allocation3 + $0x151] sm:$0xff]
      %v2127 = vld [vmem:[#allocation3 + $0x159] sm:$0xff]
      %v2128 = vld [vmem:[#allocation3 + $0x169] sm:$0xff]
      %v2129 = vld [vmem:[#allocation3 + $0x171] sm:$0xff]
      %v2130 = vld [vmem:[#allocation3 + $0x2] sm:$0xff]
      %v2131 = vld [vmem:[#allocation3 + $0xa] sm:$0xff]
      %v2132 = vld [vmem:[#allocation3 + $0x1a] sm:$0xff]
      %v2133 = vld [vmem:[#allocation3 + $0x22] sm:$0xff]
      %v2134 = vld [vmem:[#allocation3 + $0x32] sm:$0xff]
      %v2135 = vld [vmem:[#allocation3 + $0x3a] sm:$0xff]
      %v2136 = vld [vmem:[#allocation3 + $0x4a] sm:$0xff]
      %v2137 = vld [vmem:[#allocation3 + $0x52] sm:$0xff]
      %v2138 = vld [vmem:[#allocation3 + $0x62] sm:$0xff]
      %v2139 = vld [vmem:[#allocation3 + $0x6a] sm:$0xff]
      %v2140 = vld [vmem:[#allocation3 + $0x7a] sm:$0xff]
      %v2141 = vld [vmem:[#allocation3 + $0x82] sm:$0xff]
      %v2142 = vld [vmem:[#allocation3 + $0x92] sm:$0xff]
      %v2143 = vld [vmem:[#allocation3 + $0x9a] sm:$0xff]
      %v2144 = vld [vmem:[#allocation3 + $0xaa] sm:$0xff]
      %v2145 = vld [vmem:[#allocation3 + $0xb2] sm:$0xff]
      %v2146 = vld [vmem:[#allocation3 + $0xc2] sm:$0xff]
      %v2147 = vld [vmem:[#allocation3 + $0xca] sm:$0xff]
      %v2148 = vld [vmem:[#allocation3 + $0xda] sm:$0xff]
      %v2149 = vld [vmem:[#allocation3 + $0xe2] sm:$0xff]
      %v2150 = vld [vmem:[#allocation3 + $0xf2] sm:$0xff]
      %v2151 = vld [vmem:[#allocation3 + $0xfa] sm:$0xff]
      %v2152 = vld [vmem:[#allocation3 + $0x10a] sm:$0xff]
      %v2153 = vld [vmem:[#allocation3 + $0x112] sm:$0xff]
      %v2154 = vld [vmem:[#allocation3 + $0x122] sm:$0xff]
      %v2155 = vld [vmem:[#allocation3 + $0x12a] sm:$0xff]
      %v2156 = vld [vmem:[#allocation3 + $0x13a] sm:$0xff]
      %v2157 = vld [vmem:[#allocation3 + $0x142] sm:$0xff]
      %v2158 = vld [vmem:[#allocation3 + $0x152] sm:$0xff]
      %v2159 = vld [vmem:[#allocation3 + $0x15a] sm:$0xff]
      %v2160 = vld [vmem:[#allocation3 + $0x16a] sm:$0xff]
      %v2161 = vld [vmem:[#allocation3 + $0x172] sm:$0xff]
      %v2162 = vld [vmem:[%s452] sm:$0xff]
      %v2163 = vld [vmem:[%s452 + $0x8] sm:$0xff]
      %v2164 = vld [vmem:[%s452 + $0x18] sm:$0xff]
      %v2165 = vld [vmem:[%s452 + $0x20] sm:$0xff]
      %v2166 = vld [vmem:[%s452 + $0x30] sm:$0xff]
      %v2167 = vld [vmem:[%s452 + $0x38] sm:$0xff]
      %v2168 = vld [vmem:[%s452 + $0x48] sm:$0xff]
      %v2169 = vld [vmem:[%s452 + $0x50] sm:$0xff]
      %v2170 = vld [vmem:[%s452 + $0x60] sm:$0xff]
      %v2171 = vld [vmem:[%s452 + $0x68] sm:$0xff]
      %v2172 = vld [vmem:[%s452 + $0x78] sm:$0xff]
      %v2173 = vld [vmem:[%s452 + $0x80] sm:$0xff]
      %v2174 = vld [vmem:[%s452 + $0x90] sm:$0xff]
      %v2175 = vld [vmem:[%s452 + $0x98] sm:$0xff]
      %v2176 = vld [vmem:[%s452 + $0xa8] sm:$0xff]
      %v2177 = vld [vmem:[%s452 + $0xb0] sm:$0xff]
      %v2178 = vld [vmem:[%s452 + $0xc0] sm:$0xff]
      %v2179 = vld [vmem:[%s452 + $0xc8] sm:$0xff]
      %v2180 = vld [vmem:[%s452 + $0xd8] sm:$0xff]
      %v2181 = vld [vmem:[%s452 + $0xe0] sm:$0xff]
      %v2182 = vld [vmem:[%s452 + $0xf0] sm:$0xff]
      %v2183 = vld [vmem:[%s452 + $0xf8] sm:$0xff]
      %v2184 = vld [vmem:[%s452 + $0x108] sm:$0xff]
      %v2185 = vld [vmem:[%s452 + $0x110] sm:$0xff]
      %v2186 = vld [vmem:[%s452 + $0x120] sm:$0xff]
      %v2187 = vld [vmem:[%s452 + $0x128] sm:$0xff]
      %v2188 = vld [vmem:[%s452 + $0x138] sm:$0xff]
      %v2189 = vld [vmem:[%s452 + $0x140] sm:$0xff]
      %v2190 = vld [vmem:[%s452 + $0x150] sm:$0xff]
      %v2191 = vld [vmem:[%s452 + $0x158] sm:$0xff]
      %v2192 = vld [vmem:[%s452 + $0x168] sm:$0xff]
      %v2193 = vld [vmem:[%s452 + $0x170] sm:$0xff]
      %v2194 = vld [vmem:[%s452 + $0x1] sm:$0xff]
      %v2195 = vld [vmem:[%s452 + $0x9] sm:$0xff]
      %v2196 = vld [vmem:[%s452 + $0x19] sm:$0xff]
      %v2197 = vld [vmem:[%s452 + $0x21] sm:$0xff]
      %v2198 = vld [vmem:[%s452 + $0x31] sm:$0xff]
      %v2199 = vld [vmem:[%s452 + $0x39] sm:$0xff]
      %v2200 = vld [vmem:[%s452 + $0x49] sm:$0xff]
      %v2201 = vld [vmem:[%s452 + $0x51] sm:$0xff]
      %v2202 = vld [vmem:[%s452 + $0x61] sm:$0xff]
      %v2203 = vld [vmem:[%s452 + $0x69] sm:$0xff]
      %v2204 = vld [vmem:[%s452 + $0x79] sm:$0xff]
      %v2205 = vld [vmem:[%s452 + $0x81] sm:$0xff]
      %v2206 = vld [vmem:[%s452 + $0x91] sm:$0xff]
      %v2207 = vld [vmem:[%s452 + $0x99] sm:$0xff]
      %v2208 = vld [vmem:[%s452 + $0xa9] sm:$0xff]
      %v2209 = vld [vmem:[%s452 + $0xb1] sm:$0xff]
      %v2210 = vld [vmem:[%s452 + $0xc1] sm:$0xff]
      %v2211 = vld [vmem:[%s452 + $0xc9] sm:$0xff]
      %v2212 = vld [vmem:[%s452 + $0xd9] sm:$0xff]
      %v2213 = vld [vmem:[%s452 + $0xe1] sm:$0xff]
      %v2214 = vld [vmem:[%s452 + $0xf1] sm:$0xff]
      %v2215 = vld [vmem:[%s452 + $0xf9] sm:$0xff]
      %v2216 = vld [vmem:[%s452 + $0x109] sm:$0xff]
      %v2217 = vld [vmem:[%s452 + $0x111] sm:$0xff]
      %v2218 = vld [vmem:[%s452 + $0x121] sm:$0xff]
      %v2219 = vld [vmem:[%s452 + $0x129] sm:$0xff]
      %v2220 = vld [vmem:[%s452 + $0x139] sm:$0xff]
      %v2221 = vld [vmem:[%s452 + $0x141] sm:$0xff]
      %v2222 = vld [vmem:[%s452 + $0x151] sm:$0xff]
      %v2223 = vld [vmem:[%s452 + $0x159] sm:$0xff]
      %v2224 = vld [vmem:[%s452 + $0x169] sm:$0xff]
      %v2225 = vld [vmem:[%s452 + $0x171] sm:$0xff]
      %v2226 = vld [vmem:[%s452 + $0x2] sm:$0xff]
      %v2227 = vld [vmem:[%s452 + $0xa] sm:$0xff]
      %v2228 = vld [vmem:[%s452 + $0x1a] sm:$0xff]
      %v2229 = vld [vmem:[%s452 + $0x22] sm:$0xff]
      %v2230 = vld [vmem:[%s452 + $0x32] sm:$0xff]
      %v2231 = vld [vmem:[%s452 + $0x3a] sm:$0xff]
      %v2232 = vld [vmem:[%s452 + $0x4a] sm:$0xff]
      %v2233 = vld [vmem:[%s452 + $0x52] sm:$0xff]
      %v2234 = vld [vmem:[%s452 + $0x62] sm:$0xff]
      %v2235 = vld [vmem:[%s452 + $0x6a] sm:$0xff]
      %v2236 = vld [vmem:[%s452 + $0x7a] sm:$0xff]
      %v2237 = vld [vmem:[%s452 + $0x82] sm:$0xff]
      %v2238 = vld [vmem:[%s452 + $0x92] sm:$0xff]
      %v2239 = vld [vmem:[%s452 + $0x9a] sm:$0xff]
      %v2240 = vld [vmem:[%s452 + $0xaa] sm:$0xff]
      %v2241 = vld [vmem:[%s452 + $0xb2] sm:$0xff]
      %v2242 = vld [vmem:[%s452 + $0xc2] sm:$0xff]
      %v2243 = vld [vmem:[%s452 + $0xca] sm:$0xff]
      %v2244 = vld [vmem:[%s452 + $0xda] sm:$0xff]
      %v2245 = vld [vmem:[%s452 + $0xe2] sm:$0xff]
      %v2246 = vld [vmem:[%s452 + $0xf2] sm:$0xff]
      %v2247 = vld [vmem:[%s452 + $0xfa] sm:$0xff]
      %v2248 = vld [vmem:[%s452 + $0x10a] sm:$0xff]
      %v2249 = vld [vmem:[%s452 + $0x112] sm:$0xff]
      %v2250 = vld [vmem:[%s452 + $0x122] sm:$0xff]
      %v2251 = vld [vmem:[%s452 + $0x12a] sm:$0xff]
      %v2252 = vld [vmem:[%s452 + $0x13a] sm:$0xff]
      %v2253 = vld [vmem:[%s452 + $0x142] sm:$0xff]
      %v2254 = vld [vmem:[%s452 + $0x152] sm:$0xff]
      %v2255 = vld [vmem:[%s452 + $0x15a] sm:$0xff]
      %v2256 = vld [vmem:[%s452 + $0x16a] sm:$0xff]
      %v2257 = vld [vmem:[%s452 + $0x172] sm:$0xff]
      %s2258 = scalar_lea.vmem [#allocation3], 48
      %v2259 = vld [vmem:[%s2258] sm:$0xff]
      %v2260 = vld [vmem:[%s2258 + $0x8] sm:$0xff]
      %v2261 = vld [vmem:[%s2258 + $0x18] sm:$0xff]
      %v2262 = vld [vmem:[%s2258 + $0x20] sm:$0xff]
      %v2263 = vld [vmem:[%s2258 + $0x30] sm:$0xff]
      %v2264 = vld [vmem:[%s2258 + $0x38] sm:$0xff]
      %v2265 = vld [vmem:[%s2258 + $0x48] sm:$0xff]
      %v2266 = vld [vmem:[%s2258 + $0x50] sm:$0xff]
      %v2267 = vld [vmem:[%s2258 + $0x60] sm:$0xff]
      %v2268 = vld [vmem:[%s2258 + $0x68] sm:$0xff]
      %v2269 = vld [vmem:[%s2258 + $0x78] sm:$0xff]
      %v2270 = vld [vmem:[%s2258 + $0x80] sm:$0xff]
      %v2271 = vld [vmem:[%s2258 + $0x90] sm:$0xff]
      %v2272 = vld [vmem:[%s2258 + $0x98] sm:$0xff]
      %v2273 = vld [vmem:[%s2258 + $0xa8] sm:$0xff]
      %v2274 = vld [vmem:[%s2258 + $0xb0] sm:$0xff]
      %v2275 = vld [vmem:[%s2258 + $0xc0] sm:$0xff]
      %v2276 = vld [vmem:[%s2258 + $0xc8] sm:$0xff]
      %v2277 = vld [vmem:[%s2258 + $0xd8] sm:$0xff]
      %v2278 = vld [vmem:[%s2258 + $0xe0] sm:$0xff]
      %v2279 = vld [vmem:[%s2258 + $0xf0] sm:$0xff]
      %v2280 = vld [vmem:[%s2258 + $0xf8] sm:$0xff]
      %v2281 = vld [vmem:[%s2258 + $0x108] sm:$0xff]
      %v2282 = vld [vmem:[%s2258 + $0x110] sm:$0xff]
      %v2283 = vld [vmem:[%s2258 + $0x120] sm:$0xff]
      %v2284 = vld [vmem:[%s2258 + $0x128] sm:$0xff]
      %v2285 = vld [vmem:[%s2258 + $0x138] sm:$0xff]
      %v2286 = vld [vmem:[%s2258 + $0x140] sm:$0xff]
      %v2287 = vld [vmem:[%s2258 + $0x150] sm:$0xff]
      %v2288 = vld [vmem:[%s2258 + $0x158] sm:$0xff]
      %v2289 = vld [vmem:[%s2258 + $0x168] sm:$0xff]
      %v2290 = vld [vmem:[%s2258 + $0x170] sm:$0xff]
      %v2291 = vld [vmem:[%s2258 + $0x1] sm:$0xff]
      %v2292 = vld [vmem:[%s2258 + $0x9] sm:$0xff]
      %v2293 = vld [vmem:[%s2258 + $0x19] sm:$0xff]
      %v2294 = vld [vmem:[%s2258 + $0x21] sm:$0xff]
      %v2295 = vld [vmem:[%s2258 + $0x31] sm:$0xff]
      %v2296 = vld [vmem:[%s2258 + $0x39] sm:$0xff]
      %v2297 = vld [vmem:[%s2258 + $0x49] sm:$0xff]
      %v2298 = vld [vmem:[%s2258 + $0x51] sm:$0xff]
      %v2299 = vld [vmem:[%s2258 + $0x61] sm:$0xff]
      %v2300 = vld [vmem:[%s2258 + $0x69] sm:$0xff]
      %v2301 = vld [vmem:[%s2258 + $0x79] sm:$0xff]
      %v2302 = vld [vmem:[%s2258 + $0x81] sm:$0xff]
      %v2303 = vld [vmem:[%s2258 + $0x91] sm:$0xff]
      %v2304 = vld [vmem:[%s2258 + $0x99] sm:$0xff]
      %v2305 = vld [vmem:[%s2258 + $0xa9] sm:$0xff]
      %v2306 = vld [vmem:[%s2258 + $0xb1] sm:$0xff]
      %v2307 = vld [vmem:[%s2258 + $0xc1] sm:$0xff]
      %v2308 = vld [vmem:[%s2258 + $0xc9] sm:$0xff]
      %v2309 = vld [vmem:[%s2258 + $0xd9] sm:$0xff]
      %v2310 = vld [vmem:[%s2258 + $0xe1] sm:$0xff]
      %v2311 = vld [vmem:[%s2258 + $0xf1] sm:$0xff]
      %v2312 = vld [vmem:[%s2258 + $0xf9] sm:$0xff]
      %v2313 = vld [vmem:[%s2258 + $0x109] sm:$0xff]
      %v2314 = vld [vmem:[%s2258 + $0x111] sm:$0xff]
      %v2315 = vld [vmem:[%s2258 + $0x121] sm:$0xff]
      %v2316 = vld [vmem:[%s2258 + $0x129] sm:$0xff]
      %v2317 = vld [vmem:[%s2258 + $0x139] sm:$0xff]
      %v2318 = vld [vmem:[%s2258 + $0x141] sm:$0xff]
      %v2319 = vld [vmem:[%s2258 + $0x151] sm:$0xff]
      %v2320 = vld [vmem:[%s2258 + $0x159] sm:$0xff]
      %v2321 = vld [vmem:[%s2258 + $0x169] sm:$0xff]
      %v2322 = vld [vmem:[%s2258 + $0x171] sm:$0xff]
      %v2323 = vld [vmem:[%s2258 + $0x2] sm:$0xff]
      %v2324 = vld [vmem:[%s2258 + $0xa] sm:$0xff]
      %v2325 = vld [vmem:[%s2258 + $0x1a] sm:$0xff]
      %v2326 = vld [vmem:[%s2258 + $0x22] sm:$0xff]
      %v2327 = vld [vmem:[%s2258 + $0x32] sm:$0xff]
      %v2328 = vld [vmem:[%s2258 + $0x3a] sm:$0xff]
      %v2329 = vld [vmem:[%s2258 + $0x4a] sm:$0xff]
      %v2330 = vld [vmem:[%s2258 + $0x52] sm:$0xff]
      %v2331 = vld [vmem:[%s2258 + $0x62] sm:$0xff]
      %v2332 = vld [vmem:[%s2258 + $0x6a] sm:$0xff]
      %v2333 = vld [vmem:[%s2258 + $0x7a] sm:$0xff]
      %v2334 = vld [vmem:[%s2258 + $0x82] sm:$0xff]
      %v2335 = vld [vmem:[%s2258 + $0x92] sm:$0xff]
      %v2336 = vld [vmem:[%s2258 + $0x9a] sm:$0xff]
      %v2337 = vld [vmem:[%s2258 + $0xaa] sm:$0xff]
      %v2338 = vld [vmem:[%s2258 + $0xb2] sm:$0xff]
      %v2339 = vld [vmem:[%s2258 + $0xc2] sm:$0xff]
      %v2340 = vld [vmem:[%s2258 + $0xca] sm:$0xff]
      %v2341 = vld [vmem:[%s2258 + $0xda] sm:$0xff]
      %v2342 = vld [vmem:[%s2258 + $0xe2] sm:$0xff]
      %v2343 = vld [vmem:[%s2258 + $0xf2] sm:$0xff]
      %v2344 = vld [vmem:[%s2258 + $0xfa] sm:$0xff]
      %v2345 = vld [vmem:[%s2258 + $0x10a] sm:$0xff]
      %v2346 = vld [vmem:[%s2258 + $0x112] sm:$0xff]
      %v2347 = vld [vmem:[%s2258 + $0x122] sm:$0xff]
      %v2348 = vld [vmem:[%s2258 + $0x12a] sm:$0xff]
      %v2349 = vld [vmem:[%s2258 + $0x13a] sm:$0xff]
      %v2350 = vld [vmem:[%s2258 + $0x142] sm:$0xff]
      %v2351 = vld [vmem:[%s2258 + $0x152] sm:$0xff]
      %v2352 = vld [vmem:[%s2258 + $0x15a] sm:$0xff]
      %v2353 = vld [vmem:[%s2258 + $0x16a] sm:$0xff]
      %v2354 = vld [vmem:[%s2258 + $0x172] sm:$0xff]
      %2387 = vrot.lane.b32.xlu0 %v2098, 4
      %v2388 = vpop.permute.xlu0 %2387
      %2389 = vrot.lane.b32.xlu0 %v2099, 4
      %v2390 = vpop.permute.xlu0 %2389
      %2391 = vrot.lane.b32.xlu0 %v2100, 4
      %v2392 = vpop.permute.xlu0 %2391
      %2393 = vrot.lane.b32.xlu0 %v2101, 4
      %v2394 = vpop.permute.xlu0 %2393
      %2395 = vrot.lane.b32.xlu0 %v2102, 4
      %v2396 = vpop.permute.xlu0 %2395
      %2397 = vrot.lane.b32.xlu0 %v2103, 4
      %v2398 = vpop.permute.xlu0 %2397
      %2399 = vrot.lane.b32.xlu0 %v2104, 4
      %v2400 = vpop.permute.xlu0 %2399
      %2401 = vrot.lane.b32.xlu0 %v2105, 4
      %v2402 = vpop.permute.xlu0 %2401
      %2403 = vrot.lane.b32.xlu0 %v2106, 4
      %v2404 = vpop.permute.xlu0 %2403
      %2405 = vrot.lane.b32.xlu0 %v2107, 4
      %v2406 = vpop.permute.xlu0 %2405
      %2407 = vrot.lane.b32.xlu0 %v2108, 4
      %v2408 = vpop.permute.xlu0 %2407
      %2409 = vrot.lane.b32.xlu0 %v2109, 4
      %v2410 = vpop.permute.xlu0 %2409
      %2411 = vrot.lane.b32.xlu0 %v2110, 4
      %v2412 = vpop.permute.xlu0 %2411
      %2413 = vrot.lane.b32.xlu0 %v2111, 4
      %v2414 = vpop.permute.xlu0 %2413
      %2415 = vrot.lane.b32.xlu0 %v2112, 4
      %v2416 = vpop.permute.xlu0 %2415
      %2417 = vrot.lane.b32.xlu0 %v2113, 4
      %v2418 = vpop.permute.xlu0 %2417
      %2419 = vrot.lane.b32.xlu0 %v2114, 4
      %v2420 = vpop.permute.xlu0 %2419
      %2421 = vrot.lane.b32.xlu0 %v2115, 4
      %v2422 = vpop.permute.xlu0 %2421
      %2423 = vrot.lane.b32.xlu0 %v2116, 4
      %v2424 = vpop.permute.xlu0 %2423
      %2425 = vrot.lane.b32.xlu0 %v2117, 4
      %v2426 = vpop.permute.xlu0 %2425
      %2427 = vrot.lane.b32.xlu0 %v2118, 4
      %v2428 = vpop.permute.xlu0 %2427
      %2429 = vrot.lane.b32.xlu0 %v2119, 4
      %v2430 = vpop.permute.xlu0 %2429
      %2431 = vrot.lane.b32.xlu0 %v2120, 4
      %v2432 = vpop.permute.xlu0 %2431
      %2433 = vrot.lane.b32.xlu0 %v2121, 4
      %v2434 = vpop.permute.xlu0 %2433
      %2435 = vrot.lane.b32.xlu0 %v2122, 4
      %v2436 = vpop.permute.xlu0 %2435
      %2437 = vrot.lane.b32.xlu0 %v2123, 4
      %v2438 = vpop.permute.xlu0 %2437
      %2439 = vrot.lane.b32.xlu0 %v2124, 4
      %v2440 = vpop.permute.xlu0 %2439
      %2441 = vrot.lane.b32.xlu0 %v2125, 4
      %v2442 = vpop.permute.xlu0 %2441
      %2443 = vrot.lane.b32.xlu0 %v2126, 4
      %v2444 = vpop.permute.xlu0 %2443
      %2445 = vrot.lane.b32.xlu0 %v2127, 4
      %v2446 = vpop.permute.xlu0 %2445
      %2447 = vrot.lane.b32.xlu0 %v2128, 4
      %v2448 = vpop.permute.xlu0 %2447
      %2449 = vrot.lane.b32.xlu0 %v2129, 4
      %v2450 = vpop.permute.xlu0 %2449
      %2515 = vrot.lane.b32.xlu0 %v2130, 8
      %v2516 = vpop.permute.xlu0 %2515
      %2517 = vrot.lane.b32.xlu0 %v2131, 8
      %v2518 = vpop.permute.xlu0 %2517
      %2519 = vrot.lane.b32.xlu0 %v2132, 8
      %v2520 = vpop.permute.xlu0 %2519
      %2521 = vrot.lane.b32.xlu0 %v2133, 8
      %v2522 = vpop.permute.xlu0 %2521
      %2523 = vrot.lane.b32.xlu0 %v2134, 8
      %v2524 = vpop.permute.xlu0 %2523
      %2525 = vrot.lane.b32.xlu0 %v2135, 8
      %v2526 = vpop.permute.xlu0 %2525
      %2527 = vrot.lane.b32.xlu0 %v2136, 8
      %v2528 = vpop.permute.xlu0 %2527
      %2529 = vrot.lane.b32.xlu0 %v2137, 8
      %v2530 = vpop.permute.xlu0 %2529
      %2531 = vrot.lane.b32.xlu0 %v2138, 8
      %v2532 = vpop.permute.xlu0 %2531
      %2533 = vrot.lane.b32.xlu0 %v2139, 8
      %v2534 = vpop.permute.xlu0 %2533
      %2535 = vrot.lane.b32.xlu0 %v2140, 8
      %v2536 = vpop.permute.xlu0 %2535
      %2537 = vrot.lane.b32.xlu0 %v2141, 8
      %v2538 = vpop.permute.xlu0 %2537
      %2539 = vrot.lane.b32.xlu0 %v2142, 8
      %v2540 = vpop.permute.xlu0 %2539
      %2541 = vrot.lane.b32.xlu0 %v2143, 8
      %v2542 = vpop.permute.xlu0 %2541
      %2543 = vrot.lane.b32.xlu0 %v2144, 8
      %v2544 = vpop.permute.xlu0 %2543
      %2545 = vrot.lane.b32.xlu0 %v2145, 8
      %v2546 = vpop.permute.xlu0 %2545
      %2547 = vrot.lane.b32.xlu0 %v2146, 8
      %v2548 = vpop.permute.xlu0 %2547
      %2549 = vrot.lane.b32.xlu0 %v2147, 8
      %v2550 = vpop.permute.xlu0 %2549
      %2551 = vrot.lane.b32.xlu0 %v2148, 8
      %v2552 = vpop.permute.xlu0 %2551
      %2553 = vrot.lane.b32.xlu0 %v2149, 8
      %v2554 = vpop.permute.xlu0 %2553
      %2555 = vrot.lane.b32.xlu0 %v2150, 8
      %v2556 = vpop.permute.xlu0 %2555
      %2557 = vrot.lane.b32.xlu0 %v2151, 8
      %v2558 = vpop.permute.xlu0 %2557
      %2559 = vrot.lane.b32.xlu0 %v2152, 8
      %v2560 = vpop.permute.xlu0 %2559
      %2561 = vrot.lane.b32.xlu0 %v2153, 8
      %v2562 = vpop.permute.xlu0 %2561
      %2563 = vrot.lane.b32.xlu0 %v2154, 8
      %v2564 = vpop.permute.xlu0 %2563
      %2565 = vrot.lane.b32.xlu0 %v2155, 8
      %v2566 = vpop.permute.xlu0 %2565
      %2567 = vrot.lane.b32.xlu0 %v2156, 8
      %v2568 = vpop.permute.xlu0 %2567
      %2569 = vrot.lane.b32.xlu0 %v2157, 8
      %v2570 = vpop.permute.xlu0 %2569
      %2571 = vrot.lane.b32.xlu0 %v2158, 8
      %v2572 = vpop.permute.xlu0 %2571
      %2573 = vrot.lane.b32.xlu0 %v2159, 8
      %v2574 = vpop.permute.xlu0 %2573
      %2575 = vrot.lane.b32.xlu0 %v2160, 8
      %v2576 = vpop.permute.xlu0 %2575
      %2577 = vrot.lane.b32.xlu0 %v2161, 8
      %v2578 = vpop.permute.xlu0 %2577
      %2643 = vrot.lane.b32.xlu0 %v2162, 12
      %v2644 = vpop.permute.xlu0 %2643
      %2645 = vrot.lane.b32.xlu0 %v2163, 12
      %v2646 = vpop.permute.xlu0 %2645
      %2647 = vrot.lane.b32.xlu0 %v2164, 12
      %v2648 = vpop.permute.xlu0 %2647
      %2649 = vrot.lane.b32.xlu0 %v2165, 12
      %v2650 = vpop.permute.xlu0 %2649
      %2651 = vrot.lane.b32.xlu0 %v2166, 12
      %v2652 = vpop.permute.xlu0 %2651
      %2653 = vrot.lane.b32.xlu0 %v2167, 12
      %v2654 = vpop.permute.xlu0 %2653
      %2655 = vrot.lane.b32.xlu0 %v2168, 12
      %v2656 = vpop.permute.xlu0 %2655
      %2657 = vrot.lane.b32.xlu0 %v2169, 12
      %v2658 = vpop.permute.xlu0 %2657
      %2659 = vrot.lane.b32.xlu0 %v2170, 12
      %v2660 = vpop.permute.xlu0 %2659
      %2661 = vrot.lane.b32.xlu0 %v2171, 12
      %v2662 = vpop.permute.xlu0 %2661
      %2663 = vrot.lane.b32.xlu0 %v2172, 12
      %v2664 = vpop.permute.xlu0 %2663
      %2665 = vrot.lane.b32.xlu0 %v2173, 12
      %v2666 = vpop.permute.xlu0 %2665
      %2667 = vrot.lane.b32.xlu0 %v2174, 12
      %v2668 = vpop.permute.xlu0 %2667
      %2669 = vrot.lane.b32.xlu0 %v2175, 12
      %v2670 = vpop.permute.xlu0 %2669
      %2671 = vrot.lane.b32.xlu0 %v2176, 12
      %v2672 = vpop.permute.xlu0 %2671
      %2673 = vrot.lane.b32.xlu0 %v2177, 12
      %v2674 = vpop.permute.xlu0 %2673
      %2675 = vrot.lane.b32.xlu0 %v2178, 12
      %v2676 = vpop.permute.xlu0 %2675
      %2677 = vrot.lane.b32.xlu0 %v2179, 12
      %v2678 = vpop.permute.xlu0 %2677
      %2679 = vrot.lane.b32.xlu0 %v2180, 12
      %v2680 = vpop.permute.xlu0 %2679
      %2681 = vrot.lane.b32.xlu0 %v2181, 12
      %v2682 = vpop.permute.xlu0 %2681
      %2683 = vrot.lane.b32.xlu0 %v2182, 12
      %v2684 = vpop.permute.xlu0 %2683
      %2685 = vrot.lane.b32.xlu0 %v2183, 12
      %v2686 = vpop.permute.xlu0 %2685
      %2687 = vrot.lane.b32.xlu0 %v2184, 12
      %v2688 = vpop.permute.xlu0 %2687
      %2689 = vrot.lane.b32.xlu0 %v2185, 12
      %v2690 = vpop.permute.xlu0 %2689
      %2691 = vrot.lane.b32.xlu0 %v2186, 12
      %v2692 = vpop.permute.xlu0 %2691
      %2693 = vrot.lane.b32.xlu0 %v2187, 12
      %v2694 = vpop.permute.xlu0 %2693
      %2695 = vrot.lane.b32.xlu0 %v2188, 12
      %v2696 = vpop.permute.xlu0 %2695
      %2697 = vrot.lane.b32.xlu0 %v2189, 12
      %v2698 = vpop.permute.xlu0 %2697
      %2699 = vrot.lane.b32.xlu0 %v2190, 12
      %v2700 = vpop.permute.xlu0 %2699
      %2701 = vrot.lane.b32.xlu0 %v2191, 12
      %v2702 = vpop.permute.xlu0 %2701
      %2703 = vrot.lane.b32.xlu0 %v2192, 12
      %v2704 = vpop.permute.xlu0 %2703
      %2705 = vrot.lane.b32.xlu0 %v2193, 12
      %v2706 = vpop.permute.xlu0 %2705
      %2771 = vrot.lane.b32.xlu0 %v2194, 16
      %v2772 = vpop.permute.xlu0 %2771
      %2773 = vrot.lane.b32.xlu0 %v2195, 16
      %v2774 = vpop.permute.xlu0 %2773
      %2775 = vrot.lane.b32.xlu0 %v2196, 16
      %v2776 = vpop.permute.xlu0 %2775
      %2777 = vrot.lane.b32.xlu0 %v2197, 16
      %v2778 = vpop.permute.xlu0 %2777
      %2779 = vrot.lane.b32.xlu0 %v2198, 16
      %v2780 = vpop.permute.xlu0 %2779
      %2781 = vrot.lane.b32.xlu0 %v2199, 16
      %v2782 = vpop.permute.xlu0 %2781
      %2783 = vrot.lane.b32.xlu0 %v2200, 16
      %v2784 = vpop.permute.xlu0 %2783
      %2785 = vrot.lane.b32.xlu0 %v2201, 16
      %v2786 = vpop.permute.xlu0 %2785
      %2787 = vrot.lane.b32.xlu0 %v2202, 16
      %v2788 = vpop.permute.xlu0 %2787
      %2789 = vrot.lane.b32.xlu0 %v2203, 16
      %v2790 = vpop.permute.xlu0 %2789
      %2791 = vrot.lane.b32.xlu0 %v2204, 16
      %v2792 = vpop.permute.xlu0 %2791
      %2793 = vrot.lane.b32.xlu0 %v2205, 16
      %v2794 = vpop.permute.xlu0 %2793
      %2795 = vrot.lane.b32.xlu0 %v2206, 16
      %v2796 = vpop.permute.xlu0 %2795
      %2797 = vrot.lane.b32.xlu0 %v2207, 16
      %v2798 = vpop.permute.xlu0 %2797
      %2799 = vrot.lane.b32.xlu0 %v2208, 16
      %v2800 = vpop.permute.xlu0 %2799
      %2801 = vrot.lane.b32.xlu0 %v2209, 16
      %v2802 = vpop.permute.xlu0 %2801
      %2803 = vrot.lane.b32.xlu0 %v2210, 16
      %v2804 = vpop.permute.xlu0 %2803
      %2805 = vrot.lane.b32.xlu0 %v2211, 16
      %v2806 = vpop.permute.xlu0 %2805
      %2807 = vrot.lane.b32.xlu0 %v2212, 16
      %v2808 = vpop.permute.xlu0 %2807
      %2809 = vrot.lane.b32.xlu0 %v2213, 16
      %v2810 = vpop.permute.xlu0 %2809
      %2811 = vrot.lane.b32.xlu0 %v2214, 16
      %v2812 = vpop.permute.xlu0 %2811
      %2813 = vrot.lane.b32.xlu0 %v2215, 16
      %v2814 = vpop.permute.xlu0 %2813
      %2815 = vrot.lane.b32.xlu0 %v2216, 16
      %v2816 = vpop.permute.xlu0 %2815
      %2817 = vrot.lane.b32.xlu0 %v2217, 16
      %v2818 = vpop.permute.xlu0 %2817
      %2819 = vrot.lane.b32.xlu0 %v2218, 16
      %v2820 = vpop.permute.xlu0 %2819
      %2821 = vrot.lane.b32.xlu0 %v2219, 16
      %v2822 = vpop.permute.xlu0 %2821
      %2823 = vrot.lane.b32.xlu0 %v2220, 16
      %v2824 = vpop.permute.xlu0 %2823
      %2825 = vrot.lane.b32.xlu0 %v2221, 16
      %v2826 = vpop.permute.xlu0 %2825
      %2827 = vrot.lane.b32.xlu0 %v2222, 16
      %v2828 = vpop.permute.xlu0 %2827
      %2829 = vrot.lane.b32.xlu0 %v2223, 16
      %v2830 = vpop.permute.xlu0 %2829
      %2831 = vrot.lane.b32.xlu0 %v2224, 16
      %v2832 = vpop.permute.xlu0 %2831
      %2833 = vrot.lane.b32.xlu0 %v2225, 16
      %v2834 = vpop.permute.xlu0 %2833
      %2899 = vrot.lane.b32.xlu0 %v2226, 20
      %v2900 = vpop.permute.xlu0 %2899
      %2901 = vrot.lane.b32.xlu0 %v2227, 20
      %v2902 = vpop.permute.xlu0 %2901
      %2903 = vrot.lane.b32.xlu0 %v2228, 20
      %v2904 = vpop.permute.xlu0 %2903
      %2905 = vrot.lane.b32.xlu0 %v2229, 20
      %v2906 = vpop.permute.xlu0 %2905
      %2907 = vrot.lane.b32.xlu0 %v2230, 20
      %v2908 = vpop.permute.xlu0 %2907
      %2909 = vrot.lane.b32.xlu0 %v2231, 20
      %v2910 = vpop.permute.xlu0 %2909
      %2911 = vrot.lane.b32.xlu0 %v2232, 20
      %v2912 = vpop.permute.xlu0 %2911
      %2913 = vrot.lane.b32.xlu0 %v2233, 20
      %v2914 = vpop.permute.xlu0 %2913
      %2915 = vrot.lane.b32.xlu0 %v2234, 20
      %v2916 = vpop.permute.xlu0 %2915
      %2917 = vrot.lane.b32.xlu0 %v2235, 20
      %v2918 = vpop.permute.xlu0 %2917
      %2919 = vrot.lane.b32.xlu0 %v2236, 20
      %v2920 = vpop.permute.xlu0 %2919
      %2921 = vrot.lane.b32.xlu0 %v2237, 20
      %v2922 = vpop.permute.xlu0 %2921
      %2923 = vrot.lane.b32.xlu0 %v2238, 20
      %v2924 = vpop.permute.xlu0 %2923
      %2925 = vrot.lane.b32.xlu0 %v2239, 20
      %v2926 = vpop.permute.xlu0 %2925
      %2927 = vrot.lane.b32.xlu0 %v2240, 20
      %v2928 = vpop.permute.xlu0 %2927
      %2929 = vrot.lane.b32.xlu0 %v2241, 20
      %v2930 = vpop.permute.xlu0 %2929
      %2931 = vrot.lane.b32.xlu0 %v2242, 20
      %v2932 = vpop.permute.xlu0 %2931
      %2933 = vrot.lane.b32.xlu0 %v2243, 20
      %v2934 = vpop.permute.xlu0 %2933
      %2935 = vrot.lane.b32.xlu0 %v2244, 20
      %v2936 = vpop.permute.xlu0 %2935
      %2937 = vrot.lane.b32.xlu0 %v2245, 20
      %v2938 = vpop.permute.xlu0 %2937
      %2939 = vrot.lane.b32.xlu0 %v2246, 20
      %v2940 = vpop.permute.xlu0 %2939
      %2941 = vrot.lane.b32.xlu0 %v2247, 20
      %v2942 = vpop.permute.xlu0 %2941
      %2943 = vrot.lane.b32.xlu0 %v2248, 20
      %v2944 = vpop.permute.xlu0 %2943
      %2945 = vrot.lane.b32.xlu0 %v2249, 20
      %v2946 = vpop.permute.xlu0 %2945
      %2947 = vrot.lane.b32.xlu0 %v2250, 20
      %v2948 = vpop.permute.xlu0 %2947
      %2949 = vrot.lane.b32.xlu0 %v2251, 20
      %v2950 = vpop.permute.xlu0 %2949
      %2951 = vrot.lane.b32.xlu0 %v2252, 20
      %v2952 = vpop.permute.xlu0 %2951
      %2953 = vrot.lane.b32.xlu0 %v2253, 20
      %v2954 = vpop.permute.xlu0 %2953
      %2955 = vrot.lane.b32.xlu0 %v2254, 20
      %v2956 = vpop.permute.xlu0 %2955
      %2957 = vrot.lane.b32.xlu0 %v2255, 20
      %v2958 = vpop.permute.xlu0 %2957
      %2959 = vrot.lane.b32.xlu0 %v2256, 20
      %v2960 = vpop.permute.xlu0 %2959
      %2961 = vrot.lane.b32.xlu0 %v2257, 20
      %v2962 = vpop.permute.xlu0 %2961
      %3027 = vrot.lane.b32.xlu0 %v2259, 24
      %v3028 = vpop.permute.xlu0 %3027
      %3029 = vrot.lane.b32.xlu0 %v2260, 24
      %v3030 = vpop.permute.xlu0 %3029
      %3031 = vrot.lane.b32.xlu0 %v2261, 24
      %v3032 = vpop.permute.xlu0 %3031
      %3033 = vrot.lane.b32.xlu0 %v2262, 24
      %v3034 = vpop.permute.xlu0 %3033
      %3035 = vrot.lane.b32.xlu0 %v2263, 24
      %v3036 = vpop.permute.xlu0 %3035
      %3037 = vrot.lane.b32.xlu0 %v2264, 24
      %v3038 = vpop.permute.xlu0 %3037
      %3039 = vrot.lane.b32.xlu0 %v2265, 24
      %v3040 = vpop.permute.xlu0 %3039
      %3041 = vrot.lane.b32.xlu0 %v2266, 24
      %v3042 = vpop.permute.xlu0 %3041
      %3043 = vrot.lane.b32.xlu0 %v2267, 24
      %v3044 = vpop.permute.xlu0 %3043
      %3045 = vrot.lane.b32.xlu0 %v2268, 24
      %v3046 = vpop.permute.xlu0 %3045
      %3047 = vrot.lane.b32.xlu0 %v2269, 24
      %v3048 = vpop.permute.xlu0 %3047
      %3049 = vrot.lane.b32.xlu0 %v2270, 24
      %v3050 = vpop.permute.xlu0 %3049
      %3051 = vrot.lane.b32.xlu0 %v2271, 24
      %v3052 = vpop.permute.xlu0 %3051
      %3053 = vrot.lane.b32.xlu0 %v2272, 24
      %v3054 = vpop.permute.xlu0 %3053
      %3055 = vrot.lane.b32.xlu0 %v2273, 24
      %v3056 = vpop.permute.xlu0 %3055
      %3057 = vrot.lane.b32.xlu0 %v2274, 24
      %v3058 = vpop.permute.xlu0 %3057
      %3059 = vrot.lane.b32.xlu0 %v2275, 24
      %v3060 = vpop.permute.xlu0 %3059
      %3061 = vrot.lane.b32.xlu0 %v2276, 24
      %v3062 = vpop.permute.xlu0 %3061
      %3063 = vrot.lane.b32.xlu0 %v2277, 24
      %v3064 = vpop.permute.xlu0 %3063
      %3065 = vrot.lane.b32.xlu0 %v2278, 24
      %v3066 = vpop.permute.xlu0 %3065
      %3067 = vrot.lane.b32.xlu0 %v2279, 24
      %v3068 = vpop.permute.xlu0 %3067
      %3069 = vrot.lane.b32.xlu0 %v2280, 24
      %v3070 = vpop.permute.xlu0 %3069
      %3071 = vrot.lane.b32.xlu0 %v2281, 24
      %v3072 = vpop.permute.xlu0 %3071
      %3073 = vrot.lane.b32.xlu0 %v2282, 24
      %v3074 = vpop.permute.xlu0 %3073
      %3075 = vrot.lane.b32.xlu0 %v2283, 24
      %v3076 = vpop.permute.xlu0 %3075
      %3077 = vrot.lane.b32.xlu0 %v2284, 24
      %v3078 = vpop.permute.xlu0 %3077
      %3079 = vrot.lane.b32.xlu0 %v2285, 24
      %v3080 = vpop.permute.xlu0 %3079
      %3081 = vrot.lane.b32.xlu0 %v2286, 24
      %v3082 = vpop.permute.xlu0 %3081
      %3083 = vrot.lane.b32.xlu0 %v2287, 24
      %v3084 = vpop.permute.xlu0 %3083
      %3085 = vrot.lane.b32.xlu0 %v2288, 24
      %v3086 = vpop.permute.xlu0 %3085
      %3087 = vrot.lane.b32.xlu0 %v2289, 24
      %v3088 = vpop.permute.xlu0 %3087
      %3089 = vrot.lane.b32.xlu0 %v2290, 24
      %v3090 = vpop.permute.xlu0 %3089
      %3155 = vrot.lane.b32.xlu0 %v2291, 28
      %v3156 = vpop.permute.xlu0 %3155
      %3157 = vrot.lane.b32.xlu0 %v2292, 28
      %v3158 = vpop.permute.xlu0 %3157
      %3159 = vrot.lane.b32.xlu0 %v2293, 28
      %v3160 = vpop.permute.xlu0 %3159
      %3161 = vrot.lane.b32.xlu0 %v2294, 28
      %v3162 = vpop.permute.xlu0 %3161
      %3163 = vrot.lane.b32.xlu0 %v2295, 28
      %v3164 = vpop.permute.xlu0 %3163
      %3165 = vrot.lane.b32.xlu0 %v2296, 28
      %v3166 = vpop.permute.xlu0 %3165
      %3167 = vrot.lane.b32.xlu0 %v2297, 28
      %v3168 = vpop.permute.xlu0 %3167
      %3169 = vrot.lane.b32.xlu0 %v2298, 28
      %v3170 = vpop.permute.xlu0 %3169
      %3171 = vrot.lane.b32.xlu0 %v2299, 28
      %v3172 = vpop.permute.xlu0 %3171
      %3173 = vrot.lane.b32.xlu0 %v2300, 28
      %v3174 = vpop.permute.xlu0 %3173
      %3175 = vrot.lane.b32.xlu0 %v2301, 28
      %v3176 = vpop.permute.xlu0 %3175
      %3177 = vrot.lane.b32.xlu0 %v2302, 28
      %v3178 = vpop.permute.xlu0 %3177
      %3179 = vrot.lane.b32.xlu0 %v2303, 28
      %v3180 = vpop.permute.xlu0 %3179
      %3181 = vrot.lane.b32.xlu0 %v2304, 28
      %v3182 = vpop.permute.xlu0 %3181
      %3183 = vrot.lane.b32.xlu0 %v2305, 28
      %v3184 = vpop.permute.xlu0 %3183
      %3185 = vrot.lane.b32.xlu0 %v2306, 28
      %v3186 = vpop.permute.xlu0 %3185
      %3187 = vrot.lane.b32.xlu0 %v2307, 28
      %v3188 = vpop.permute.xlu0 %3187
      %3189 = vrot.lane.b32.xlu0 %v2308, 28
      %v3190 = vpop.permute.xlu0 %3189
      %3191 = vrot.lane.b32.xlu0 %v2309, 28
      %v3192 = vpop.permute.xlu0 %3191
      %3193 = vrot.lane.b32.xlu0 %v2310, 28
      %v3194 = vpop.permute.xlu0 %3193
      %3195 = vrot.lane.b32.xlu0 %v2311, 28
      %v3196 = vpop.permute.xlu0 %3195
      %3197 = vrot.lane.b32.xlu0 %v2312, 28
      %v3198 = vpop.permute.xlu0 %3197
      %3199 = vrot.lane.b32.xlu0 %v2313, 28
      %v3200 = vpop.permute.xlu0 %3199
      %3201 = vrot.lane.b32.xlu0 %v2314, 28
      %v3202 = vpop.permute.xlu0 %3201
      %3203 = vrot.lane.b32.xlu0 %v2315, 28
      %v3204 = vpop.permute.xlu0 %3203
      %3205 = vrot.lane.b32.xlu0 %v2316, 28
      %v3206 = vpop.permute.xlu0 %3205
      %3207 = vrot.lane.b32.xlu0 %v2317, 28
      %v3208 = vpop.permute.xlu0 %3207
      %3209 = vrot.lane.b32.xlu0 %v2318, 28
      %v3210 = vpop.permute.xlu0 %3209
      %3211 = vrot.lane.b32.xlu0 %v2319, 28
      %v3212 = vpop.permute.xlu0 %3211
      %3213 = vrot.lane.b32.xlu0 %v2320, 28
      %v3214 = vpop.permute.xlu0 %3213
      %3215 = vrot.lane.b32.xlu0 %v2321, 28
      %v3216 = vpop.permute.xlu0 %3215
      %3217 = vrot.lane.b32.xlu0 %v2322, 28
      %v3218 = vpop.permute.xlu0 %3217
      %3283 = vrot.lane.b32.xlu0 %v2323, 32
      %v3284 = vpop.permute.xlu0 %3283
      %3285 = vrot.lane.b32.xlu0 %v2324, 32
      %v3286 = vpop.permute.xlu0 %3285
      %3287 = vrot.lane.b32.xlu0 %v2325, 32
      %v3288 = vpop.permute.xlu0 %3287
      %3289 = vrot.lane.b32.xlu0 %v2326, 32
      %v3290 = vpop.permute.xlu0 %3289
      %3291 = vrot.lane.b32.xlu0 %v2327, 32
      %v3292 = vpop.permute.xlu0 %3291
      %3293 = vrot.lane.b32.xlu0 %v2328, 32
      %v3294 = vpop.permute.xlu0 %3293
      %3295 = vrot.lane.b32.xlu0 %v2329, 32
      %v3296 = vpop.permute.xlu0 %3295
      %3297 = vrot.lane.b32.xlu0 %v2330, 32
      %v3298 = vpop.permute.xlu0 %3297
      %3299 = vrot.lane.b32.xlu0 %v2331, 32
      %v3300 = vpop.permute.xlu0 %3299
      %3301 = vrot.lane.b32.xlu0 %v2332, 32
      %v3302 = vpop.permute.xlu0 %3301
      %3303 = vrot.lane.b32.xlu0 %v2333, 32
      %v3304 = vpop.permute.xlu0 %3303
      %3305 = vrot.lane.b32.xlu0 %v2334, 32
      %v3306 = vpop.permute.xlu0 %3305
      %3307 = vrot.lane.b32.xlu0 %v2335, 32
      %v3308 = vpop.permute.xlu0 %3307
      %3309 = vrot.lane.b32.xlu0 %v2336, 32
      %v3310 = vpop.permute.xlu0 %3309
      %3311 = vrot.lane.b32.xlu0 %v2337, 32
      %v3312 = vpop.permute.xlu0 %3311
      %3313 = vrot.lane.b32.xlu0 %v2338, 32
      %v3314 = vpop.permute.xlu0 %3313
      %3315 = vrot.lane.b32.xlu0 %v2339, 32
      %v3316 = vpop.permute.xlu0 %3315
      %3317 = vrot.lane.b32.xlu0 %v2340, 32
      %v3318 = vpop.permute.xlu0 %3317
      %3319 = vrot.lane.b32.xlu0 %v2341, 32
      %v3320 = vpop.permute.xlu0 %3319
      %3321 = vrot.lane.b32.xlu0 %v2342, 32
      %v3322 = vpop.permute.xlu0 %3321
      %3323 = vrot.lane.b32.xlu0 %v2343, 32
      %v3324 = vpop.permute.xlu0 %3323
      %3325 = vrot.lane.b32.xlu0 %v2344, 32
      %v3326 = vpop.permute.xlu0 %3325
      %3327 = vrot.lane.b32.xlu0 %v2345, 32
      %v3328 = vpop.permute.xlu0 %3327
      %3329 = vrot.lane.b32.xlu0 %v2346, 32
      %v3330 = vpop.permute.xlu0 %3329
      %3331 = vrot.lane.b32.xlu0 %v2347, 32
      %v3332 = vpop.permute.xlu0 %3331
      %3333 = vrot.lane.b32.xlu0 %v2348, 32
      %v3334 = vpop.permute.xlu0 %3333
      %3335 = vrot.lane.b32.xlu0 %v2349, 32
      %v3336 = vpop.permute.xlu0 %3335
      %3337 = vrot.lane.b32.xlu0 %v2350, 32
      %v3338 = vpop.permute.xlu0 %3337
      %3339 = vrot.lane.b32.xlu0 %v2351, 32
      %v3340 = vpop.permute.xlu0 %3339
      %3341 = vrot.lane.b32.xlu0 %v2352, 32
      %v3342 = vpop.permute.xlu0 %3341
      %3343 = vrot.lane.b32.xlu0 %v2353, 32
      %v3344 = vpop.permute.xlu0 %3343
      %3345 = vrot.lane.b32.xlu0 %v2354, 32
      %v3346 = vpop.permute.xlu0 %3345
      %v3379 = vsel %vm245, %v2066, %v2388
      %v3380 = vsel %vm245, %v2067, %v2390
      %v3381 = vsel %vm245, %v2068, %v2392
      %v3382 = vsel %vm245, %v2069, %v2394
      %v3383 = vsel %vm245, %v2070, %v2396
      %v3384 = vsel %vm245, %v2071, %v2398
      %v3385 = vsel %vm245, %v2072, %v2400
      %v3386 = vsel %vm245, %v2073, %v2402
      %v3387 = vsel %vm245, %v2074, %v2404
      %v3388 = vsel %vm245, %v2075, %v2406
      %v3389 = vsel %vm245, %v2076, %v2408
      %v3390 = vsel %vm245, %v2077, %v2410
      %v3391 = vsel %vm245, %v2078, %v2412
      %v3392 = vsel %vm245, %v2079, %v2414
      %v3393 = vsel %vm245, %v2080, %v2416
      %v3394 = vsel %vm245, %v2081, %v2418
      %v3395 = vsel %vm245, %v2082, %v2420
      %v3396 = vsel %vm245, %v2083, %v2422
      %v3397 = vsel %vm245, %v2084, %v2424
      %v3398 = vsel %vm245, %v2085, %v2426
      %v3399 = vsel %vm245, %v2086, %v2428
      %v3400 = vsel %vm245, %v2087, %v2430
      %v3401 = vsel %vm245, %v2088, %v2432
      %v3402 = vsel %vm245, %v2089, %v2434
      %v3403 = vsel %vm245, %v2090, %v2436
      %v3404 = vsel %vm245, %v2091, %v2438
      %v3405 = vsel %vm245, %v2092, %v2440
      %v3406 = vsel %vm245, %v2093, %v2442
      %v3407 = vsel %vm245, %v2094, %v2444
      %v3408 = vsel %vm245, %v2095, %v2446
      %v3409 = vsel %vm245, %v2096, %v2448
      %v3410 = vsel %vm245, %v2097, %v2450
      %v3411 = vsel %vm1830, %v3379, %v2516
      %v3412 = vsel %vm1830, %v3380, %v2518
      %v3413 = vsel %vm1830, %v3381, %v2520
      %v3414 = vsel %vm1830, %v3382, %v2522
      %v3415 = vsel %vm1830, %v3383, %v2524
      %v3416 = vsel %vm1830, %v3384, %v2526
      %v3417 = vsel %vm1830, %v3385, %v2528
      %v3418 = vsel %vm1830, %v3386, %v2530
      %v3419 = vsel %vm1830, %v3387, %v2532
      %v3420 = vsel %vm1830, %v3388, %v2534
      %v3421 = vsel %vm1830, %v3389, %v2536
      %v3422 = vsel %vm1830, %v3390, %v2538
      %v3423 = vsel %vm1830, %v3391, %v2540
      %v3424 = vsel %vm1830, %v3392, %v2542
      %v3425 = vsel %vm1830, %v3393, %v2544
      %v3426 = vsel %vm1830, %v3394, %v2546
      %v3427 = vsel %vm1830, %v3395, %v2548
      %v3428 = vsel %vm1830, %v3396, %v2550
      %v3429 = vsel %vm1830, %v3397, %v2552
      %v3430 = vsel %vm1830, %v3398, %v2554
      %v3431 = vsel %vm1830, %v3399, %v2556
      %v3432 = vsel %vm1830, %v3400, %v2558
      %v3433 = vsel %vm1830, %v3401, %v2560
      %v3434 = vsel %vm1830, %v3402, %v2562
      %v3435 = vsel %vm1830, %v3403, %v2564
      %v3436 = vsel %vm1830, %v3404, %v2566
      %v3437 = vsel %vm1830, %v3405, %v2568
      %v3438 = vsel %vm1830, %v3406, %v2570
      %v3439 = vsel %vm1830, %v3407, %v2572
      %v3440 = vsel %vm1830, %v3408, %v2574
      %v3441 = vsel %vm1830, %v3409, %v2576
      %v3442 = vsel %vm1830, %v3410, %v2578
      %v3443 = vsel %vm1863, %v3411, %v2644
      %v3444 = vsel %vm1863, %v3412, %v2646
      %v3445 = vsel %vm1863, %v3413, %v2648
      %v3446 = vsel %vm1863, %v3414, %v2650
      %v3447 = vsel %vm1863, %v3415, %v2652
      %v3448 = vsel %vm1863, %v3416, %v2654
      %v3449 = vsel %vm1863, %v3417, %v2656
      %v3450 = vsel %vm1863, %v3418, %v2658
      %v3451 = vsel %vm1863, %v3419, %v2660
      %v3452 = vsel %vm1863, %v3420, %v2662
      %v3453 = vsel %vm1863, %v3421, %v2664
      %v3454 = vsel %vm1863, %v3422, %v2666
      %v3455 = vsel %vm1863, %v3423, %v2668
      %v3456 = vsel %vm1863, %v3424, %v2670
      %v3457 = vsel %vm1863, %v3425, %v2672
      %v3458 = vsel %vm1863, %v3426, %v2674
      %v3459 = vsel %vm1863, %v3427, %v2676
      %v3460 = vsel %vm1863, %v3428, %v2678
      %v3461 = vsel %vm1863, %v3429, %v2680
      %v3462 = vsel %vm1863, %v3430, %v2682
      %v3463 = vsel %vm1863, %v3431, %v2684
      %v3464 = vsel %vm1863, %v3432, %v2686
      %v3465 = vsel %vm1863, %v3433, %v2688
      %v3466 = vsel %vm1863, %v3434, %v2690
      %v3467 = vsel %vm1863, %v3435, %v2692
      %v3468 = vsel %vm1863, %v3436, %v2694
      %v3469 = vsel %vm1863, %v3437, %v2696
      %v3470 = vsel %vm1863, %v3438, %v2698
      %v3471 = vsel %vm1863, %v3439, %v2700
      %v3472 = vsel %vm1863, %v3440, %v2702
      %v3473 = vsel %vm1863, %v3441, %v2704
      %v3474 = vsel %vm1863, %v3442, %v2706
      %v3475 = vsel %vm1896, %v3443, %v2772
      %v3476 = vsel %vm1896, %v3444, %v2774
      %v3477 = vsel %vm1896, %v3445, %v2776
      %v3478 = vsel %vm1896, %v3446, %v2778
      %v3479 = vsel %vm1896, %v3447, %v2780
      %v3480 = vsel %vm1896, %v3448, %v2782
      %v3481 = vsel %vm1896, %v3449, %v2784
      %v3482 = vsel %vm1896, %v3450, %v2786
      %v3483 = vsel %vm1896, %v3451, %v2788
      %v3484 = vsel %vm1896, %v3452, %v2790
      %v3485 = vsel %vm1896, %v3453, %v2792
      %v3486 = vsel %vm1896, %v3454, %v2794
      %v3487 = vsel %vm1896, %v3455, %v2796
      %v3488 = vsel %vm1896, %v3456, %v2798
      %v3489 = vsel %vm1896, %v3457, %v2800
      %v3490 = vsel %vm1896, %v3458, %v2802
      %v3491 = vsel %vm1896, %v3459, %v2804
      %v3492 = vsel %vm1896, %v3460, %v2806
      %v3493 = vsel %vm1896, %v3461, %v2808
      %v3494 = vsel %vm1896, %v3462, %v2810
      %v3495 = vsel %vm1896, %v3463, %v2812
      %v3496 = vsel %vm1896, %v3464, %v2814
      %v3497 = vsel %vm1896, %v3465, %v2816
      %v3498 = vsel %vm1896, %v3466, %v2818
      %v3499 = vsel %vm1896, %v3467, %v2820
      %v3500 = vsel %vm1896, %v3468, %v2822
      %v3501 = vsel %vm1896, %v3469, %v2824
      %v3502 = vsel %vm1896, %v3470, %v2826
      %v3503 = vsel %vm1896, %v3471, %v2828
      %v3504 = vsel %vm1896, %v3472, %v2830
      %v3505 = vsel %vm1896, %v3473, %v2832
      %v3506 = vsel %vm1896, %v3474, %v2834
      %v3507 = vsel %vm1929, %v3475, %v2900
      %v3508 = vsel %vm1929, %v3476, %v2902
      %v3509 = vsel %vm1929, %v3477, %v2904
      %v3510 = vsel %vm1929, %v3478, %v2906
      %v3511 = vsel %vm1929, %v3479, %v2908
      %v3512 = vsel %vm1929, %v3480, %v2910
      %v3513 = vsel %vm1929, %v3481, %v2912
      %v3514 = vsel %vm1929, %v3482, %v2914
      %v3515 = vsel %vm1929, %v3483, %v2916
      %v3516 = vsel %vm1929, %v3484, %v2918
      %v3517 = vsel %vm1929, %v3485, %v2920
      %v3518 = vsel %vm1929, %v3486, %v2922
      %v3519 = vsel %vm1929, %v3487, %v2924
      %v3520 = vsel %vm1929, %v3488, %v2926
      %v3521 = vsel %vm1929, %v3489, %v2928
      %v3522 = vsel %vm1929, %v3490, %v2930
      %v3523 = vsel %vm1929, %v3491, %v2932
      %v3524 = vsel %vm1929, %v3492, %v2934
      %v3525 = vsel %vm1929, %v3493, %v2936
      %v3526 = vsel %vm1929, %v3494, %v2938
      %v3527 = vsel %vm1929, %v3495, %v2940
      %v3528 = vsel %vm1929, %v3496, %v2942
      %v3529 = vsel %vm1929, %v3497, %v2944
      %v3530 = vsel %vm1929, %v3498, %v2946
      %v3531 = vsel %vm1929, %v3499, %v2948
      %v3532 = vsel %vm1929, %v3500, %v2950
      %v3533 = vsel %vm1929, %v3501, %v2952
      %v3534 = vsel %vm1929, %v3502, %v2954
      %v3535 = vsel %vm1929, %v3503, %v2956
      %v3536 = vsel %vm1929, %v3504, %v2958
      %v3537 = vsel %vm1929, %v3505, %v2960
      %v3538 = vsel %vm1929, %v3506, %v2962
      %v3539 = vsel %vm1962, %v3507, %v3028
      %v3540 = vsel %vm1962, %v3508, %v3030
      %v3541 = vsel %vm1962, %v3509, %v3032
      %v3542 = vsel %vm1962, %v3510, %v3034
      %v3543 = vsel %vm1962, %v3511, %v3036
      %v3544 = vsel %vm1962, %v3512, %v3038
      %v3545 = vsel %vm1962, %v3513, %v3040
      %v3546 = vsel %vm1962, %v3514, %v3042
      %v3547 = vsel %vm1962, %v3515, %v3044
      %v3548 = vsel %vm1962, %v3516, %v3046
      %v3549 = vsel %vm1962, %v3517, %v3048
      %v3550 = vsel %vm1962, %v3518, %v3050
      %v3551 = vsel %vm1962, %v3519, %v3052
      %v3552 = vsel %vm1962, %v3520, %v3054
      %v3553 = vsel %vm1962, %v3521, %v3056
      %v3554 = vsel %vm1962, %v3522, %v3058
      %v3555 = vsel %vm1962, %v3523, %v3060
      %v3556 = vsel %vm1962, %v3524, %v3062
      %v3557 = vsel %vm1962, %v3525, %v3064
      %v3558 = vsel %vm1962, %v3526, %v3066
      %v3559 = vsel %vm1962, %v3527, %v3068
      %v3560 = vsel %vm1962, %v3528, %v3070
      %v3561 = vsel %vm1962, %v3529, %v3072
      %v3562 = vsel %vm1962, %v3530, %v3074
      %v3563 = vsel %vm1962, %v3531, %v3076
      %v3564 = vsel %vm1962, %v3532, %v3078
      %v3565 = vsel %vm1962, %v3533, %v3080
      %v3566 = vsel %vm1962, %v3534, %v3082
      %v3567 = vsel %vm1962, %v3535, %v3084
      %v3568 = vsel %vm1962, %v3536, %v3086
      %v3569 = vsel %vm1962, %v3537, %v3088
      %v3570 = vsel %vm1962, %v3538, %v3090
      %v3571 = vsel %vm1995, %v3539, %v3156
      %v3572 = vsel %vm1995, %v3540, %v3158
      %v3573 = vsel %vm1995, %v3541, %v3160
      %v3574 = vsel %vm1995, %v3542, %v3162
      %v3575 = vsel %vm1995, %v3543, %v3164
      %v3576 = vsel %vm1995, %v3544, %v3166
      %v3577 = vsel %vm1995, %v3545, %v3168
      %v3578 = vsel %vm1995, %v3546, %v3170
      %v3579 = vsel %vm1995, %v3547, %v3172
      %v3580 = vsel %vm1995, %v3548, %v3174
      %v3581 = vsel %vm1995, %v3549, %v3176
      %v3582 = vsel %vm1995, %v3550, %v3178
      %v3583 = vsel %vm1995, %v3551, %v3180
      %v3584 = vsel %vm1995, %v3552, %v3182
      %v3585 = vsel %vm1995, %v3553, %v3184
      %v3586 = vsel %vm1995, %v3554, %v3186
      %v3587 = vsel %vm1995, %v3555, %v3188
      %v3588 = vsel %vm1995, %v3556, %v3190
      %v3589 = vsel %vm1995, %v3557, %v3192
      %v3590 = vsel %vm1995, %v3558, %v3194
      %v3591 = vsel %vm1995, %v3559, %v3196
      %v3592 = vsel %vm1995, %v3560, %v3198
      %v3593 = vsel %vm1995, %v3561, %v3200
      %v3594 = vsel %vm1995, %v3562, %v3202
      %v3595 = vsel %vm1995, %v3563, %v3204
      %v3596 = vsel %vm1995, %v3564, %v3206
      %v3597 = vsel %vm1995, %v3565, %v3208
      %v3598 = vsel %vm1995, %v3566, %v3210
      %v3599 = vsel %vm1995, %v3567, %v3212
      %v3600 = vsel %vm1995, %v3568, %v3214
      %v3601 = vsel %vm1995, %v3569, %v3216
      %v3602 = vsel %vm1995, %v3570, %v3218
      %v3603 = vsel %vm2028, %v3571, %v3284
      %v3604 = vsel %vm2028, %v3572, %v3286
      %v3605 = vsel %vm2028, %v3573, %v3288
      %v3606 = vsel %vm2028, %v3574, %v3290
      %v3607 = vsel %vm2028, %v3575, %v3292
      %v3608 = vsel %vm2028, %v3576, %v3294
      %v3609 = vsel %vm2028, %v3577, %v3296
      %v3610 = vsel %vm2028, %v3578, %v3298
      %v3611 = vsel %vm2028, %v3579, %v3300
      %v3612 = vsel %vm2028, %v3580, %v3302
      %v3613 = vsel %vm2028, %v3581, %v3304
      %v3614 = vsel %vm2028, %v3582, %v3306
      %v3615 = vsel %vm2028, %v3583, %v3308
      %v3616 = vsel %vm2028, %v3584, %v3310
      %v3617 = vsel %vm2028, %v3585, %v3312
      %v3618 = vsel %vm2028, %v3586, %v3314
      %v3619 = vsel %vm2028, %v3587, %v3316
      %v3620 = vsel %vm2028, %v3588, %v3318
      %v3621 = vsel %vm2028, %v3589, %v3320
      %v3622 = vsel %vm2028, %v3590, %v3322
      %v3623 = vsel %vm2028, %v3591, %v3324
      %v3624 = vsel %vm2028, %v3592, %v3326
      %v3625 = vsel %vm2028, %v3593, %v3328
      %v3626 = vsel %vm2028, %v3594, %v3330
      %v3627 = vsel %vm2028, %v3595, %v3332
      %v3628 = vsel %vm2028, %v3596, %v3334
      %v3629 = vsel %vm2028, %v3597, %v3336
      %v3630 = vsel %vm2028, %v3598, %v3338
      %v3631 = vsel %vm2028, %v3599, %v3340
      %v3632 = vsel %vm2028, %v3600, %v3342
      %v3633 = vsel %vm2028, %v3601, %v3344
      %v3634 = vsel %vm2028, %v3602, %v3346
      %v3635 = vld [vmem:[%s3] sm:$0xff]
      %v3636 = vld [vmem:[%s3 + $0x8] sm:$0xff]
      %v3637 = vld [vmem:[%s3 + $0x10] sm:$0xff]
      %v3638 = vld [vmem:[%s3 + $0x18] sm:$0xff]
      %v3639 = vld [vmem:[%s3 + $0x20] sm:$0xf]
      %vm3640 = vcmask 293888
      %v3642 = vsel %vm3640, %v3603, 0
      %v3645 = vsel %vm3640, %v3604, 0
      %v3648 = vsel %vm3640, %v3605, 0
      %v3651 = vsel %vm3640, %v3606, 0
      %v3654 = vsel %vm3640, %v3607, 0
      %v3657 = vsel %vm3640, %v3608, 0
      %v3660 = vsel %vm3640, %v3609, 0
      %v3663 = vsel %vm3640, %v3610, 0
      %v3666 = vsel %vm3640, %v3611, 0
      %v3669 = vsel %vm3640, %v3612, 0
      %v3672 = vsel %vm3640, %v3613, 0
      %v3675 = vsel %vm3640, %v3614, 0
      %v3678 = vsel %vm3640, %v3615, 0
      %v3681 = vsel %vm3640, %v3616, 0
      %v3684 = vsel %vm3640, %v3617, 0
      %v3687 = vsel %vm3640, %v3618, 0
      %v3690 = vsel %vm3640, %v3619, 0
      %v3693 = vsel %vm3640, %v3620, 0
      %v3696 = vsel %vm3640, %v3621, 0
      %v3699 = vsel %vm3640, %v3622, 0
      %v3702 = vsel %vm3640, %v3623, 0
      %v3705 = vsel %vm3640, %v3624, 0
      %v3708 = vsel %vm3640, %v3625, 0
      %v3711 = vsel %vm3640, %v3626, 0
      %v3714 = vsel %vm3640, %v3627, 0
      %v3717 = vsel %vm3640, %v3628, 0
      %v3720 = vsel %vm3640, %v3629, 0
      %v3723 = vsel %vm3640, %v3630, 0
      %v3726 = vsel %vm3640, %v3631, 0
      %v3729 = vsel %vm3640, %v3632, 0
      %v3732 = vsel %vm3640, %v3633, 0
      %v3735 = vsel %vm3640, %v3634, 0
      %vm3737 = vcmask 1043456
      %v3739 = vsel %vm3737, %v3639, 0
      %3741 = vmatprep.subr.mxu0 0.0
      %3742 = vmatpush1.msra.mxu0 %v3635
      %3743 = vmatprep.subr.mxu0 0.0
      %3744 = vmatpush1.msra.mxu0 %v3636
      %3745 = vmatprep.subr.mxu0 0.0
      %3746 = vmatpush1.msra.mxu0 %v3637
      %3747 = vmatprep.subr.mxu0 0.0
      %3748 = vmatpush1.msra.mxu0 %v3638
      %3749 = vmatprep.subr.mxu0 0.0
      %3750 = vmatpush1.msra.mxu0 %v3739
      %3751 = vmatprep.subr.mxu0 0.0
      %3752 = vmatpush1.msra.mxu0 0.0
      %3753 = vmatprep.subr.mxu0 0.0
      %3754 = vmatpush1.msra.mxu0 0.0
      %3755 = vmatprep.subr.mxu0 0.0
      %3756 = vmatpush1.msra.mxu0 0.0
      %3757 = vmatprep.subr.mxu0 0.0
      %3758 = vmatpush1.msra.mxu0 0.0
      %3759 = vmatprep.subr.mxu0 0.0
      %3760 = vmatpush1.msra.mxu0 0.0
      %3761 = vmatprep.subr.mxu0 0.0
      %3762 = vmatpush1.msra.mxu0 0.0
      %3763 = vmatprep.subr.mxu0 0.0
      %3764 = vmatpush1.msra.mxu0 0.0
      %3765 = vmatprep.subr.mxu0 0.0
      %3766 = vmatpush1.msra.mxu0 0.0
      %3767 = vmatprep.subr.mxu0 0.0
      %3768 = vmatpush1.msra.mxu0 0.0
      %3769 = vmatprep.subr.mxu0 0.0
      %3770 = vmatpush1.msra.mxu0 0.0
      %3771 = vmatprep.subr.mxu0 0.0
      %3772 = vmatpush1.msra.mxu0 0.0
      %3773 = vmatprep.subr.mxu0 0.0
      %3774 = vmatpush1.msra.mxu0 0.0
      %3775 = vmatprep.subr.mxu0 0.0
      %3776 = vmatpush1.msra.mxu0 0.0
      %3777 = vmatprep.subr.mxu0 0.0
      %3778 = vmatpush1.msra.mxu0 0.0
      %3779 = vmatprep.subr.mxu0 0.0
      %3780 = vmatpush1.msra.mxu0 0.0
      %3781 = vmatprep.subr.mxu0 0.0
      %3782 = vmatpush1.msra.mxu0 0.0
      %3783 = vmatprep.subr.mxu0 0.0
      %3784 = vmatpush1.msra.mxu0 0.0
      %3785 = vmatprep.subr.mxu0 0.0
      %3786 = vmatpush1.msra.mxu0 0.0
      %3787 = vmatprep.subr.mxu0 0.0
      %3788 = vmatpush1.msra.mxu0 0.0
      %3789 = vmatprep.subr.mxu0 0.0
      %3790 = vmatpush1.msra.mxu0 0.0
      %3791 = vmatprep.subr.mxu0 0.0
      %3792 = vmatpush1.msra.mxu0 0.0
      %3793 = vmatprep.subr.mxu0 0.0
      %3794 = vmatpush1.msra.mxu0 0.0
      %3795 = vmatprep.subr.mxu0 0.0
      %3796 = vmatpush1.msra.mxu0 0.0
      %3797 = vmatprep.subr.mxu0 0.0
      %3798 = vmatpush1.msra.mxu0 0.0
      %3799 = vmatprep.subr.mxu0 0.0
      %3800 = vmatpush1.msra.mxu0 0.0
      %3801 = vmatprep.subr.mxu0 0.0
      %3802 = vmatpush1.msra.mxu0 0.0
      %3803 = vmatprep.subr.mxu0 0.0
      %3804 = vmatpush1.msra.mxu0 0.0
      %3805 = vmatprep.mubr.f32.mxu0 0.0
      %3806 = vmatmul.mubr.f32.gmra.mrb[0].mxu0 %v3642
      %v3807 = vpop.f32.mrb[0].mxu0
      %v3808 = vadd.f32 0.0, %v3807
      %v3809 = vpop.f32.mrb[0].mxu0
      %3810 = vmatprep.mubr.f32.mxu0 0.0
      %3811 = vmatmul.mubr.f32.gmra.mrb[0].mxu0 %v3645
      %v3812 = vpop.f32.mrb[0].mxu0
      %v3813 = vadd.f32 0.0, %v3812
      %v3814 = vpop.f32.mrb[0].mxu0
      %3815 = vmatprep.mubr.f32.mxu0 0.0
      %3816 = vmatmul.mubr.f32.gmra.mrb[0].mxu0 %v3648
      %v3817 = vpop.f32.mrb[0].mxu0
      %v3818 = vadd.f32 0.0, %v3817
      %v3819 = vpop.f32.mrb[0].mxu0
      %3820 = vmatprep.mubr.f32.mxu0 0.0
      %3821 = vmatmul.mubr.f32.gmra.mrb[0].mxu0 %v3651
      %v3822 = vpop.f32.mrb[0].mxu0
      %v3823 = vadd.f32 0.0, %v3822
      %v3824 = vpop.f32.mrb[0].mxu0
      %3825 = vmatprep.mubr.f32.mxu0 0.0
      %3826 = vmatmul.mubr.f32.gmra.mrb[0].mxu0 %v3654
      %v3827 = vpop.f32.mrb[0].mxu0
      %v3828 = vadd.f32 0.0, %v3827
      %v3829 = vpop.f32.mrb[0].mxu0
      %3830 = vmatprep.mubr.f32.mxu0 0.0
      %3831 = vmatmul.mubr.f32.gmra.mrb[0].mxu0 %v3657
      %v3832 = vpop.f32.mrb[0].mxu0
      %v3833 = vadd.f32 0.0, %v3832
      %v3834 = vpop.f32.mrb[0].mxu0
      %3835 = vmatprep.mubr.f32.mxu0 0.0
      %3836 = vmatmul.mubr.f32.gmra.mrb[0].mxu0 %v3660
      %v3837 = vpop.f32.mrb[0].mxu0
      %v3838 = vadd.f32 0.0, %v3837
      %v3839 = vpop.f32.mrb[0].mxu0
      %3840 = vmatprep.mubr.f32.mxu0 0.0
      %3841 = vmatmul.mubr.f32.gmra.mrb[0].mxu0 %v3663
      %v3842 = vpop.f32.mrb[0].mxu0
      %v3843 = vadd.f32 0.0, %v3842
      %v3844 = vpop.f32.mrb[0].mxu0
      %3845 = vmatprep.mubr.f32.mxu0 0.0
      %3846 = vmatmul.mubr.f32.gmra.mrb[0].mxu0 %v3666
      %v3847 = vpop.f32.mrb[0].mxu0
      %v3848 = vadd.f32 0.0, %v3847
      %v3849 = vpop.f32.mrb[0].mxu0
      %3850 = vmatprep.mubr.f32.mxu0 0.0
      %3851 = vmatmul.mubr.f32.gmra.mrb[0].mxu0 %v3669
      %v3852 = vpop.f32.mrb[0].mxu0
      %v3853 = vadd.f32 0.0, %v3852
      %v3854 = vpop.f32.mrb[0].mxu0
      %3855 = vmatprep.mubr.f32.mxu0 0.0
      %3856 = vmatmul.mubr.f32.gmra.mrb[0].mxu0 %v3672
      %v3857 = vpop.f32.mrb[0].mxu0
      %v3858 = vadd.f32 0.0, %v3857
      %v3859 = vpop.f32.mrb[0].mxu0
      %3860 = vmatprep.mubr.f32.mxu0 0.0
      %3861 = vmatmul.mubr.f32.gmra.mrb[0].mxu0 %v3675
      %v3862 = vpop.f32.mrb[0].mxu0
      %v3863 = vadd.f32 0.0, %v3862
      %v3864 = vpop.f32.mrb[0].mxu0
      %3865 = vmatprep.mubr.f32.mxu0 0.0
      %3866 = vmatmul.mubr.f32.gmra.mrb[0].mxu0 %v3678
      %v3867 = vpop.f32.mrb[0].mxu0
      %v3868 = vadd.f32 0.0, %v3867
      %v3869 = vpop.f32.mrb[0].mxu0
      %3870 = vmatprep.mubr.f32.mxu0 0.0
      %3871 = vmatmul.mubr.f32.gmra.mrb[0].mxu0 %v3681
      %v3872 = vpop.f32.mrb[0].mxu0
      %v3873 = vadd.f32 0.0, %v3872
      %v3874 = vpop.f32.mrb[0].mxu0
      %3875 = vmatprep.mubr.f32.mxu0 0.0
      %3876 = vmatmul.mubr.f32.gmra.mrb[0].mxu0 %v3684
      %v3877 = vpop.f32.mrb[0].mxu0
      %v3878 = vadd.f32 0.0, %v3877
      %v3879 = vpop.f32.mrb[0].mxu0
      %3880 = vmatprep.mubr.f32.mxu0 0.0
      %3881 = vmatmul.mubr.f32.gmra.mrb[0].mxu0 %v3687
      %v3882 = vpop.f32.mrb[0].mxu0
      %v3883 = vadd.f32 0.0, %v3882
      %v3884 = vpop.f32.mrb[0].mxu0
      %3885 = vmatprep.mubr.f32.mxu0 0.0
      %3886 = vmatmul.mubr.f32.gmra.mrb[0].mxu0 %v3690
      %v3887 = vpop.f32.mrb[0].mxu0
      %v3888 = vadd.f32 0.0, %v3887
      %v3889 = vpop.f32.mrb[0].mxu0
      %3890 = vmatprep.mubr.f32.mxu0 0.0
      %3891 = vmatmul.mubr.f32.gmra.mrb[0].mxu0 %v3693
      %v3892 = vpop.f32.mrb[0].mxu0
      %v3893 = vadd.f32 0.0, %v3892
      %v3894 = vpop.f32.mrb[0].mxu0
      %3895 = vmatprep.mubr.f32.mxu0 0.0
      %3896 = vmatmul.mubr.f32.gmra.mrb[0].mxu0 %v3696
      %v3897 = vpop.f32.mrb[0].mxu0
      %v3898 = vadd.f32 0.0, %v3897
      %v3899 = vpop.f32.mrb[0].mxu0
      %3900 = vmatprep.mubr.f32.mxu0 0.0
      %3901 = vmatmul.mubr.f32.gmra.mrb[0].mxu0 %v3699
      %v3902 = vpop.f32.mrb[0].mxu0
      %v3903 = vadd.f32 0.0, %v3902
      %v3904 = vpop.f32.mrb[0].mxu0
      %3905 = vmatprep.mubr.f32.mxu0 0.0
      %3906 = vmatmul.mubr.f32.gmra.mrb[0].mxu0 %v3702
      %v3907 = vpop.f32.mrb[0].mxu0
      %v3908 = vadd.f32 0.0, %v3907
      %v3909 = vpop.f32.mrb[0].mxu0
      %3910 = vmatprep.mubr.f32.mxu0 0.0
      %3911 = vmatmul.mubr.f32.gmra.mrb[0].mxu0 %v3705
      %v3912 = vpop.f32.mrb[0].mxu0
      %v3913 = vadd.f32 0.0, %v3912
      %v3914 = vpop.f32.mrb[0].mxu0
      %3915 = vmatprep.mubr.f32.mxu0 0.0
      %3916 = vmatmul.mubr.f32.gmra.mrb[0].mxu0 %v3708
      %v3917 = vpop.f32.mrb[0].mxu0
      %v3918 = vadd.f32 0.0, %v3917
      %v3919 = vpop.f32.mrb[0].mxu0
      %3920 = vmatprep.mubr.f32.mxu0 0.0
      %3921 = vmatmul.mubr.f32.gmra.mrb[0].mxu0 %v3711
      %v3922 = vpop.f32.mrb[0].mxu0
      %v3923 = vadd.f32 0.0, %v3922
      %v3924 = vpop.f32.mrb[0].mxu0
      %3925 = vmatprep.mubr.f32.mxu0 0.0
      %3926 = vmatmul.mubr.f32.gmra.mrb[0].mxu0 %v3714
      %v3927 = vpop.f32.mrb[0].mxu0
      %v3928 = vadd.f32 0.0, %v3927
      %v3929 = vpop.f32.mrb[0].mxu0
      %3930 = vmatprep.mubr.f32.mxu0 0.0
      %3931 = vmatmul.mubr.f32.gmra.mrb[0].mxu0 %v3717
      %v3932 = vpop.f32.mrb[0].mxu0
      %v3933 = vadd.f32 0.0, %v3932
      %v3934 = vpop.f32.mrb[0].mxu0
      %3935 = vmatprep.mubr.f32.mxu0 0.0
      %3936 = vmatmul.mubr.f32.gmra.mrb[0].mxu0 %v3720
      %v3937 = vpop.f32.mrb[0].mxu0
      %v3938 = vadd.f32 0.0, %v3937
      %v3939 = vpop.f32.mrb[0].mxu0
      %3940 = vmatprep.mubr.f32.mxu0 0.0
      %3941 = vmatmul.mubr.f32.gmra.mrb[0].mxu0 %v3723
      %v3942 = vpop.f32.mrb[0].mxu0
      %v3943 = vadd.f32 0.0, %v3942
      %v3944 = vpop.f32.mrb[0].mxu0
      %3945 = vmatprep.mubr.f32.mxu0 0.0
      %3946 = vmatmul.mubr.f32.gmra.mrb[0].mxu0 %v3726
      %v3947 = vpop.f32.mrb[0].mxu0
      %v3948 = vadd.f32 0.0, %v3947
      %v3949 = vpop.f32.mrb[0].mxu0
      %3950 = vmatprep.mubr.f32.mxu0 0.0
      %3951 = vmatmul.mubr.f32.gmra.mrb[0].mxu0 %v3729
      %v3952 = vpop.f32.mrb[0].mxu0
      %v3953 = vadd.f32 0.0, %v3952
      %v3954 = vpop.f32.mrb[0].mxu0
      %3955 = vmatprep.mubr.f32.mxu0 0.0
      %3956 = vmatmul.mubr.f32.gmra.mrb[0].mxu0 %v3732
      %v3957 = vpop.f32.mrb[0].mxu0
      %v3958 = vadd.f32 0.0, %v3957
      %v3959 = vpop.f32.mrb[0].mxu0
      %3960 = vmatprep.mubr.f32.mxu0 0.0
      %3961 = vmatmul.mubr.f32.gmra.mrb[0].mxu0 %v3735
      %v3962 = vpop.f32.mrb[0].mxu0
      %v3963 = vadd.f32 0.0, %v3962
      %v3964 = vpop.f32.mrb[0].mxu0
      %3965 = vdwg.mxu0
      %v3967 = vsel %vm3640, %v2029, 0
      %v3970 = vsel %vm3640, %v2030, 0
      %v3973 = vsel %vm3640, %v2031, 0
      %v3976 = vsel %vm3640, %v2032, 0
      %v3979 = vsel %vm3640, %v2033, 0
      %v3982 = vsel %vm3640, %v2034, 0
      %v3985 = vsel %vm3640, %v2035, 0
      %v3988 = vsel %vm3640, %v2036, 0
      %v3991 = vsel %vm3640, %v2037, 0
      %v3994 = vsel %vm3640, %v2038, 0
      %v3997 = vsel %vm3640, %v2039, 0
      %v4000 = vsel %vm3640, %v2040, 0
      %v4003 = vsel %vm3640, %v2041, 0
      %v4006 = vsel %vm3640, %v2042, 0
      %v4009 = vsel %vm3640, %v2043, 0
      %v4012 = vsel %vm3640, %v2044, 0
      %v4015 = vsel %vm3640, %v2045, 0
      %v4018 = vsel %vm3640, %v2046, 0
      %v4021 = vsel %vm3640, %v2047, 0
      %v4024 = vsel %vm3640, %v2048, 0
      %v4027 = vsel %vm3640, %v2049, 0
      %v4030 = vsel %vm3640, %v2050, 0
      %v4033 = vsel %vm3640, %v2051, 0
      %v4036 = vsel %vm3640, %v2052, 0
      %v4039 = vsel %vm3640, %v2053, 0
      %v4042 = vsel %vm3640, %v2054, 0
      %v4045 = vsel %vm3640, %v2055, 0
      %v4048 = vsel %vm3640, %v2056, 0
      %v4051 = vsel %vm3640, %v2057, 0
      %v4054 = vsel %vm3640, %v2058, 0
      %v4057 = vsel %vm3640, %v2059, 0
      %v4060 = vsel %vm3640, %v2060, 0
      %v4063 = vsel %vm3737, %v2065, 0
      %4065 = vmatprep.subr.mxu0 0.0
      %4066 = vmatpush1.msra.mxu0 %v2061
      %4067 = vmatprep.subr.mxu0 0.0
      %4068 = vmatpush1.msra.mxu0 %v2062
      %4069 = vmatprep.subr.mxu0 0.0
      %4070 = vmatpush1.msra.mxu0 %v2063
      %4071 = vmatprep.subr.mxu0 0.0
      %4072 = vmatpush1.msra.mxu0 %v2064
      %4073 = vmatprep.subr.mxu0 0.0
      %4074 = vmatpush1.msra.mxu0 %v4063
      %4075 = vmatprep.subr.mxu0 0.0
      %4076 = vmatpush1.msra.mxu0 0.0
      %4077 = vmatprep.subr.mxu0 0.0
      %4078 = vmatpush1.msra.mxu0 0.0
      %4079 = vmatprep.subr.mxu0 0.0
      %4080 = vmatpush1.msra.mxu0 0.0
      %4081 = vmatprep.subr.mxu0 0.0
      %4082 = vmatpush1.msra.mxu0 0.0
      %4083 = vmatprep.subr.mxu0 0.0
      %4084 = vmatpush1.msra.mxu0 0.0
      %4085 = vmatprep.subr.mxu0 0.0
      %4086 = vmatpush1.msra.mxu0 0.0
      %4087 = vmatprep.subr.mxu0 0.0
      %4088 = vmatpush1.msra.mxu0 0.0
      %4089 = vmatprep.subr.mxu0 0.0
      %4090 = vmatpush1.msra.mxu0 0.0
      %4091 = vmatprep.subr.mxu0 0.0
      %4092 = vmatpush1.msra.mxu0 0.0
      %4093 = vmatprep.subr.mxu0 0.0
      %4094 = vmatpush1.msra.mxu0 0.0
      %4095 = vmatprep.subr.mxu0 0.0
      %4096 = vmatpush1.msra.mxu0 0.0
      %4097 = vmatprep.subr.mxu0 0.0
      %4098 = vmatpush1.msra.mxu0 0.0
      %4099 = vmatprep.subr.mxu0 0.0
      %4100 = vmatpush1.msra.mxu0 0.0
      %4101 = vmatprep.subr.mxu0 0.0
      %4102 = vmatpush1.msra.mxu0 0.0
      %4103 = vmatprep.subr.mxu0 0.0
      %4104 = vmatpush1.msra.mxu0 0.0
      %4105 = vmatprep.subr.mxu0 0.0
      %4106 = vmatpush1.msra.mxu0 0.0
      %4107 = vmatprep.subr.mxu0 0.0
      %4108 = vmatpush1.msra.mxu0 0.0
      %4109 = vmatprep.subr.mxu0 0.0
      %4110 = vmatpush1.msra.mxu0 0.0
      %4111 = vmatprep.subr.mxu0 0.0
      %4112 = vmatpush1.msra.mxu0 0.0
      %4113 = vmatprep.subr.mxu0 0.0
      %4114 = vmatpush1.msra.mxu0 0.0
      %4115 = vmatprep.subr.mxu0 0.0
      %4116 = vmatpush1.msra.mxu0 0.0
      %4117 = vmatprep.subr.mxu0 0.0
      %4118 = vmatpush1.msra.mxu0 0.0
      %4119 = vmatprep.subr.mxu0 0.0
      %4120 = vmatpush1.msra.mxu0 0.0
      %4121 = vmatprep.subr.mxu0 0.0
      %4122 = vmatpush1.msra.mxu0 0.0
      %4123 = vmatprep.subr.mxu0 0.0
      %4124 = vmatpush1.msra.mxu0 0.0
      %4125 = vmatprep.subr.mxu0 0.0
      %4126 = vmatpush1.msra.mxu0 0.0
      %4127 = vmatprep.subr.mxu0 0.0
      %4128 = vmatpush1.msra.mxu0 0.0
      %4129 = vmatprep.mubr.f32.mxu0 0.0
      %4130 = vmatmul.mubr.f32.gmra.mrb[0].mxu0 %v3967
      %v4131 = vpop.f32.mrb[0].mxu0
      %v4132 = vadd.f32 %v3808, %v4131
      %v4133 = vpop.f32.mrb[0].mxu0
      %4134 = vmatprep.mubr.f32.mxu0 0.0
      %4135 = vmatmul.mubr.f32.gmra.mrb[0].mxu0 %v3970
      %v4136 = vpop.f32.mrb[0].mxu0
      %v4137 = vadd.f32 %v3813, %v4136
      %v4138 = vpop.f32.mrb[0].mxu0
      %4139 = vmatprep.mubr.f32.mxu0 0.0
      %4140 = vmatmul.mubr.f32.gmra.mrb[0].mxu0 %v3973
      %v4141 = vpop.f32.mrb[0].mxu0
      %v4142 = vadd.f32 %v3818, %v4141
      %v4143 = vpop.f32.mrb[0].mxu0
      %4144 = vmatprep.mubr.f32.mxu0 0.0
      %4145 = vmatmul.mubr.f32.gmra.mrb[0].mxu0 %v3976
      %v4146 = vpop.f32.mrb[0].mxu0
      %v4147 = vadd.f32 %v3823, %v4146
      %v4148 = vpop.f32.mrb[0].mxu0
      %4149 = vmatprep.mubr.f32.mxu0 0.0
      %4150 = vmatmul.mubr.f32.gmra.mrb[0].mxu0 %v3979
      %v4151 = vpop.f32.mrb[0].mxu0
      %v4152 = vadd.f32 %v3828, %v4151
      %v4153 = vpop.f32.mrb[0].mxu0
      %4154 = vmatprep.mubr.f32.mxu0 0.0
      %4155 = vmatmul.mubr.f32.gmra.mrb[0].mxu0 %v3982
      %v4156 = vpop.f32.mrb[0].mxu0
      %v4157 = vadd.f32 %v3833, %v4156
      %v4158 = vpop.f32.mrb[0].mxu0
      %4159 = vmatprep.mubr.f32.mxu0 0.0
      %4160 = vmatmul.mubr.f32.gmra.mrb[0].mxu0 %v3985
      %v4161 = vpop.f32.mrb[0].mxu0
      %v4162 = vadd.f32 %v3838, %v4161
      %v4163 = vpop.f32.mrb[0].mxu0
      %4164 = vmatprep.mubr.f32.mxu0 0.0
      %4165 = vmatmul.mubr.f32.gmra.mrb[0].mxu0 %v3988
      %v4166 = vpop.f32.mrb[0].mxu0
      %v4167 = vadd.f32 %v3843, %v4166
      %v4168 = vpop.f32.mrb[0].mxu0
      %4169 = vmatprep.mubr.f32.mxu0 0.0
      %4170 = vmatmul.mubr.f32.gmra.mrb[0].mxu0 %v3991
      %v4171 = vpop.f32.mrb[0].mxu0
      %v4172 = vadd.f32 %v3848, %v4171
      %v4173 = vpop.f32.mrb[0].mxu0
      %4174 = vmatprep.mubr.f32.mxu0 0.0
      %4175 = vmatmul.mubr.f32.gmra.mrb[0].mxu0 %v3994
      %v4176 = vpop.f32.mrb[0].mxu0
      %v4177 = vadd.f32 %v3853, %v4176
      %v4178 = vpop.f32.mrb[0].mxu0
      %4179 = vmatprep.mubr.f32.mxu0 0.0
      %4180 = vmatmul.mubr.f32.gmra.mrb[0].mxu0 %v3997
      %v4181 = vpop.f32.mrb[0].mxu0
      %v4182 = vadd.f32 %v3858, %v4181
      %v4183 = vpop.f32.mrb[0].mxu0
      %4184 = vmatprep.mubr.f32.mxu0 0.0
      %4185 = vmatmul.mubr.f32.gmra.mrb[0].mxu0 %v4000
      %v4186 = vpop.f32.mrb[0].mxu0
      %v4187 = vadd.f32 %v3863, %v4186
      %v4188 = vpop.f32.mrb[0].mxu0
      %4189 = vmatprep.mubr.f32.mxu0 0.0
      %4190 = vmatmul.mubr.f32.gmra.mrb[0].mxu0 %v4003
      %v4191 = vpop.f32.mrb[0].mxu0
      %v4192 = vadd.f32 %v3868, %v4191
      %v4193 = vpop.f32.mrb[0].mxu0
      %4194 = vmatprep.mubr.f32.mxu0 0.0
      %4195 = vmatmul.mubr.f32.gmra.mrb[0].mxu0 %v4006
      %v4196 = vpop.f32.mrb[0].mxu0
      %v4197 = vadd.f32 %v3873, %v4196
      %v4198 = vpop.f32.mrb[0].mxu0
      %4199 = vmatprep.mubr.f32.mxu0 0.0
      %4200 = vmatmul.mubr.f32.gmra.mrb[0].mxu0 %v4009
      %v4201 = vpop.f32.mrb[0].mxu0
      %v4202 = vadd.f32 %v3878, %v4201
      %v4203 = vpop.f32.mrb[0].mxu0
      %4204 = vmatprep.mubr.f32.mxu0 0.0
      %4205 = vmatmul.mubr.f32.gmra.mrb[0].mxu0 %v4012
      %v4206 = vpop.f32.mrb[0].mxu0
      %v4207 = vadd.f32 %v3883, %v4206
      %v4208 = vpop.f32.mrb[0].mxu0
      %4209 = vmatprep.mubr.f32.mxu0 0.0
      %4210 = vmatmul.mubr.f32.gmra.mrb[0].mxu0 %v4015
      %v4211 = vpop.f32.mrb[0].mxu0
      %v4212 = vadd.f32 %v3888, %v4211
      %v4213 = vpop.f32.mrb[0].mxu0
      %4214 = vmatprep.mubr.f32.mxu0 0.0
      %4215 = vmatmul.mubr.f32.gmra.mrb[0].mxu0 %v4018
      %v4216 = vpop.f32.mrb[0].mxu0
      %v4217 = vadd.f32 %v3893, %v4216
      %v4218 = vpop.f32.mrb[0].mxu0
      %4219 = vmatprep.mubr.f32.mxu0 0.0
      %4220 = vmatmul.mubr.f32.gmra.mrb[0].mxu0 %v4021
      %v4221 = vpop.f32.mrb[0].mxu0
      %v4222 = vadd.f32 %v3898, %v4221
      %v4223 = vpop.f32.mrb[0].mxu0
      %4224 = vmatprep.mubr.f32.mxu0 0.0
      %4225 = vmatmul.mubr.f32.gmra.mrb[0].mxu0 %v4024
      %v4226 = vpop.f32.mrb[0].mxu0
      %v4227 = vadd.f32 %v3903, %v4226
      %v4228 = vpop.f32.mrb[0].mxu0
      %4229 = vmatprep.mubr.f32.mxu0 0.0
      %4230 = vmatmul.mubr.f32.gmra.mrb[0].mxu0 %v4027
      %v4231 = vpop.f32.mrb[0].mxu0
      %v4232 = vadd.f32 %v3908, %v4231
      %v4233 = vpop.f32.mrb[0].mxu0
      %4234 = vmatprep.mubr.f32.mxu0 0.0
      %4235 = vmatmul.mubr.f32.gmra.mrb[0].mxu0 %v4030
      %v4236 = vpop.f32.mrb[0].mxu0
      %v4237 = vadd.f32 %v3913, %v4236
      %v4238 = vpop.f32.mrb[0].mxu0
      %4239 = vmatprep.mubr.f32.mxu0 0.0
      %4240 = vmatmul.mubr.f32.gmra.mrb[0].mxu0 %v4033
      %v4241 = vpop.f32.mrb[0].mxu0
      %v4242 = vadd.f32 %v3918, %v4241
      %v4243 = vpop.f32.mrb[0].mxu0
      %4244 = vmatprep.mubr.f32.mxu0 0.0
      %4245 = vmatmul.mubr.f32.gmra.mrb[0].mxu0 %v4036
      %v4246 = vpop.f32.mrb[0].mxu0
      %v4247 = vadd.f32 %v3923, %v4246
      %v4248 = vpop.f32.mrb[0].mxu0
      %4249 = vmatprep.mubr.f32.mxu0 0.0
      %4250 = vmatmul.mubr.f32.gmra.mrb[0].mxu0 %v4039
      %v4251 = vpop.f32.mrb[0].mxu0
      %v4252 = vadd.f32 %v3928, %v4251
      %v4253 = vpop.f32.mrb[0].mxu0
      %4254 = vmatprep.mubr.f32.mxu0 0.0
      %4255 = vmatmul.mubr.f32.gmra.mrb[0].mxu0 %v4042
      %v4256 = vpop.f32.mrb[0].mxu0
      %v4257 = vadd.f32 %v3933, %v4256
      %v4258 = vpop.f32.mrb[0].mxu0
      %4259 = vmatprep.mubr.f32.mxu0 0.0
      %4260 = vmatmul.mubr.f32.gmra.mrb[0].mxu0 %v4045
      %v4261 = vpop.f32.mrb[0].mxu0
      %v4262 = vadd.f32 %v3938, %v4261
      %v4263 = vpop.f32.mrb[0].mxu0
      %4264 = vmatprep.mubr.f32.mxu0 0.0
      %4265 = vmatmul.mubr.f32.gmra.mrb[0].mxu0 %v4048
      %v4266 = vpop.f32.mrb[0].mxu0
      %v4267 = vadd.f32 %v3943, %v4266
      %v4268 = vpop.f32.mrb[0].mxu0
      %4269 = vmatprep.mubr.f32.mxu0 0.0
      %4270 = vmatmul.mubr.f32.gmra.mrb[0].mxu0 %v4051
      %v4271 = vpop.f32.mrb[0].mxu0
      %v4272 = vadd.f32 %v3948, %v4271
      %v4273 = vpop.f32.mrb[0].mxu0
      %4274 = vmatprep.mubr.f32.mxu0 0.0
      %4275 = vmatmul.mubr.f32.gmra.mrb[0].mxu0 %v4054
      %v4276 = vpop.f32.mrb[0].mxu0
      %v4277 = vadd.f32 %v3953, %v4276
      %v4278 = vpop.f32.mrb[0].mxu0
      %4279 = vmatprep.mubr.f32.mxu0 0.0
      %4280 = vmatmul.mubr.f32.gmra.mrb[0].mxu0 %v4057
      %v4281 = vpop.f32.mrb[0].mxu0
      %v4282 = vadd.f32 %v3958, %v4281
      %v4283 = vpop.f32.mrb[0].mxu0
      %4284 = vmatprep.mubr.f32.mxu0 0.0
      %4285 = vmatmul.mubr.f32.gmra.mrb[0].mxu0 %v4060
      %v4286 = vpop.f32.mrb[0].mxu0
      %v4287 = vadd.f32 %v3963, %v4286
      %v4288 = vpop.f32.mrb[0].mxu0
      %4289 = vdwg.mxu0
      %v4290 = vld [vmem:[%s4] sm:$0x1]
      %v4292 = vlaneseq
      %v4293 = vshrl.u32 %v4292, 7
      %v4294 = vsub.s32 0, %v4293
      %v4295 = vrot.slane %v4290, %v4294
      %v4297 = vadd.f32 %v4132, %v4295
      %v4298 = vadd.f32 %v4137, %v4295
      %v4299 = vadd.f32 %v4142, %v4295
      %v4300 = vadd.f32 %v4147, %v4295
      %v4301 = vadd.f32 %v4152, %v4295
      %v4302 = vadd.f32 %v4157, %v4295
      %v4303 = vadd.f32 %v4162, %v4295
      %v4304 = vadd.f32 %v4167, %v4295
      %v4305 = vadd.f32 %v4172, %v4295
      %v4306 = vadd.f32 %v4177, %v4295
      %v4307 = vadd.f32 %v4182, %v4295
      %v4308 = vadd.f32 %v4187, %v4295
      %v4309 = vadd.f32 %v4192, %v4295
      %v4310 = vadd.f32 %v4197, %v4295
      %v4311 = vadd.f32 %v4202, %v4295
      %v4312 = vadd.f32 %v4207, %v4295
      %v4313 = vadd.f32 %v4212, %v4295
      %v4314 = vadd.f32 %v4217, %v4295
      %v4315 = vadd.f32 %v4222, %v4295
      %v4316 = vadd.f32 %v4227, %v4295
      %v4317 = vadd.f32 %v4232, %v4295
      %v4318 = vadd.f32 %v4237, %v4295
      %v4319 = vadd.f32 %v4242, %v4295
      %v4320 = vadd.f32 %v4247, %v4295
      %v4321 = vadd.f32 %v4252, %v4295
      %v4322 = vadd.f32 %v4257, %v4295
      %v4323 = vadd.f32 %v4262, %v4295
      %v4324 = vadd.f32 %v4267, %v4295
      %v4325 = vadd.f32 %v4272, %v4295
      %v4326 = vadd.f32 %v4277, %v4295
      %v4327 = vadd.f32 %v4282, %v4295
      %v4328 = vadd.f32 %v4287, %v4295
      %v4329 = vmax.f32 %v4297, 0.0
      %v4330 = vmax.f32 %v4298, 0.0
      %v4331 = vmax.f32 %v4299, 0.0
      %v4332 = vmax.f32 %v4300, 0.0
      %v4333 = vmax.f32 %v4301, 0.0
      %v4334 = vmax.f32 %v4302, 0.0
      %v4335 = vmax.f32 %v4303, 0.0
      %v4336 = vmax.f32 %v4304, 0.0
      %v4337 = vmax.f32 %v4305, 0.0
      %v4338 = vmax.f32 %v4306, 0.0
      %v4339 = vmax.f32 %v4307, 0.0
      %v4340 = vmax.f32 %v4308, 0.0
      %v4341 = vmax.f32 %v4309, 0.0
      %v4342 = vmax.f32 %v4310, 0.0
      %v4343 = vmax.f32 %v4311, 0.0
      %v4344 = vmax.f32 %v4312, 0.0
      %v4345 = vmax.f32 %v4313, 0.0
      %v4346 = vmax.f32 %v4314, 0.0
      %v4347 = vmax.f32 %v4315, 0.0
      %v4348 = vmax.f32 %v4316, 0.0
      %v4349 = vmax.f32 %v4317, 0.0
      %v4350 = vmax.f32 %v4318, 0.0
      %v4351 = vmax.f32 %v4319, 0.0
      %v4352 = vmax.f32 %v4320, 0.0
      %v4353 = vmax.f32 %v4321, 0.0
      %v4354 = vmax.f32 %v4322, 0.0
      %v4355 = vmax.f32 %v4323, 0.0
      %v4356 = vmax.f32 %v4324, 0.0
      %v4357 = vmax.f32 %v4325, 0.0
      %v4358 = vmax.f32 %v4326, 0.0
      %v4359 = vmax.f32 %v4327, 0.0
      %v4360 = vmax.f32 %v4328, 0.0
      %4361 = vst.msk [vmem:[%s244] sm:$0xff] %vm245, %v4329
      %4362 = vst.msk [vmem:[%s244 + $0x8] sm:$0xff] %vm245, %v4330
      %4363 = vst.msk [vmem:[%s244 + $0x10] sm:$0xff] %vm245, %v4331
      %4364 = vst.msk [vmem:[%s244 + $0x18] sm:$0xff] %vm245, %v4332
      %4365 = vst.msk [vmem:[%s244 + $0x20] sm:$0xff] %vm245, %v4333
      %4366 = vst.msk [vmem:[%s244 + $0x28] sm:$0xff] %vm245, %v4334
      %4367 = vst.msk [vmem:[%s244 + $0x30] sm:$0xff] %vm245, %v4335
      %4368 = vst.msk [vmem:[%s244 + $0x38] sm:$0xff] %vm245, %v4336
      %4369 = vst.msk [vmem:[%s244 + $0x40] sm:$0xff] %vm245, %v4337
      %4370 = vst.msk [vmem:[%s244 + $0x48] sm:$0xff] %vm245, %v4338
      %4371 = vst.msk [vmem:[%s244 + $0x50] sm:$0xff] %vm245, %v4339
      %4372 = vst.msk [vmem:[%s244 + $0x58] sm:$0xff] %vm245, %v4340
      %4373 = vst.msk [vmem:[%s244 + $0x60] sm:$0xff] %vm245, %v4341
      %4374 = vst.msk [vmem:[%s244 + $0x68] sm:$0xff] %vm245, %v4342
      %4375 = vst.msk [vmem:[%s244 + $0x70] sm:$0xff] %vm245, %v4343
      %4376 = vst.msk [vmem:[%s244 + $0x78] sm:$0xff] %vm245, %v4344
      %4377 = vst.msk [vmem:[%s244 + $0x80] sm:$0xff] %vm245, %v4345
      %4378 = vst.msk [vmem:[%s244 + $0x88] sm:$0xff] %vm245, %v4346
      %4379 = vst.msk [vmem:[%s244 + $0x90] sm:$0xff] %vm245, %v4347
      %4380 = vst.msk [vmem:[%s244 + $0x98] sm:$0xff] %vm245, %v4348
      %4381 = vst.msk [vmem:[%s244 + $0xa0] sm:$0xff] %vm245, %v4349
      %4382 = vst.msk [vmem:[%s244 + $0xa8] sm:$0xff] %vm245, %v4350
      %4383 = vst.msk [vmem:[%s244 + $0xb0] sm:$0xff] %vm245, %v4351
      %4384 = vst.msk [vmem:[%s244 + $0xb8] sm:$0xff] %vm245, %v4352
      %4385 = vst.msk [vmem:[%s244 + $0xc0] sm:$0xff] %vm245, %v4353
      %4386 = vst.msk [vmem:[%s244 + $0xc8] sm:$0xff] %vm245, %v4354
      %4387 = vst.msk [vmem:[%s244 + $0xd0] sm:$0xff] %vm245, %v4355
      %4388 = vst.msk [vmem:[%s244 + $0xd8] sm:$0xff] %vm245, %v4356
      %4389 = vst.msk [vmem:[%s244 + $0xe0] sm:$0xff] %vm245, %v4357
      %4390 = vst.msk [vmem:[%s244 + $0xe8] sm:$0xff] %vm245, %v4358
      %4391 = vst.msk [vmem:[%s244 + $0xf0] sm:$0xff] %vm245, %v4359
      %4392 = vst.msk [vmem:[%s244 + $0xf8] sm:$0xff] %vm245, %v4360
      %p4393 = scmp.lt.s32.totalorder %s16, 1
      %s4394 = scalar_select %p4393, %s16, 1
      %s4395 = smul.addr %s4394, 32
      %s4396 = smul.addr %s4395, 8
      %s4397 = scalar_lea.vmem %s5, %s4396
      // Predicated region
      $region41: #{upconv_forward.4} parent=39 // pred_check
        %p4398 = pneg %p149
      $region42: #{upconv_forward.4} parent=39 // pred_check_branch
        %4400 = sbr.rel (%p4398) target = $region44
      $region43: #{upconv_forward.4} parent=39 // pred_region
        _
      $region44: #{upconv_forward.4} parent=39 // pred_fallthru
        _
    $region40: #{upconv_forward.4} parent=5 // pred_fallthru
      _
    %p4401 = scmp.le.s32.totalorder 2, %s11
    // Predicated region
    $region45: #{upconv_forward.4} parent=5 // pred_check
      %p4402 = pneg %p4401
    $region46: #{upconv_forward.4} parent=5 // pred_check_branch
      %4404 = sbr.rel (%p4402) target = $region48
    $region47: #{upconv_forward.4} parent=5 // pred_region
      %s4405 = ssub.s32 %s11, 2
      // Predicated region
      $region49: #{upconv_forward.4} parent=47 // pred_check
        %p4406 = pneg %p155
      $region50: #{upconv_forward.4} parent=47 // pred_check_branch
        %4408 = sbr.rel (%p4406) target = $region52
      $region51: #{upconv_forward.4} parent=47 // pred_region
        %p4409 = scmp.lt.s32.totalorder %s17, 1
        %s4410 = scalar_select %p4409, %s17, 1
        %s4411 = smul.addr %s4410, 32
        %s4412 = smul.addr %s4411, 8
        %s4413 = scalar_lea.vmem %s5, %s4412
      $region52: #{upconv_forward.4} parent=47 // pred_fallthru
        _
    $region48: #{upconv_forward.4} parent=5 // pred_fallthru
      _
  $region6: #{upconv_forward.4} parent=0 // loop_footer
    %s15 = sadd.s32 1, %s11
  $region7: #{upconv_forward.4} parent=0 // loop_footer_branch
    %10 = sbr.rel target = $region3
  $region8: #{upconv_forward.4} parent=0 // loop_exit
    _

</llo_original>
